<compile_context>
chip_gen: v6e
topology: v6e:2x2x1
jax: 0.10.0
libtpu: 0.0.40
codegen_flags: <defaults>
</compile_context>

<pallas_src>
from collections import namedtuple

import jax
import jax.numpy as jnp
from jax.experimental import pallas as pl
from jax.experimental.pallas import tpu as pltpu

Genotype = namedtuple("Genotype", "normal normal_concat reduce reduce_concat")

GENOTYPE = Genotype(
    normal=[("sep_conv_3x3", 0), ("skip_connect", 1),
            ("sep_conv_3x3", 1), ("skip_connect", 2)],
    normal_concat=[2, 3],
    reduce=[("max_pool_3x3", 0), ("skip_connect", 1),
            ("sep_conv_3x3", 2), ("max_pool_3x3", 1)],
    reduce_concat=[2, 3],
)

_PARALLEL = pltpu.CompilerParams(dimension_semantics=("parallel",))


# ----------------------------------------------------------------------------
# Padded-slab geometry helpers (wrapper-side, cheap XLA glue)
# ----------------------------------------------------------------------------
def _win_geom(h, w):
    """Geometry of a 3x3 / pad-1 stencil at resolution (h, w) on a flat slab."""
    wp = w + 2
    rimg = (h + 2) * wp                 # rows of one padded image
    s = h * wp - 2                      # rows of the computed window
    offs = tuple(dy * wp + dx for dy in range(3) for dx in range(3))
    return wp, rimg, s, offs


def _pad_slab(x_nhwc, pad_value):
    n, h, w, c = x_nhwc.shape
    xp = jnp.pad(x_nhwc, ((0, 0), (1, 1), (1, 1), (0, 0)),
                 constant_values=pad_value)
    return xp.reshape(n, (h + 2) * (w + 2), c)


def _window_to_nhwc(win, h, w):
    """(N, S, C) window rows -> (N, h, w, C) (drops the halo-column rows)."""
    n, s, c = win.shape
    wp = w + 2
    full = jnp.pad(win, ((0, 0), (0, h * wp - s), (0, 0)))
    return full.reshape(n, h, wp, c)[:, :, :w, :]


def _nhwc_to_window(x_nhwc):
    """(N, h, w, C) -> (N, S, C) window rows (halo positions filled with 0)."""
    n, h, w, c = x_nhwc.shape
    wp = w + 2
    xw = jnp.pad(x_nhwc, ((0, 0), (0, 0), (0, 2), (0, 0))).reshape(n, h * wp, c)
    return xw[:, :h * wp - 2, :]


def _interior_mask(h, w):
    wp, _, s, _ = _win_geom(h, w)
    col = jnp.arange(s, dtype=jnp.int32) % wp
    return (col < w).astype(jnp.float32).reshape(s, 1)


# ----------------------------------------------------------------------------
# Pallas kernels
# ----------------------------------------------------------------------------
def pointwise_conv_bn(x_rows, w_bf16, scale, shift, *, relu_in, add_rows=None):
    """(relu(x) @ w) * scale + shift (+ add): 1x1 conv + folded BN, rows=(N,M,Cin)."""
    n, m, cin = x_rows.shape
    cout = w_bf16.shape[1]
    has_add = add_rows is not None

    def kernel(*refs):
        if has_add:
            x_ref, w_ref, s_ref, b_ref, a_ref, o_ref = refs
        else:
            x_ref, w_ref, s_ref, b_ref, o_ref = refs
        xv = x_ref[0]
        if relu_in:
            xv = jnp.maximum(xv, 0.0)
        acc = jnp.dot(xv.astype(jnp.bfloat16), w_ref[...],
                      preferred_element_type=jnp.float32)
        y = acc * s_ref[...] + b_ref[...]
        if has_add:
            y = y + a_ref[0]
        o_ref[0] = y

    in_specs = [pl.BlockSpec((1, m, cin), lambda i: (i, 0, 0)),
                pl.BlockSpec((cin, cout), lambda i: (0, 0)),
                pl.BlockSpec((1, cout), lambda i: (0, 0)),
                pl.BlockSpec((1, cout), lambda i: (0, 0))]
    args = [x_rows, w_bf16, scale, shift]
    if has_add:
        in_specs.append(pl.BlockSpec((1, m, cout), lambda i: (i, 0, 0)))
        args.append(add_rows)

    return pl.pallas_call(
        kernel,
        out_shape=jax.ShapeDtypeStruct((n, m, cout), jnp.float32),
        grid=(n,),
        in_specs=in_specs,
        out_specs=pl.BlockSpec((1, m, cout), lambda i: (i, 0, 0)),
        compiler_params=_PARALLEL,
    )(*args)


def conv3x3_bn(x_nhwc, w_bf16, scale, shift, *, relu_in=False):
    """Full 3x3 conv (pad 1, stride 1) + folded BN; taps read in-kernel."""
    n, h, w, cin = x_nhwc.shape
    cout = w_bf16.shape[1]
    _, rimg, s, offs = _win_geom(h, w)
    xp = _pad_slab(x_nhwc, 0.0)

    def kernel(x_ref, w_ref, s_ref, b_ref, o_ref):
        acc = jnp.zeros((s, cout), jnp.float32)
        for t, off in enumerate(offs):
            tap = x_ref[0, off:off + s, :]
            if relu_in:
                tap = jnp.maximum(tap, 0.0)
            acc = acc + jnp.dot(tap.astype(jnp.bfloat16),
                                w_ref[t * cin:(t + 1) * cin, :],
                                preferred_element_type=jnp.float32)
        o_ref[0] = acc * s_ref[...] + b_ref[...]

    win = pl.pallas_call(
        kernel,
        out_shape=jax.ShapeDtypeStruct((n, s, cout), jnp.float32),
        grid=(n,),
        in_specs=[pl.BlockSpec((1, rimg, cin), lambda i: (i, 0, 0)),
                  pl.BlockSpec((9 * cin, cout), lambda i: (0, 0)),
                  pl.BlockSpec((1, cout), lambda i: (0, 0)),
                  pl.BlockSpec((1, cout), lambda i: (0, 0))],
        out_specs=pl.BlockSpec((1, s, cout), lambda i: (i, 0, 0)),
        compiler_params=_PARALLEL,
    )(xp, w_bf16, scale, shift)
    return _window_to_nhwc(win, h, w)


def sep_conv3x3(x_nhwc, p, add_nhwc=None):
    """Fused SepConv: relu->dw3x3->1x1+BN->relu->dw3x3->1x1+BN (+ fused node add).

    The whole chain runs in one pallas_call; the stage-1 result lives in a
    zero-padded VMEM scratch so stage-2's stencil taps never touch HBM.
    """
    n, h, w, c = x_nhwc.shape
    wp, rimg, s, offs = _win_geom(h, w)
    a0 = wp + 1
    xp = _pad_slab(x_nhwc, 0.0)
    mask = _interior_mask(h, w)
    has_add = add_nhwc is not None
    add_win = _nhwc_to_window(add_nhwc) if has_add else None

    def kernel(*refs):
        if has_add:
            (x_ref, dw1_ref, pw1_ref, s1_ref, b1_ref, dw2_ref, pw2_ref,
             s2_ref, b2_ref, m_ref, a_ref, o_ref, mid_ref) = refs
        else:
            (x_ref, dw1_ref, pw1_ref, s1_ref, b1_ref, dw2_ref, pw2_ref,
             s2_ref, b2_ref, m_ref, o_ref, mid_ref) = refs

        # stage 1: relu -> depthwise 3x3 -> 1x1 conv -> BN, into padded scratch
        acc = jnp.zeros((s, c), jnp.float32)
        for t, off in enumerate(offs):
            tap = jnp.maximum(x_ref[0, off:off + s, :], 0.0)
            acc = acc + tap * dw1_ref[t:t + 1, :]
        y1 = jnp.dot(acc.astype(jnp.bfloat16), pw1_ref[...],
                     preferred_element_type=jnp.float32)
        y1 = (y1 * s1_ref[...] + b1_ref[...]) * m_ref[...]   # zero halo columns
        mid_ref[...] = jnp.zeros_like(mid_ref)
        mid_ref[a0:a0 + s, :] = y1

        # stage 2: relu -> depthwise 3x3 -> 1x1 conv -> BN (+ fused h1+h2 add)
        acc = jnp.zeros((s, c), jnp.float32)
        for t, off in enumerate(offs):
            tap = jnp.maximum(mid_ref[off:off + s, :], 0.0)
            acc = acc + tap * dw2_ref[t:t + 1, :]
        y2 = jnp.dot(acc.astype(jnp.bfloat16), pw2_ref[...],
                     preferred_element_type=jnp.float32)
        y2 = y2 * s2_ref[...] + b2_ref[...]
        if has_add:
            y2 = y2 + a_ref[0]
        o_ref[0] = y2

    in_specs = [pl.BlockSpec((1, rimg, c), lambda i: (i, 0, 0)),
                pl.BlockSpec((9, c), lambda i: (0, 0)),
                pl.BlockSpec((c, c), lambda i: (0, 0)),
                pl.BlockSpec((1, c), lambda i: (0, 0)),
                pl.BlockSpec((1, c), lambda i: (0, 0)),
                pl.BlockSpec((9, c), lambda i: (0, 0)),
                pl.BlockSpec((c, c), lambda i: (0, 0)),
                pl.BlockSpec((1, c), lambda i: (0, 0)),
                pl.BlockSpec((1, c), lambda i: (0, 0)),
                pl.BlockSpec((s, 1), lambda i: (0, 0))]
    args = [xp, p["dw1"], p["pw1"], p["s1"], p["b1"],
            p["dw2"], p["pw2"], p["s2"], p["b2"], mask]
    if has_add:
        in_specs.append(pl.BlockSpec((1, s, c), lambda i: (i, 0, 0)))
        args.append(add_win)

    win = pl.pallas_call(
        kernel,
        out_shape=jax.ShapeDtypeStruct((n, s, c), jnp.float32),
        grid=(n,),
        in_specs=in_specs,
        out_specs=pl.BlockSpec((1, s, c), lambda i: (i, 0, 0)),
        scratch_shapes=[pltpu.VMEM((rimg, c), jnp.float32)],
        compiler_params=_PARALLEL,
    )(*args)
    return _window_to_nhwc(win, h, w)


def max_pool3x3(x_nhwc, stride):
    """MaxPool2d(3, stride, padding=1); stencil taps read in-kernel."""
    n, h, w, c = x_nhwc.shape
    _, rimg, s, offs = _win_geom(h, w)
    xp = _pad_slab(x_nhwc, float("-inf"))

    def kernel(x_ref, o_ref):
        best = x_ref[0, offs[0]:offs[0] + s, :]
        for off in offs[1:]:
            best = jnp.maximum(best, x_ref[0, off:off + s, :])
        o_ref[0] = best

    win = pl.pallas_call(
        kernel,
        out_shape=jax.ShapeDtypeStruct((n, s, c), jnp.float32),
        grid=(n,),
        in_specs=[pl.BlockSpec((1, rimg, c), lambda i: (i, 0, 0))],
        out_specs=pl.BlockSpec((1, s, c), lambda i: (i, 0, 0)),
        compiler_params=_PARALLEL,
    )(xp)
    y = _window_to_nhwc(win, h, w)
    if stride == 2:
        y = y[:, ::2, ::2, :]
    return y


def pool_and_classify(x_nhwc, head_w_bf16, head_b):
    """Fused AdaptiveAvgPool2d(1) + all classifier heads (weights concatenated)."""
    n, h, w, c = x_nhwc.shape
    m = h * w
    tot = head_w_bf16.shape[1]
    x_rows = x_nhwc.reshape(n, m, c)

    def kernel(x_ref, w_ref, b_ref, o_ref):
        pooled = jnp.mean(x_ref[0], axis=0, keepdims=True)
        o_ref[0] = jnp.dot(pooled.astype(jnp.bfloat16), w_ref[...],
                           preferred_element_type=jnp.float32) + b_ref[...]

    out = pl.pallas_call(
        kernel,
        out_shape=jax.ShapeDtypeStruct((n, 1, tot), jnp.float32),
        grid=(n,),
        in_specs=[pl.BlockSpec((1, m, c), lambda i: (i, 0, 0)),
                  pl.BlockSpec((c, tot), lambda i: (0, 0)),
                  pl.BlockSpec((1, tot), lambda i: (0, 0))],
        out_specs=pl.BlockSpec((1, 1, tot), lambda i: (i, 0, 0)),
        compiler_params=_PARALLEL,
    )(x_rows, head_w_bf16, head_b)
    return out.reshape(n, tot)


# ----------------------------------------------------------------------------
# Deterministic parameter construction (mirrors Network.__init__ bookkeeping)
# ----------------------------------------------------------------------------
class _KeyGen:
    def __init__(self, seed):
        self._key = jax.random.PRNGKey(seed)
        self._n = 0

    def __call__(self):
        self._n += 1
        return jax.random.fold_in(self._key, self._n)


def _conv_w(kg, k, cin, cout):           # (k*k*cin, cout) bf16, tap-major rows
    w = 0.1 * jax.random.normal(kg(), (k * k * cin, cout), jnp.float32)
    return w.astype(jnp.bfloat16)


def _dw_w(kg, c):                        # (9, c) depthwise taps, f32
    return 0.1 * jax.random.normal(kg(), (9, c), jnp.float32)


def _bn(kg, c, eps=1e-5):                # inference-mode BN folded to scale/shift
    gamma = 1.0 + 0.1 * jax.random.normal(kg(), (c,), jnp.float32)
    beta = 0.1 * jax.random.normal(kg(), (c,), jnp.float32)
    rmean = 0.1 * jax.random.normal(kg(), (c,), jnp.float32)
    rvar = 1.0 + 0.5 * jax.random.uniform(kg(), (c,), jnp.float32)
    scale = gamma / jnp.sqrt(rvar + eps)
    shift = beta - rmean * scale
    return scale.reshape(1, c), shift.reshape(1, c)


def _make_rcb(kg, cin, cout):            # ReLUConvBN(cin, cout, 1, 1, 0)
    s, b = _bn(kg, cout)
    return {"w": _conv_w(kg, 1, cin, cout), "scale": s, "shift": b}


def _make_frz(kg, cin, cout):            # FactorizedReduce: block-diag merged 1x1s
    half = cout // 2
    w1 = 0.1 * jax.random.normal(kg(), (cin, half), jnp.float32)
    w2 = 0.1 * jax.random.normal(kg(), (cin, half), jnp.float32)
    wb = jnp.zeros((2 * cin, cout), jnp.float32)
    wb = wb.at[:cin, :half].set(w1).at[cin:, half:].set(w2)
    s, b = _bn(kg, cout)
    return {"w": wb.astype(jnp.bfloat16), "scale": s, "shift": b}


def _make_sep(kg, c):                    # SepConv(c, c, 3, stride, 1)
    s1, b1 = _bn(kg, c)
    s2, b2 = _bn(kg, c)
    return {"dw1": _dw_w(kg, c), "pw1": _conv_w(kg, 1, c, c), "s1": s1, "b1": b1,
            "dw2": _dw_w(kg, c), "pw2": _conv_w(kg, 1, c, c), "s2": s2, "b2": b2}


def _make_op(kg, name, c, stride):
    if name == "sep_conv_3x3":
        return _make_sep(kg, c)
    if name == "skip_connect":
        return _make_frz(kg, c, c) if stride == 2 else None
    if name == "max_pool_3x3":
        return None
    raise ValueError(name)


def _make_cell(kg, genotype, cpp, cp, c, reduction, reduction_prev):
    pre0 = ("frz", _make_frz(kg, cpp, c)) if reduction_prev else ("rcb", _make_rcb(kg, cpp, c))
    pre1 = ("rcb", _make_rcb(kg, cp, c))
    if reduction:
        op_names, indices = zip(*genotype.reduce)
        concat = genotype.reduce_concat
    else:
        op_names, indices = zip(*genotype.normal)
        concat = genotype.normal_concat
    ops = []
    for name, index in zip(op_names, indices):
        stride = 2 if reduction and index < 2 else 1
        ops.append((name, stride, _make_op(kg, name, c, stride)))
    return {"pre0": pre0, "pre1": pre1, "ops": ops,
            "indices": indices, "concat": concat, "multiplier": len(concat)}


def make_network_params(seed, input_size, task_classes, cell_nums, init_channel, genotype):
    kg = _KeyGen(seed)
    ncha = input_size[0]
    C = init_channel
    c_curr = 3 * C                          # stem_multiplier = 3
    stem_scale, stem_shift = _bn(kg, c_curr)
    params = {"stem": [{"w": _conv_w(kg, 3, ncha, c_curr),
                        "scale": stem_scale, "shift": stem_shift}]}
    cpp, cp, c_curr = c_curr, c_curr, C
    cells = []
    reduction_prev = False
    for i in range(cell_nums):
        if i in [cell_nums // 3, 2 * cell_nums // 3]:
            c_curr *= 2
            reduction = True
        else:
            reduction = False
        cell = _make_cell(kg, genotype, cpp, cp, c_curr, reduction, reduction_prev)
        reduction_prev = reduction
        cells.append([cell])                # nn.ModuleList([cell]): one candidate per slot
        cpp, cp = cp, cell["multiplier"] * c_curr
    params["cells"] = cells
    heads = []
    for _t, c in task_classes:
        w = 0.1 * jax.random.normal(kg(), (cp, c), jnp.float32)
        b = 0.1 * jax.random.normal(kg(), (c,), jnp.float32)
        heads.append((w, b))
    # fused classifier: all task heads concatenated along the output dim
    params["head_w"] = jnp.concatenate([heads[t][0] for t, _ in task_classes],
                                       axis=1).astype(jnp.bfloat16)
    params["head_b"] = jnp.concatenate([heads[t][1] for t, _ in task_classes],
                                       axis=0).reshape(1, -1)
    params["C_prev"] = cp
    return params


# ----------------------------------------------------------------------------
# Forward pass (semantics of Network.forward with path=[0, ...])
# ----------------------------------------------------------------------------
def _apply_rcb(p, x, add=None):
    n, h, w, cin = x.shape
    cout = p["w"].shape[1]
    add_rows = add.reshape(n, h * w, cout) if add is not None else None
    y = pointwise_conv_bn(x.reshape(n, h * w, cin), p["w"], p["scale"], p["shift"],
                          relu_in=True, add_rows=add_rows)
    return y.reshape(n, h, w, cout)


def _apply_frz(p, x, add=None):
    # FactorizedReduce: relu -> two stride-2 1x1 convs merged into one
    # block-diagonal matmul -> BN.  NOTE: x[:, 1::2, 1::2] matches PyTorch's
    # conv_2(x[:, :, 1:, 1:]) only for even H, W (true for this network).
    n, h, w, cin = x.shape
    cout = p["w"].shape[1]
    ho, wo = h // 2, w // 2
    xcat = jnp.concatenate([x[:, ::2, ::2, :], x[:, 1::2, 1::2, :]],
                           axis=-1).reshape(n, ho * wo, 2 * cin)
    add_rows = add.reshape(n, ho * wo, cout) if add is not None else None
    y = pointwise_conv_bn(xcat, p["w"], p["scale"], p["shift"],
                          relu_in=True, add_rows=add_rows)
    return y.reshape(n, ho, wo, cout)


def _apply_op(name, stride, p, x, add=None):
    if name == "skip_connect":
        if stride == 1:
            return x if add is None else x + add
        return _apply_frz(p, x, add=add)
    if name == "max_pool_3x3":
        assert add is None
        return max_pool3x3(x, stride)
    if name == "sep_conv_3x3":
        # TODO(synk): only stride-1 SepConv is fused into one kernel; a stride-2
        # SepConv (not used by this genotype) would need a strided stage-1 output.
        assert stride == 1
        return sep_conv3x3(x, p, add_nhwc=add)
    raise ValueError(name)


def _op_can_fuse_add(name, stride):
    return name == "sep_conv_3x3" or (name == "skip_connect" and stride == 2)


def _apply_pre(pre, x):
    kind, p = pre
    return _apply_frz(p, x) if kind == "frz" else _apply_rcb(p, x)


def _cell_forward(cell, s0, s1):
    (k0, p0), (k1, p1) = cell["pre0"], cell["pre1"]
    if (s0 is s1) and k0 == "rcb" and k1 == "rcb":
        # Both 1x1 preprocessing convs read the same tensor: pack into one matmul.
        n, h, w, cin = s0.shape
        c = p0["w"].shape[1]
        y = pointwise_conv_bn(
            s0.reshape(n, h * w, cin),
            jnp.concatenate([p0["w"], p1["w"]], axis=1),
            jnp.concatenate([p0["scale"], p1["scale"]], axis=1),
            jnp.concatenate([p0["shift"], p1["shift"]], axis=1),
            relu_in=True).reshape(n, h, w, 2 * c)
        t0, t1 = y[..., :c], y[..., c:]
    else:
        t0 = _apply_pre(cell["pre0"], s0)
        t1 = _apply_pre(cell["pre1"], s1)
    states = [t0, t1]
    ops, idx = cell["ops"], cell["indices"]
    for i in range(len(ops) // 2):
        n1, st1, pp1 = ops[2 * i]
        n2, st2, pp2 = ops[2 * i + 1]
        x1, x2 = states[idx[2 * i]], states[idx[2 * i + 1]]
        # fuse the node sum h1 + h2 into the epilogue of one producing kernel
        if _op_can_fuse_add(n2, st2):
            node = _apply_op(n2, st2, pp2, x2, add=_apply_op(n1, st1, pp1, x1))
        elif _op_can_fuse_add(n1, st1):
            node = _apply_op(n1, st1, pp1, x1, add=_apply_op(n2, st2, pp2, x2))
        else:
            node = _apply_op(n1, st1, pp1, x1) + _apply_op(n2, st2, pp2, x2)
        states.append(node)
    return jnp.concatenate([states[i] for i in cell["concat"]], axis=-1)


def _stem_forward(p, x_nhwc):               # Conv2d(ncha, 3C, 3, padding=1) + BN
    return conv3x3_bn(x_nhwc, p["w"], p["scale"], p["shift"], relu_in=False)


def network_forward(params, x_nchw, task_classes, path):
    x = jnp.transpose(x_nchw, (0, 2, 3, 1)).astype(jnp.float32)   # NCHW -> NHWC
    s0 = s1 = _stem_forward(params["stem"][path[0]], x)
    for i, cell_slot in enumerate(params["cells"]):
        s0, s1 = s1, _cell_forward(cell_slot[path[i + 1]], s0, s1)
    logits_cat = pool_and_classify(s1, params["head_w"], params["head_b"])
    logits, off = [], 0
    for _t, c in task_classes:
        logits.append(logits_cat[:, off:off + c])
        off += c
    return logits


# ----------------------------------------------------------------------------
if __name__ == "__main__":
    batch, ncha, hw = 2, 3, 16
    input_size = (ncha, hw, hw)
    task_classes = [(0, 5), (1, 3)]
    cell_nums = 2
    init_channel = 4

    params = make_network_params(42, input_size, task_classes, cell_nums,
                                 init_channel, GENOTYPE)

    key = jax.random.PRNGKey(0)
    x = jax.random.normal(key, (batch, ncha, hw, hw), jnp.float32)  # NCHW input
    path = [0] * (cell_nums + 1)

    fwd = jax.jit(lambda inp: network_forward(params, inp, task_classes, path))
    logits = fwd(x)
    for l in logits:
        jax.block_until_ready(l)

    assert logits[0].shape == (batch, 5) and logits[1].shape == (batch, 3)
    assert all(bool(jnp.all(jnp.isfinite(l))) for l in logits)
    print("KERNEL_OK")
</pallas_src>

<mosaic_0001>
module attributes {stable_mosaic.version = 11 : i64} {
  func.func @kernel(%arg0: i32, %arg1: memref<1x324x3xf32, #tpu.memory_space<vmem>>, %arg2: memref<27x12xbf16, #tpu.memory_space<vmem>>, %arg3: memref<1x12xf32, #tpu.memory_space<vmem>>, %arg4: memref<1x12xf32, #tpu.memory_space<vmem>>, %arg5: memref<1x286x12xf32, #tpu.memory_space<vmem>>) attributes {dimension_semantics = [#tpu.dimension_semantics<parallel>], iteration_bounds = array<i64: 2>, scalar_prefetch = 0 : i64, scratch_operands = 0 : i64, tpu.core_type = #tpu.core_type<tc>, window_params = [{transform_indices = @transform_0, window_bounds = array<i64: 1, 324, 3>}, {pipeline_mode = #tpu.pipeline_mode<synchronous>, transform_indices = @transform_1, window_bounds = array<i64: 27, 12>}, {pipeline_mode = #tpu.pipeline_mode<synchronous>, transform_indices = @transform_2, window_bounds = array<i64: 1, 12>}, {pipeline_mode = #tpu.pipeline_mode<synchronous>, transform_indices = @transform_3, window_bounds = array<i64: 1, 12>}, {transform_indices = @transform_4, window_bounds = array<i64: 1, 286, 12>}]} {
    %cst = arith.constant 0.000000e+00 : f32
    %0 = vector.broadcast %cst : f32 to vector<286x12xf32>
    %c0 = arith.constant 0 : index
    %c0_0 = arith.constant 0 : index
    %c0_1 = arith.constant 0 : index
    %1 = vector.load %arg1[%c0, %c0_0, %c0_1] : memref<1x324x3xf32, #tpu.memory_space<vmem>>, vector<1x286x3xf32>
    %2 = vector.shape_cast %1 : vector<1x286x3xf32> to vector<286x3xf32>
    %3 = arith.truncf %2 : vector<286x3xf32> to vector<286x3xbf16>
    %c0_2 = arith.constant 0 : index
    %c0_3 = arith.constant 0 : index
    %4 = vector.load %arg2[%c0_2, %c0_3] : memref<27x12xbf16, #tpu.memory_space<vmem>>, vector<3x12xbf16>
    %cst_4 = arith.constant dense<0.000000e+00> : vector<286x12xf32>
    %5 = tpu.matmul %3, %4, %cst_4 {dimension_numbers = #tpu.dot_dimension_numbers<[1], [0], [0], [1], [0, 0, 1, 1], [], []>} : vector<286x3xbf16>, vector<3x12xbf16>, vector<286x12xf32> -> vector<286x12xf32>
    %6 = arith.addf %0, %5 : vector<286x12xf32>
    %c0_5 = arith.constant 0 : index
    %c1 = arith.constant 1 : index
    %c0_6 = arith.constant 0 : index
    %7 = vector.load %arg1[%c0_5, %c1, %c0_6] : memref<1x324x3xf32, #tpu.memory_space<vmem>>, vector<1x286x3xf32>
    %8 = vector.shape_cast %7 : vector<1x286x3xf32> to vector<286x3xf32>
    %9 = arith.truncf %8 : vector<286x3xf32> to vector<286x3xbf16>
    %c3 = arith.constant 3 : index
    %c0_7 = arith.constant 0 : index
    %10 = vector.load %arg2[%c3, %c0_7] : memref<27x12xbf16, #tpu.memory_space<vmem>>, vector<3x12xbf16>
    %cst_8 = arith.constant dense<0.000000e+00> : vector<286x12xf32>
    %11 = tpu.matmul %9, %10, %cst_8 {dimension_numbers = #tpu.dot_dimension_numbers<[1], [0], [0], [1], [0, 0, 1, 1], [], []>} : vector<286x3xbf16>, vector<3x12xbf16>, vector<286x12xf32> -> vector<286x12xf32>
    %12 = arith.addf %6, %11 : vector<286x12xf32>
    %c0_9 = arith.constant 0 : index
    %c2 = arith.constant 2 : index
    %c0_10 = arith.constant 0 : index
    %13 = vector.load %arg1[%c0_9, %c2, %c0_10] : memref<1x324x3xf32, #tpu.memory_space<vmem>>, vector<1x286x3xf32>
    %14 = vector.shape_cast %13 : vector<1x286x3xf32> to vector<286x3xf32>
    %15 = arith.truncf %14 : vector<286x3xf32> to vector<286x3xbf16>
    %c6 = arith.constant 6 : index
    %c0_11 = arith.constant 0 : index
    %16 = vector.load %arg2[%c6, %c0_11] : memref<27x12xbf16, #tpu.memory_space<vmem>>, vector<3x12xbf16>
    %cst_12 = arith.constant dense<0.000000e+00> : vector<286x12xf32>
    %17 = tpu.matmul %15, %16, %cst_12 {dimension_numbers = #tpu.dot_dimension_numbers<[1], [0], [0], [1], [0, 0, 1, 1], [], []>} : vector<286x3xbf16>, vector<3x12xbf16>, vector<286x12xf32> -> vector<286x12xf32>
    %18 = arith.addf %12, %17 : vector<286x12xf32>
    %c0_13 = arith.constant 0 : index
    %c18 = arith.constant 18 : index
    %c0_14 = arith.constant 0 : index
    %19 = vector.load %arg1[%c0_13, %c18, %c0_14] : memref<1x324x3xf32, #tpu.memory_space<vmem>>, vector<1x286x3xf32>
    %20 = vector.shape_cast %19 : vector<1x286x3xf32> to vector<286x3xf32>
    %21 = arith.truncf %20 : vector<286x3xf32> to vector<286x3xbf16>
    %c9 = arith.constant 9 : index
    %c0_15 = arith.constant 0 : index
    %22 = vector.load %arg2[%c9, %c0_15] : memref<27x12xbf16, #tpu.memory_space<vmem>>, vector<3x12xbf16>
    %cst_16 = arith.constant dense<0.000000e+00> : vector<286x12xf32>
    %23 = tpu.matmul %21, %22, %cst_16 {dimension_numbers = #tpu.dot_dimension_numbers<[1], [0], [0], [1], [0, 0, 1, 1], [], []>} : vector<286x3xbf16>, vector<3x12xbf16>, vector<286x12xf32> -> vector<286x12xf32>
    %24 = arith.addf %18, %23 : vector<286x12xf32>
    %c0_17 = arith.constant 0 : index
    %c19 = arith.constant 19 : index
    %c0_18 = arith.constant 0 : index
    %25 = vector.load %arg1[%c0_17, %c19, %c0_18] : memref<1x324x3xf32, #tpu.memory_space<vmem>>, vector<1x286x3xf32>
    %26 = vector.shape_cast %25 : vector<1x286x3xf32> to vector<286x3xf32>
    %27 = arith.truncf %26 : vector<286x3xf32> to vector<286x3xbf16>
    %c12 = arith.constant 12 : index
    %c0_19 = arith.constant 0 : index
    %28 = vector.load %arg2[%c12, %c0_19] : memref<27x12xbf16, #tpu.memory_space<vmem>>, vector<3x12xbf16>
    %cst_20 = arith.constant dense<0.000000e+00> : vector<286x12xf32>
    %29 = tpu.matmul %27, %28, %cst_20 {dimension_numbers = #tpu.dot_dimension_numbers<[1], [0], [0], [1], [0, 0, 1, 1], [], []>} : vector<286x3xbf16>, vector<3x12xbf16>, vector<286x12xf32> -> vector<286x12xf32>
    %30 = arith.addf %24, %29 : vector<286x12xf32>
    %c0_21 = arith.constant 0 : index
    %c20 = arith.constant 20 : index
    %c0_22 = arith.constant 0 : index
    %31 = vector.load %arg1[%c0_21, %c20, %c0_22] : memref<1x324x3xf32, #tpu.memory_space<vmem>>, vector<1x286x3xf32>
    %32 = vector.shape_cast %31 : vector<1x286x3xf32> to vector<286x3xf32>
    %33 = arith.truncf %32 : vector<286x3xf32> to vector<286x3xbf16>
    %c15 = arith.constant 15 : index
    %c0_23 = arith.constant 0 : index
    %34 = vector.load %arg2[%c15, %c0_23] : memref<27x12xbf16, #tpu.memory_space<vmem>>, vector<3x12xbf16>
    %cst_24 = arith.constant dense<0.000000e+00> : vector<286x12xf32>
    %35 = tpu.matmul %33, %34, %cst_24 {dimension_numbers = #tpu.dot_dimension_numbers<[1], [0], [0], [1], [0, 0, 1, 1], [], []>} : vector<286x3xbf16>, vector<3x12xbf16>, vector<286x12xf32> -> vector<286x12xf32>
    %36 = arith.addf %30, %35 : vector<286x12xf32>
    %c0_25 = arith.constant 0 : index
    %c36 = arith.constant 36 : index
    %c0_26 = arith.constant 0 : index
    %37 = vector.load %arg1[%c0_25, %c36, %c0_26] : memref<1x324x3xf32, #tpu.memory_space<vmem>>, vector<1x286x3xf32>
    %38 = vector.shape_cast %37 : vector<1x286x3xf32> to vector<286x3xf32>
    %39 = arith.truncf %38 : vector<286x3xf32> to vector<286x3xbf16>
    %c18_27 = arith.constant 18 : index
    %c0_28 = arith.constant 0 : index
    %40 = vector.load %arg2[%c18_27, %c0_28] : memref<27x12xbf16, #tpu.memory_space<vmem>>, vector<3x12xbf16>
    %cst_29 = arith.constant dense<0.000000e+00> : vector<286x12xf32>
    %41 = tpu.matmul %39, %40, %cst_29 {dimension_numbers = #tpu.dot_dimension_numbers<[1], [0], [0], [1], [0, 0, 1, 1], [], []>} : vector<286x3xbf16>, vector<3x12xbf16>, vector<286x12xf32> -> vector<286x12xf32>
    %42 = arith.addf %36, %41 : vector<286x12xf32>
    %c0_30 = arith.constant 0 : index
    %c37 = arith.constant 37 : index
    %c0_31 = arith.constant 0 : index
    %43 = vector.load %arg1[%c0_30, %c37, %c0_31] : memref<1x324x3xf32, #tpu.memory_space<vmem>>, vector<1x286x3xf32>
    %44 = vector.shape_cast %43 : vector<1x286x3xf32> to vector<286x3xf32>
    %45 = arith.truncf %44 : vector<286x3xf32> to vector<286x3xbf16>
    %c21 = arith.constant 21 : index
    %c0_32 = arith.constant 0 : index
    %46 = vector.load %arg2[%c21, %c0_32] : memref<27x12xbf16, #tpu.memory_space<vmem>>, vector<3x12xbf16>
    %cst_33 = arith.constant dense<0.000000e+00> : vector<286x12xf32>
    %47 = tpu.matmul %45, %46, %cst_33 {dimension_numbers = #tpu.dot_dimension_numbers<[1], [0], [0], [1], [0, 0, 1, 1], [], []>} : vector<286x3xbf16>, vector<3x12xbf16>, vector<286x12xf32> -> vector<286x12xf32>
    %48 = arith.addf %42, %47 : vector<286x12xf32>
    %c0_34 = arith.constant 0 : index
    %c38 = arith.constant 38 : index
    %c0_35 = arith.constant 0 : index
    %49 = vector.load %arg1[%c0_34, %c38, %c0_35] : memref<1x324x3xf32, #tpu.memory_space<vmem>>, vector<1x286x3xf32>
    %50 = vector.shape_cast %49 : vector<1x286x3xf32> to vector<286x3xf32>
    %51 = arith.truncf %50 : vector<286x3xf32> to vector<286x3xbf16>
    %c24 = arith.constant 24 : index
    %c0_36 = arith.constant 0 : index
    %52 = vector.load %arg2[%c24, %c0_36] : memref<27x12xbf16, #tpu.memory_space<vmem>>, vector<3x12xbf16>
    %cst_37 = arith.constant dense<0.000000e+00> : vector<286x12xf32>
    %53 = tpu.matmul %51, %52, %cst_37 {dimension_numbers = #tpu.dot_dimension_numbers<[1], [0], [0], [1], [0, 0, 1, 1], [], []>} : vector<286x3xbf16>, vector<3x12xbf16>, vector<286x12xf32> -> vector<286x12xf32>
    %54 = arith.addf %48, %53 : vector<286x12xf32>
    %c0_38 = arith.constant 0 : index
    %c0_39 = arith.constant 0 : index
    %55 = vector.load %arg3[%c0_38, %c0_39] : memref<1x12xf32, #tpu.memory_space<vmem>>, vector<1x12xf32>
    %56 = vector.broadcast %55 : vector<1x12xf32> to vector<286x12xf32>
    %57 = arith.mulf %54, %56 : vector<286x12xf32>
    %c0_40 = arith.constant 0 : index
    %c0_41 = arith.constant 0 : index
    %58 = vector.load %arg4[%c0_40, %c0_41] : memref<1x12xf32, #tpu.memory_space<vmem>>, vector<1x12xf32>
    %59 = vector.broadcast %58 : vector<1x12xf32> to vector<286x12xf32>
    %60 = arith.addf %57, %59 : vector<286x12xf32>
    %c0_42 = arith.constant 0 : index
    %c0_43 = arith.constant 0 : index
    %c0_44 = arith.constant 0 : index
    %61 = vector.load %arg5[%c0_42, %c0_43, %c0_44] : memref<1x286x12xf32, #tpu.memory_space<vmem>>, vector<1x286x12xf32>
    %62 = vector.shape_cast %61 : vector<1x286x12xf32> to vector<286x12xf32>
    %63 = vector.shape_cast %60 : vector<286x12xf32> to vector<1x286x12xf32>
    tpu.vector_store %arg5[%c0_42, %c0_43, %c0_44], %63 {strides = array<i32>} : memref<1x286x12xf32, #tpu.memory_space<vmem>>, vector<1x286x12xf32>,
    return
  }
  func.func @transform_0(%arg0: i32) -> (i32, i32, i32) {
    %c0_i32 = arith.constant 0 : i32
    %c0_i32_0 = arith.constant 0 : i32
    %c0_i32_1 = arith.constant 0 : i32
    return %arg0, %c0_i32, %c0_i32_0 : i32, i32, i32
  }
  func.func @transform_1(%arg0: i32) -> (i32, i32) {
    %c0_i32 = arith.constant 0 : i32
    %c0_i32_0 = arith.constant 0 : i32
    %c0_i32_1 = arith.constant 0 : i32
    return %c0_i32, %c0_i32_0 : i32, i32
  }
  func.func @transform_2(%arg0: i32) -> (i32, i32) {
    %c0_i32 = arith.constant 0 : i32
    %c0_i32_0 = arith.constant 0 : i32
    %c0_i32_1 = arith.constant 0 : i32
    return %c0_i32, %c0_i32_0 : i32, i32
  }
  func.func @transform_3(%arg0: i32) -> (i32, i32) {
    %c0_i32 = arith.constant 0 : i32
    %c0_i32_0 = arith.constant 0 : i32
    %c0_i32_1 = arith.constant 0 : i32
    return %c0_i32, %c0_i32_0 : i32, i32
  }
  func.func @transform_4(%arg0: i32) -> (i32, i32, i32) {
    %c0_i32 = arith.constant 0 : i32
    %c0_i32_0 = arith.constant 0 : i32
    %c0_i32_1 = arith.constant 0 : i32
    return %arg0, %c0_i32, %c0_i32_0 : i32, i32, i32
  }
}

module attributes {stable_mosaic.version = 11 : i64} {
  func.func @kernel(%arg0: i32, %arg1: memref<1x64x24xf32, #tpu.memory_space<vmem>>, %arg2: memref<24x16xbf16, #tpu.memory_space<vmem>>, %arg3: memref<1x16xf32, #tpu.memory_space<vmem>>, %arg4: memref<1x16xf32, #tpu.memory_space<vmem>>, %arg5: memref<1x64x16xf32, #tpu.memory_space<vmem>>) attributes {dimension_semantics = [#tpu.dimension_semantics<parallel>], iteration_bounds = array<i64: 2>, scalar_prefetch = 0 : i64, scratch_operands = 0 : i64, tpu.core_type = #tpu.core_type<tc>, window_params = [{transform_indices = @transform_0, window_bounds = array<i64: 1, 64, 24>}, {pipeline_mode = #tpu.pipeline_mode<synchronous>, transform_indices = @transform_1, window_bounds = array<i64: 24, 16>}, {pipeline_mode = #tpu.pipeline_mode<synchronous>, transform_indices = @transform_2, window_bounds = array<i64: 1, 16>}, {pipeline_mode = #tpu.pipeline_mode<synchronous>, transform_indices = @transform_3, window_bounds = array<i64: 1, 16>}, {transform_indices = @transform_4, window_bounds = array<i64: 1, 64, 16>}]} {
    %c0 = arith.constant 0 : index
    %c0_0 = arith.constant 0 : index
    %c0_1 = arith.constant 0 : index
    %0 = vector.load %arg1[%c0, %c0_0, %c0_1] : memref<1x64x24xf32, #tpu.memory_space<vmem>>, vector<1x64x24xf32>
    %1 = vector.shape_cast %0 : vector<1x64x24xf32> to vector<64x24xf32>
    %cst = arith.constant 0.000000e+00 : f32
    %2 = vector.broadcast %cst : f32 to vector<64x24xf32>
    %3 = arith.maximumf %1, %2 : vector<64x24xf32>
    %4 = arith.truncf %3 : vector<64x24xf32> to vector<64x24xbf16>
    %c0_2 = arith.constant 0 : index
    %c0_3 = arith.constant 0 : index
    %5 = vector.load %arg2[%c0_2, %c0_3] : memref<24x16xbf16, #tpu.memory_space<vmem>>, vector<24x16xbf16>
    %cst_4 = arith.constant dense<0.000000e+00> : vector<64x16xf32>
    %6 = tpu.matmul %4, %5, %cst_4 {dimension_numbers = #tpu.dot_dimension_numbers<[1], [0], [0], [1], [0, 0, 1, 1], [], []>} : vector<64x24xbf16>, vector<24x16xbf16>, vector<64x16xf32> -> vector<64x16xf32>
    %c0_5 = arith.constant 0 : index
    %c0_6 = arith.constant 0 : index
    %7 = vector.load %arg3[%c0_5, %c0_6] : memref<1x16xf32, #tpu.memory_space<vmem>>, vector<1x16xf32>
    %8 = vector.broadcast %7 : vector<1x16xf32> to vector<64x16xf32>
    %9 = arith.mulf %6, %8 : vector<64x16xf32>
    %c0_7 = arith.constant 0 : index
    %c0_8 = arith.constant 0 : index
    %10 = vector.load %arg4[%c0_7, %c0_8] : memref<1x16xf32, #tpu.memory_space<vmem>>, vector<1x16xf32>
    %11 = vector.broadcast %10 : vector<1x16xf32> to vector<64x16xf32>
    %12 = arith.addf %9, %11 : vector<64x16xf32>
    %c0_9 = arith.constant 0 : index
    %c0_10 = arith.constant 0 : index
    %c0_11 = arith.constant 0 : index
    %13 = vector.load %arg5[%c0_9, %c0_10, %c0_11] : memref<1x64x16xf32, #tpu.memory_space<vmem>>, vector<1x64x16xf32>
    %14 = vector.shape_cast %13 : vector<1x64x16xf32> to vector<64x16xf32>
    %15 = vector.shape_cast %12 : vector<64x16xf32> to vector<1x64x16xf32>
    tpu.vector_store %arg5[%c0_9, %c0_10, %c0_11], %15 {strides = array<i32>} : memref<1x64x16xf32, #tpu.memory_space<vmem>>, vector<1x64x16xf32>,
    return
  }
  func.func @transform_0(%arg0: i32) -> (i32, i32, i32) {
    %c0_i32 = arith.constant 0 : i32
    %c0_i32_0 = arith.constant 0 : i32
    %c0_i32_1 = arith.constant 0 : i32
    return %arg0, %c0_i32, %c0_i32_0 : i32, i32, i32
  }
  func.func @transform_1(%arg0: i32) -> (i32, i32) {
    %c0_i32 = arith.constant 0 : i32
    %c0_i32_0 = arith.constant 0 : i32
    %c0_i32_1 = arith.constant 0 : i32
    return %c0_i32, %c0_i32_0 : i32, i32
  }
  func.func @transform_2(%arg0: i32) -> (i32, i32) {
    %c0_i32 = arith.constant 0 : i32
    %c0_i32_0 = arith.constant 0 : i32
    %c0_i32_1 = arith.constant 0 : i32
    return %c0_i32, %c0_i32_0 : i32, i32
  }
  func.func @transform_3(%arg0: i32) -> (i32, i32) {
    %c0_i32 = arith.constant 0 : i32
    %c0_i32_0 = arith.constant 0 : i32
    %c0_i32_1 = arith.constant 0 : i32
    return %c0_i32, %c0_i32_0 : i32, i32
  }
  func.func @transform_4(%arg0: i32) -> (i32, i32, i32) {
    %c0_i32 = arith.constant 0 : i32
    %c0_i32_0 = arith.constant 0 : i32
    %c0_i32_1 = arith.constant 0 : i32
    return %arg0, %c0_i32, %c0_i32_0 : i32, i32, i32
  }
}

module attributes {stable_mosaic.version = 11 : i64} {
  func.func @kernel(%arg0: i32, %arg1: memref<1x100x16xf32, #tpu.memory_space<vmem>>, %arg2: memref<1x78x16xf32, #tpu.memory_space<vmem>>) attributes {dimension_semantics = [#tpu.dimension_semantics<parallel>], iteration_bounds = array<i64: 2>, scalar_prefetch = 0 : i64, scratch_operands = 0 : i64, tpu.core_type = #tpu.core_type<tc>, window_params = [{transform_indices = @transform_0, window_bounds = array<i64: 1, 100, 16>}, {transform_indices = @transform_1, window_bounds = array<i64: 1, 78, 16>}]} {
    %c0 = arith.constant 0 : index
    %c0_0 = arith.constant 0 : index
    %c0_1 = arith.constant 0 : index
    %0 = vector.load %arg1[%c0, %c0_0, %c0_1] : memref<1x100x16xf32, #tpu.memory_space<vmem>>, vector<1x78x16xf32>
    %1 = vector.shape_cast %0 : vector<1x78x16xf32> to vector<78x16xf32>
    %c0_2 = arith.constant 0 : index
    %c1 = arith.constant 1 : index
    %c0_3 = arith.constant 0 : index
    %2 = vector.load %arg1[%c0_2, %c1, %c0_3] : memref<1x100x16xf32, #tpu.memory_space<vmem>>, vector<1x78x16xf32>
    %3 = vector.shape_cast %2 : vector<1x78x16xf32> to vector<78x16xf32>
    %4 = arith.maximumf %1, %3 : vector<78x16xf32>
    %c0_4 = arith.constant 0 : index
    %c2 = arith.constant 2 : index
    %c0_5 = arith.constant 0 : index
    %5 = vector.load %arg1[%c0_4, %c2, %c0_5] : memref<1x100x16xf32, #tpu.memory_space<vmem>>, vector<1x78x16xf32>
    %6 = vector.shape_cast %5 : vector<1x78x16xf32> to vector<78x16xf32>
    %7 = arith.maximumf %4, %6 : vector<78x16xf32>
    %c0_6 = arith.constant 0 : index
    %c10 = arith.constant 10 : index
    %c0_7 = arith.constant 0 : index
    %8 = vector.load %arg1[%c0_6, %c10, %c0_7] : memref<1x100x16xf32, #tpu.memory_space<vmem>>, vector<1x78x16xf32>
    %9 = vector.shape_cast %8 : vector<1x78x16xf32> to vector<78x16xf32>
    %10 = arith.maximumf %7, %9 : vector<78x16xf32>
    %c0_8 = arith.constant 0 : index
    %c11 = arith.constant 11 : index
    %c0_9 = arith.constant 0 : index
    %11 = vector.load %arg1[%c0_8, %c11, %c0_9] : memref<1x100x16xf32, #tpu.memory_space<vmem>>, vector<1x78x16xf32>
    %12 = vector.shape_cast %11 : vector<1x78x16xf32> to vector<78x16xf32>
    %13 = arith.maximumf %10, %12 : vector<78x16xf32>
    %c0_10 = arith.constant 0 : index
    %c12 = arith.constant 12 : index
    %c0_11 = arith.constant 0 : index
    %14 = vector.load %arg1[%c0_10, %c12, %c0_11] : memref<1x100x16xf32, #tpu.memory_space<vmem>>, vector<1x78x16xf32>
    %15 = vector.shape_cast %14 : vector<1x78x16xf32> to vector<78x16xf32>
    %16 = arith.maximumf %13, %15 : vector<78x16xf32>
    %c0_12 = arith.constant 0 : index
    %c20 = arith.constant 20 : index
    %c0_13 = arith.constant 0 : index
    %17 = vector.load %arg1[%c0_12, %c20, %c0_13] : memref<1x100x16xf32, #tpu.memory_space<vmem>>, vector<1x78x16xf32>
    %18 = vector.shape_cast %17 : vector<1x78x16xf32> to vector<78x16xf32>
    %19 = arith.maximumf %16, %18 : vector<78x16xf32>
    %c0_14 = arith.constant 0 : index
    %c21 = arith.constant 21 : index
    %c0_15 = arith.constant 0 : index
    %20 = vector.load %arg1[%c0_14, %c21, %c0_15] : memref<1x100x16xf32, #tpu.memory_space<vmem>>, vector<1x78x16xf32>
    %21 = vector.shape_cast %20 : vector<1x78x16xf32> to vector<78x16xf32>
    %22 = arith.maximumf %19, %21 : vector<78x16xf32>
    %c0_16 = arith.constant 0 : index
    %c22 = arith.constant 22 : index
    %c0_17 = arith.constant 0 : index
    %23 = vector.load %arg1[%c0_16, %c22, %c0_17] : memref<1x100x16xf32, #tpu.memory_space<vmem>>, vector<1x78x16xf32>
    %24 = vector.shape_cast %23 : vector<1x78x16xf32> to vector<78x16xf32>
    %25 = arith.maximumf %22, %24 : vector<78x16xf32>
    %c0_18 = arith.constant 0 : index
    %c0_19 = arith.constant 0 : index
    %c0_20 = arith.constant 0 : index
    %26 = vector.load %arg2[%c0_18, %c0_19, %c0_20] : memref<1x78x16xf32, #tpu.memory_space<vmem>>, vector<1x78x16xf32>
    %27 = vector.shape_cast %26 : vector<1x78x16xf32> to vector<78x16xf32>
    %28 = vector.shape_cast %25 : vector<78x16xf32> to vector<1x78x16xf32>
    tpu.vector_store %arg2[%c0_18, %c0_19, %c0_20], %28 {strides = array<i32>} : memref<1x78x16xf32, #tpu.memory_space<vmem>>, vector<1x78x16xf32>,
    return
  }
  func.func @transform_0(%arg0: i32) -> (i32, i32, i32) {
    %c0_i32 = arith.constant 0 : i32
    %c0_i32_0 = arith.constant 0 : i32
    %c0_i32_1 = arith.constant 0 : i32
    return %arg0, %c0_i32, %c0_i32_0 : i32, i32, i32
  }
  func.func @transform_1(%arg0: i32) -> (i32, i32, i32) {
    %c0_i32 = arith.constant 0 : i32
    %c0_i32_0 = arith.constant 0 : i32
    %c0_i32_1 = arith.constant 0 : i32
    return %arg0, %c0_i32, %c0_i32_0 : i32, i32, i32
  }
}

module attributes {stable_mosaic.version = 11 : i64} {
  func.func @kernel(%arg0: i32, %arg1: memref<1x256x12xf32, #tpu.memory_space<vmem>>, %arg2: memref<12x16xbf16, #tpu.memory_space<vmem>>, %arg3: memref<1x16xf32, #tpu.memory_space<vmem>>, %arg4: memref<1x16xf32, #tpu.memory_space<vmem>>, %arg5: memref<1x256x16xf32, #tpu.memory_space<vmem>>) attributes {dimension_semantics = [#tpu.dimension_semantics<parallel>], iteration_bounds = array<i64: 2>, scalar_prefetch = 0 : i64, scratch_operands = 0 : i64, tpu.core_type = #tpu.core_type<tc>, window_params = [{transform_indices = @transform_0, window_bounds = array<i64: 1, 256, 12>}, {pipeline_mode = #tpu.pipeline_mode<synchronous>, transform_indices = @transform_1, window_bounds = array<i64: 12, 16>}, {pipeline_mode = #tpu.pipeline_mode<synchronous>, transform_indices = @transform_2, window_bounds = array<i64: 1, 16>}, {pipeline_mode = #tpu.pipeline_mode<synchronous>, transform_indices = @transform_3, window_bounds = array<i64: 1, 16>}, {transform_indices = @transform_4, window_bounds = array<i64: 1, 256, 16>}]} {
    %c0 = arith.constant 0 : index
    %c0_0 = arith.constant 0 : index
    %c0_1 = arith.constant 0 : index
    %0 = vector.load %arg1[%c0, %c0_0, %c0_1] : memref<1x256x12xf32, #tpu.memory_space<vmem>>, vector<1x256x12xf32>
    %1 = vector.shape_cast %0 : vector<1x256x12xf32> to vector<256x12xf32>
    %cst = arith.constant 0.000000e+00 : f32
    %2 = vector.broadcast %cst : f32 to vector<256x12xf32>
    %3 = arith.maximumf %1, %2 : vector<256x12xf32>
    %4 = arith.truncf %3 : vector<256x12xf32> to vector<256x12xbf16>
    %c0_2 = arith.constant 0 : index
    %c0_3 = arith.constant 0 : index
    %5 = vector.load %arg2[%c0_2, %c0_3] : memref<12x16xbf16, #tpu.memory_space<vmem>>, vector<12x16xbf16>
    %cst_4 = arith.constant dense<0.000000e+00> : vector<256x16xf32>
    %6 = tpu.matmul %4, %5, %cst_4 {dimension_numbers = #tpu.dot_dimension_numbers<[1], [0], [0], [1], [0, 0, 1, 1], [], []>} : vector<256x12xbf16>, vector<12x16xbf16>, vector<256x16xf32> -> vector<256x16xf32>
    %c0_5 = arith.constant 0 : index
    %c0_6 = arith.constant 0 : index
    %7 = vector.load %arg3[%c0_5, %c0_6] : memref<1x16xf32, #tpu.memory_space<vmem>>, vector<1x16xf32>
    %8 = vector.broadcast %7 : vector<1x16xf32> to vector<256x16xf32>
    %9 = arith.mulf %6, %8 : vector<256x16xf32>
    %c0_7 = arith.constant 0 : index
    %c0_8 = arith.constant 0 : index
    %10 = vector.load %arg4[%c0_7, %c0_8] : memref<1x16xf32, #tpu.memory_space<vmem>>, vector<1x16xf32>
    %11 = vector.broadcast %10 : vector<1x16xf32> to vector<256x16xf32>
    %12 = arith.addf %9, %11 : vector<256x16xf32>
    %c0_9 = arith.constant 0 : index
    %c0_10 = arith.constant 0 : index
    %c0_11 = arith.constant 0 : index
    %13 = vector.load %arg5[%c0_9, %c0_10, %c0_11] : memref<1x256x16xf32, #tpu.memory_space<vmem>>, vector<1x256x16xf32>
    %14 = vector.shape_cast %13 : vector<1x256x16xf32> to vector<256x16xf32>
    %15 = vector.shape_cast %12 : vector<256x16xf32> to vector<1x256x16xf32>
    tpu.vector_store %arg5[%c0_9, %c0_10, %c0_11], %15 {strides = array<i32>} : memref<1x256x16xf32, #tpu.memory_space<vmem>>, vector<1x256x16xf32>,
    return
  }
  func.func @transform_0(%arg0: i32) -> (i32, i32, i32) {
    %c0_i32 = arith.constant 0 : i32
    %c0_i32_0 = arith.constant 0 : i32
    %c0_i32_1 = arith.constant 0 : i32
    return %arg0, %c0_i32, %c0_i32_0 : i32, i32, i32
  }
  func.func @transform_1(%arg0: i32) -> (i32, i32) {
    %c0_i32 = arith.constant 0 : i32
    %c0_i32_0 = arith.constant 0 : i32
    %c0_i32_1 = arith.constant 0 : i32
    return %c0_i32, %c0_i32_0 : i32, i32
  }
  func.func @transform_2(%arg0: i32) -> (i32, i32) {
    %c0_i32 = arith.constant 0 : i32
    %c0_i32_0 = arith.constant 0 : i32
    %c0_i32_1 = arith.constant 0 : i32
    return %c0_i32, %c0_i32_0 : i32, i32
  }
  func.func @transform_3(%arg0: i32) -> (i32, i32) {
    %c0_i32 = arith.constant 0 : i32
    %c0_i32_0 = arith.constant 0 : i32
    %c0_i32_1 = arith.constant 0 : i32
    return %c0_i32, %c0_i32_0 : i32, i32
  }
  func.func @transform_4(%arg0: i32) -> (i32, i32, i32) {
    %c0_i32 = arith.constant 0 : i32
    %c0_i32_0 = arith.constant 0 : i32
    %c0_i32_1 = arith.constant 0 : i32
    return %arg0, %c0_i32, %c0_i32_0 : i32, i32, i32
  }
}

module attributes {stable_mosaic.version = 11 : i64} {
  func.func @kernel(%arg0: i32, %arg1: memref<1x324x8xf32, #tpu.memory_space<vmem>>, %arg2: memref<1x286x8xf32, #tpu.memory_space<vmem>>) attributes {dimension_semantics = [#tpu.dimension_semantics<parallel>], iteration_bounds = array<i64: 2>, scalar_prefetch = 0 : i64, scratch_operands = 0 : i64, tpu.core_type = #tpu.core_type<tc>, window_params = [{transform_indices = @transform_0, window_bounds = array<i64: 1, 324, 8>}, {transform_indices = @transform_1, window_bounds = array<i64: 1, 286, 8>}]} {
    %c0 = arith.constant 0 : index
    %c0_0 = arith.constant 0 : index
    %c0_1 = arith.constant 0 : index
    %0 = vector.load %arg1[%c0, %c0_0, %c0_1] : memref<1x324x8xf32, #tpu.memory_space<vmem>>, vector<1x286x8xf32>
    %1 = vector.shape_cast %0 : vector<1x286x8xf32> to vector<286x8xf32>
    %c0_2 = arith.constant 0 : index
    %c1 = arith.constant 1 : index
    %c0_3 = arith.constant 0 : index
    %2 = vector.load %arg1[%c0_2, %c1, %c0_3] : memref<1x324x8xf32, #tpu.memory_space<vmem>>, vector<1x286x8xf32>
    %3 = vector.shape_cast %2 : vector<1x286x8xf32> to vector<286x8xf32>
    %4 = arith.maximumf %1, %3 : vector<286x8xf32>
    %c0_4 = arith.constant 0 : index
    %c2 = arith.constant 2 : index
    %c0_5 = arith.constant 0 : index
    %5 = vector.load %arg1[%c0_4, %c2, %c0_5] : memref<1x324x8xf32, #tpu.memory_space<vmem>>, vector<1x286x8xf32>
    %6 = vector.shape_cast %5 : vector<1x286x8xf32> to vector<286x8xf32>
    %7 = arith.maximumf %4, %6 : vector<286x8xf32>
    %c0_6 = arith.constant 0 : index
    %c18 = arith.constant 18 : index
    %c0_7 = arith.constant 0 : index
    %8 = vector.load %arg1[%c0_6, %c18, %c0_7] : memref<1x324x8xf32, #tpu.memory_space<vmem>>, vector<1x286x8xf32>
    %9 = vector.shape_cast %8 : vector<1x286x8xf32> to vector<286x8xf32>
    %10 = arith.maximumf %7, %9 : vector<286x8xf32>
    %c0_8 = arith.constant 0 : index
    %c19 = arith.constant 19 : index
    %c0_9 = arith.constant 0 : index
    %11 = vector.load %arg1[%c0_8, %c19, %c0_9] : memref<1x324x8xf32, #tpu.memory_space<vmem>>, vector<1x286x8xf32>
    %12 = vector.shape_cast %11 : vector<1x286x8xf32> to vector<286x8xf32>
    %13 = arith.maximumf %10, %12 : vector<286x8xf32>
    %c0_10 = arith.constant 0 : index
    %c20 = arith.constant 20 : index
    %c0_11 = arith.constant 0 : index
    %14 = vector.load %arg1[%c0_10, %c20, %c0_11] : memref<1x324x8xf32, #tpu.memory_space<vmem>>, vector<1x286x8xf32>
    %15 = vector.shape_cast %14 : vector<1x286x8xf32> to vector<286x8xf32>
    %16 = arith.maximumf %13, %15 : vector<286x8xf32>
    %c0_12 = arith.constant 0 : index
    %c36 = arith.constant 36 : index
    %c0_13 = arith.constant 0 : index
    %17 = vector.load %arg1[%c0_12, %c36, %c0_13] : memref<1x324x8xf32, #tpu.memory_space<vmem>>, vector<1x286x8xf32>
    %18 = vector.shape_cast %17 : vector<1x286x8xf32> to vector<286x8xf32>
    %19 = arith.maximumf %16, %18 : vector<286x8xf32>
    %c0_14 = arith.constant 0 : index
    %c37 = arith.constant 37 : index
    %c0_15 = arith.constant 0 : index
    %20 = vector.load %arg1[%c0_14, %c37, %c0_15] : memref<1x324x8xf32, #tpu.memory_space<vmem>>, vector<1x286x8xf32>
    %21 = vector.shape_cast %20 : vector<1x286x8xf32> to vector<286x8xf32>
    %22 = arith.maximumf %19, %21 : vector<286x8xf32>
    %c0_16 = arith.constant 0 : index
    %c38 = arith.constant 38 : index
    %c0_17 = arith.constant 0 : index
    %23 = vector.load %arg1[%c0_16, %c38, %c0_17] : memref<1x324x8xf32, #tpu.memory_space<vmem>>, vector<1x286x8xf32>
    %24 = vector.shape_cast %23 : vector<1x286x8xf32> to vector<286x8xf32>
    %25 = arith.maximumf %22, %24 : vector<286x8xf32>
    %c0_18 = arith.constant 0 : index
    %c0_19 = arith.constant 0 : index
    %c0_20 = arith.constant 0 : index
    %26 = vector.load %arg2[%c0_18, %c0_19, %c0_20] : memref<1x286x8xf32, #tpu.memory_space<vmem>>, vector<1x286x8xf32>
    %27 = vector.shape_cast %26 : vector<1x286x8xf32> to vector<286x8xf32>
    %28 = vector.shape_cast %25 : vector<286x8xf32> to vector<1x286x8xf32>
    tpu.vector_store %arg2[%c0_18, %c0_19, %c0_20], %28 {strides = array<i32>} : memref<1x286x8xf32, #tpu.memory_space<vmem>>, vector<1x286x8xf32>,
    return
  }
  func.func @transform_0(%arg0: i32) -> (i32, i32, i32) {
    %c0_i32 = arith.constant 0 : i32
    %c0_i32_0 = arith.constant 0 : i32
    %c0_i32_1 = arith.constant 0 : i32
    return %arg0, %c0_i32, %c0_i32_0 : i32, i32, i32
  }
  func.func @transform_1(%arg0: i32) -> (i32, i32, i32) {
    %c0_i32 = arith.constant 0 : i32
    %c0_i32_0 = arith.constant 0 : i32
    %c0_i32_1 = arith.constant 0 : i32
    return %arg0, %c0_i32, %c0_i32_0 : i32, i32, i32
  }
}

module attributes {stable_mosaic.version = 11 : i64} {
  func.func @kernel(%arg0: i32, %arg1: memref<1x64x16xf32, #tpu.memory_space<vmem>>, %arg2: memref<16x8xbf16, #tpu.memory_space<vmem>>, %arg3: memref<1x8xf32, #tpu.memory_space<vmem>>, %arg4: memref<1x8xf32, #tpu.memory_space<vmem>>, %arg5: memref<1x64x8xf32, #tpu.memory_space<vmem>>, %arg6: memref<1x64x8xf32, #tpu.memory_space<vmem>>) attributes {dimension_semantics = [#tpu.dimension_semantics<parallel>], iteration_bounds = array<i64: 2>, scalar_prefetch = 0 : i64, scratch_operands = 0 : i64, tpu.core_type = #tpu.core_type<tc>, window_params = [{transform_indices = @transform_0, window_bounds = array<i64: 1, 64, 16>}, {pipeline_mode = #tpu.pipeline_mode<synchronous>, transform_indices = @transform_1, window_bounds = array<i64: 16, 8>}, {pipeline_mode = #tpu.pipeline_mode<synchronous>, transform_indices = @transform_2, window_bounds = array<i64: 1, 8>}, {pipeline_mode = #tpu.pipeline_mode<synchronous>, transform_indices = @transform_3, window_bounds = array<i64: 1, 8>}, {transform_indices = @transform_4, window_bounds = array<i64: 1, 64, 8>}, {transform_indices = @transform_5, window_bounds = array<i64: 1, 64, 8>}]} {
    %c0 = arith.constant 0 : index
    %c0_0 = arith.constant 0 : index
    %c0_1 = arith.constant 0 : index
    %0 = vector.load %arg1[%c0, %c0_0, %c0_1] : memref<1x64x16xf32, #tpu.memory_space<vmem>>, vector<1x64x16xf32>
    %1 = vector.shape_cast %0 : vector<1x64x16xf32> to vector<64x16xf32>
    %cst = arith.constant 0.000000e+00 : f32
    %2 = vector.broadcast %cst : f32 to vector<64x16xf32>
    %3 = arith.maximumf %1, %2 : vector<64x16xf32>
    %4 = arith.truncf %3 : vector<64x16xf32> to vector<64x16xbf16>
    %c0_2 = arith.constant 0 : index
    %c0_3 = arith.constant 0 : index
    %5 = vector.load %arg2[%c0_2, %c0_3] : memref<16x8xbf16, #tpu.memory_space<vmem>>, vector<16x8xbf16>
    %cst_4 = arith.constant dense<0.000000e+00> : vector<64x8xf32>
    %6 = tpu.matmul %4, %5, %cst_4 {dimension_numbers = #tpu.dot_dimension_numbers<[1], [0], [0], [1], [0, 0, 1, 1], [], []>} : vector<64x16xbf16>, vector<16x8xbf16>, vector<64x8xf32> -> vector<64x8xf32>
    %c0_5 = arith.constant 0 : index
    %c0_6 = arith.constant 0 : index
    %7 = vector.load %arg3[%c0_5, %c0_6] : memref<1x8xf32, #tpu.memory_space<vmem>>, vector<1x8xf32>
    %8 = vector.broadcast %7 : vector<1x8xf32> to vector<64x8xf32>
    %9 = arith.mulf %6, %8 : vector<64x8xf32>
    %c0_7 = arith.constant 0 : index
    %c0_8 = arith.constant 0 : index
    %10 = vector.load %arg4[%c0_7, %c0_8] : memref<1x8xf32, #tpu.memory_space<vmem>>, vector<1x8xf32>
    %11 = vector.broadcast %10 : vector<1x8xf32> to vector<64x8xf32>
    %12 = arith.addf %9, %11 : vector<64x8xf32>
    %c0_9 = arith.constant 0 : index
    %c0_10 = arith.constant 0 : index
    %c0_11 = arith.constant 0 : index
    %13 = vector.load %arg5[%c0_9, %c0_10, %c0_11] : memref<1x64x8xf32, #tpu.memory_space<vmem>>, vector<1x64x8xf32>
    %14 = vector.shape_cast %13 : vector<1x64x8xf32> to vector<64x8xf32>
    %15 = arith.addf %12, %14 : vector<64x8xf32>
    %c0_12 = arith.constant 0 : index
    %c0_13 = arith.constant 0 : index
    %c0_14 = arith.constant 0 : index
    %16 = vector.load %arg6[%c0_12, %c0_13, %c0_14] : memref<1x64x8xf32, #tpu.memory_space<vmem>>, vector<1x64x8xf32>
    %17 = vector.shape_cast %16 : vector<1x64x8xf32> to vector<64x8xf32>
    %18 = vector.shape_cast %15 : vector<64x8xf32> to vector<1x64x8xf32>
    tpu.vector_store %arg6[%c0_12, %c0_13, %c0_14], %18 {strides = array<i32>} : memref<1x64x8xf32, #tpu.memory_space<vmem>>, vector<1x64x8xf32>,
    return
  }
  func.func @transform_0(%arg0: i32) -> (i32, i32, i32) {
    %c0_i32 = arith.constant 0 : i32
    %c0_i32_0 = arith.constant 0 : i32
    %c0_i32_1 = arith.constant 0 : i32
    return %arg0, %c0_i32, %c0_i32_0 : i32, i32, i32
  }
  func.func @transform_1(%arg0: i32) -> (i32, i32) {
    %c0_i32 = arith.constant 0 : i32
    %c0_i32_0 = arith.constant 0 : i32
    %c0_i32_1 = arith.constant 0 : i32
    return %c0_i32, %c0_i32_0 : i32, i32
  }
  func.func @transform_2(%arg0: i32) -> (i32, i32) {
    %c0_i32 = arith.constant 0 : i32
    %c0_i32_0 = arith.constant 0 : i32
    %c0_i32_1 = arith.constant 0 : i32
    return %c0_i32, %c0_i32_0 : i32, i32
  }
  func.func @transform_3(%arg0: i32) -> (i32, i32) {
    %c0_i32 = arith.constant 0 : i32
    %c0_i32_0 = arith.constant 0 : i32
    %c0_i32_1 = arith.constant 0 : i32
    return %c0_i32, %c0_i32_0 : i32, i32
  }
  func.func @transform_4(%arg0: i32) -> (i32, i32, i32) {
    %c0_i32 = arith.constant 0 : i32
    %c0_i32_0 = arith.constant 0 : i32
    %c0_i32_1 = arith.constant 0 : i32
    return %arg0, %c0_i32, %c0_i32_0 : i32, i32, i32
  }
  func.func @transform_5(%arg0: i32) -> (i32, i32, i32) {
    %c0_i32 = arith.constant 0 : i32
    %c0_i32_0 = arith.constant 0 : i32
    %c0_i32_1 = arith.constant 0 : i32
    return %arg0, %c0_i32, %c0_i32_0 : i32, i32, i32
  }
}

module attributes {stable_mosaic.version = 11 : i64} {
  func.func @kernel(%arg0: i32, %arg1: memref<1x100x8xf32, #tpu.memory_space<vmem>>, %arg2: memref<9x8xf32, #tpu.memory_space<vmem>>, %arg3: memref<8x8xbf16, #tpu.memory_space<vmem>>, %arg4: memref<1x8xf32, #tpu.memory_space<vmem>>, %arg5: memref<1x8xf32, #tpu.memory_space<vmem>>, %arg6: memref<9x8xf32, #tpu.memory_space<vmem>>, %arg7: memref<8x8xbf16, #tpu.memory_space<vmem>>, %arg8: memref<1x8xf32, #tpu.memory_space<vmem>>, %arg9: memref<1x8xf32, #tpu.memory_space<vmem>>, %arg10: memref<78x1xf32, #tpu.memory_space<vmem>>, %arg11: memref<1x78x8xf32, #tpu.memory_space<vmem>>, %arg12: memref<1x78x8xf32, #tpu.memory_space<vmem>>, %arg13: memref<100x8xf32, #tpu.memory_space<vmem>>) attributes {dimension_semantics = [#tpu.dimension_semantics<parallel>], iteration_bounds = array<i64: 2>, scalar_prefetch = 0 : i64, scratch_operands = 1 : i64, tpu.core_type = #tpu.core_type<tc>, window_params = [{transform_indices = @transform_0, window_bounds = array<i64: 1, 100, 8>}, {pipeline_mode = #tpu.pipeline_mode<synchronous>, transform_indices = @transform_1, window_bounds = array<i64: 9, 8>}, {pipeline_mode = #tpu.pipeline_mode<synchronous>, transform_indices = @transform_2, window_bounds = array<i64: 8, 8>}, {pipeline_mode = #tpu.pipeline_mode<synchronous>, transform_indices = @transform_3, window_bounds = array<i64: 1, 8>}, {pipeline_mode = #tpu.pipeline_mode<synchronous>, transform_indices = @transform_4, window_bounds = array<i64: 1, 8>}, {pipeline_mode = #tpu.pipeline_mode<synchronous>, transform_indices = @transform_5, window_bounds = array<i64: 9, 8>}, {pipeline_mode = #tpu.pipeline_mode<synchronous>, transform_indices = @transform_6, window_bounds = array<i64: 8, 8>}, {pipeline_mode = #tpu.pipeline_mode<synchronous>, transform_indices = @transform_7, window_bounds = array<i64: 1, 8>}, {pipeline_mode = #tpu.pipeline_mode<synchronous>, transform_indices = @transform_8, window_bounds = array<i64: 1, 8>}, {pipeline_mode = #tpu.pipeline_mode<synchronous>, transform_indices = @transform_9, window_bounds = array<i64: 78, 1>}, {transform_indices = @transform_10, window_bounds = array<i64: 1, 78, 8>}, {transform_indices = @transform_11, window_bounds = array<i64: 1, 78, 8>}]} {
    %cst = arith.constant 0.000000e+00 : f32
    %0 = vector.broadcast %cst : f32 to vector<78x8xf32>
    %c0 = arith.constant 0 : index
    %c0_0 = arith.constant 0 : index
    %c0_1 = arith.constant 0 : index
    %1 = vector.load %arg1[%c0, %c0_0, %c0_1] : memref<1x100x8xf32, #tpu.memory_space<vmem>>, vector<1x78x8xf32>
    %2 = vector.shape_cast %1 : vector<1x78x8xf32> to vector<78x8xf32>
    %cst_2 = arith.constant 0.000000e+00 : f32
    %3 = vector.broadcast %cst_2 : f32 to vector<78x8xf32>
    %4 = arith.maximumf %2, %3 : vector<78x8xf32>
    %c0_3 = arith.constant 0 : index
    %c0_4 = arith.constant 0 : index
    %5 = vector.load %arg2[%c0_3, %c0_4] : memref<9x8xf32, #tpu.memory_space<vmem>>, vector<1x8xf32>
    %6 = vector.broadcast %5 : vector<1x8xf32> to vector<78x8xf32>
    %7 = arith.mulf %4, %6 : vector<78x8xf32>
    %8 = arith.addf %0, %7 : vector<78x8xf32>
    %c0_5 = arith.constant 0 : index
    %c1 = arith.constant 1 : index
    %c0_6 = arith.constant 0 : index
    %9 = vector.load %arg1[%c0_5, %c1, %c0_6] : memref<1x100x8xf32, #tpu.memory_space<vmem>>, vector<1x78x8xf32>
    %10 = vector.shape_cast %9 : vector<1x78x8xf32> to vector<78x8xf32>
    %cst_7 = arith.constant 0.000000e+00 : f32
    %11 = vector.broadcast %cst_7 : f32 to vector<78x8xf32>
    %12 = arith.maximumf %10, %11 : vector<78x8xf32>
    %c1_8 = arith.constant 1 : index
    %c0_9 = arith.constant 0 : index
    %13 = vector.load %arg2[%c1_8, %c0_9] : memref<9x8xf32, #tpu.memory_space<vmem>>, vector<1x8xf32>
    %14 = vector.broadcast %13 : vector<1x8xf32> to vector<78x8xf32>
    %15 = arith.mulf %12, %14 : vector<78x8xf32>
    %16 = arith.addf %8, %15 : vector<78x8xf32>
    %c0_10 = arith.constant 0 : index
    %c2 = arith.constant 2 : index
    %c0_11 = arith.constant 0 : index
    %17 = vector.load %arg1[%c0_10, %c2, %c0_11] : memref<1x100x8xf32, #tpu.memory_space<vmem>>, vector<1x78x8xf32>
    %18 = vector.shape_cast %17 : vector<1x78x8xf32> to vector<78x8xf32>
    %cst_12 = arith.constant 0.000000e+00 : f32
    %19 = vector.broadcast %cst_12 : f32 to vector<78x8xf32>
    %20 = arith.maximumf %18, %19 : vector<78x8xf32>
    %c2_13 = arith.constant 2 : index
    %c0_14 = arith.constant 0 : index
    %21 = vector.load %arg2[%c2_13, %c0_14] : memref<9x8xf32, #tpu.memory_space<vmem>>, vector<1x8xf32>
    %22 = vector.broadcast %21 : vector<1x8xf32> to vector<78x8xf32>
    %23 = arith.mulf %20, %22 : vector<78x8xf32>
    %24 = arith.addf %16, %23 : vector<78x8xf32>
    %c0_15 = arith.constant 0 : index
    %c10 = arith.constant 10 : index
    %c0_16 = arith.constant 0 : index
    %25 = vector.load %arg1[%c0_15, %c10, %c0_16] : memref<1x100x8xf32, #tpu.memory_space<vmem>>, vector<1x78x8xf32>
    %26 = vector.shape_cast %25 : vector<1x78x8xf32> to vector<78x8xf32>
    %cst_17 = arith.constant 0.000000e+00 : f32
    %27 = vector.broadcast %cst_17 : f32 to vector<78x8xf32>
    %28 = arith.maximumf %26, %27 : vector<78x8xf32>
    %c3 = arith.constant 3 : index
    %c0_18 = arith.constant 0 : index
    %29 = vector.load %arg2[%c3, %c0_18] : memref<9x8xf32, #tpu.memory_space<vmem>>, vector<1x8xf32>
    %30 = vector.broadcast %29 : vector<1x8xf32> to vector<78x8xf32>
    %31 = arith.mulf %28, %30 : vector<78x8xf32>
    %32 = arith.addf %24, %31 : vector<78x8xf32>
    %c0_19 = arith.constant 0 : index
    %c11 = arith.constant 11 : index
    %c0_20 = arith.constant 0 : index
    %33 = vector.load %arg1[%c0_19, %c11, %c0_20] : memref<1x100x8xf32, #tpu.memory_space<vmem>>, vector<1x78x8xf32>
    %34 = vector.shape_cast %33 : vector<1x78x8xf32> to vector<78x8xf32>
    %cst_21 = arith.constant 0.000000e+00 : f32
    %35 = vector.broadcast %cst_21 : f32 to vector<78x8xf32>
    %36 = arith.maximumf %34, %35 : vector<78x8xf32>
    %c4 = arith.constant 4 : index
    %c0_22 = arith.constant 0 : index
    %37 = vector.load %arg2[%c4, %c0_22] : memref<9x8xf32, #tpu.memory_space<vmem>>, vector<1x8xf32>
    %38 = vector.broadcast %37 : vector<1x8xf32> to vector<78x8xf32>
    %39 = arith.mulf %36, %38 : vector<78x8xf32>
    %40 = arith.addf %32, %39 : vector<78x8xf32>
    %c0_23 = arith.constant 0 : index
    %c12 = arith.constant 12 : index
    %c0_24 = arith.constant 0 : index
    %41 = vector.load %arg1[%c0_23, %c12, %c0_24] : memref<1x100x8xf32, #tpu.memory_space<vmem>>, vector<1x78x8xf32>
    %42 = vector.shape_cast %41 : vector<1x78x8xf32> to vector<78x8xf32>
    %cst_25 = arith.constant 0.000000e+00 : f32
    %43 = vector.broadcast %cst_25 : f32 to vector<78x8xf32>
    %44 = arith.maximumf %42, %43 : vector<78x8xf32>
    %c5 = arith.constant 5 : index
    %c0_26 = arith.constant 0 : index
    %45 = vector.load %arg2[%c5, %c0_26] : memref<9x8xf32, #tpu.memory_space<vmem>>, vector<1x8xf32>
    %46 = vector.broadcast %45 : vector<1x8xf32> to vector<78x8xf32>
    %47 = arith.mulf %44, %46 : vector<78x8xf32>
    %48 = arith.addf %40, %47 : vector<78x8xf32>
    %c0_27 = arith.constant 0 : index
    %c20 = arith.constant 20 : index
    %c0_28 = arith.constant 0 : index
    %49 = vector.load %arg1[%c0_27, %c20, %c0_28] : memref<1x100x8xf32, #tpu.memory_space<vmem>>, vector<1x78x8xf32>
    %50 = vector.shape_cast %49 : vector<1x78x8xf32> to vector<78x8xf32>
    %cst_29 = arith.constant 0.000000e+00 : f32
    %51 = vector.broadcast %cst_29 : f32 to vector<78x8xf32>
    %52 = arith.maximumf %50, %51 : vector<78x8xf32>
    %c6 = arith.constant 6 : index
    %c0_30 = arith.constant 0 : index
    %53 = vector.load %arg2[%c6, %c0_30] : memref<9x8xf32, #tpu.memory_space<vmem>>, vector<1x8xf32>
    %54 = vector.broadcast %53 : vector<1x8xf32> to vector<78x8xf32>
    %55 = arith.mulf %52, %54 : vector<78x8xf32>
    %56 = arith.addf %48, %55 : vector<78x8xf32>
    %c0_31 = arith.constant 0 : index
    %c21 = arith.constant 21 : index
    %c0_32 = arith.constant 0 : index
    %57 = vector.load %arg1[%c0_31, %c21, %c0_32] : memref<1x100x8xf32, #tpu.memory_space<vmem>>, vector<1x78x8xf32>
    %58 = vector.shape_cast %57 : vector<1x78x8xf32> to vector<78x8xf32>
    %cst_33 = arith.constant 0.000000e+00 : f32
    %59 = vector.broadcast %cst_33 : f32 to vector<78x8xf32>
    %60 = arith.maximumf %58, %59 : vector<78x8xf32>
    %c7 = arith.constant 7 : index
    %c0_34 = arith.constant 0 : index
    %61 = vector.load %arg2[%c7, %c0_34] : memref<9x8xf32, #tpu.memory_space<vmem>>, vector<1x8xf32>
    %62 = vector.broadcast %61 : vector<1x8xf32> to vector<78x8xf32>
    %63 = arith.mulf %60, %62 : vector<78x8xf32>
    %64 = arith.addf %56, %63 : vector<78x8xf32>
    %c0_35 = arith.constant 0 : index
    %c22 = arith.constant 22 : index
    %c0_36 = arith.constant 0 : index
    %65 = vector.load %arg1[%c0_35, %c22, %c0_36] : memref<1x100x8xf32, #tpu.memory_space<vmem>>, vector<1x78x8xf32>
    %66 = vector.shape_cast %65 : vector<1x78x8xf32> to vector<78x8xf32>
    %cst_37 = arith.constant 0.000000e+00 : f32
    %67 = vector.broadcast %cst_37 : f32 to vector<78x8xf32>
    %68 = arith.maximumf %66, %67 : vector<78x8xf32>
    %c8 = arith.constant 8 : index
    %c0_38 = arith.constant 0 : index
    %69 = vector.load %arg2[%c8, %c0_38] : memref<9x8xf32, #tpu.memory_space<vmem>>, vector<1x8xf32>
    %70 = vector.broadcast %69 : vector<1x8xf32> to vector<78x8xf32>
    %71 = arith.mulf %68, %70 : vector<78x8xf32>
    %72 = arith.addf %64, %71 : vector<78x8xf32>
    %73 = arith.truncf %72 : vector<78x8xf32> to vector<78x8xbf16>
    %c0_39 = arith.constant 0 : index
    %c0_40 = arith.constant 0 : index
    %74 = vector.load %arg3[%c0_39, %c0_40] : memref<8x8xbf16, #tpu.memory_space<vmem>>, vector<8x8xbf16>
    %cst_41 = arith.constant dense<0.000000e+00> : vector<78x8xf32>
    %75 = tpu.matmul %73, %74, %cst_41 {dimension_numbers = #tpu.dot_dimension_numbers<[1], [0], [0], [1], [0, 0, 1, 1], [], []>} : vector<78x8xbf16>, vector<8x8xbf16>, vector<78x8xf32> -> vector<78x8xf32>
    %c0_42 = arith.constant 0 : index
    %c0_43 = arith.constant 0 : index
    %76 = vector.load %arg4[%c0_42, %c0_43] : memref<1x8xf32, #tpu.memory_space<vmem>>, vector<1x8xf32>
    %77 = vector.broadcast %76 : vector<1x8xf32> to vector<78x8xf32>
    %78 = arith.mulf %75, %77 : vector<78x8xf32>
    %c0_44 = arith.constant 0 : index
    %c0_45 = arith.constant 0 : index
    %79 = vector.load %arg5[%c0_44, %c0_45] : memref<1x8xf32, #tpu.memory_space<vmem>>, vector<1x8xf32>
    %80 = vector.broadcast %79 : vector<1x8xf32> to vector<78x8xf32>
    %81 = arith.addf %78, %80 : vector<78x8xf32>
    %c0_46 = arith.constant 0 : index
    %c0_47 = arith.constant 0 : index
    %82 = vector.load %arg10[%c0_46, %c0_47] : memref<78x1xf32, #tpu.memory_space<vmem>>, vector<78x1xf32>
    %83 = vector.broadcast %82 : vector<78x1xf32> to vector<78x8xf32>
    %84 = arith.mulf %81, %83 : vector<78x8xf32>
    %cst_48 = arith.constant 0.000000e+00 : f32
    %85 = vector.broadcast %cst_48 : f32 to vector<100x8xf32>
    %c0_49 = arith.constant 0 : index
    %c0_50 = arith.constant 0 : index
    %86 = vector.load %arg13[%c0_49, %c0_50] : memref<100x8xf32, #tpu.memory_space<vmem>>, vector<100x8xf32>
    tpu.vector_store %arg13[%c0_49, %c0_50], %85 {strides = array<i32>} : memref<100x8xf32, #tpu.memory_space<vmem>>, vector<100x8xf32>,
    %c11_51 = arith.constant 11 : index
    %c0_52 = arith.constant 0 : index
    %87 = vector.load %arg13[%c11_51, %c0_52] : memref<100x8xf32, #tpu.memory_space<vmem>>, vector<78x8xf32>
    tpu.vector_store %arg13[%c11_51, %c0_52], %84 {strides = array<i32>} : memref<100x8xf32, #tpu.memory_space<vmem>>, vector<78x8xf32>,
    %cst_53 = arith.constant 0.000000e+00 : f32
    %88 = vector.broadcast %cst_53 : f32 to vector<78x8xf32>
    %c0_54 = arith.constant 0 : index
    %c0_55 = arith.constant 0 : index
    %89 = vector.load %arg13[%c0_54, %c0_55] : memref<100x8xf32, #tpu.memory_space<vmem>>, vector<78x8xf32>
    %cst_56 = arith.constant 0.000000e+00 : f32
    %90 = vector.broadcast %cst_56 : f32 to vector<78x8xf32>
    %91 = arith.maximumf %89, %90 : vector<78x8xf32>
    %c0_57 = arith.constant 0 : index
    %c0_58 = arith.constant 0 : index
    %92 = vector.load %arg6[%c0_57, %c0_58] : memref<9x8xf32, #tpu.memory_space<vmem>>, vector<1x8xf32>
    %93 = vector.broadcast %92 : vector<1x8xf32> to vector<78x8xf32>
    %94 = arith.mulf %91, %93 : vector<78x8xf32>
    %95 = arith.addf %88, %94 : vector<78x8xf32>
    %c1_59 = arith.constant 1 : index
    %c0_60 = arith.constant 0 : index
    %96 = vector.load %arg13[%c1_59, %c0_60] : memref<100x8xf32, #tpu.memory_space<vmem>>, vector<78x8xf32>
    %cst_61 = arith.constant 0.000000e+00 : f32
    %97 = vector.broadcast %cst_61 : f32 to vector<78x8xf32>
    %98 = arith.maximumf %96, %97 : vector<78x8xf32>
    %c1_62 = arith.constant 1 : index
    %c0_63 = arith.constant 0 : index
    %99 = vector.load %arg6[%c1_62, %c0_63] : memref<9x8xf32, #tpu.memory_space<vmem>>, vector<1x8xf32>
    %100 = vector.broadcast %99 : vector<1x8xf32> to vector<78x8xf32>
    %101 = arith.mulf %98, %100 : vector<78x8xf32>
    %102 = arith.addf %95, %101 : vector<78x8xf32>
    %c2_64 = arith.constant 2 : index
    %c0_65 = arith.constant 0 : index
    %103 = vector.load %arg13[%c2_64, %c0_65] : memref<100x8xf32, #tpu.memory_space<vmem>>, vector<78x8xf32>
    %cst_66 = arith.constant 0.000000e+00 : f32
    %104 = vector.broadcast %cst_66 : f32 to vector<78x8xf32>
    %105 = arith.maximumf %103, %104 : vector<78x8xf32>
    %c2_67 = arith.constant 2 : index
    %c0_68 = arith.constant 0 : index
    %106 = vector.load %arg6[%c2_67, %c0_68] : memref<9x8xf32, #tpu.memory_space<vmem>>, vector<1x8xf32>
    %107 = vector.broadcast %106 : vector<1x8xf32> to vector<78x8xf32>
    %108 = arith.mulf %105, %107 : vector<78x8xf32>
    %109 = arith.addf %102, %108 : vector<78x8xf32>
    %c10_69 = arith.constant 10 : index
    %c0_70 = arith.constant 0 : index
    %110 = vector.load %arg13[%c10_69, %c0_70] : memref<100x8xf32, #tpu.memory_space<vmem>>, vector<78x8xf32>
    %cst_71 = arith.constant 0.000000e+00 : f32
    %111 = vector.broadcast %cst_71 : f32 to vector<78x8xf32>
    %112 = arith.maximumf %110, %111 : vector<78x8xf32>
    %c3_72 = arith.constant 3 : index
    %c0_73 = arith.constant 0 : index
    %113 = vector.load %arg6[%c3_72, %c0_73] : memref<9x8xf32, #tpu.memory_space<vmem>>, vector<1x8xf32>
    %114 = vector.broadcast %113 : vector<1x8xf32> to vector<78x8xf32>
    %115 = arith.mulf %112, %114 : vector<78x8xf32>
    %116 = arith.addf %109, %115 : vector<78x8xf32>
    %c11_74 = arith.constant 11 : index
    %c0_75 = arith.constant 0 : index
    %117 = vector.load %arg13[%c11_74, %c0_75] : memref<100x8xf32, #tpu.memory_space<vmem>>, vector<78x8xf32>
    %cst_76 = arith.constant 0.000000e+00 : f32
    %118 = vector.broadcast %cst_76 : f32 to vector<78x8xf32>
    %119 = arith.maximumf %117, %118 : vector<78x8xf32>
    %c4_77 = arith.constant 4 : index
    %c0_78 = arith.constant 0 : index
    %120 = vector.load %arg6[%c4_77, %c0_78] : memref<9x8xf32, #tpu.memory_space<vmem>>, vector<1x8xf32>
    %121 = vector.broadcast %120 : vector<1x8xf32> to vector<78x8xf32>
    %122 = arith.mulf %119, %121 : vector<78x8xf32>
    %123 = arith.addf %116, %122 : vector<78x8xf32>
    %c12_79 = arith.constant 12 : index
    %c0_80 = arith.constant 0 : index
    %124 = vector.load %arg13[%c12_79, %c0_80] : memref<100x8xf32, #tpu.memory_space<vmem>>, vector<78x8xf32>
    %cst_81 = arith.constant 0.000000e+00 : f32
    %125 = vector.broadcast %cst_81 : f32 to vector<78x8xf32>
    %126 = arith.maximumf %124, %125 : vector<78x8xf32>
    %c5_82 = arith.constant 5 : index
    %c0_83 = arith.constant 0 : index
    %127 = vector.load %arg6[%c5_82, %c0_83] : memref<9x8xf32, #tpu.memory_space<vmem>>, vector<1x8xf32>
    %128 = vector.broadcast %127 : vector<1x8xf32> to vector<78x8xf32>
    %129 = arith.mulf %126, %128 : vector<78x8xf32>
    %130 = arith.addf %123, %129 : vector<78x8xf32>
    %c20_84 = arith.constant 20 : index
    %c0_85 = arith.constant 0 : index
    %131 = vector.load %arg13[%c20_84, %c0_85] : memref<100x8xf32, #tpu.memory_space<vmem>>, vector<78x8xf32>
    %cst_86 = arith.constant 0.000000e+00 : f32
    %132 = vector.broadcast %cst_86 : f32 to vector<78x8xf32>
    %133 = arith.maximumf %131, %132 : vector<78x8xf32>
    %c6_87 = arith.constant 6 : index
    %c0_88 = arith.constant 0 : index
    %134 = vector.load %arg6[%c6_87, %c0_88] : memref<9x8xf32, #tpu.memory_space<vmem>>, vector<1x8xf32>
    %135 = vector.broadcast %134 : vector<1x8xf32> to vector<78x8xf32>
    %136 = arith.mulf %133, %135 : vector<78x8xf32>
    %137 = arith.addf %130, %136 : vector<78x8xf32>
    %c21_89 = arith.constant 21 : index
    %c0_90 = arith.constant 0 : index
    %138 = vector.load %arg13[%c21_89, %c0_90] : memref<100x8xf32, #tpu.memory_space<vmem>>, vector<78x8xf32>
    %cst_91 = arith.constant 0.000000e+00 : f32
    %139 = vector.broadcast %cst_91 : f32 to vector<78x8xf32>
    %140 = arith.maximumf %138, %139 : vector<78x8xf32>
    %c7_92 = arith.constant 7 : index
    %c0_93 = arith.constant 0 : index
    %141 = vector.load %arg6[%c7_92, %c0_93] : memref<9x8xf32, #tpu.memory_space<vmem>>, vector<1x8xf32>
    %142 = vector.broadcast %141 : vector<1x8xf32> to vector<78x8xf32>
    %143 = arith.mulf %140, %142 : vector<78x8xf32>
    %144 = arith.addf %137, %143 : vector<78x8xf32>
    %c22_94 = arith.constant 22 : index
    %c0_95 = arith.constant 0 : index
    %145 = vector.load %arg13[%c22_94, %c0_95] : memref<100x8xf32, #tpu.memory_space<vmem>>, vector<78x8xf32>
    %cst_96 = arith.constant 0.000000e+00 : f32
    %146 = vector.broadcast %cst_96 : f32 to vector<78x8xf32>
    %147 = arith.maximumf %145, %146 : vector<78x8xf32>
    %c8_97 = arith.constant 8 : index
    %c0_98 = arith.constant 0 : index
    %148 = vector.load %arg6[%c8_97, %c0_98] : memref<9x8xf32, #tpu.memory_space<vmem>>, vector<1x8xf32>
    %149 = vector.broadcast %148 : vector<1x8xf32> to vector<78x8xf32>
    %150 = arith.mulf %147, %149 : vector<78x8xf32>
    %151 = arith.addf %144, %150 : vector<78x8xf32>
    %152 = arith.truncf %151 : vector<78x8xf32> to vector<78x8xbf16>
    %c0_99 = arith.constant 0 : index
    %c0_100 = arith.constant 0 : index
    %153 = vector.load %arg7[%c0_99, %c0_100] : memref<8x8xbf16, #tpu.memory_space<vmem>>, vector<8x8xbf16>
    %cst_101 = arith.constant dense<0.000000e+00> : vector<78x8xf32>
    %154 = tpu.matmul %152, %153, %cst_101 {dimension_numbers = #tpu.dot_dimension_numbers<[1], [0], [0], [1], [0, 0, 1, 1], [], []>} : vector<78x8xbf16>, vector<8x8xbf16>, vector<78x8xf32> -> vector<78x8xf32>
    %c0_102 = arith.constant 0 : index
    %c0_103 = arith.constant 0 : index
    %155 = vector.load %arg8[%c0_102, %c0_103] : memref<1x8xf32, #tpu.memory_space<vmem>>, vector<1x8xf32>
    %156 = vector.broadcast %155 : vector<1x8xf32> to vector<78x8xf32>
    %157 = arith.mulf %154, %156 : vector<78x8xf32>
    %c0_104 = arith.constant 0 : index
    %c0_105 = arith.constant 0 : index
    %158 = vector.load %arg9[%c0_104, %c0_105] : memref<1x8xf32, #tpu.memory_space<vmem>>, vector<1x8xf32>
    %159 = vector.broadcast %158 : vector<1x8xf32> to vector<78x8xf32>
    %160 = arith.addf %157, %159 : vector<78x8xf32>
    %c0_106 = arith.constant 0 : index
    %c0_107 = arith.constant 0 : index
    %c0_108 = arith.constant 0 : index
    %161 = vector.load %arg11[%c0_106, %c0_107, %c0_108] : memref<1x78x8xf32, #tpu.memory_space<vmem>>, vector<1x78x8xf32>
    %162 = vector.shape_cast %161 : vector<1x78x8xf32> to vector<78x8xf32>
    %163 = arith.addf %160, %162 : vector<78x8xf32>
    %c0_109 = arith.constant 0 : index
    %c0_110 = arith.constant 0 : index
    %c0_111 = arith.constant 0 : index
    %164 = vector.load %arg12[%c0_109, %c0_110, %c0_111] : memref<1x78x8xf32, #tpu.memory_space<vmem>>, vector<1x78x8xf32>
    %165 = vector.shape_cast %164 : vector<1x78x8xf32> to vector<78x8xf32>
    %166 = vector.shape_cast %163 : vector<78x8xf32> to vector<1x78x8xf32>
    tpu.vector_store %arg12[%c0_109, %c0_110, %c0_111], %166 {strides = array<i32>} : memref<1x78x8xf32, #tpu.memory_space<vmem>>, vector<1x78x8xf32>,
    return
  }
  func.func @transform_0(%arg0: i32) -> (i32, i32, i32) {
    %c0_i32 = arith.constant 0 : i32
    %c0_i32_0 = arith.constant 0 : i32
    %c0_i32_1 = arith.constant 0 : i32
    return %arg0, %c0_i32, %c0_i32_0 : i32, i32, i32
  }
  func.func @transform_1(%arg0: i32) -> (i32, i32) {
    %c0_i32 = arith.constant 0 : i32
    %c0_i32_0 = arith.constant 0 : i32
    %c0_i32_1 = arith.constant 0 : i32
    return %c0_i32, %c0_i32_0 : i32, i32
  }
  func.func @transform_2(%arg0: i32) -> (i32, i32) {
    %c0_i32 = arith.constant 0 : i32
    %c0_i32_0 = arith.constant 0 : i32
    %c0_i32_1 = arith.constant 0 : i32
    return %c0_i32, %c0_i32_0 : i32, i32
  }
  func.func @transform_3(%arg0: i32) -> (i32, i32) {
    %c0_i32 = arith.constant 0 : i32
    %c0_i32_0 = arith.constant 0 : i32
    %c0_i32_1 = arith.constant 0 : i32
    return %c0_i32, %c0_i32_0 : i32, i32
  }
  func.func @transform_4(%arg0: i32) -> (i32, i32) {
    %c0_i32 = arith.constant 0 : i32
    %c0_i32_0 = arith.constant 0 : i32
    %c0_i32_1 = arith.constant 0 : i32
    return %c0_i32, %c0_i32_0 : i32, i32
  }
  func.func @transform_5(%arg0: i32) -> (i32, i32) {
    %c0_i32 = arith.constant 0 : i32
    %c0_i32_0 = arith.constant 0 : i32
    %c0_i32_1 = arith.constant 0 : i32
    return %c0_i32, %c0_i32_0 : i32, i32
  }
  func.func @transform_6(%arg0: i32) -> (i32, i32) {
    %c0_i32 = arith.constant 0 : i32
    %c0_i32_0 = arith.constant 0 : i32
    %c0_i32_1 = arith.constant 0 : i32
    return %c0_i32, %c0_i32_0 : i32, i32
  }
  func.func @transform_7(%arg0: i32) -> (i32, i32) {
    %c0_i32 = arith.constant 0 : i32
    %c0_i32_0 = arith.constant 0 : i32
    %c0_i32_1 = arith.constant 0 : i32
    return %c0_i32, %c0_i32_0 : i32, i32
  }
  func.func @transform_8(%arg0: i32) -> (i32, i32) {
    %c0_i32 = arith.constant 0 : i32
    %c0_i32_0 = arith.constant 0 : i32
    %c0_i32_1 = arith.constant 0 : i32
    return %c0_i32, %c0_i32_0 : i32, i32
  }
  func.func @transform_9(%arg0: i32) -> (i32, i32) {
    %c0_i32 = arith.constant 0 : i32
    %c0_i32_0 = arith.constant 0 : i32
    %c0_i32_1 = arith.constant 0 : i32
    return %c0_i32, %c0_i32_0 : i32, i32
  }
  func.func @transform_10(%arg0: i32) -> (i32, i32, i32) {
    %c0_i32 = arith.constant 0 : i32
    %c0_i32_0 = arith.constant 0 : i32
    %c0_i32_1 = arith.constant 0 : i32
    return %arg0, %c0_i32, %c0_i32_0 : i32, i32, i32
  }
  func.func @transform_11(%arg0: i32) -> (i32, i32, i32) {
    %c0_i32 = arith.constant 0 : i32
    %c0_i32_0 = arith.constant 0 : i32
    %c0_i32_1 = arith.constant 0 : i32
    return %arg0, %c0_i32, %c0_i32_0 : i32, i32, i32
  }
}

module attributes {stable_mosaic.version = 11 : i64} {
  func.func @kernel(%arg0: i32, %arg1: memref<1x64x16xf32, #tpu.memory_space<vmem>>, %arg2: memref<16x16xbf16, #tpu.memory_space<vmem>>, %arg3: memref<1x16xf32, #tpu.memory_space<vmem>>, %arg4: memref<1x16xf32, #tpu.memory_space<vmem>>, %arg5: memref<1x64x16xf32, #tpu.memory_space<vmem>>) attributes {dimension_semantics = [#tpu.dimension_semantics<parallel>], iteration_bounds = array<i64: 2>, scalar_prefetch = 0 : i64, scratch_operands = 0 : i64, tpu.core_type = #tpu.core_type<tc>, window_params = [{transform_indices = @transform_0, window_bounds = array<i64: 1, 64, 16>}, {pipeline_mode = #tpu.pipeline_mode<synchronous>, transform_indices = @transform_1, window_bounds = array<i64: 16, 16>}, {pipeline_mode = #tpu.pipeline_mode<synchronous>, transform_indices = @transform_2, window_bounds = array<i64: 1, 16>}, {pipeline_mode = #tpu.pipeline_mode<synchronous>, transform_indices = @transform_3, window_bounds = array<i64: 1, 16>}, {transform_indices = @transform_4, window_bounds = array<i64: 1, 64, 16>}]} {
    %c0 = arith.constant 0 : index
    %c0_0 = arith.constant 0 : index
    %c0_1 = arith.constant 0 : index
    %0 = vector.load %arg1[%c0, %c0_0, %c0_1] : memref<1x64x16xf32, #tpu.memory_space<vmem>>, vector<1x64x16xf32>
    %1 = vector.shape_cast %0 : vector<1x64x16xf32> to vector<64x16xf32>
    %cst = arith.constant 0.000000e+00 : f32
    %2 = vector.broadcast %cst : f32 to vector<64x16xf32>
    %3 = arith.maximumf %1, %2 : vector<64x16xf32>
    %4 = arith.truncf %3 : vector<64x16xf32> to vector<64x16xbf16>
    %c0_2 = arith.constant 0 : index
    %c0_3 = arith.constant 0 : index
    %5 = vector.load %arg2[%c0_2, %c0_3] : memref<16x16xbf16, #tpu.memory_space<vmem>>, vector<16x16xbf16>
    %cst_4 = arith.constant dense<0.000000e+00> : vector<64x16xf32>
    %6 = tpu.matmul %4, %5, %cst_4 {dimension_numbers = #tpu.dot_dimension_numbers<[1], [0], [0], [1], [0, 0, 1, 1], [], []>} : vector<64x16xbf16>, vector<16x16xbf16>, vector<64x16xf32> -> vector<64x16xf32>
    %c0_5 = arith.constant 0 : index
    %c0_6 = arith.constant 0 : index
    %7 = vector.load %arg3[%c0_5, %c0_6] : memref<1x16xf32, #tpu.memory_space<vmem>>, vector<1x16xf32>
    %8 = vector.broadcast %7 : vector<1x16xf32> to vector<64x16xf32>
    %9 = arith.mulf %6, %8 : vector<64x16xf32>
    %c0_7 = arith.constant 0 : index
    %c0_8 = arith.constant 0 : index
    %10 = vector.load %arg4[%c0_7, %c0_8] : memref<1x16xf32, #tpu.memory_space<vmem>>, vector<1x16xf32>
    %11 = vector.broadcast %10 : vector<1x16xf32> to vector<64x16xf32>
    %12 = arith.addf %9, %11 : vector<64x16xf32>
    %c0_9 = arith.constant 0 : index
    %c0_10 = arith.constant 0 : index
    %c0_11 = arith.constant 0 : index
    %13 = vector.load %arg5[%c0_9, %c0_10, %c0_11] : memref<1x64x16xf32, #tpu.memory_space<vmem>>, vector<1x64x16xf32>
    %14 = vector.shape_cast %13 : vector<1x64x16xf32> to vector<64x16xf32>
    %15 = vector.shape_cast %12 : vector<64x16xf32> to vector<1x64x16xf32>
    tpu.vector_store %arg5[%c0_9, %c0_10, %c0_11], %15 {strides = array<i32>} : memref<1x64x16xf32, #tpu.memory_space<vmem>>, vector<1x64x16xf32>,
    return
  }
  func.func @transform_0(%arg0: i32) -> (i32, i32, i32) {
    %c0_i32 = arith.constant 0 : i32
    %c0_i32_0 = arith.constant 0 : i32
    %c0_i32_1 = arith.constant 0 : i32
    return %arg0, %c0_i32, %c0_i32_0 : i32, i32, i32
  }
  func.func @transform_1(%arg0: i32) -> (i32, i32) {
    %c0_i32 = arith.constant 0 : i32
    %c0_i32_0 = arith.constant 0 : i32
    %c0_i32_1 = arith.constant 0 : i32
    return %c0_i32, %c0_i32_0 : i32, i32
  }
  func.func @transform_2(%arg0: i32) -> (i32, i32) {
    %c0_i32 = arith.constant 0 : i32
    %c0_i32_0 = arith.constant 0 : i32
    %c0_i32_1 = arith.constant 0 : i32
    return %c0_i32, %c0_i32_0 : i32, i32
  }
  func.func @transform_3(%arg0: i32) -> (i32, i32) {
    %c0_i32 = arith.constant 0 : i32
    %c0_i32_0 = arith.constant 0 : i32
    %c0_i32_1 = arith.constant 0 : i32
    return %c0_i32, %c0_i32_0 : i32, i32
  }
  func.func @transform_4(%arg0: i32) -> (i32, i32, i32) {
    %c0_i32 = arith.constant 0 : i32
    %c0_i32_0 = arith.constant 0 : i32
    %c0_i32_1 = arith.constant 0 : i32
    return %arg0, %c0_i32, %c0_i32_0 : i32, i32, i32
  }
}

module attributes {stable_mosaic.version = 11 : i64} {
  func.func @kernel(%arg0: i32, %arg1: memref<1x16x32xf32, #tpu.memory_space<vmem>>, %arg2: memref<32x16xbf16, #tpu.memory_space<vmem>>, %arg3: memref<1x16xf32, #tpu.memory_space<vmem>>, %arg4: memref<1x16xf32, #tpu.memory_space<vmem>>, %arg5: memref<1x16x16xf32, #tpu.memory_space<vmem>>, %arg6: memref<1x16x16xf32, #tpu.memory_space<vmem>>) attributes {dimension_semantics = [#tpu.dimension_semantics<parallel>], iteration_bounds = array<i64: 2>, scalar_prefetch = 0 : i64, scratch_operands = 0 : i64, tpu.core_type = #tpu.core_type<tc>, window_params = [{transform_indices = @transform_0, window_bounds = array<i64: 1, 16, 32>}, {pipeline_mode = #tpu.pipeline_mode<synchronous>, transform_indices = @transform_1, window_bounds = array<i64: 32, 16>}, {pipeline_mode = #tpu.pipeline_mode<synchronous>, transform_indices = @transform_2, window_bounds = array<i64: 1, 16>}, {pipeline_mode = #tpu.pipeline_mode<synchronous>, transform_indices = @transform_3, window_bounds = array<i64: 1, 16>}, {transform_indices = @transform_4, window_bounds = array<i64: 1, 16, 16>}, {transform_indices = @transform_5, window_bounds = array<i64: 1, 16, 16>}]} {
    %c0 = arith.constant 0 : index
    %c0_0 = arith.constant 0 : index
    %c0_1 = arith.constant 0 : index
    %0 = vector.load %arg1[%c0, %c0_0, %c0_1] : memref<1x16x32xf32, #tpu.memory_space<vmem>>, vector<1x16x32xf32>
    %1 = vector.shape_cast %0 : vector<1x16x32xf32> to vector<16x32xf32>
    %cst = arith.constant 0.000000e+00 : f32
    %2 = vector.broadcast %cst : f32 to vector<16x32xf32>
    %3 = arith.maximumf %1, %2 : vector<16x32xf32>
    %4 = arith.truncf %3 : vector<16x32xf32> to vector<16x32xbf16>
    %c0_2 = arith.constant 0 : index
    %c0_3 = arith.constant 0 : index
    %5 = vector.load %arg2[%c0_2, %c0_3] : memref<32x16xbf16, #tpu.memory_space<vmem>>, vector<32x16xbf16>
    %cst_4 = arith.constant dense<0.000000e+00> : vector<16x16xf32>
    %6 = tpu.matmul %4, %5, %cst_4 {dimension_numbers = #tpu.dot_dimension_numbers<[1], [0], [0], [1], [0, 0, 1, 1], [], []>} : vector<16x32xbf16>, vector<32x16xbf16>, vector<16x16xf32> -> vector<16x16xf32>
    %c0_5 = arith.constant 0 : index
    %c0_6 = arith.constant 0 : index
    %7 = vector.load %arg3[%c0_5, %c0_6] : memref<1x16xf32, #tpu.memory_space<vmem>>, vector<1x16xf32>
    %8 = vector.broadcast %7 : vector<1x16xf32> to vector<16x16xf32>
    %9 = arith.mulf %6, %8 : vector<16x16xf32>
    %c0_7 = arith.constant 0 : index
    %c0_8 = arith.constant 0 : index
    %10 = vector.load %arg4[%c0_7, %c0_8] : memref<1x16xf32, #tpu.memory_space<vmem>>, vector<1x16xf32>
    %11 = vector.broadcast %10 : vector<1x16xf32> to vector<16x16xf32>
    %12 = arith.addf %9, %11 : vector<16x16xf32>
    %c0_9 = arith.constant 0 : index
    %c0_10 = arith.constant 0 : index
    %c0_11 = arith.constant 0 : index
    %13 = vector.load %arg5[%c0_9, %c0_10, %c0_11] : memref<1x16x16xf32, #tpu.memory_space<vmem>>, vector<1x16x16xf32>
    %14 = vector.shape_cast %13 : vector<1x16x16xf32> to vector<16x16xf32>
    %15 = arith.addf %12, %14 : vector<16x16xf32>
    %c0_12 = arith.constant 0 : index
    %c0_13 = arith.constant 0 : index
    %c0_14 = arith.constant 0 : index
    %16 = vector.load %arg6[%c0_12, %c0_13, %c0_14] : memref<1x16x16xf32, #tpu.memory_space<vmem>>, vector<1x16x16xf32>
    %17 = vector.shape_cast %16 : vector<1x16x16xf32> to vector<16x16xf32>
    %18 = vector.shape_cast %15 : vector<16x16xf32> to vector<1x16x16xf32>
    tpu.vector_store %arg6[%c0_12, %c0_13, %c0_14], %18 {strides = array<i32>} : memref<1x16x16xf32, #tpu.memory_space<vmem>>, vector<1x16x16xf32>,
    return
  }
  func.func @transform_0(%arg0: i32) -> (i32, i32, i32) {
    %c0_i32 = arith.constant 0 : i32
    %c0_i32_0 = arith.constant 0 : i32
    %c0_i32_1 = arith.constant 0 : i32
    return %arg0, %c0_i32, %c0_i32_0 : i32, i32, i32
  }
  func.func @transform_1(%arg0: i32) -> (i32, i32) {
    %c0_i32 = arith.constant 0 : i32
    %c0_i32_0 = arith.constant 0 : i32
    %c0_i32_1 = arith.constant 0 : i32
    return %c0_i32, %c0_i32_0 : i32, i32
  }
  func.func @transform_2(%arg0: i32) -> (i32, i32) {
    %c0_i32 = arith.constant 0 : i32
    %c0_i32_0 = arith.constant 0 : i32
    %c0_i32_1 = arith.constant 0 : i32
    return %c0_i32, %c0_i32_0 : i32, i32
  }
  func.func @transform_3(%arg0: i32) -> (i32, i32) {
    %c0_i32 = arith.constant 0 : i32
    %c0_i32_0 = arith.constant 0 : i32
    %c0_i32_1 = arith.constant 0 : i32
    return %c0_i32, %c0_i32_0 : i32, i32
  }
  func.func @transform_4(%arg0: i32) -> (i32, i32, i32) {
    %c0_i32 = arith.constant 0 : i32
    %c0_i32_0 = arith.constant 0 : i32
    %c0_i32_1 = arith.constant 0 : i32
    return %arg0, %c0_i32, %c0_i32_0 : i32, i32, i32
  }
  func.func @transform_5(%arg0: i32) -> (i32, i32, i32) {
    %c0_i32 = arith.constant 0 : i32
    %c0_i32_0 = arith.constant 0 : i32
    %c0_i32_1 = arith.constant 0 : i32
    return %arg0, %c0_i32, %c0_i32_0 : i32, i32, i32
  }
}

module attributes {stable_mosaic.version = 11 : i64} {
  func.func @kernel(%arg0: i32, %arg1: memref<1x36x16xf32, #tpu.memory_space<vmem>>, %arg2: memref<9x16xf32, #tpu.memory_space<vmem>>, %arg3: memref<16x16xbf16, #tpu.memory_space<vmem>>, %arg4: memref<1x16xf32, #tpu.memory_space<vmem>>, %arg5: memref<1x16xf32, #tpu.memory_space<vmem>>, %arg6: memref<9x16xf32, #tpu.memory_space<vmem>>, %arg7: memref<16x16xbf16, #tpu.memory_space<vmem>>, %arg8: memref<1x16xf32, #tpu.memory_space<vmem>>, %arg9: memref<1x16xf32, #tpu.memory_space<vmem>>, %arg10: memref<22x1xf32, #tpu.memory_space<vmem>>, %arg11: memref<1x22x16xf32, #tpu.memory_space<vmem>>, %arg12: memref<1x22x16xf32, #tpu.memory_space<vmem>>, %arg13: memref<36x16xf32, #tpu.memory_space<vmem>>) attributes {dimension_semantics = [#tpu.dimension_semantics<parallel>], iteration_bounds = array<i64: 2>, scalar_prefetch = 0 : i64, scratch_operands = 1 : i64, tpu.core_type = #tpu.core_type<tc>, window_params = [{transform_indices = @transform_0, window_bounds = array<i64: 1, 36, 16>}, {pipeline_mode = #tpu.pipeline_mode<synchronous>, transform_indices = @transform_1, window_bounds = array<i64: 9, 16>}, {pipeline_mode = #tpu.pipeline_mode<synchronous>, transform_indices = @transform_2, window_bounds = array<i64: 16, 16>}, {pipeline_mode = #tpu.pipeline_mode<synchronous>, transform_indices = @transform_3, window_bounds = array<i64: 1, 16>}, {pipeline_mode = #tpu.pipeline_mode<synchronous>, transform_indices = @transform_4, window_bounds = array<i64: 1, 16>}, {pipeline_mode = #tpu.pipeline_mode<synchronous>, transform_indices = @transform_5, window_bounds = array<i64: 9, 16>}, {pipeline_mode = #tpu.pipeline_mode<synchronous>, transform_indices = @transform_6, window_bounds = array<i64: 16, 16>}, {pipeline_mode = #tpu.pipeline_mode<synchronous>, transform_indices = @transform_7, window_bounds = array<i64: 1, 16>}, {pipeline_mode = #tpu.pipeline_mode<synchronous>, transform_indices = @transform_8, window_bounds = array<i64: 1, 16>}, {pipeline_mode = #tpu.pipeline_mode<synchronous>, transform_indices = @transform_9, window_bounds = array<i64: 22, 1>}, {transform_indices = @transform_10, window_bounds = array<i64: 1, 22, 16>}, {transform_indices = @transform_11, window_bounds = array<i64: 1, 22, 16>}]} {
    %cst = arith.constant 0.000000e+00 : f32
    %0 = vector.broadcast %cst : f32 to vector<22x16xf32>
    %c0 = arith.constant 0 : index
    %c0_0 = arith.constant 0 : index
    %c0_1 = arith.constant 0 : index
    %1 = vector.load %arg1[%c0, %c0_0, %c0_1] : memref<1x36x16xf32, #tpu.memory_space<vmem>>, vector<1x22x16xf32>
    %2 = vector.shape_cast %1 : vector<1x22x16xf32> to vector<22x16xf32>
    %cst_2 = arith.constant 0.000000e+00 : f32
    %3 = vector.broadcast %cst_2 : f32 to vector<22x16xf32>
    %4 = arith.maximumf %2, %3 : vector<22x16xf32>
    %c0_3 = arith.constant 0 : index
    %c0_4 = arith.constant 0 : index
    %5 = vector.load %arg2[%c0_3, %c0_4] : memref<9x16xf32, #tpu.memory_space<vmem>>, vector<1x16xf32>
    %6 = vector.broadcast %5 : vector<1x16xf32> to vector<22x16xf32>
    %7 = arith.mulf %4, %6 : vector<22x16xf32>
    %8 = arith.addf %0, %7 : vector<22x16xf32>
    %c0_5 = arith.constant 0 : index
    %c1 = arith.constant 1 : index
    %c0_6 = arith.constant 0 : index
    %9 = vector.load %arg1[%c0_5, %c1, %c0_6] : memref<1x36x16xf32, #tpu.memory_space<vmem>>, vector<1x22x16xf32>
    %10 = vector.shape_cast %9 : vector<1x22x16xf32> to vector<22x16xf32>
    %cst_7 = arith.constant 0.000000e+00 : f32
    %11 = vector.broadcast %cst_7 : f32 to vector<22x16xf32>
    %12 = arith.maximumf %10, %11 : vector<22x16xf32>
    %c1_8 = arith.constant 1 : index
    %c0_9 = arith.constant 0 : index
    %13 = vector.load %arg2[%c1_8, %c0_9] : memref<9x16xf32, #tpu.memory_space<vmem>>, vector<1x16xf32>
    %14 = vector.broadcast %13 : vector<1x16xf32> to vector<22x16xf32>
    %15 = arith.mulf %12, %14 : vector<22x16xf32>
    %16 = arith.addf %8, %15 : vector<22x16xf32>
    %c0_10 = arith.constant 0 : index
    %c2 = arith.constant 2 : index
    %c0_11 = arith.constant 0 : index
    %17 = vector.load %arg1[%c0_10, %c2, %c0_11] : memref<1x36x16xf32, #tpu.memory_space<vmem>>, vector<1x22x16xf32>
    %18 = vector.shape_cast %17 : vector<1x22x16xf32> to vector<22x16xf32>
    %cst_12 = arith.constant 0.000000e+00 : f32
    %19 = vector.broadcast %cst_12 : f32 to vector<22x16xf32>
    %20 = arith.maximumf %18, %19 : vector<22x16xf32>
    %c2_13 = arith.constant 2 : index
    %c0_14 = arith.constant 0 : index
    %21 = vector.load %arg2[%c2_13, %c0_14] : memref<9x16xf32, #tpu.memory_space<vmem>>, vector<1x16xf32>
    %22 = vector.broadcast %21 : vector<1x16xf32> to vector<22x16xf32>
    %23 = arith.mulf %20, %22 : vector<22x16xf32>
    %24 = arith.addf %16, %23 : vector<22x16xf32>
    %c0_15 = arith.constant 0 : index
    %c6 = arith.constant 6 : index
    %c0_16 = arith.constant 0 : index
    %25 = vector.load %arg1[%c0_15, %c6, %c0_16] : memref<1x36x16xf32, #tpu.memory_space<vmem>>, vector<1x22x16xf32>
    %26 = vector.shape_cast %25 : vector<1x22x16xf32> to vector<22x16xf32>
    %cst_17 = arith.constant 0.000000e+00 : f32
    %27 = vector.broadcast %cst_17 : f32 to vector<22x16xf32>
    %28 = arith.maximumf %26, %27 : vector<22x16xf32>
    %c3 = arith.constant 3 : index
    %c0_18 = arith.constant 0 : index
    %29 = vector.load %arg2[%c3, %c0_18] : memref<9x16xf32, #tpu.memory_space<vmem>>, vector<1x16xf32>
    %30 = vector.broadcast %29 : vector<1x16xf32> to vector<22x16xf32>
    %31 = arith.mulf %28, %30 : vector<22x16xf32>
    %32 = arith.addf %24, %31 : vector<22x16xf32>
    %c0_19 = arith.constant 0 : index
    %c7 = arith.constant 7 : index
    %c0_20 = arith.constant 0 : index
    %33 = vector.load %arg1[%c0_19, %c7, %c0_20] : memref<1x36x16xf32, #tpu.memory_space<vmem>>, vector<1x22x16xf32>
    %34 = vector.shape_cast %33 : vector<1x22x16xf32> to vector<22x16xf32>
    %cst_21 = arith.constant 0.000000e+00 : f32
    %35 = vector.broadcast %cst_21 : f32 to vector<22x16xf32>
    %36 = arith.maximumf %34, %35 : vector<22x16xf32>
    %c4 = arith.constant 4 : index
    %c0_22 = arith.constant 0 : index
    %37 = vector.load %arg2[%c4, %c0_22] : memref<9x16xf32, #tpu.memory_space<vmem>>, vector<1x16xf32>
    %38 = vector.broadcast %37 : vector<1x16xf32> to vector<22x16xf32>
    %39 = arith.mulf %36, %38 : vector<22x16xf32>
    %40 = arith.addf %32, %39 : vector<22x16xf32>
    %c0_23 = arith.constant 0 : index
    %c8 = arith.constant 8 : index
    %c0_24 = arith.constant 0 : index
    %41 = vector.load %arg1[%c0_23, %c8, %c0_24] : memref<1x36x16xf32, #tpu.memory_space<vmem>>, vector<1x22x16xf32>
    %42 = vector.shape_cast %41 : vector<1x22x16xf32> to vector<22x16xf32>
    %cst_25 = arith.constant 0.000000e+00 : f32
    %43 = vector.broadcast %cst_25 : f32 to vector<22x16xf32>
    %44 = arith.maximumf %42, %43 : vector<22x16xf32>
    %c5 = arith.constant 5 : index
    %c0_26 = arith.constant 0 : index
    %45 = vector.load %arg2[%c5, %c0_26] : memref<9x16xf32, #tpu.memory_space<vmem>>, vector<1x16xf32>
    %46 = vector.broadcast %45 : vector<1x16xf32> to vector<22x16xf32>
    %47 = arith.mulf %44, %46 : vector<22x16xf32>
    %48 = arith.addf %40, %47 : vector<22x16xf32>
    %c0_27 = arith.constant 0 : index
    %c12 = arith.constant 12 : index
    %c0_28 = arith.constant 0 : index
    %49 = vector.load %arg1[%c0_27, %c12, %c0_28] : memref<1x36x16xf32, #tpu.memory_space<vmem>>, vector<1x22x16xf32>
    %50 = vector.shape_cast %49 : vector<1x22x16xf32> to vector<22x16xf32>
    %cst_29 = arith.constant 0.000000e+00 : f32
    %51 = vector.broadcast %cst_29 : f32 to vector<22x16xf32>
    %52 = arith.maximumf %50, %51 : vector<22x16xf32>
    %c6_30 = arith.constant 6 : index
    %c0_31 = arith.constant 0 : index
    %53 = vector.load %arg2[%c6_30, %c0_31] : memref<9x16xf32, #tpu.memory_space<vmem>>, vector<1x16xf32>
    %54 = vector.broadcast %53 : vector<1x16xf32> to vector<22x16xf32>
    %55 = arith.mulf %52, %54 : vector<22x16xf32>
    %56 = arith.addf %48, %55 : vector<22x16xf32>
    %c0_32 = arith.constant 0 : index
    %c13 = arith.constant 13 : index
    %c0_33 = arith.constant 0 : index
    %57 = vector.load %arg1[%c0_32, %c13, %c0_33] : memref<1x36x16xf32, #tpu.memory_space<vmem>>, vector<1x22x16xf32>
    %58 = vector.shape_cast %57 : vector<1x22x16xf32> to vector<22x16xf32>
    %cst_34 = arith.constant 0.000000e+00 : f32
    %59 = vector.broadcast %cst_34 : f32 to vector<22x16xf32>
    %60 = arith.maximumf %58, %59 : vector<22x16xf32>
    %c7_35 = arith.constant 7 : index
    %c0_36 = arith.constant 0 : index
    %61 = vector.load %arg2[%c7_35, %c0_36] : memref<9x16xf32, #tpu.memory_space<vmem>>, vector<1x16xf32>
    %62 = vector.broadcast %61 : vector<1x16xf32> to vector<22x16xf32>
    %63 = arith.mulf %60, %62 : vector<22x16xf32>
    %64 = arith.addf %56, %63 : vector<22x16xf32>
    %c0_37 = arith.constant 0 : index
    %c14 = arith.constant 14 : index
    %c0_38 = arith.constant 0 : index
    %65 = vector.load %arg1[%c0_37, %c14, %c0_38] : memref<1x36x16xf32, #tpu.memory_space<vmem>>, vector<1x22x16xf32>
    %66 = vector.shape_cast %65 : vector<1x22x16xf32> to vector<22x16xf32>
    %cst_39 = arith.constant 0.000000e+00 : f32
    %67 = vector.broadcast %cst_39 : f32 to vector<22x16xf32>
    %68 = arith.maximumf %66, %67 : vector<22x16xf32>
    %c8_40 = arith.constant 8 : index
    %c0_41 = arith.constant 0 : index
    %69 = vector.load %arg2[%c8_40, %c0_41] : memref<9x16xf32, #tpu.memory_space<vmem>>, vector<1x16xf32>
    %70 = vector.broadcast %69 : vector<1x16xf32> to vector<22x16xf32>
    %71 = arith.mulf %68, %70 : vector<22x16xf32>
    %72 = arith.addf %64, %71 : vector<22x16xf32>
    %73 = arith.truncf %72 : vector<22x16xf32> to vector<22x16xbf16>
    %c0_42 = arith.constant 0 : index
    %c0_43 = arith.constant 0 : index
    %74 = vector.load %arg3[%c0_42, %c0_43] : memref<16x16xbf16, #tpu.memory_space<vmem>>, vector<16x16xbf16>
    %cst_44 = arith.constant dense<0.000000e+00> : vector<22x16xf32>
    %75 = tpu.matmul %73, %74, %cst_44 {dimension_numbers = #tpu.dot_dimension_numbers<[1], [0], [0], [1], [0, 0, 1, 1], [], []>} : vector<22x16xbf16>, vector<16x16xbf16>, vector<22x16xf32> -> vector<22x16xf32>
    %c0_45 = arith.constant 0 : index
    %c0_46 = arith.constant 0 : index
    %76 = vector.load %arg4[%c0_45, %c0_46] : memref<1x16xf32, #tpu.memory_space<vmem>>, vector<1x16xf32>
    %77 = vector.broadcast %76 : vector<1x16xf32> to vector<22x16xf32>
    %78 = arith.mulf %75, %77 : vector<22x16xf32>
    %c0_47 = arith.constant 0 : index
    %c0_48 = arith.constant 0 : index
    %79 = vector.load %arg5[%c0_47, %c0_48] : memref<1x16xf32, #tpu.memory_space<vmem>>, vector<1x16xf32>
    %80 = vector.broadcast %79 : vector<1x16xf32> to vector<22x16xf32>
    %81 = arith.addf %78, %80 : vector<22x16xf32>
    %c0_49 = arith.constant 0 : index
    %c0_50 = arith.constant 0 : index
    %82 = vector.load %arg10[%c0_49, %c0_50] : memref<22x1xf32, #tpu.memory_space<vmem>>, vector<22x1xf32>
    %83 = vector.broadcast %82 : vector<22x1xf32> to vector<22x16xf32>
    %84 = arith.mulf %81, %83 : vector<22x16xf32>
    %cst_51 = arith.constant 0.000000e+00 : f32
    %85 = vector.broadcast %cst_51 : f32 to vector<36x16xf32>
    %c0_52 = arith.constant 0 : index
    %c0_53 = arith.constant 0 : index
    %86 = vector.load %arg13[%c0_52, %c0_53] : memref<36x16xf32, #tpu.memory_space<vmem>>, vector<36x16xf32>
    tpu.vector_store %arg13[%c0_52, %c0_53], %85 {strides = array<i32>} : memref<36x16xf32, #tpu.memory_space<vmem>>, vector<36x16xf32>,
    %c7_54 = arith.constant 7 : index
    %c0_55 = arith.constant 0 : index
    %87 = vector.load %arg13[%c7_54, %c0_55] : memref<36x16xf32, #tpu.memory_space<vmem>>, vector<22x16xf32>
    tpu.vector_store %arg13[%c7_54, %c0_55], %84 {strides = array<i32>} : memref<36x16xf32, #tpu.memory_space<vmem>>, vector<22x16xf32>,
    %cst_56 = arith.constant 0.000000e+00 : f32
    %88 = vector.broadcast %cst_56 : f32 to vector<22x16xf32>
    %c0_57 = arith.constant 0 : index
    %c0_58 = arith.constant 0 : index
    %89 = vector.load %arg13[%c0_57, %c0_58] : memref<36x16xf32, #tpu.memory_space<vmem>>, vector<22x16xf32>
    %cst_59 = arith.constant 0.000000e+00 : f32
    %90 = vector.broadcast %cst_59 : f32 to vector<22x16xf32>
    %91 = arith.maximumf %89, %90 : vector<22x16xf32>
    %c0_60 = arith.constant 0 : index
    %c0_61 = arith.constant 0 : index
    %92 = vector.load %arg6[%c0_60, %c0_61] : memref<9x16xf32, #tpu.memory_space<vmem>>, vector<1x16xf32>
    %93 = vector.broadcast %92 : vector<1x16xf32> to vector<22x16xf32>
    %94 = arith.mulf %91, %93 : vector<22x16xf32>
    %95 = arith.addf %88, %94 : vector<22x16xf32>
    %c1_62 = arith.constant 1 : index
    %c0_63 = arith.constant 0 : index
    %96 = vector.load %arg13[%c1_62, %c0_63] : memref<36x16xf32, #tpu.memory_space<vmem>>, vector<22x16xf32>
    %cst_64 = arith.constant 0.000000e+00 : f32
    %97 = vector.broadcast %cst_64 : f32 to vector<22x16xf32>
    %98 = arith.maximumf %96, %97 : vector<22x16xf32>
    %c1_65 = arith.constant 1 : index
    %c0_66 = arith.constant 0 : index
    %99 = vector.load %arg6[%c1_65, %c0_66] : memref<9x16xf32, #tpu.memory_space<vmem>>, vector<1x16xf32>
    %100 = vector.broadcast %99 : vector<1x16xf32> to vector<22x16xf32>
    %101 = arith.mulf %98, %100 : vector<22x16xf32>
    %102 = arith.addf %95, %101 : vector<22x16xf32>
    %c2_67 = arith.constant 2 : index
    %c0_68 = arith.constant 0 : index
    %103 = vector.load %arg13[%c2_67, %c0_68] : memref<36x16xf32, #tpu.memory_space<vmem>>, vector<22x16xf32>
    %cst_69 = arith.constant 0.000000e+00 : f32
    %104 = vector.broadcast %cst_69 : f32 to vector<22x16xf32>
    %105 = arith.maximumf %103, %104 : vector<22x16xf32>
    %c2_70 = arith.constant 2 : index
    %c0_71 = arith.constant 0 : index
    %106 = vector.load %arg6[%c2_70, %c0_71] : memref<9x16xf32, #tpu.memory_space<vmem>>, vector<1x16xf32>
    %107 = vector.broadcast %106 : vector<1x16xf32> to vector<22x16xf32>
    %108 = arith.mulf %105, %107 : vector<22x16xf32>
    %109 = arith.addf %102, %108 : vector<22x16xf32>
    %c6_72 = arith.constant 6 : index
    %c0_73 = arith.constant 0 : index
    %110 = vector.load %arg13[%c6_72, %c0_73] : memref<36x16xf32, #tpu.memory_space<vmem>>, vector<22x16xf32>
    %cst_74 = arith.constant 0.000000e+00 : f32
    %111 = vector.broadcast %cst_74 : f32 to vector<22x16xf32>
    %112 = arith.maximumf %110, %111 : vector<22x16xf32>
    %c3_75 = arith.constant 3 : index
    %c0_76 = arith.constant 0 : index
    %113 = vector.load %arg6[%c3_75, %c0_76] : memref<9x16xf32, #tpu.memory_space<vmem>>, vector<1x16xf32>
    %114 = vector.broadcast %113 : vector<1x16xf32> to vector<22x16xf32>
    %115 = arith.mulf %112, %114 : vector<22x16xf32>
    %116 = arith.addf %109, %115 : vector<22x16xf32>
    %c7_77 = arith.constant 7 : index
    %c0_78 = arith.constant 0 : index
    %117 = vector.load %arg13[%c7_77, %c0_78] : memref<36x16xf32, #tpu.memory_space<vmem>>, vector<22x16xf32>
    %cst_79 = arith.constant 0.000000e+00 : f32
    %118 = vector.broadcast %cst_79 : f32 to vector<22x16xf32>
    %119 = arith.maximumf %117, %118 : vector<22x16xf32>
    %c4_80 = arith.constant 4 : index
    %c0_81 = arith.constant 0 : index
    %120 = vector.load %arg6[%c4_80, %c0_81] : memref<9x16xf32, #tpu.memory_space<vmem>>, vector<1x16xf32>
    %121 = vector.broadcast %120 : vector<1x16xf32> to vector<22x16xf32>
    %122 = arith.mulf %119, %121 : vector<22x16xf32>
    %123 = arith.addf %116, %122 : vector<22x16xf32>
    %c8_82 = arith.constant 8 : index
    %c0_83 = arith.constant 0 : index
    %124 = vector.load %arg13[%c8_82, %c0_83] : memref<36x16xf32, #tpu.memory_space<vmem>>, vector<22x16xf32>
    %cst_84 = arith.constant 0.000000e+00 : f32
    %125 = vector.broadcast %cst_84 : f32 to vector<22x16xf32>
    %126 = arith.maximumf %124, %125 : vector<22x16xf32>
    %c5_85 = arith.constant 5 : index
    %c0_86 = arith.constant 0 : index
    %127 = vector.load %arg6[%c5_85, %c0_86] : memref<9x16xf32, #tpu.memory_space<vmem>>, vector<1x16xf32>
    %128 = vector.broadcast %127 : vector<1x16xf32> to vector<22x16xf32>
    %129 = arith.mulf %126, %128 : vector<22x16xf32>
    %130 = arith.addf %123, %129 : vector<22x16xf32>
    %c12_87 = arith.constant 12 : index
    %c0_88 = arith.constant 0 : index
    %131 = vector.load %arg13[%c12_87, %c0_88] : memref<36x16xf32, #tpu.memory_space<vmem>>, vector<22x16xf32>
    %cst_89 = arith.constant 0.000000e+00 : f32
    %132 = vector.broadcast %cst_89 : f32 to vector<22x16xf32>
    %133 = arith.maximumf %131, %132 : vector<22x16xf32>
    %c6_90 = arith.constant 6 : index
    %c0_91 = arith.constant 0 : index
    %134 = vector.load %arg6[%c6_90, %c0_91] : memref<9x16xf32, #tpu.memory_space<vmem>>, vector<1x16xf32>
    %135 = vector.broadcast %134 : vector<1x16xf32> to vector<22x16xf32>
    %136 = arith.mulf %133, %135 : vector<22x16xf32>
    %137 = arith.addf %130, %136 : vector<22x16xf32>
    %c13_92 = arith.constant 13 : index
    %c0_93 = arith.constant 0 : index
    %138 = vector.load %arg13[%c13_92, %c0_93] : memref<36x16xf32, #tpu.memory_space<vmem>>, vector<22x16xf32>
    %cst_94 = arith.constant 0.000000e+00 : f32
    %139 = vector.broadcast %cst_94 : f32 to vector<22x16xf32>
    %140 = arith.maximumf %138, %139 : vector<22x16xf32>
    %c7_95 = arith.constant 7 : index
    %c0_96 = arith.constant 0 : index
    %141 = vector.load %arg6[%c7_95, %c0_96] : memref<9x16xf32, #tpu.memory_space<vmem>>, vector<1x16xf32>
    %142 = vector.broadcast %141 : vector<1x16xf32> to vector<22x16xf32>
    %143 = arith.mulf %140, %142 : vector<22x16xf32>
    %144 = arith.addf %137, %143 : vector<22x16xf32>
    %c14_97 = arith.constant 14 : index
    %c0_98 = arith.constant 0 : index
    %145 = vector.load %arg13[%c14_97, %c0_98] : memref<36x16xf32, #tpu.memory_space<vmem>>, vector<22x16xf32>
    %cst_99 = arith.constant 0.000000e+00 : f32
    %146 = vector.broadcast %cst_99 : f32 to vector<22x16xf32>
    %147 = arith.maximumf %145, %146 : vector<22x16xf32>
    %c8_100 = arith.constant 8 : index
    %c0_101 = arith.constant 0 : index
    %148 = vector.load %arg6[%c8_100, %c0_101] : memref<9x16xf32, #tpu.memory_space<vmem>>, vector<1x16xf32>
    %149 = vector.broadcast %148 : vector<1x16xf32> to vector<22x16xf32>
    %150 = arith.mulf %147, %149 : vector<22x16xf32>
    %151 = arith.addf %144, %150 : vector<22x16xf32>
    %152 = arith.truncf %151 : vector<22x16xf32> to vector<22x16xbf16>
    %c0_102 = arith.constant 0 : index
    %c0_103 = arith.constant 0 : index
    %153 = vector.load %arg7[%c0_102, %c0_103] : memref<16x16xbf16, #tpu.memory_space<vmem>>, vector<16x16xbf16>
    %cst_104 = arith.constant dense<0.000000e+00> : vector<22x16xf32>
    %154 = tpu.matmul %152, %153, %cst_104 {dimension_numbers = #tpu.dot_dimension_numbers<[1], [0], [0], [1], [0, 0, 1, 1], [], []>} : vector<22x16xbf16>, vector<16x16xbf16>, vector<22x16xf32> -> vector<22x16xf32>
    %c0_105 = arith.constant 0 : index
    %c0_106 = arith.constant 0 : index
    %155 = vector.load %arg8[%c0_105, %c0_106] : memref<1x16xf32, #tpu.memory_space<vmem>>, vector<1x16xf32>
    %156 = vector.broadcast %155 : vector<1x16xf32> to vector<22x16xf32>
    %157 = arith.mulf %154, %156 : vector<22x16xf32>
    %c0_107 = arith.constant 0 : index
    %c0_108 = arith.constant 0 : index
    %158 = vector.load %arg9[%c0_107, %c0_108] : memref<1x16xf32, #tpu.memory_space<vmem>>, vector<1x16xf32>
    %159 = vector.broadcast %158 : vector<1x16xf32> to vector<22x16xf32>
    %160 = arith.addf %157, %159 : vector<22x16xf32>
    %c0_109 = arith.constant 0 : index
    %c0_110 = arith.constant 0 : index
    %c0_111 = arith.constant 0 : index
    %161 = vector.load %arg11[%c0_109, %c0_110, %c0_111] : memref<1x22x16xf32, #tpu.memory_space<vmem>>, vector<1x22x16xf32>
    %162 = vector.shape_cast %161 : vector<1x22x16xf32> to vector<22x16xf32>
    %163 = arith.addf %160, %162 : vector<22x16xf32>
    %c0_112 = arith.constant 0 : index
    %c0_113 = arith.constant 0 : index
    %c0_114 = arith.constant 0 : index
    %164 = vector.load %arg12[%c0_112, %c0_113, %c0_114] : memref<1x22x16xf32, #tpu.memory_space<vmem>>, vector<1x22x16xf32>
    %165 = vector.shape_cast %164 : vector<1x22x16xf32> to vector<22x16xf32>
    %166 = vector.shape_cast %163 : vector<22x16xf32> to vector<1x22x16xf32>
    tpu.vector_store %arg12[%c0_112, %c0_113, %c0_114], %166 {strides = array<i32>} : memref<1x22x16xf32, #tpu.memory_space<vmem>>, vector<1x22x16xf32>,
    return
  }
  func.func @transform_0(%arg0: i32) -> (i32, i32, i32) {
    %c0_i32 = arith.constant 0 : i32
    %c0_i32_0 = arith.constant 0 : i32
    %c0_i32_1 = arith.constant 0 : i32
    return %arg0, %c0_i32, %c0_i32_0 : i32, i32, i32
  }
  func.func @transform_1(%arg0: i32) -> (i32, i32) {
    %c0_i32 = arith.constant 0 : i32
    %c0_i32_0 = arith.constant 0 : i32
    %c0_i32_1 = arith.constant 0 : i32
    return %c0_i32, %c0_i32_0 : i32, i32
  }
  func.func @transform_2(%arg0: i32) -> (i32, i32) {
    %c0_i32 = arith.constant 0 : i32
    %c0_i32_0 = arith.constant 0 : i32
    %c0_i32_1 = arith.constant 0 : i32
    return %c0_i32, %c0_i32_0 : i32, i32
  }
  func.func @transform_3(%arg0: i32) -> (i32, i32) {
    %c0_i32 = arith.constant 0 : i32
    %c0_i32_0 = arith.constant 0 : i32
    %c0_i32_1 = arith.constant 0 : i32
    return %c0_i32, %c0_i32_0 : i32, i32
  }
  func.func @transform_4(%arg0: i32) -> (i32, i32) {
    %c0_i32 = arith.constant 0 : i32
    %c0_i32_0 = arith.constant 0 : i32
    %c0_i32_1 = arith.constant 0 : i32
    return %c0_i32, %c0_i32_0 : i32, i32
  }
  func.func @transform_5(%arg0: i32) -> (i32, i32) {
    %c0_i32 = arith.constant 0 : i32
    %c0_i32_0 = arith.constant 0 : i32
    %c0_i32_1 = arith.constant 0 : i32
    return %c0_i32, %c0_i32_0 : i32, i32
  }
  func.func @transform_6(%arg0: i32) -> (i32, i32) {
    %c0_i32 = arith.constant 0 : i32
    %c0_i32_0 = arith.constant 0 : i32
    %c0_i32_1 = arith.constant 0 : i32
    return %c0_i32, %c0_i32_0 : i32, i32
  }
  func.func @transform_7(%arg0: i32) -> (i32, i32) {
    %c0_i32 = arith.constant 0 : i32
    %c0_i32_0 = arith.constant 0 : i32
    %c0_i32_1 = arith.constant 0 : i32
    return %c0_i32, %c0_i32_0 : i32, i32
  }
  func.func @transform_8(%arg0: i32) -> (i32, i32) {
    %c0_i32 = arith.constant 0 : i32
    %c0_i32_0 = arith.constant 0 : i32
    %c0_i32_1 = arith.constant 0 : i32
    return %c0_i32, %c0_i32_0 : i32, i32
  }
  func.func @transform_9(%arg0: i32) -> (i32, i32) {
    %c0_i32 = arith.constant 0 : i32
    %c0_i32_0 = arith.constant 0 : i32
    %c0_i32_1 = arith.constant 0 : i32
    return %c0_i32, %c0_i32_0 : i32, i32
  }
  func.func @transform_10(%arg0: i32) -> (i32, i32, i32) {
    %c0_i32 = arith.constant 0 : i32
    %c0_i32_0 = arith.constant 0 : i32
    %c0_i32_1 = arith.constant 0 : i32
    return %arg0, %c0_i32, %c0_i32_0 : i32, i32, i32
  }
  func.func @transform_11(%arg0: i32) -> (i32, i32, i32) {
    %c0_i32 = arith.constant 0 : i32
    %c0_i32_0 = arith.constant 0 : i32
    %c0_i32_1 = arith.constant 0 : i32
    return %arg0, %c0_i32, %c0_i32_0 : i32, i32, i32
  }
}

module attributes {stable_mosaic.version = 11 : i64} {
  func.func @kernel(%arg0: i32, %arg1: memref<1x16x32xf32, #tpu.memory_space<vmem>>, %arg2: memref<32x8xbf16, #tpu.memory_space<vmem>>, %arg3: memref<1x8xf32, #tpu.memory_space<vmem>>, %arg4: memref<1x1x8xf32, #tpu.memory_space<vmem>>) attributes {dimension_semantics = [#tpu.dimension_semantics<parallel>], iteration_bounds = array<i64: 2>, scalar_prefetch = 0 : i64, scratch_operands = 0 : i64, tpu.core_type = #tpu.core_type<tc>, window_params = [{transform_indices = @transform_0, window_bounds = array<i64: 1, 16, 32>}, {pipeline_mode = #tpu.pipeline_mode<synchronous>, transform_indices = @transform_1, window_bounds = array<i64: 32, 8>}, {pipeline_mode = #tpu.pipeline_mode<synchronous>, transform_indices = @transform_2, window_bounds = array<i64: 1, 8>}, {transform_indices = @transform_3, window_bounds = array<i64: 1, 1, 8>}]} {
    %c0 = arith.constant 0 : index
    %c0_0 = arith.constant 0 : index
    %c0_1 = arith.constant 0 : index
    %0 = vector.load %arg1[%c0, %c0_0, %c0_1] : memref<1x16x32xf32, #tpu.memory_space<vmem>>, vector<1x16x32xf32>
    %1 = vector.shape_cast %0 : vector<1x16x32xf32> to vector<16x32xf32>
    %cst = arith.constant dense<0.000000e+00> : vector<32xf32>
    %2 = vector.multi_reduction <add>, %1, %cst [0] : vector<16x32xf32> to vector<32xf32>
    %3 = vector.shape_cast %2 : vector<32xf32> to vector<1x32xf32>
    %cst_2 = arith.constant 1.600000e+01 : f32
    %4 = vector.broadcast %cst_2 : f32 to vector<1x32xf32>
    %5 = arith.divf %3, %4 : vector<1x32xf32>
    %6 = arith.truncf %5 : vector<1x32xf32> to vector<1x32xbf16>
    %c0_3 = arith.constant 0 : index
    %c0_4 = arith.constant 0 : index
    %7 = vector.load %arg2[%c0_3, %c0_4] : memref<32x8xbf16, #tpu.memory_space<vmem>>, vector<32x8xbf16>
    %cst_5 = arith.constant dense<0.000000e+00> : vector<1x8xf32>
    %8 = tpu.matmul %6, %7, %cst_5 {dimension_numbers = #tpu.dot_dimension_numbers<[1], [0], [0], [1], [0, 0, 1, 1], [], []>} : vector<1x32xbf16>, vector<32x8xbf16>, vector<1x8xf32> -> vector<1x8xf32>
    %c0_6 = arith.constant 0 : index
    %c0_7 = arith.constant 0 : index
    %9 = vector.load %arg3[%c0_6, %c0_7] : memref<1x8xf32, #tpu.memory_space<vmem>>, vector<1x8xf32>
    %10 = arith.addf %8, %9 : vector<1x8xf32>
    %c0_8 = arith.constant 0 : index
    %c0_9 = arith.constant 0 : index
    %c0_10 = arith.constant 0 : index
    %11 = vector.load %arg4[%c0_8, %c0_9, %c0_10] : memref<1x1x8xf32, #tpu.memory_space<vmem>>, vector<1x1x8xf32>
    %12 = vector.shape_cast %11 : vector<1x1x8xf32> to vector<1x8xf32>
    %13 = vector.shape_cast %10 : vector<1x8xf32> to vector<1x1x8xf32>
    tpu.vector_store %arg4[%c0_8, %c0_9, %c0_10], %13 {strides = array<i32>} : memref<1x1x8xf32, #tpu.memory_space<vmem>>, vector<1x1x8xf32>,
    return
  }
  func.func @transform_0(%arg0: i32) -> (i32, i32, i32) {
    %c0_i32 = arith.constant 0 : i32
    %c0_i32_0 = arith.constant 0 : i32
    %c0_i32_1 = arith.constant 0 : i32
    return %arg0, %c0_i32, %c0_i32_0 : i32, i32, i32
  }
  func.func @transform_1(%arg0: i32) -> (i32, i32) {
    %c0_i32 = arith.constant 0 : i32
    %c0_i32_0 = arith.constant 0 : i32
    %c0_i32_1 = arith.constant 0 : i32
    return %c0_i32, %c0_i32_0 : i32, i32
  }
  func.func @transform_2(%arg0: i32) -> (i32, i32) {
    %c0_i32 = arith.constant 0 : i32
    %c0_i32_0 = arith.constant 0 : i32
    %c0_i32_1 = arith.constant 0 : i32
    return %c0_i32, %c0_i32_0 : i32, i32
  }
  func.func @transform_3(%arg0: i32) -> (i32, i32, i32) {
    %c0_i32 = arith.constant 0 : i32
    %c0_i32_0 = arith.constant 0 : i32
    %c0_i32_1 = arith.constant 0 : i32
    return %arg0, %c0_i32, %c0_i32_0 : i32, i32, i32
  }
}

</mosaic_0001>

<llo_original>
// kernel: _lambda_.19
$region0: #{_lambda_.19}
  #allocation0 [shape = 'u32[]', space=smem, size = 0x4, offset = 0x4, fixed_abs, tag = 'smem constant byte address 0x4 - core index']
  #allocation1 [shape = 'u32[144,128]{1,0:T(1,128)}', space=vmem, size = 0x12000, scoped, tag = 'internal scratch']
  %s0 = inlined_call_operand.vmem [shape: f32[2,64,24], index: 0, kind: input, shape index: {}]
  %s1 = inlined_call_operand.vmem [shape: bf16[24,16], index: 1, kind: input, shape index: {}]
  %s2 = inlined_call_operand.vmem [shape: f32[1,16], index: 2, kind: input, shape index: {}]
  %s3 = inlined_call_operand.vmem [shape: f32[1,16], index: 3, kind: input, shape index: {}]
  %s4 = inlined_call_operand.vmem [shape: f32[2,64,16], index: 4, kind: output, shape index: {}]
  %s5 = sld [smem:[#allocation0]]
  $region49: #{_lambda_.19} parent=0
    _
  %s7 = ssub.s32 1, %s5
  %s8 = scalar_select 0, %s7, %s5
  loop: start=0, step=1, limit=4
  $region2: #{_lambda_.19} parent=0 // loop_pre_header
    _
  $region3: #{_lambda_.19} parent=0 // loop_header
    %s10 = sphi 0, %s14
    %p11 = scmp.ge.s32.totalorder %s10, 4
    %s20 = sphi 0, %s22
    %s23 = sphi 0, %s20
    %s24 = sphi 0, %s23
    %s40 = sphi 0, %s24
    %s44 = sphi 0, %s44
    %s46 = sphi 0, %s44
    %s47 = sphi 0, %s46
    %s61 = sphi 0, %s47
    %s65 = sphi 0, %s65
    %s67 = sphi 0, %s65
    %s68 = sphi 0, %s67
    %s82 = sphi 0, %s68
    %s86 = sphi 0, %s86
    %s88 = sphi 0, %s86
    %s89 = sphi 0, %s88
    %s103 = sphi 0, %s89
    %s109 = sphi 0, %s111
    %s112 = sphi 0, %s109
    %s113 = sphi 0, %s112
    %s129 = sphi 0, %s113
  $region4: #{_lambda_.19} parent=0 // loop_header_branch
    %13 = sbr.rel (%p11) target = $region8
  $region5: #{_lambda_.19} parent=0 // loop_body
    %s15 = ssub.s32 %s10, 1
    %s16 = ssub.s32 %s10, 2
    %s17 = sadd.s32 %s10, 1
    %s18 = ssub.s32 %s10, %s17
    %p19 = scmp.eq.s32.totalorder %s18, 0
    %s21 = sadd.s32 %s20, 1
    %s22 = scalar_select %p19, %s20, %s21
    %p25 = pneg %p19
    %p26 = scmp.eq.s32.totalorder %s10, 1
    %p27 = por %p25, %p26
    %p28 = scmp.ne.s32.totalorder %s20, %s23
    %p29 = scmp.eq.s32.totalorder %s10, 0
    %p30 = por %p28, %p29
    %p31 = scmp.ne.s32.totalorder %s20, %s23
    %p32 = scmp.eq.s32.totalorder %s15, 1
    %p33 = por %p31, %p32
    %p34 = scmp.ne.s32.totalorder %s23, %s24
    %p35 = scmp.eq.s32.totalorder %s15, 0
    %p36 = por %p34, %p35
    %p37 = scmp.ne.s32.totalorder %s23, %s24
    %p38 = scmp.eq.s32.totalorder %s16, 1
    %p39 = por %p37, %p38
    %p41 = scmp.ne.s32.totalorder %s24, %s40
    %p42 = scmp.eq.s32.totalorder %s16, 0
    %p43 = por %p41, %p42
    %s45 = sadd.s32 %s44, 1
    %p48 = scmp.eq.s32.totalorder %s10, 1
    %p49 = scmp.ne.s32.totalorder %s44, %s46
    %p50 = scmp.eq.s32.totalorder %s10, 0
    %p51 = por %p49, %p50
    %p52 = scmp.ne.s32.totalorder %s44, %s46
    %p53 = scmp.eq.s32.totalorder %s15, 1
    %p54 = por %p52, %p53
    %p55 = scmp.ne.s32.totalorder %s46, %s47
    %p56 = scmp.eq.s32.totalorder %s15, 0
    %p57 = por %p55, %p56
    %p58 = scmp.ne.s32.totalorder %s46, %s47
    %p59 = scmp.eq.s32.totalorder %s16, 1
    %p60 = por %p58, %p59
    %p62 = scmp.ne.s32.totalorder %s47, %s61
    %p63 = scmp.eq.s32.totalorder %s16, 0
    %p64 = por %p62, %p63
    %s66 = sadd.s32 %s65, 1
    %p69 = scmp.eq.s32.totalorder %s10, 1
    %p70 = scmp.ne.s32.totalorder %s65, %s67
    %p71 = scmp.eq.s32.totalorder %s10, 0
    %p72 = por %p70, %p71
    %p73 = scmp.ne.s32.totalorder %s65, %s67
    %p74 = scmp.eq.s32.totalorder %s15, 1
    %p75 = por %p73, %p74
    %p76 = scmp.ne.s32.totalorder %s67, %s68
    %p77 = scmp.eq.s32.totalorder %s15, 0
    %p78 = por %p76, %p77
    %p79 = scmp.ne.s32.totalorder %s67, %s68
    %p80 = scmp.eq.s32.totalorder %s16, 1
    %p81 = por %p79, %p80
    %p83 = scmp.ne.s32.totalorder %s68, %s82
    %p84 = scmp.eq.s32.totalorder %s16, 0
    %p85 = por %p83, %p84
    %s87 = sadd.s32 %s86, 1
    %p90 = scmp.eq.s32.totalorder %s10, 1
    %p91 = scmp.ne.s32.totalorder %s86, %s88
    %p92 = scmp.eq.s32.totalorder %s10, 0
    %p93 = por %p91, %p92
    %p94 = scmp.ne.s32.totalorder %s86, %s88
    %p95 = scmp.eq.s32.totalorder %s15, 1
    %p96 = por %p94, %p95
    %p97 = scmp.ne.s32.totalorder %s88, %s89
    %p98 = scmp.eq.s32.totalorder %s15, 0
    %p99 = por %p97, %p98
    %p100 = scmp.ne.s32.totalorder %s88, %s89
    %p101 = scmp.eq.s32.totalorder %s16, 1
    %p102 = por %p100, %p101
    %p104 = scmp.ne.s32.totalorder %s89, %s103
    %p105 = scmp.eq.s32.totalorder %s16, 0
    %p106 = por %p104, %p105
    %s107 = ssub.s32 %s10, %s17
    %p108 = scmp.eq.s32.totalorder %s107, 0
    %s110 = sadd.s32 %s109, 1
    %s111 = scalar_select %p108, %s109, %s110
    %p114 = pneg %p108
    %p115 = scmp.eq.s32.totalorder %s10, 1
    %p116 = por %p114, %p115
    %p117 = scmp.ne.s32.totalorder %s109, %s112
    %p118 = scmp.eq.s32.totalorder %s10, 0
    %p119 = por %p117, %p118
    %p120 = scmp.ne.s32.totalorder %s109, %s112
    %p121 = scmp.eq.s32.totalorder %s15, 1
    %p122 = por %p120, %p121
    %p123 = scmp.ne.s32.totalorder %s112, %s113
    %p124 = scmp.eq.s32.totalorder %s15, 0
    %p125 = por %p123, %p124
    %p126 = scmp.ne.s32.totalorder %s112, %s113
    %p127 = scmp.eq.s32.totalorder %s16, 1
    %p128 = por %p126, %p127
    %p130 = scmp.ne.s32.totalorder %s113, %s129
    %p131 = scmp.eq.s32.totalorder %s16, 0
    %p132 = por %p130, %p131
    %p133 = scmp.le.s32.totalorder 1, %s10
    %p134 = scmp.lt.s32.totalorder %s10, 3
    %p135 = pnand %p133, %p134
    %p136 = pneg %p135
    // Predicated region
    $region9: #{_lambda_.19} parent=5 // pred_check
      _
    $region10: #{_lambda_.19} parent=5 // pred_check_branch
      %138 = sbr.rel (%p135) target = $region12
    $region11: #{_lambda_.19} parent=5 // pred_region
      %s139 = ssub.s32 %s10, 1
      // Predicated region
      $region13: #{_lambda_.19} parent=11 // pred_check
        %p140 = pneg %p57
      $region14: #{_lambda_.19} parent=11 // pred_check_branch
        %142 = sbr.rel (%p140) target = $region16
      $region15: #{_lambda_.19} parent=11 // pred_region
        _
      $region16: #{_lambda_.19} parent=11 // pred_fallthru
        _
      // Predicated region
      $region17: #{_lambda_.19} parent=11 // pred_check
        %p143 = pneg %p78
      $region18: #{_lambda_.19} parent=11 // pred_check_branch
        %145 = sbr.rel (%p143) target = $region20
      $region19: #{_lambda_.19} parent=11 // pred_region
        _
      $region20: #{_lambda_.19} parent=11 // pred_fallthru
        _
      // Predicated region
      $region21: #{_lambda_.19} parent=11 // pred_check
        %p146 = pneg %p99
      $region22: #{_lambda_.19} parent=11 // pred_check_branch
        %148 = sbr.rel (%p146) target = $region24
      $region23: #{_lambda_.19} parent=11 // pred_region
        _
      $region24: #{_lambda_.19} parent=11 // pred_fallthru
        _
    $region12: #{_lambda_.19} parent=5 // pred_fallthru
      _
    %p149 = scmp.lt.s32.totalorder %s10, 2
    // Predicated region
    $region25: #{_lambda_.19} parent=5 // pred_check
      %p150 = pneg %p149
    $region26: #{_lambda_.19} parent=5 // pred_check_branch
      %152 = sbr.rel (%p150) target = $region28
    $region27: #{_lambda_.19} parent=5 // pred_region
      // Predicated region
      $region29: #{_lambda_.19} parent=27 // pred_check
        %p153 = pneg %p30
      $region30: #{_lambda_.19} parent=27 // pred_check_branch
        %155 = sbr.rel (%p153) target = $region32
      $region31: #{_lambda_.19} parent=27 // pred_region
        %p156 = scmp.lt.s32.totalorder %s10, 1
        %s157 = scalar_select %p156, %s10, 1
        %s158 = smul.addr %s157, 8
        %s159 = smul.addr %s158, 8
        %s160 = scalar_lea.vmem %s0, %s159
      $region32: #{_lambda_.19} parent=27 // pred_fallthru
        _
    $region28: #{_lambda_.19} parent=5 // pred_fallthru
      _
    %p161 = scmp.le.s32.totalorder 1, %s10
    %p162 = scmp.lt.s32.totalorder %s10, 3
    %p163 = pnand %p161, %p162
    %p164 = pneg %p163
    // Predicated region
    $region33: #{_lambda_.19} parent=5 // pred_check
      _
    $region34: #{_lambda_.19} parent=5 // pred_check_branch
      %166 = sbr.rel (%p163) target = $region36
    $region35: #{_lambda_.19} parent=5 // pred_region
      %s167 = ssub.s32 %s10, 1
      %p168 = scmp.lt.s32.totalorder %s15, 1
      %s169 = scalar_select %p168, %s15, 1
      %s170 = smul.addr %s169, 8
      %s171 = smul.addr %s170, 8
      %s172 = scalar_lea.vmem %s0, %s171
      %p173 = pneg %p36
      %p174 = pneg %p33
      %p175 = pneg %p57
      %p176 = pneg %p54
      %p177 = pneg %p78
      %p178 = pneg %p75
      %p179 = pneg %p99
      %p180 = pneg %p96
      %p181 = pneg %p125
      %p182 = pneg %p122
      %p183 = scmp.lt.s32.totalorder %s15, 1
      %s184 = scalar_select %p183, %s15, 1
      %s185 = smul.addr %s184, 8
      %s186 = smul.addr %s185, 8
      %s187 = scalar_lea.vmem %s4, %s186
      %p188 = scmp.lt.s32.totalorder %s15, 1
      %s189 = scalar_select %p188, %s15, 1
      %s190 = smul.addr %s189, 8
      %s191 = smul.addr %s190, 8
      %s192 = scalar_lea.vmem %s0, %s191
      %p193 = scmp.lt.s32.totalorder %s15, 1
      %s194 = scalar_select %p193, %s15, 1
      %s195 = smul.addr %s194, 8
      %s196 = smul.addr %s195, 8
      %s197 = scalar_lea.vmem %s4, %s196
      %v199 = vld [vmem:[%s192] sm:$0xff]
      %v200 = vld [vmem:[%s192 + $0x8] sm:$0xff]
      %v201 = vld [vmem:[%s192 + $0x10] sm:$0xff]
      %v202 = vld [vmem:[%s192 + $0x18] sm:$0xff]
      %v203 = vld [vmem:[%s192 + $0x20] sm:$0xff]
      %v204 = vld [vmem:[%s192 + $0x28] sm:$0xff]
      %v205 = vld [vmem:[%s192 + $0x30] sm:$0xff]
      %v206 = vld [vmem:[%s192 + $0x38] sm:$0xff]
      %v207 = vmax.f32 %v199, 0.0
      %v208 = vmax.f32 %v200, 0.0
      %v209 = vmax.f32 %v201, 0.0
      %v210 = vmax.f32 %v202, 0.0
      %v211 = vmax.f32 %v203, 0.0
      %v212 = vmax.f32 %v204, 0.0
      %v213 = vmax.f32 %v205, 0.0
      %v214 = vmax.f32 %v206, 0.0
      %v215 = vpack.c.bf16 %v208, %v207
      %v216 = vpack.c.bf16 %v210, %v209
      %v217 = vpack.c.bf16 %v212, %v211
      %v218 = vpack.c.bf16 %v214, %v213
      %v219 = vld [vmem:[%s1] sm:$0xf]
      %v220 = vld [vmem:[%s1 + $0x4] sm:$0xf]
      %v221 = vld [vmem:[%s1 + $0x8] sm:$0xf]
      %v225 = vunpack.c.l.b16 %v219
      %v226 = vunpack.c.l.b16 %v220
      %v227 = vunpack.c.l.b16 %v221
      %v228 = vpack.c.b16 %v226, %v225
      %v229 = vpack.c.b16 %v227, %v227
      %vm231 = vcmask 195584
      %v233 = vsel %vm231, %v215, 0
      %v236 = vsel %vm231, %v216, 0
      %v239 = vsel %vm231, %v217, 0
      %v242 = vsel %vm231, %v218, 0
      %vm244 = vcmask 1043456
      %v246 = vsel %vm244, %v229, 0
      %248 = vmatprep.subr.bf16.mxu0 0
      %249 = vmatpush1.bf16.msra.mxu0 0
      %250 = vmatprep.subr.bf16.mxu0 0
      %251 = vmatpush1.bf16.msra.mxu0 0
      %252 = vmatprep.subr.bf16.mxu0 0
      %253 = vmatpush1.bf16.msra.mxu0 0
      %254 = vmatprep.subr.bf16.mxu0 0
      %255 = vmatpush1.bf16.msra.mxu0 0
      %256 = vmatprep.subr.bf16.mxu0 0
      %257 = vmatpush1.bf16.msra.mxu0 0
      %258 = vmatprep.subr.bf16.mxu0 0
      %259 = vmatpush1.bf16.msra.mxu0 0
      %260 = vmatprep.subr.bf16.mxu0 0
      %261 = vmatpush1.bf16.msra.mxu0 %v246
      %262 = vmatprep.subr.bf16.mxu0 0
      %263 = vmatpush1.bf16.msra.mxu0 %v228
      %264 = vmatprep.subr.bf16.mxu0 0
      %265 = vmatpush2.bf16.msra.mxu0 0
      %266 = vmatprep.subr.bf16.mxu0 0
      %267 = vmatpush2.bf16.msra.mxu0 0
      %268 = vmatprep.subr.bf16.mxu0 0
      %269 = vmatpush2.bf16.msra.mxu0 0
      %270 = vmatprep.subr.bf16.mxu0 0
      %271 = vmatpush2.bf16.msra.mxu0 0
      %272 = vmatprep.subr.bf16.mxu0 0
      %273 = vmatpush2.bf16.msra.mxu0 0
      %274 = vmatprep.subr.bf16.mxu0 0
      %275 = vmatpush2.bf16.msra.mxu0 0
      %276 = vmatprep.subr.bf16.mxu0 0
      %277 = vmatpush2.bf16.msra.mxu0 0
      %278 = vmatprep.subr.bf16.mxu0 0
      %279 = vmatpush2.bf16.msra.mxu0 0
      %280 = vmatprep.mubr.bf16.mxu0 0
      %281 = vmatmul.mubr.bf16.gmra.mxu0 %v233
      %v282 = vpop.f32.mrf.mxu0
      %v283 = vadd.f32 0.0, %v282
      %v284 = vpop.f32.mrf.mxu0
      %v285 = vpop.f32.mrf.mxu0
      %v286 = vadd.f32 0.0, %v285
      %v287 = vpop.f32.mrf.mxu0
      %288 = vmatprep.mubr.bf16.mxu0 0
      %289 = vmatmul.mubr.bf16.gmra.mxu0 %v236
      %v290 = vpop.f32.mrf.mxu0
      %v291 = vadd.f32 0.0, %v290
      %v292 = vpop.f32.mrf.mxu0
      %v293 = vpop.f32.mrf.mxu0
      %v294 = vadd.f32 0.0, %v293
      %v295 = vpop.f32.mrf.mxu0
      %296 = vmatprep.mubr.bf16.mxu0 0
      %297 = vmatmul.mubr.bf16.gmra.mxu0 %v239
      %v298 = vpop.f32.mrf.mxu0
      %v299 = vadd.f32 0.0, %v298
      %v300 = vpop.f32.mrf.mxu0
      %v301 = vpop.f32.mrf.mxu0
      %v302 = vadd.f32 0.0, %v301
      %v303 = vpop.f32.mrf.mxu0
      %304 = vmatprep.mubr.bf16.mxu0 0
      %305 = vmatmul.mubr.bf16.gmra.mxu0 %v242
      %v306 = vpop.f32.mrf.mxu0
      %v307 = vadd.f32 0.0, %v306
      %v308 = vpop.f32.mrf.mxu0
      %v309 = vpop.f32.mrf.mxu0
      %v310 = vadd.f32 0.0, %v309
      %v311 = vpop.f32.mrf.mxu0
      %312 = vdwg.mxu0
      %v313 = vld [vmem:[%s2] sm:$0x1]
      %v315 = vlaneseq
      %v316 = vshrl.u32 %v315, 7
      %v317 = vsub.s32 0, %v316
      %v318 = vrot.slane %v313, %v317
      %v320 = vmul.f32 %v283, %v318
      %v321 = vmul.f32 %v286, %v318
      %v322 = vmul.f32 %v291, %v318
      %v323 = vmul.f32 %v294, %v318
      %v324 = vmul.f32 %v299, %v318
      %v325 = vmul.f32 %v302, %v318
      %v326 = vmul.f32 %v307, %v318
      %v327 = vmul.f32 %v310, %v318
      %v328 = vld [vmem:[%s3] sm:$0x1]
      %v330 = vlaneseq
      %v331 = vshrl.u32 %v330, 7
      %v332 = vsub.s32 0, %v331
      %v333 = vrot.slane %v328, %v332
      %v335 = vadd.f32 %v320, %v333
      %v336 = vadd.f32 %v321, %v333
      %v337 = vadd.f32 %v322, %v333
      %v338 = vadd.f32 %v323, %v333
      %v339 = vadd.f32 %v324, %v333
      %v340 = vadd.f32 %v325, %v333
      %v341 = vadd.f32 %v326, %v333
      %v342 = vadd.f32 %v327, %v333
      %vm343 = vcmask 130048
      %344 = vst.msk [vmem:[%s197] sm:$0xff] %vm343, %v335
      %345 = vst.msk [vmem:[%s197 + $0x8] sm:$0xff] %vm343, %v336
      %346 = vst.msk [vmem:[%s197 + $0x10] sm:$0xff] %vm343, %v337
      %347 = vst.msk [vmem:[%s197 + $0x18] sm:$0xff] %vm343, %v338
      %348 = vst.msk [vmem:[%s197 + $0x20] sm:$0xff] %vm343, %v339
      %349 = vst.msk [vmem:[%s197 + $0x28] sm:$0xff] %vm343, %v340
      %350 = vst.msk [vmem:[%s197 + $0x30] sm:$0xff] %vm343, %v341
      %351 = vst.msk [vmem:[%s197 + $0x38] sm:$0xff] %vm343, %v342
      %p352 = scmp.lt.s32.totalorder %s15, 1
      %s353 = scalar_select %p352, %s15, 1
      %s354 = smul.addr %s353, 8
      %s355 = smul.addr %s354, 8
      %s356 = scalar_lea.vmem %s4, %s355
      // Predicated region
      $region37: #{_lambda_.19} parent=35 // pred_check
        %p357 = pneg %p122
      $region38: #{_lambda_.19} parent=35 // pred_check_branch
        %359 = sbr.rel (%p357) target = $region40
      $region39: #{_lambda_.19} parent=35 // pred_region
        _
      $region40: #{_lambda_.19} parent=35 // pred_fallthru
        _
    $region36: #{_lambda_.19} parent=5 // pred_fallthru
      _
    %p360 = scmp.le.s32.totalorder 2, %s10
    // Predicated region
    $region41: #{_lambda_.19} parent=5 // pred_check
      %p361 = pneg %p360
    $region42: #{_lambda_.19} parent=5 // pred_check_branch
      %363 = sbr.rel (%p361) target = $region44
    $region43: #{_lambda_.19} parent=5 // pred_region
      %s364 = ssub.s32 %s10, 2
      // Predicated region
      $region45: #{_lambda_.19} parent=43 // pred_check
        %p365 = pneg %p128
      $region46: #{_lambda_.19} parent=43 // pred_check_branch
        %367 = sbr.rel (%p365) target = $region48
      $region47: #{_lambda_.19} parent=43 // pred_region
        %p368 = scmp.lt.s32.totalorder %s16, 1
        %s369 = scalar_select %p368, %s16, 1
        %s370 = smul.addr %s369, 8
        %s371 = smul.addr %s370, 8
        %s372 = scalar_lea.vmem %s4, %s371
      $region48: #{_lambda_.19} parent=43 // pred_fallthru
        _
    $region44: #{_lambda_.19} parent=5 // pred_fallthru
      _
  $region6: #{_lambda_.19} parent=0 // loop_footer
    %s14 = sadd.s32 1, %s10
  $region7: #{_lambda_.19} parent=0 // loop_footer_branch
    %9 = sbr.rel target = $region3
  $region8: #{_lambda_.19} parent=0 // loop_exit
    _

// kernel: _lambda_.21
$region0: #{_lambda_.21}
  #allocation0 [shape = 'u32[]', space=smem, size = 0x4, offset = 0x4, fixed_abs, tag = 'smem constant byte address 0x4 - core index']
  #allocation1 [shape = 'u32[144,128]{1,0:T(1,128)}', space=vmem, size = 0x12000, scoped, tag = 'internal scratch']
  %s0 = inlined_call_operand.vmem [shape: f32[2,100,16], index: 0, kind: input, shape index: {}]
  %s1 = inlined_call_operand.vmem [shape: f32[2,78,16], index: 1, kind: output, shape index: {}]
  %s2 = sld [smem:[#allocation0]]
  $region37: #{_lambda_.21} parent=0
    _
  %s4 = ssub.s32 1, %s2
  %s5 = scalar_select 0, %s4, %s2
  loop: start=0, step=1, limit=4
  $region2: #{_lambda_.21} parent=0 // loop_pre_header
    _
  $region3: #{_lambda_.21} parent=0 // loop_header
    %s7 = sphi 0, %s11
    %p8 = scmp.ge.s32.totalorder %s7, 4
    %s17 = sphi 0, %s19
    %s20 = sphi 0, %s17
    %s21 = sphi 0, %s20
    %s37 = sphi 0, %s21
    %s43 = sphi 0, %s45
    %s46 = sphi 0, %s43
    %s47 = sphi 0, %s46
    %s63 = sphi 0, %s47
  $region4: #{_lambda_.21} parent=0 // loop_header_branch
    %10 = sbr.rel (%p8) target = $region8
  $region5: #{_lambda_.21} parent=0 // loop_body
    %s12 = ssub.s32 %s7, 1
    %s13 = ssub.s32 %s7, 2
    %s14 = sadd.s32 %s7, 1
    %s15 = ssub.s32 %s7, %s14
    %p16 = scmp.eq.s32.totalorder %s15, 0
    %s18 = sadd.s32 %s17, 1
    %s19 = scalar_select %p16, %s17, %s18
    %p22 = pneg %p16
    %p23 = scmp.eq.s32.totalorder %s7, 1
    %p24 = por %p22, %p23
    %p25 = scmp.ne.s32.totalorder %s17, %s20
    %p26 = scmp.eq.s32.totalorder %s7, 0
    %p27 = por %p25, %p26
    %p28 = scmp.ne.s32.totalorder %s17, %s20
    %p29 = scmp.eq.s32.totalorder %s12, 1
    %p30 = por %p28, %p29
    %p31 = scmp.ne.s32.totalorder %s20, %s21
    %p32 = scmp.eq.s32.totalorder %s12, 0
    %p33 = por %p31, %p32
    %p34 = scmp.ne.s32.totalorder %s20, %s21
    %p35 = scmp.eq.s32.totalorder %s13, 1
    %p36 = por %p34, %p35
    %p38 = scmp.ne.s32.totalorder %s21, %s37
    %p39 = scmp.eq.s32.totalorder %s13, 0
    %p40 = por %p38, %p39
    %s41 = ssub.s32 %s7, %s14
    %p42 = scmp.eq.s32.totalorder %s41, 0
    %s44 = sadd.s32 %s43, 1
    %s45 = scalar_select %p42, %s43, %s44
    %p48 = pneg %p42
    %p49 = scmp.eq.s32.totalorder %s7, 1
    %p50 = por %p48, %p49
    %p51 = scmp.ne.s32.totalorder %s43, %s46
    %p52 = scmp.eq.s32.totalorder %s7, 0
    %p53 = por %p51, %p52
    %p54 = scmp.ne.s32.totalorder %s43, %s46
    %p55 = scmp.eq.s32.totalorder %s12, 1
    %p56 = por %p54, %p55
    %p57 = scmp.ne.s32.totalorder %s46, %s47
    %p58 = scmp.eq.s32.totalorder %s12, 0
    %p59 = por %p57, %p58
    %p60 = scmp.ne.s32.totalorder %s46, %s47
    %p61 = scmp.eq.s32.totalorder %s13, 1
    %p62 = por %p60, %p61
    %p64 = scmp.ne.s32.totalorder %s47, %s63
    %p65 = scmp.eq.s32.totalorder %s13, 0
    %p66 = por %p64, %p65
    %p67 = scmp.le.s32.totalorder 1, %s7
    %p68 = scmp.lt.s32.totalorder %s7, 3
    %p69 = pnand %p67, %p68
    %p70 = pneg %p69
    // Predicated region
    $region9: #{_lambda_.21} parent=5 // pred_check
      _
    $region10: #{_lambda_.21} parent=5 // pred_check_branch
      %72 = sbr.rel (%p69) target = $region12
    $region11: #{_lambda_.21} parent=5 // pred_region
      %s73 = ssub.s32 %s7, 1
    $region12: #{_lambda_.21} parent=5 // pred_fallthru
      _
    %p74 = scmp.lt.s32.totalorder %s7, 2
    // Predicated region
    $region13: #{_lambda_.21} parent=5 // pred_check
      %p75 = pneg %p74
    $region14: #{_lambda_.21} parent=5 // pred_check_branch
      %77 = sbr.rel (%p75) target = $region16
    $region15: #{_lambda_.21} parent=5 // pred_region
      // Predicated region
      $region17: #{_lambda_.21} parent=15 // pred_check
        %p78 = pneg %p27
      $region18: #{_lambda_.21} parent=15 // pred_check_branch
        %80 = sbr.rel (%p78) target = $region20
      $region19: #{_lambda_.21} parent=15 // pred_region
        %p81 = scmp.lt.s32.totalorder %s7, 1
        %s82 = scalar_select %p81, %s7, 1
        %s83 = smul.addr %s82, 13
        %s84 = smul.addr %s83, 8
        %s85 = scalar_lea.vmem %s0, %s84
      $region20: #{_lambda_.21} parent=15 // pred_fallthru
        _
    $region16: #{_lambda_.21} parent=5 // pred_fallthru
      _
    %p86 = scmp.le.s32.totalorder 1, %s7
    %p87 = scmp.lt.s32.totalorder %s7, 3
    %p88 = pnand %p86, %p87
    %p89 = pneg %p88
    // Predicated region
    $region21: #{_lambda_.21} parent=5 // pred_check
      _
    $region22: #{_lambda_.21} parent=5 // pred_check_branch
      %91 = sbr.rel (%p88) target = $region24
    $region23: #{_lambda_.21} parent=5 // pred_region
      %s92 = ssub.s32 %s7, 1
      %p93 = scmp.lt.s32.totalorder %s12, 1
      %s94 = scalar_select %p93, %s12, 1
      %s95 = smul.addr %s94, 13
      %s96 = smul.addr %s95, 8
      %s97 = scalar_lea.vmem %s0, %s96
      %p98 = pneg %p33
      %p99 = pneg %p30
      %p100 = pneg %p59
      %p101 = pneg %p56
      %p102 = scmp.lt.s32.totalorder %s12, 1
      %s103 = scalar_select %p102, %s12, 1
      %s104 = smul.addr %s103, 10
      %s105 = smul.addr %s104, 8
      %s106 = scalar_lea.vmem %s1, %s105
      %p107 = scmp.lt.s32.totalorder %s12, 1
      %s108 = scalar_select %p107, %s12, 1
      %s109 = smul.addr %s108, 13
      %s110 = smul.addr %s109, 8
      %s111 = scalar_lea.vmem %s0, %s110
      %p112 = scmp.lt.s32.totalorder %s12, 1
      %s113 = scalar_select %p112, %s12, 1
      %s114 = smul.addr %s113, 10
      %s115 = smul.addr %s114, 8
      %s116 = scalar_lea.vmem %s1, %s115
      %v117 = vld [vmem:[%s111] sm:$0xff]
      %v118 = vld [vmem:[%s111 + $0x8] sm:$0xff]
      %v119 = vld [vmem:[%s111 + $0x10] sm:$0xff]
      %v120 = vld [vmem:[%s111 + $0x18] sm:$0xff]
      %v121 = vld [vmem:[%s111 + $0x20] sm:$0xff]
      %v122 = vld [vmem:[%s111 + $0x28] sm:$0xff]
      %v123 = vld [vmem:[%s111 + $0x30] sm:$0xff]
      %v124 = vld [vmem:[%s111 + $0x38] sm:$0xff]
      %v125 = vld [vmem:[%s111 + $0x40] sm:$0xff]
      %v126 = vld [vmem:[%s111 + $0x48] sm:$0x3f]
      %v127 = vld [vmem:[%s111 + $0x1] sm:$0xff]
      %v128 = vld [vmem:[%s111 + $0x9] sm:$0xff]
      %v129 = vld [vmem:[%s111 + $0x11] sm:$0xff]
      %v130 = vld [vmem:[%s111 + $0x19] sm:$0xff]
      %v131 = vld [vmem:[%s111 + $0x21] sm:$0xff]
      %v132 = vld [vmem:[%s111 + $0x29] sm:$0xff]
      %v133 = vld [vmem:[%s111 + $0x31] sm:$0xff]
      %v134 = vld [vmem:[%s111 + $0x39] sm:$0xff]
      %v135 = vld [vmem:[%s111 + $0x41] sm:$0xff]
      %v136 = vld [vmem:[%s111 + $0x49] sm:$0x3f]
      %v137 = vmax.f32 %v117, %v127
      %v138 = vmax.f32 %v118, %v128
      %v139 = vmax.f32 %v119, %v129
      %v140 = vmax.f32 %v120, %v130
      %v141 = vmax.f32 %v121, %v131
      %v142 = vmax.f32 %v122, %v132
      %v143 = vmax.f32 %v123, %v133
      %v144 = vmax.f32 %v124, %v134
      %v145 = vmax.f32 %v125, %v135
      %v146 = vmax.f32 %v126, %v136
      %v147 = vld [vmem:[%s111 + $0x2] sm:$0xff]
      %v148 = vld [vmem:[%s111 + $0xa] sm:$0xff]
      %v149 = vld [vmem:[%s111 + $0x12] sm:$0xff]
      %v150 = vld [vmem:[%s111 + $0x1a] sm:$0xff]
      %v151 = vld [vmem:[%s111 + $0x22] sm:$0xff]
      %v152 = vld [vmem:[%s111 + $0x2a] sm:$0xff]
      %v153 = vld [vmem:[%s111 + $0x32] sm:$0xff]
      %v154 = vld [vmem:[%s111 + $0x3a] sm:$0xff]
      %v155 = vld [vmem:[%s111 + $0x42] sm:$0xff]
      %v156 = vld [vmem:[%s111 + $0x4a] sm:$0x3f]
      %v157 = vmax.f32 %v137, %v147
      %v158 = vmax.f32 %v138, %v148
      %v159 = vmax.f32 %v139, %v149
      %v160 = vmax.f32 %v140, %v150
      %v161 = vmax.f32 %v141, %v151
      %v162 = vmax.f32 %v142, %v152
      %v163 = vmax.f32 %v143, %v153
      %v164 = vmax.f32 %v144, %v154
      %v165 = vmax.f32 %v145, %v155
      %v166 = vmax.f32 %v146, %v156
      %v167 = vld [vmem:[%s111 + $0x4a] sm:$0xff]
      %v168 = vld [vmem:[%s111 + $0x52] sm:$0x3f]
      %v169 = vmax.f32 %v157, %v148
      %v170 = vmax.f32 %v158, %v149
      %v171 = vmax.f32 %v159, %v150
      %v172 = vmax.f32 %v160, %v151
      %v173 = vmax.f32 %v161, %v152
      %v174 = vmax.f32 %v162, %v153
      %v175 = vmax.f32 %v163, %v154
      %v176 = vmax.f32 %v164, %v155
      %v177 = vmax.f32 %v165, %v167
      %v178 = vmax.f32 %v166, %v168
      %v179 = vld [vmem:[%s111 + $0xb] sm:$0xff]
      %v180 = vld [vmem:[%s111 + $0x13] sm:$0xff]
      %v181 = vld [vmem:[%s111 + $0x1b] sm:$0xff]
      %v182 = vld [vmem:[%s111 + $0x23] sm:$0xff]
      %v183 = vld [vmem:[%s111 + $0x2b] sm:$0xff]
      %v184 = vld [vmem:[%s111 + $0x33] sm:$0xff]
      %v185 = vld [vmem:[%s111 + $0x3b] sm:$0xff]
      %v186 = vld [vmem:[%s111 + $0x43] sm:$0xff]
      %v187 = vld [vmem:[%s111 + $0x4b] sm:$0xff]
      %v188 = vld [vmem:[%s111 + $0x53] sm:$0x3f]
      %v189 = vmax.f32 %v169, %v179
      %v190 = vmax.f32 %v170, %v180
      %v191 = vmax.f32 %v171, %v181
      %v192 = vmax.f32 %v172, %v182
      %v193 = vmax.f32 %v173, %v183
      %v194 = vmax.f32 %v174, %v184
      %v195 = vmax.f32 %v175, %v185
      %v196 = vmax.f32 %v176, %v186
      %v197 = vmax.f32 %v177, %v187
      %v198 = vmax.f32 %v178, %v188
      %v199 = vld [vmem:[%s111 + $0xc] sm:$0xff]
      %v200 = vld [vmem:[%s111 + $0x14] sm:$0xff]
      %v201 = vld [vmem:[%s111 + $0x1c] sm:$0xff]
      %v202 = vld [vmem:[%s111 + $0x24] sm:$0xff]
      %v203 = vld [vmem:[%s111 + $0x2c] sm:$0xff]
      %v204 = vld [vmem:[%s111 + $0x34] sm:$0xff]
      %v205 = vld [vmem:[%s111 + $0x3c] sm:$0xff]
      %v206 = vld [vmem:[%s111 + $0x44] sm:$0xff]
      %v207 = vld [vmem:[%s111 + $0x4c] sm:$0xff]
      %v208 = vld [vmem:[%s111 + $0x54] sm:$0x3f]
      %v209 = vmax.f32 %v189, %v199
      %v210 = vmax.f32 %v190, %v200
      %v211 = vmax.f32 %v191, %v201
      %v212 = vmax.f32 %v192, %v202
      %v213 = vmax.f32 %v193, %v203
      %v214 = vmax.f32 %v194, %v204
      %v215 = vmax.f32 %v195, %v205
      %v216 = vmax.f32 %v196, %v206
      %v217 = vmax.f32 %v197, %v207
      %v218 = vmax.f32 %v198, %v208
      %v219 = vld [vmem:[%s111 + $0x54] sm:$0xff]
      %v220 = vld [vmem:[%s111 + $0x5c] sm:$0x3f]
      %v221 = vmax.f32 %v209, %v200
      %v222 = vmax.f32 %v210, %v201
      %v223 = vmax.f32 %v211, %v202
      %v224 = vmax.f32 %v212, %v203
      %v225 = vmax.f32 %v213, %v204
      %v226 = vmax.f32 %v214, %v205
      %v227 = vmax.f32 %v215, %v206
      %v228 = vmax.f32 %v216, %v207
      %v229 = vmax.f32 %v217, %v219
      %v230 = vmax.f32 %v218, %v220
      %v231 = vld [vmem:[%s111 + $0x15] sm:$0xff]
      %v232 = vld [vmem:[%s111 + $0x1d] sm:$0xff]
      %v233 = vld [vmem:[%s111 + $0x25] sm:$0xff]
      %v234 = vld [vmem:[%s111 + $0x2d] sm:$0xff]
      %v235 = vld [vmem:[%s111 + $0x35] sm:$0xff]
      %v236 = vld [vmem:[%s111 + $0x3d] sm:$0xff]
      %v237 = vld [vmem:[%s111 + $0x45] sm:$0xff]
      %v238 = vld [vmem:[%s111 + $0x4d] sm:$0xff]
      %v239 = vld [vmem:[%s111 + $0x55] sm:$0xff]
      %v240 = vld [vmem:[%s111 + $0x5d] sm:$0x3f]
      %v241 = vmax.f32 %v221, %v231
      %v242 = vmax.f32 %v222, %v232
      %v243 = vmax.f32 %v223, %v233
      %v244 = vmax.f32 %v224, %v234
      %v245 = vmax.f32 %v225, %v235
      %v246 = vmax.f32 %v226, %v236
      %v247 = vmax.f32 %v227, %v237
      %v248 = vmax.f32 %v228, %v238
      %v249 = vmax.f32 %v229, %v239
      %v250 = vmax.f32 %v230, %v240
      %v251 = vld [vmem:[%s111 + $0x16] sm:$0xff]
      %v252 = vld [vmem:[%s111 + $0x1e] sm:$0xff]
      %v253 = vld [vmem:[%s111 + $0x26] sm:$0xff]
      %v254 = vld [vmem:[%s111 + $0x2e] sm:$0xff]
      %v255 = vld [vmem:[%s111 + $0x36] sm:$0xff]
      %v256 = vld [vmem:[%s111 + $0x3e] sm:$0xff]
      %v257 = vld [vmem:[%s111 + $0x46] sm:$0xff]
      %v258 = vld [vmem:[%s111 + $0x4e] sm:$0xff]
      %v259 = vld [vmem:[%s111 + $0x56] sm:$0xff]
      %v260 = vld [vmem:[%s111 + $0x5e] sm:$0x3f]
      %v261 = vmax.f32 %v241, %v251
      %v262 = vmax.f32 %v242, %v252
      %v263 = vmax.f32 %v243, %v253
      %v264 = vmax.f32 %v244, %v254
      %v265 = vmax.f32 %v245, %v255
      %v266 = vmax.f32 %v246, %v256
      %v267 = vmax.f32 %v247, %v257
      %v268 = vmax.f32 %v248, %v258
      %v269 = vmax.f32 %v249, %v259
      %v270 = vmax.f32 %v250, %v260
      %vm271 = vcmask 130048
      %272 = vst.msk [vmem:[%s116] sm:$0xff] %vm271, %v261
      %273 = vst.msk [vmem:[%s116 + $0x8] sm:$0xff] %vm271, %v262
      %274 = vst.msk [vmem:[%s116 + $0x10] sm:$0xff] %vm271, %v263
      %275 = vst.msk [vmem:[%s116 + $0x18] sm:$0xff] %vm271, %v264
      %276 = vst.msk [vmem:[%s116 + $0x20] sm:$0xff] %vm271, %v265
      %277 = vst.msk [vmem:[%s116 + $0x28] sm:$0xff] %vm271, %v266
      %278 = vst.msk [vmem:[%s116 + $0x30] sm:$0xff] %vm271, %v267
      %279 = vst.msk [vmem:[%s116 + $0x38] sm:$0xff] %vm271, %v268
      %280 = vst.msk [vmem:[%s116 + $0x40] sm:$0xff] %vm271, %v269
      %vm281 = vcmask 128000
      %282 = vst.msk [vmem:[%s116 + $0x48] sm:$0x3f] %vm281, %v270
      %p283 = scmp.lt.s32.totalorder %s12, 1
      %s284 = scalar_select %p283, %s12, 1
      %s285 = smul.addr %s284, 10
      %s286 = smul.addr %s285, 8
      %s287 = scalar_lea.vmem %s1, %s286
      // Predicated region
      $region25: #{_lambda_.21} parent=23 // pred_check
        %p288 = pneg %p56
      $region26: #{_lambda_.21} parent=23 // pred_check_branch
        %290 = sbr.rel (%p288) target = $region28
      $region27: #{_lambda_.21} parent=23 // pred_region
        _
      $region28: #{_lambda_.21} parent=23 // pred_fallthru
        _
    $region24: #{_lambda_.21} parent=5 // pred_fallthru
      _
    %p291 = scmp.le.s32.totalorder 2, %s7
    // Predicated region
    $region29: #{_lambda_.21} parent=5 // pred_check
      %p292 = pneg %p291
    $region30: #{_lambda_.21} parent=5 // pred_check_branch
      %294 = sbr.rel (%p292) target = $region32
    $region31: #{_lambda_.21} parent=5 // pred_region
      %s295 = ssub.s32 %s7, 2
      // Predicated region
      $region33: #{_lambda_.21} parent=31 // pred_check
        %p296 = pneg %p62
      $region34: #{_lambda_.21} parent=31 // pred_check_branch
        %298 = sbr.rel (%p296) target = $region36
      $region35: #{_lambda_.21} parent=31 // pred_region
        %p299 = scmp.lt.s32.totalorder %s13, 1
        %s300 = scalar_select %p299, %s13, 1
        %s301 = smul.addr %s300, 10
        %s302 = smul.addr %s301, 8
        %s303 = scalar_lea.vmem %s1, %s302
      $region36: #{_lambda_.21} parent=31 // pred_fallthru
        _
    $region32: #{_lambda_.21} parent=5 // pred_fallthru
      _
  $region6: #{_lambda_.21} parent=0 // loop_footer
    %s11 = sadd.s32 1, %s7
  $region7: #{_lambda_.21} parent=0 // loop_footer_branch
    %6 = sbr.rel target = $region3
  $region8: #{_lambda_.21} parent=0 // loop_exit
    _

// kernel: _lambda_.13
$region0: #{_lambda_.13}
  #allocation0 [shape = 'u32[]', space=smem, size = 0x4, offset = 0x4, fixed_abs, tag = 'smem constant byte address 0x4 - core index']
  #allocation1 [shape = 'u32[144,128]{1,0:T(1,128)}', space=vmem, size = 0x12000, scoped, tag = 'internal scratch']
  %s0 = inlined_call_operand.vmem [shape: f32[2,324,3], index: 0, kind: input, shape index: {}]
  %s1 = inlined_call_operand.vmem [shape: bf16[27,12], index: 1, kind: input, shape index: {}]
  %s2 = inlined_call_operand.vmem [shape: f32[1,12], index: 2, kind: input, shape index: {}]
  %s3 = inlined_call_operand.vmem [shape: f32[1,12], index: 3, kind: input, shape index: {}]
  %s4 = inlined_call_operand.vmem [shape: f32[2,286,12], index: 4, kind: output, shape index: {}]
  %s5 = sld [smem:[#allocation0]]
  $region49: #{_lambda_.13} parent=0
    _
  %s7 = ssub.s32 1, %s5
  %s8 = scalar_select 0, %s7, %s5
  loop: start=0, step=1, limit=4
  $region2: #{_lambda_.13} parent=0 // loop_pre_header
    _
  $region3: #{_lambda_.13} parent=0 // loop_header
    %s10 = sphi 0, %s14
    %p11 = scmp.ge.s32.totalorder %s10, 4
    %s20 = sphi 0, %s22
    %s23 = sphi 0, %s20
    %s24 = sphi 0, %s23
    %s40 = sphi 0, %s24
    %s44 = sphi 0, %s44
    %s46 = sphi 0, %s44
    %s47 = sphi 0, %s46
    %s61 = sphi 0, %s47
    %s65 = sphi 0, %s65
    %s67 = sphi 0, %s65
    %s68 = sphi 0, %s67
    %s82 = sphi 0, %s68
    %s86 = sphi 0, %s86
    %s88 = sphi 0, %s86
    %s89 = sphi 0, %s88
    %s103 = sphi 0, %s89
    %s109 = sphi 0, %s111
    %s112 = sphi 0, %s109
    %s113 = sphi 0, %s112
    %s129 = sphi 0, %s113
  $region4: #{_lambda_.13} parent=0 // loop_header_branch
    %13 = sbr.rel (%p11) target = $region8
  $region5: #{_lambda_.13} parent=0 // loop_body
    %s15 = ssub.s32 %s10, 1
    %s16 = ssub.s32 %s10, 2
    %s17 = sadd.s32 %s10, 1
    %s18 = ssub.s32 %s10, %s17
    %p19 = scmp.eq.s32.totalorder %s18, 0
    %s21 = sadd.s32 %s20, 1
    %s22 = scalar_select %p19, %s20, %s21
    %p25 = pneg %p19
    %p26 = scmp.eq.s32.totalorder %s10, 1
    %p27 = por %p25, %p26
    %p28 = scmp.ne.s32.totalorder %s20, %s23
    %p29 = scmp.eq.s32.totalorder %s10, 0
    %p30 = por %p28, %p29
    %p31 = scmp.ne.s32.totalorder %s20, %s23
    %p32 = scmp.eq.s32.totalorder %s15, 1
    %p33 = por %p31, %p32
    %p34 = scmp.ne.s32.totalorder %s23, %s24
    %p35 = scmp.eq.s32.totalorder %s15, 0
    %p36 = por %p34, %p35
    %p37 = scmp.ne.s32.totalorder %s23, %s24
    %p38 = scmp.eq.s32.totalorder %s16, 1
    %p39 = por %p37, %p38
    %p41 = scmp.ne.s32.totalorder %s24, %s40
    %p42 = scmp.eq.s32.totalorder %s16, 0
    %p43 = por %p41, %p42
    %s45 = sadd.s32 %s44, 1
    %p48 = scmp.eq.s32.totalorder %s10, 1
    %p49 = scmp.ne.s32.totalorder %s44, %s46
    %p50 = scmp.eq.s32.totalorder %s10, 0
    %p51 = por %p49, %p50
    %p52 = scmp.ne.s32.totalorder %s44, %s46
    %p53 = scmp.eq.s32.totalorder %s15, 1
    %p54 = por %p52, %p53
    %p55 = scmp.ne.s32.totalorder %s46, %s47
    %p56 = scmp.eq.s32.totalorder %s15, 0
    %p57 = por %p55, %p56
    %p58 = scmp.ne.s32.totalorder %s46, %s47
    %p59 = scmp.eq.s32.totalorder %s16, 1
    %p60 = por %p58, %p59
    %p62 = scmp.ne.s32.totalorder %s47, %s61
    %p63 = scmp.eq.s32.totalorder %s16, 0
    %p64 = por %p62, %p63
    %s66 = sadd.s32 %s65, 1
    %p69 = scmp.eq.s32.totalorder %s10, 1
    %p70 = scmp.ne.s32.totalorder %s65, %s67
    %p71 = scmp.eq.s32.totalorder %s10, 0
    %p72 = por %p70, %p71
    %p73 = scmp.ne.s32.totalorder %s65, %s67
    %p74 = scmp.eq.s32.totalorder %s15, 1
    %p75 = por %p73, %p74
    %p76 = scmp.ne.s32.totalorder %s67, %s68
    %p77 = scmp.eq.s32.totalorder %s15, 0
    %p78 = por %p76, %p77
    %p79 = scmp.ne.s32.totalorder %s67, %s68
    %p80 = scmp.eq.s32.totalorder %s16, 1
    %p81 = por %p79, %p80
    %p83 = scmp.ne.s32.totalorder %s68, %s82
    %p84 = scmp.eq.s32.totalorder %s16, 0
    %p85 = por %p83, %p84
    %s87 = sadd.s32 %s86, 1
    %p90 = scmp.eq.s32.totalorder %s10, 1
    %p91 = scmp.ne.s32.totalorder %s86, %s88
    %p92 = scmp.eq.s32.totalorder %s10, 0
    %p93 = por %p91, %p92
    %p94 = scmp.ne.s32.totalorder %s86, %s88
    %p95 = scmp.eq.s32.totalorder %s15, 1
    %p96 = por %p94, %p95
    %p97 = scmp.ne.s32.totalorder %s88, %s89
    %p98 = scmp.eq.s32.totalorder %s15, 0
    %p99 = por %p97, %p98
    %p100 = scmp.ne.s32.totalorder %s88, %s89
    %p101 = scmp.eq.s32.totalorder %s16, 1
    %p102 = por %p100, %p101
    %p104 = scmp.ne.s32.totalorder %s89, %s103
    %p105 = scmp.eq.s32.totalorder %s16, 0
    %p106 = por %p104, %p105
    %s107 = ssub.s32 %s10, %s17
    %p108 = scmp.eq.s32.totalorder %s107, 0
    %s110 = sadd.s32 %s109, 1
    %s111 = scalar_select %p108, %s109, %s110
    %p114 = pneg %p108
    %p115 = scmp.eq.s32.totalorder %s10, 1
    %p116 = por %p114, %p115
    %p117 = scmp.ne.s32.totalorder %s109, %s112
    %p118 = scmp.eq.s32.totalorder %s10, 0
    %p119 = por %p117, %p118
    %p120 = scmp.ne.s32.totalorder %s109, %s112
    %p121 = scmp.eq.s32.totalorder %s15, 1
    %p122 = por %p120, %p121
    %p123 = scmp.ne.s32.totalorder %s112, %s113
    %p124 = scmp.eq.s32.totalorder %s15, 0
    %p125 = por %p123, %p124
    %p126 = scmp.ne.s32.totalorder %s112, %s113
    %p127 = scmp.eq.s32.totalorder %s16, 1
    %p128 = por %p126, %p127
    %p130 = scmp.ne.s32.totalorder %s113, %s129
    %p131 = scmp.eq.s32.totalorder %s16, 0
    %p132 = por %p130, %p131
    %p133 = scmp.le.s32.totalorder 1, %s10
    %p134 = scmp.lt.s32.totalorder %s10, 3
    %p135 = pnand %p133, %p134
    %p136 = pneg %p135
    // Predicated region
    $region9: #{_lambda_.13} parent=5 // pred_check
      _
    $region10: #{_lambda_.13} parent=5 // pred_check_branch
      %138 = sbr.rel (%p135) target = $region12
    $region11: #{_lambda_.13} parent=5 // pred_region
      %s139 = ssub.s32 %s10, 1
      // Predicated region
      $region13: #{_lambda_.13} parent=11 // pred_check
        %p140 = pneg %p57
      $region14: #{_lambda_.13} parent=11 // pred_check_branch
        %142 = sbr.rel (%p140) target = $region16
      $region15: #{_lambda_.13} parent=11 // pred_region
        _
      $region16: #{_lambda_.13} parent=11 // pred_fallthru
        _
      // Predicated region
      $region17: #{_lambda_.13} parent=11 // pred_check
        %p143 = pneg %p78
      $region18: #{_lambda_.13} parent=11 // pred_check_branch
        %145 = sbr.rel (%p143) target = $region20
      $region19: #{_lambda_.13} parent=11 // pred_region
        _
      $region20: #{_lambda_.13} parent=11 // pred_fallthru
        _
      // Predicated region
      $region21: #{_lambda_.13} parent=11 // pred_check
        %p146 = pneg %p99
      $region22: #{_lambda_.13} parent=11 // pred_check_branch
        %148 = sbr.rel (%p146) target = $region24
      $region23: #{_lambda_.13} parent=11 // pred_region
        _
      $region24: #{_lambda_.13} parent=11 // pred_fallthru
        _
    $region12: #{_lambda_.13} parent=5 // pred_fallthru
      _
    %p149 = scmp.lt.s32.totalorder %s10, 2
    // Predicated region
    $region25: #{_lambda_.13} parent=5 // pred_check
      %p150 = pneg %p149
    $region26: #{_lambda_.13} parent=5 // pred_check_branch
      %152 = sbr.rel (%p150) target = $region28
    $region27: #{_lambda_.13} parent=5 // pred_region
      // Predicated region
      $region29: #{_lambda_.13} parent=27 // pred_check
        %p153 = pneg %p30
      $region30: #{_lambda_.13} parent=27 // pred_check_branch
        %155 = sbr.rel (%p153) target = $region32
      $region31: #{_lambda_.13} parent=27 // pred_region
        %p156 = scmp.lt.s32.totalorder %s10, 1
        %s157 = scalar_select %p156, %s10, 1
        %s158 = smul.addr %s157, 41
        %s159 = smul.addr %s158, 8
        %s160 = scalar_lea.vmem %s0, %s159
      $region32: #{_lambda_.13} parent=27 // pred_fallthru
        _
    $region28: #{_lambda_.13} parent=5 // pred_fallthru
      _
    %p161 = scmp.le.s32.totalorder 1, %s10
    %p162 = scmp.lt.s32.totalorder %s10, 3
    %p163 = pnand %p161, %p162
    %p164 = pneg %p163
    // Predicated region
    $region33: #{_lambda_.13} parent=5 // pred_check
      _
    $region34: #{_lambda_.13} parent=5 // pred_check_branch
      %166 = sbr.rel (%p163) target = $region36
    $region35: #{_lambda_.13} parent=5 // pred_region
      %s167 = ssub.s32 %s10, 1
      %p168 = scmp.lt.s32.totalorder %s15, 1
      %s169 = scalar_select %p168, %s15, 1
      %s170 = smul.addr %s169, 41
      %s171 = smul.addr %s170, 8
      %s172 = scalar_lea.vmem %s0, %s171
      %p173 = pneg %p36
      %p174 = pneg %p33
      %p175 = pneg %p57
      %p176 = pneg %p54
      %p177 = pneg %p78
      %p178 = pneg %p75
      %p179 = pneg %p99
      %p180 = pneg %p96
      %p181 = pneg %p125
      %p182 = pneg %p122
      %p183 = scmp.lt.s32.totalorder %s15, 1
      %s184 = scalar_select %p183, %s15, 1
      %s185 = smul.addr %s184, 36
      %s186 = smul.addr %s185, 8
      %s187 = scalar_lea.vmem %s4, %s186
      %p188 = scmp.lt.s32.totalorder %s15, 1
      %s189 = scalar_select %p188, %s15, 1
      %s190 = smul.addr %s189, 41
      %s191 = smul.addr %s190, 8
      %s192 = scalar_lea.vmem %s0, %s191
      %p193 = scmp.lt.s32.totalorder %s15, 1
      %s194 = scalar_select %p193, %s15, 1
      %s195 = smul.addr %s194, 36
      %s196 = smul.addr %s195, 8
      %s197 = scalar_lea.vmem %s4, %s196
      %v199 = vld [vmem:[%s192] sm:$0xff]
      %v200 = vld [vmem:[%s192 + $0x8] sm:$0xff]
      %v201 = vld [vmem:[%s192 + $0x10] sm:$0xff]
      %v202 = vld [vmem:[%s192 + $0x18] sm:$0xff]
      %v203 = vld [vmem:[%s192 + $0x20] sm:$0xff]
      %v204 = vld [vmem:[%s192 + $0x28] sm:$0xff]
      %v205 = vld [vmem:[%s192 + $0x30] sm:$0xff]
      %v206 = vld [vmem:[%s192 + $0x38] sm:$0xff]
      %v207 = vld [vmem:[%s192 + $0x40] sm:$0xff]
      %v208 = vld [vmem:[%s192 + $0x48] sm:$0xff]
      %v209 = vld [vmem:[%s192 + $0x50] sm:$0xff]
      %v210 = vld [vmem:[%s192 + $0x58] sm:$0xff]
      %v211 = vld [vmem:[%s192 + $0x60] sm:$0xff]
      %v212 = vld [vmem:[%s192 + $0x68] sm:$0xff]
      %v213 = vld [vmem:[%s192 + $0x70] sm:$0xff]
      %v214 = vld [vmem:[%s192 + $0x78] sm:$0xff]
      %v215 = vld [vmem:[%s192 + $0x80] sm:$0xff]
      %v216 = vld [vmem:[%s192 + $0x88] sm:$0xff]
      %v217 = vld [vmem:[%s192 + $0x90] sm:$0xff]
      %v218 = vld [vmem:[%s192 + $0x98] sm:$0xff]
      %v219 = vld [vmem:[%s192 + $0xa0] sm:$0xff]
      %v220 = vld [vmem:[%s192 + $0xa8] sm:$0xff]
      %v221 = vld [vmem:[%s192 + $0xb0] sm:$0xff]
      %v222 = vld [vmem:[%s192 + $0xb8] sm:$0xff]
      %v223 = vld [vmem:[%s192 + $0xc0] sm:$0xff]
      %v224 = vld [vmem:[%s192 + $0xc8] sm:$0xff]
      %v225 = vld [vmem:[%s192 + $0xd0] sm:$0xff]
      %v226 = vld [vmem:[%s192 + $0xd8] sm:$0xff]
      %v227 = vld [vmem:[%s192 + $0xe0] sm:$0xff]
      %v228 = vld [vmem:[%s192 + $0xe8] sm:$0xff]
      %v229 = vld [vmem:[%s192 + $0xf0] sm:$0xff]
      %v230 = vld [vmem:[%s192 + $0xf8] sm:$0xff]
      %v231 = vld [vmem:[%s192 + $0x100] sm:$0xff]
      %v232 = vld [vmem:[%s192 + $0x108] sm:$0xff]
      %v233 = vld [vmem:[%s192 + $0x110] sm:$0xff]
      %v234 = vld [vmem:[%s192 + $0x118] sm:$0x3f]
      %v235 = vpack.c.bf16 %v200, %v199
      %v236 = vpack.c.bf16 %v202, %v201
      %v237 = vpack.c.bf16 %v204, %v203
      %v238 = vpack.c.bf16 %v206, %v205
      %v239 = vpack.c.bf16 %v208, %v207
      %v240 = vpack.c.bf16 %v210, %v209
      %v241 = vpack.c.bf16 %v212, %v211
      %v242 = vpack.c.bf16 %v214, %v213
      %v243 = vpack.c.bf16 %v216, %v215
      %v244 = vpack.c.bf16 %v218, %v217
      %v245 = vpack.c.bf16 %v220, %v219
      %v246 = vpack.c.bf16 %v222, %v221
      %v247 = vpack.c.bf16 %v224, %v223
      %v248 = vpack.c.bf16 %v226, %v225
      %v249 = vpack.c.bf16 %v228, %v227
      %v250 = vpack.c.bf16 %v230, %v229
      %v251 = vpack.c.bf16 %v232, %v231
      %v252 = vpack.c.bf16 %v234, %v233
      %v253 = vld [vmem:[%s1] sm:$0x3]
      %v254 = vld [vmem:[%s192 + $0x1] sm:$0xff]
      %v255 = vld [vmem:[%s192 + $0x9] sm:$0xff]
      %v256 = vld [vmem:[%s192 + $0x11] sm:$0xff]
      %v257 = vld [vmem:[%s192 + $0x19] sm:$0xff]
      %v258 = vld [vmem:[%s192 + $0x21] sm:$0xff]
      %v259 = vld [vmem:[%s192 + $0x29] sm:$0xff]
      %v260 = vld [vmem:[%s192 + $0x31] sm:$0xff]
      %v261 = vld [vmem:[%s192 + $0x39] sm:$0xff]
      %v262 = vld [vmem:[%s192 + $0x41] sm:$0xff]
      %v263 = vld [vmem:[%s192 + $0x49] sm:$0xff]
      %v264 = vld [vmem:[%s192 + $0x51] sm:$0xff]
      %v265 = vld [vmem:[%s192 + $0x59] sm:$0xff]
      %v266 = vld [vmem:[%s192 + $0x61] sm:$0xff]
      %v267 = vld [vmem:[%s192 + $0x69] sm:$0xff]
      %v268 = vld [vmem:[%s192 + $0x71] sm:$0xff]
      %v269 = vld [vmem:[%s192 + $0x79] sm:$0xff]
      %v270 = vld [vmem:[%s192 + $0x81] sm:$0xff]
      %v271 = vld [vmem:[%s192 + $0x89] sm:$0xff]
      %v272 = vld [vmem:[%s192 + $0x91] sm:$0xff]
      %v273 = vld [vmem:[%s192 + $0x99] sm:$0xff]
      %v274 = vld [vmem:[%s192 + $0xa1] sm:$0xff]
      %v275 = vld [vmem:[%s192 + $0xa9] sm:$0xff]
      %v276 = vld [vmem:[%s192 + $0xb1] sm:$0xff]
      %v277 = vld [vmem:[%s192 + $0xb9] sm:$0xff]
      %v278 = vld [vmem:[%s192 + $0xc1] sm:$0xff]
      %v279 = vld [vmem:[%s192 + $0xc9] sm:$0xff]
      %v280 = vld [vmem:[%s192 + $0xd1] sm:$0xff]
      %v281 = vld [vmem:[%s192 + $0xd9] sm:$0xff]
      %v282 = vld [vmem:[%s192 + $0xe1] sm:$0xff]
      %v283 = vld [vmem:[%s192 + $0xe9] sm:$0xff]
      %v284 = vld [vmem:[%s192 + $0xf1] sm:$0xff]
      %v285 = vld [vmem:[%s192 + $0xf9] sm:$0xff]
      %v286 = vld [vmem:[%s192 + $0x101] sm:$0xff]
      %v287 = vld [vmem:[%s192 + $0x109] sm:$0xff]
      %v288 = vld [vmem:[%s192 + $0x111] sm:$0xff]
      %v289 = vld [vmem:[%s192 + $0x119] sm:$0x3f]
      %v290 = vpack.c.bf16 %v255, %v254
      %v291 = vpack.c.bf16 %v257, %v256
      %v292 = vpack.c.bf16 %v259, %v258
      %v293 = vpack.c.bf16 %v261, %v260
      %v294 = vpack.c.bf16 %v263, %v262
      %v295 = vpack.c.bf16 %v265, %v264
      %v296 = vpack.c.bf16 %v267, %v266
      %v297 = vpack.c.bf16 %v269, %v268
      %v298 = vpack.c.bf16 %v271, %v270
      %v299 = vpack.c.bf16 %v273, %v272
      %v300 = vpack.c.bf16 %v275, %v274
      %v301 = vpack.c.bf16 %v277, %v276
      %v302 = vpack.c.bf16 %v279, %v278
      %v303 = vpack.c.bf16 %v281, %v280
      %v304 = vpack.c.bf16 %v283, %v282
      %v305 = vpack.c.bf16 %v285, %v284
      %v306 = vpack.c.bf16 %v287, %v286
      %v307 = vpack.c.bf16 %v289, %v288
      %v308 = vld [vmem:[%s1] sm:$0x6]
      %v310 = vunpack.c.l.b16 %v308
      %v311 = vpack.c.b16 %v310, %v310
      %v313 = vshrl.u32 %v311, 16
      %v315 = vrot.slane %v313, 1
      %v316 = vshll.u32 %v311, 16
      %v318 = vrot.slane %v316, 2
      %v319 = vor.u32 %v315, %v318
      %vm320 = vcmask 23552
      %v322 = vsel %vm320, %v290, 0
      %v325 = vsel %vm320, %v291, 0
      %v328 = vsel %vm320, %v292, 0
      %v331 = vsel %vm320, %v293, 0
      %v334 = vsel %vm320, %v294, 0
      %v337 = vsel %vm320, %v295, 0
      %v340 = vsel %vm320, %v296, 0
      %v343 = vsel %vm320, %v297, 0
      %v346 = vsel %vm320, %v298, 0
      %v349 = vsel %vm320, %v299, 0
      %v352 = vsel %vm320, %v300, 0
      %v355 = vsel %vm320, %v301, 0
      %v358 = vsel %vm320, %v302, 0
      %v361 = vsel %vm320, %v303, 0
      %v364 = vsel %vm320, %v304, 0
      %v367 = vsel %vm320, %v305, 0
      %v370 = vsel %vm320, %v306, 0
      %v373 = vsel %vm320, %v307, 0
      %vm375 = vcmask 1040384
      %vm376 = vcmask 1041408
      %v377 = vsel %vm375, 4294967295, 65535
      %v378 = vsel %vm376, %v377, 0
      %v380 = vand.u32 %v319, %v378
      %382 = vmatprep.subr.bf16.mxu0 0
      %383 = vmatpush1.bf16.msra.mxu0 0
      %384 = vmatprep.subr.bf16.mxu0 0
      %385 = vmatpush1.bf16.msra.mxu0 0
      %386 = vmatprep.subr.bf16.mxu0 0
      %387 = vmatpush1.bf16.msra.mxu0 0
      %388 = vmatprep.subr.bf16.mxu0 0
      %389 = vmatpush1.bf16.msra.mxu0 0
      %390 = vmatprep.subr.bf16.mxu0 0
      %391 = vmatpush1.bf16.msra.mxu0 0
      %392 = vmatprep.subr.bf16.mxu0 0
      %393 = vmatpush1.bf16.msra.mxu0 0
      %394 = vmatprep.subr.bf16.mxu0 0
      %395 = vmatpush1.bf16.msra.mxu0 0
      %396 = vmatprep.subr.bf16.mxu0 0
      %397 = vmatpush1.bf16.msra.mxu0 %v380
      %398 = vmatprep.subr.bf16.mxu0 0
      %399 = vmatpush2.bf16.msra.mxu0 0
      %400 = vmatprep.subr.bf16.mxu0 0
      %401 = vmatpush2.bf16.msra.mxu0 0
      %402 = vmatprep.subr.bf16.mxu0 0
      %403 = vmatpush2.bf16.msra.mxu0 0
      %404 = vmatprep.subr.bf16.mxu0 0
      %405 = vmatpush2.bf16.msra.mxu0 0
      %406 = vmatprep.subr.bf16.mxu0 0
      %407 = vmatpush2.bf16.msra.mxu0 0
      %408 = vmatprep.subr.bf16.mxu0 0
      %409 = vmatpush2.bf16.msra.mxu0 0
      %410 = vmatprep.subr.bf16.mxu0 0
      %411 = vmatpush2.bf16.msra.mxu0 0
      %412 = vmatprep.subr.bf16.mxu0 0
      %413 = vmatpush2.bf16.msra.mxu0 0
      %414 = vmatprep.mubr.bf16.mxu0 0
      %415 = vmatmul.mubr.bf16.gmra.mxu0 %v322
      %v416 = vpop.f32.mrf.mxu0
      %v417 = vadd.f32 0.0, %v416
      %v418 = vpop.f32.mrf.mxu0
      %v419 = vpop.f32.mrf.mxu0
      %v420 = vadd.f32 0.0, %v419
      %v421 = vpop.f32.mrf.mxu0
      %422 = vmatprep.mubr.bf16.mxu0 0
      %423 = vmatmul.mubr.bf16.gmra.mxu0 %v325
      %v424 = vpop.f32.mrf.mxu0
      %v425 = vadd.f32 0.0, %v424
      %v426 = vpop.f32.mrf.mxu0
      %v427 = vpop.f32.mrf.mxu0
      %v428 = vadd.f32 0.0, %v427
      %v429 = vpop.f32.mrf.mxu0
      %430 = vmatprep.mubr.bf16.mxu0 0
      %431 = vmatmul.mubr.bf16.gmra.mxu0 %v328
      %v432 = vpop.f32.mrf.mxu0
      %v433 = vadd.f32 0.0, %v432
      %v434 = vpop.f32.mrf.mxu0
      %v435 = vpop.f32.mrf.mxu0
      %v436 = vadd.f32 0.0, %v435
      %v437 = vpop.f32.mrf.mxu0
      %438 = vmatprep.mubr.bf16.mxu0 0
      %439 = vmatmul.mubr.bf16.gmra.mxu0 %v331
      %v440 = vpop.f32.mrf.mxu0
      %v441 = vadd.f32 0.0, %v440
      %v442 = vpop.f32.mrf.mxu0
      %v443 = vpop.f32.mrf.mxu0
      %v444 = vadd.f32 0.0, %v443
      %v445 = vpop.f32.mrf.mxu0
      %446 = vmatprep.mubr.bf16.mxu0 0
      %447 = vmatmul.mubr.bf16.gmra.mxu0 %v334
      %v448 = vpop.f32.mrf.mxu0
      %v449 = vadd.f32 0.0, %v448
      %v450 = vpop.f32.mrf.mxu0
      %v451 = vpop.f32.mrf.mxu0
      %v452 = vadd.f32 0.0, %v451
      %v453 = vpop.f32.mrf.mxu0
      %454 = vmatprep.mubr.bf16.mxu0 0
      %455 = vmatmul.mubr.bf16.gmra.mxu0 %v337
      %v456 = vpop.f32.mrf.mxu0
      %v457 = vadd.f32 0.0, %v456
      %v458 = vpop.f32.mrf.mxu0
      %v459 = vpop.f32.mrf.mxu0
      %v460 = vadd.f32 0.0, %v459
      %v461 = vpop.f32.mrf.mxu0
      %462 = vmatprep.mubr.bf16.mxu0 0
      %463 = vmatmul.mubr.bf16.gmra.mxu0 %v340
      %v464 = vpop.f32.mrf.mxu0
      %v465 = vadd.f32 0.0, %v464
      %v466 = vpop.f32.mrf.mxu0
      %v467 = vpop.f32.mrf.mxu0
      %v468 = vadd.f32 0.0, %v467
      %v469 = vpop.f32.mrf.mxu0
      %470 = vmatprep.mubr.bf16.mxu0 0
      %471 = vmatmul.mubr.bf16.gmra.mxu0 %v343
      %v472 = vpop.f32.mrf.mxu0
      %v473 = vadd.f32 0.0, %v472
      %v474 = vpop.f32.mrf.mxu0
      %v475 = vpop.f32.mrf.mxu0
      %v476 = vadd.f32 0.0, %v475
      %v477 = vpop.f32.mrf.mxu0
      %478 = vmatprep.mubr.bf16.mxu0 0
      %479 = vmatmul.mubr.bf16.gmra.mxu0 %v346
      %v480 = vpop.f32.mrf.mxu0
      %v481 = vadd.f32 0.0, %v480
      %v482 = vpop.f32.mrf.mxu0
      %v483 = vpop.f32.mrf.mxu0
      %v484 = vadd.f32 0.0, %v483
      %v485 = vpop.f32.mrf.mxu0
      %486 = vmatprep.mubr.bf16.mxu0 0
      %487 = vmatmul.mubr.bf16.gmra.mxu0 %v349
      %v488 = vpop.f32.mrf.mxu0
      %v489 = vadd.f32 0.0, %v488
      %v490 = vpop.f32.mrf.mxu0
      %v491 = vpop.f32.mrf.mxu0
      %v492 = vadd.f32 0.0, %v491
      %v493 = vpop.f32.mrf.mxu0
      %494 = vmatprep.mubr.bf16.mxu0 0
      %495 = vmatmul.mubr.bf16.gmra.mxu0 %v352
      %v496 = vpop.f32.mrf.mxu0
      %v497 = vadd.f32 0.0, %v496
      %v498 = vpop.f32.mrf.mxu0
      %v499 = vpop.f32.mrf.mxu0
      %v500 = vadd.f32 0.0, %v499
      %v501 = vpop.f32.mrf.mxu0
      %502 = vmatprep.mubr.bf16.mxu0 0
      %503 = vmatmul.mubr.bf16.gmra.mxu0 %v355
      %v504 = vpop.f32.mrf.mxu0
      %v505 = vadd.f32 0.0, %v504
      %v506 = vpop.f32.mrf.mxu0
      %v507 = vpop.f32.mrf.mxu0
      %v508 = vadd.f32 0.0, %v507
      %v509 = vpop.f32.mrf.mxu0
      %510 = vmatprep.mubr.bf16.mxu0 0
      %511 = vmatmul.mubr.bf16.gmra.mxu0 %v358
      %v512 = vpop.f32.mrf.mxu0
      %v513 = vadd.f32 0.0, %v512
      %v514 = vpop.f32.mrf.mxu0
      %v515 = vpop.f32.mrf.mxu0
      %v516 = vadd.f32 0.0, %v515
      %v517 = vpop.f32.mrf.mxu0
      %518 = vmatprep.mubr.bf16.mxu0 0
      %519 = vmatmul.mubr.bf16.gmra.mxu0 %v361
      %v520 = vpop.f32.mrf.mxu0
      %v521 = vadd.f32 0.0, %v520
      %v522 = vpop.f32.mrf.mxu0
      %v523 = vpop.f32.mrf.mxu0
      %v524 = vadd.f32 0.0, %v523
      %v525 = vpop.f32.mrf.mxu0
      %526 = vmatprep.mubr.bf16.mxu0 0
      %527 = vmatmul.mubr.bf16.gmra.mxu0 %v364
      %v528 = vpop.f32.mrf.mxu0
      %v529 = vadd.f32 0.0, %v528
      %v530 = vpop.f32.mrf.mxu0
      %v531 = vpop.f32.mrf.mxu0
      %v532 = vadd.f32 0.0, %v531
      %v533 = vpop.f32.mrf.mxu0
      %534 = vmatprep.mubr.bf16.mxu0 0
      %535 = vmatmul.mubr.bf16.gmra.mxu0 %v367
      %v536 = vpop.f32.mrf.mxu0
      %v537 = vadd.f32 0.0, %v536
      %v538 = vpop.f32.mrf.mxu0
      %v539 = vpop.f32.mrf.mxu0
      %v540 = vadd.f32 0.0, %v539
      %v541 = vpop.f32.mrf.mxu0
      %542 = vmatprep.mubr.bf16.mxu0 0
      %543 = vmatmul.mubr.bf16.gmra.mxu0 %v370
      %v544 = vpop.f32.mrf.mxu0
      %v545 = vadd.f32 0.0, %v544
      %v546 = vpop.f32.mrf.mxu0
      %v547 = vpop.f32.mrf.mxu0
      %v548 = vadd.f32 0.0, %v547
      %v549 = vpop.f32.mrf.mxu0
      %550 = vmatprep.mubr.bf16.mxu0 0
      %551 = vmatmul.mubr.bf16.gmra.mxu0 %v373
      %v552 = vpop.f32.mrf.mxu0
      %v553 = vadd.f32 0.0, %v552
      %v554 = vpop.f32.mrf.mxu0
      %v555 = vpop.f32.mrf.mxu0
      %v556 = vadd.f32 0.0, %v555
      %v557 = vpop.f32.mrf.mxu0
      %558 = vdwg.mxu0
      %v560 = vsel %vm320, %v235, 0
      %v563 = vsel %vm320, %v236, 0
      %v566 = vsel %vm320, %v237, 0
      %v569 = vsel %vm320, %v238, 0
      %v572 = vsel %vm320, %v239, 0
      %v575 = vsel %vm320, %v240, 0
      %v578 = vsel %vm320, %v241, 0
      %v581 = vsel %vm320, %v242, 0
      %v584 = vsel %vm320, %v243, 0
      %v587 = vsel %vm320, %v244, 0
      %v590 = vsel %vm320, %v245, 0
      %v593 = vsel %vm320, %v246, 0
      %v596 = vsel %vm320, %v247, 0
      %v599 = vsel %vm320, %v248, 0
      %v602 = vsel %vm320, %v249, 0
      %v605 = vsel %vm320, %v250, 0
      %v608 = vsel %vm320, %v251, 0
      %v611 = vsel %vm320, %v252, 0
      %v614 = vand.u32 %v253, %v378
      %616 = vmatprep.subr.bf16.mxu0 0
      %617 = vmatpush1.bf16.msra.mxu0 0
      %618 = vmatprep.subr.bf16.mxu0 0
      %619 = vmatpush1.bf16.msra.mxu0 0
      %620 = vmatprep.subr.bf16.mxu0 0
      %621 = vmatpush1.bf16.msra.mxu0 0
      %622 = vmatprep.subr.bf16.mxu0 0
      %623 = vmatpush1.bf16.msra.mxu0 0
      %624 = vmatprep.subr.bf16.mxu0 0
      %625 = vmatpush1.bf16.msra.mxu0 0
      %626 = vmatprep.subr.bf16.mxu0 0
      %627 = vmatpush1.bf16.msra.mxu0 0
      %628 = vmatprep.subr.bf16.mxu0 0
      %629 = vmatpush1.bf16.msra.mxu0 0
      %630 = vmatprep.subr.bf16.mxu0 0
      %631 = vmatpush1.bf16.msra.mxu0 %v614
      %632 = vmatprep.subr.bf16.mxu0 0
      %633 = vmatpush2.bf16.msra.mxu0 0
      %634 = vmatprep.subr.bf16.mxu0 0
      %635 = vmatpush2.bf16.msra.mxu0 0
      %636 = vmatprep.subr.bf16.mxu0 0
      %637 = vmatpush2.bf16.msra.mxu0 0
      %638 = vmatprep.subr.bf16.mxu0 0
      %639 = vmatpush2.bf16.msra.mxu0 0
      %640 = vmatprep.subr.bf16.mxu0 0
      %641 = vmatpush2.bf16.msra.mxu0 0
      %642 = vmatprep.subr.bf16.mxu0 0
      %643 = vmatpush2.bf16.msra.mxu0 0
      %644 = vmatprep.subr.bf16.mxu0 0
      %645 = vmatpush2.bf16.msra.mxu0 0
      %646 = vmatprep.subr.bf16.mxu0 0
      %647 = vmatpush2.bf16.msra.mxu0 0
      %648 = vmatprep.mubr.bf16.mxu0 0
      %649 = vmatmul.mubr.bf16.gmra.mxu0 %v560
      %v650 = vpop.f32.mrf.mxu0
      %v651 = vadd.f32 %v417, %v650
      %v652 = vpop.f32.mrf.mxu0
      %v653 = vpop.f32.mrf.mxu0
      %v654 = vadd.f32 %v420, %v653
      %v655 = vpop.f32.mrf.mxu0
      %656 = vmatprep.mubr.bf16.mxu0 0
      %657 = vmatmul.mubr.bf16.gmra.mxu0 %v563
      %v658 = vpop.f32.mrf.mxu0
      %v659 = vadd.f32 %v425, %v658
      %v660 = vpop.f32.mrf.mxu0
      %v661 = vpop.f32.mrf.mxu0
      %v662 = vadd.f32 %v428, %v661
      %v663 = vpop.f32.mrf.mxu0
      %664 = vmatprep.mubr.bf16.mxu0 0
      %665 = vmatmul.mubr.bf16.gmra.mxu0 %v566
      %v666 = vpop.f32.mrf.mxu0
      %v667 = vadd.f32 %v433, %v666
      %v668 = vpop.f32.mrf.mxu0
      %v669 = vpop.f32.mrf.mxu0
      %v670 = vadd.f32 %v436, %v669
      %v671 = vpop.f32.mrf.mxu0
      %672 = vmatprep.mubr.bf16.mxu0 0
      %673 = vmatmul.mubr.bf16.gmra.mxu0 %v569
      %v674 = vpop.f32.mrf.mxu0
      %v675 = vadd.f32 %v441, %v674
      %v676 = vpop.f32.mrf.mxu0
      %v677 = vpop.f32.mrf.mxu0
      %v678 = vadd.f32 %v444, %v677
      %v679 = vpop.f32.mrf.mxu0
      %680 = vmatprep.mubr.bf16.mxu0 0
      %681 = vmatmul.mubr.bf16.gmra.mxu0 %v572
      %v682 = vpop.f32.mrf.mxu0
      %v683 = vadd.f32 %v449, %v682
      %v684 = vpop.f32.mrf.mxu0
      %v685 = vpop.f32.mrf.mxu0
      %v686 = vadd.f32 %v452, %v685
      %v687 = vpop.f32.mrf.mxu0
      %688 = vmatprep.mubr.bf16.mxu0 0
      %689 = vmatmul.mubr.bf16.gmra.mxu0 %v575
      %v690 = vpop.f32.mrf.mxu0
      %v691 = vadd.f32 %v457, %v690
      %v692 = vpop.f32.mrf.mxu0
      %v693 = vpop.f32.mrf.mxu0
      %v694 = vadd.f32 %v460, %v693
      %v695 = vpop.f32.mrf.mxu0
      %696 = vmatprep.mubr.bf16.mxu0 0
      %697 = vmatmul.mubr.bf16.gmra.mxu0 %v578
      %v698 = vpop.f32.mrf.mxu0
      %v699 = vadd.f32 %v465, %v698
      %v700 = vpop.f32.mrf.mxu0
      %v701 = vpop.f32.mrf.mxu0
      %v702 = vadd.f32 %v468, %v701
      %v703 = vpop.f32.mrf.mxu0
      %704 = vmatprep.mubr.bf16.mxu0 0
      %705 = vmatmul.mubr.bf16.gmra.mxu0 %v581
      %v706 = vpop.f32.mrf.mxu0
      %v707 = vadd.f32 %v473, %v706
      %v708 = vpop.f32.mrf.mxu0
      %v709 = vpop.f32.mrf.mxu0
      %v710 = vadd.f32 %v476, %v709
      %v711 = vpop.f32.mrf.mxu0
      %712 = vmatprep.mubr.bf16.mxu0 0
      %713 = vmatmul.mubr.bf16.gmra.mxu0 %v584
      %v714 = vpop.f32.mrf.mxu0
      %v715 = vadd.f32 %v481, %v714
      %v716 = vpop.f32.mrf.mxu0
      %v717 = vpop.f32.mrf.mxu0
      %v718 = vadd.f32 %v484, %v717
      %v719 = vpop.f32.mrf.mxu0
      %720 = vmatprep.mubr.bf16.mxu0 0
      %721 = vmatmul.mubr.bf16.gmra.mxu0 %v587
      %v722 = vpop.f32.mrf.mxu0
      %v723 = vadd.f32 %v489, %v722
      %v724 = vpop.f32.mrf.mxu0
      %v725 = vpop.f32.mrf.mxu0
      %v726 = vadd.f32 %v492, %v725
      %v727 = vpop.f32.mrf.mxu0
      %728 = vmatprep.mubr.bf16.mxu0 0
      %729 = vmatmul.mubr.bf16.gmra.mxu0 %v590
      %v730 = vpop.f32.mrf.mxu0
      %v731 = vadd.f32 %v497, %v730
      %v732 = vpop.f32.mrf.mxu0
      %v733 = vpop.f32.mrf.mxu0
      %v734 = vadd.f32 %v500, %v733
      %v735 = vpop.f32.mrf.mxu0
      %736 = vmatprep.mubr.bf16.mxu0 0
      %737 = vmatmul.mubr.bf16.gmra.mxu0 %v593
      %v738 = vpop.f32.mrf.mxu0
      %v739 = vadd.f32 %v505, %v738
      %v740 = vpop.f32.mrf.mxu0
      %v741 = vpop.f32.mrf.mxu0
      %v742 = vadd.f32 %v508, %v741
      %v743 = vpop.f32.mrf.mxu0
      %744 = vmatprep.mubr.bf16.mxu0 0
      %745 = vmatmul.mubr.bf16.gmra.mxu0 %v596
      %v746 = vpop.f32.mrf.mxu0
      %v747 = vadd.f32 %v513, %v746
      %v748 = vpop.f32.mrf.mxu0
      %v749 = vpop.f32.mrf.mxu0
      %v750 = vadd.f32 %v516, %v749
      %v751 = vpop.f32.mrf.mxu0
      %752 = vmatprep.mubr.bf16.mxu0 0
      %753 = vmatmul.mubr.bf16.gmra.mxu0 %v599
      %v754 = vpop.f32.mrf.mxu0
      %v755 = vadd.f32 %v521, %v754
      %v756 = vpop.f32.mrf.mxu0
      %v757 = vpop.f32.mrf.mxu0
      %v758 = vadd.f32 %v524, %v757
      %v759 = vpop.f32.mrf.mxu0
      %760 = vmatprep.mubr.bf16.mxu0 0
      %761 = vmatmul.mubr.bf16.gmra.mxu0 %v602
      %v762 = vpop.f32.mrf.mxu0
      %v763 = vadd.f32 %v529, %v762
      %v764 = vpop.f32.mrf.mxu0
      %v765 = vpop.f32.mrf.mxu0
      %v766 = vadd.f32 %v532, %v765
      %v767 = vpop.f32.mrf.mxu0
      %768 = vmatprep.mubr.bf16.mxu0 0
      %769 = vmatmul.mubr.bf16.gmra.mxu0 %v605
      %v770 = vpop.f32.mrf.mxu0
      %v771 = vadd.f32 %v537, %v770
      %v772 = vpop.f32.mrf.mxu0
      %v773 = vpop.f32.mrf.mxu0
      %v774 = vadd.f32 %v540, %v773
      %v775 = vpop.f32.mrf.mxu0
      %776 = vmatprep.mubr.bf16.mxu0 0
      %777 = vmatmul.mubr.bf16.gmra.mxu0 %v608
      %v778 = vpop.f32.mrf.mxu0
      %v779 = vadd.f32 %v545, %v778
      %v780 = vpop.f32.mrf.mxu0
      %v781 = vpop.f32.mrf.mxu0
      %v782 = vadd.f32 %v548, %v781
      %v783 = vpop.f32.mrf.mxu0
      %784 = vmatprep.mubr.bf16.mxu0 0
      %785 = vmatmul.mubr.bf16.gmra.mxu0 %v611
      %v786 = vpop.f32.mrf.mxu0
      %v787 = vadd.f32 %v553, %v786
      %v788 = vpop.f32.mrf.mxu0
      %v789 = vpop.f32.mrf.mxu0
      %v790 = vadd.f32 %v556, %v789
      %v791 = vpop.f32.mrf.mxu0
      %792 = vdwg.mxu0
      %v793 = vld [vmem:[%s192 + $0x2] sm:$0xff]
      %v794 = vld [vmem:[%s192 + $0xa] sm:$0xff]
      %v795 = vld [vmem:[%s192 + $0x12] sm:$0xff]
      %v796 = vld [vmem:[%s192 + $0x1a] sm:$0xff]
      %v797 = vld [vmem:[%s192 + $0x22] sm:$0xff]
      %v798 = vld [vmem:[%s192 + $0x2a] sm:$0xff]
      %v799 = vld [vmem:[%s192 + $0x32] sm:$0xff]
      %v800 = vld [vmem:[%s192 + $0x3a] sm:$0xff]
      %v801 = vld [vmem:[%s192 + $0x42] sm:$0xff]
      %v802 = vld [vmem:[%s192 + $0x4a] sm:$0xff]
      %v803 = vld [vmem:[%s192 + $0x52] sm:$0xff]
      %v804 = vld [vmem:[%s192 + $0x5a] sm:$0xff]
      %v805 = vld [vmem:[%s192 + $0x62] sm:$0xff]
      %v806 = vld [vmem:[%s192 + $0x6a] sm:$0xff]
      %v807 = vld [vmem:[%s192 + $0x72] sm:$0xff]
      %v808 = vld [vmem:[%s192 + $0x7a] sm:$0xff]
      %v809 = vld [vmem:[%s192 + $0x82] sm:$0xff]
      %v810 = vld [vmem:[%s192 + $0x8a] sm:$0xff]
      %v811 = vld [vmem:[%s192 + $0x92] sm:$0xff]
      %v812 = vld [vmem:[%s192 + $0x9a] sm:$0xff]
      %v813 = vld [vmem:[%s192 + $0xa2] sm:$0xff]
      %v814 = vld [vmem:[%s192 + $0xaa] sm:$0xff]
      %v815 = vld [vmem:[%s192 + $0xb2] sm:$0xff]
      %v816 = vld [vmem:[%s192 + $0xba] sm:$0xff]
      %v817 = vld [vmem:[%s192 + $0xc2] sm:$0xff]
      %v818 = vld [vmem:[%s192 + $0xca] sm:$0xff]
      %v819 = vld [vmem:[%s192 + $0xd2] sm:$0xff]
      %v820 = vld [vmem:[%s192 + $0xda] sm:$0xff]
      %v821 = vld [vmem:[%s192 + $0xe2] sm:$0xff]
      %v822 = vld [vmem:[%s192 + $0xea] sm:$0xff]
      %v823 = vld [vmem:[%s192 + $0xf2] sm:$0xff]
      %v824 = vld [vmem:[%s192 + $0xfa] sm:$0xff]
      %v825 = vld [vmem:[%s192 + $0x102] sm:$0xff]
      %v826 = vld [vmem:[%s192 + $0x10a] sm:$0xff]
      %v827 = vld [vmem:[%s192 + $0x112] sm:$0xff]
      %v828 = vld [vmem:[%s192 + $0x11a] sm:$0x3f]
      %v829 = vpack.c.bf16 %v794, %v793
      %v830 = vpack.c.bf16 %v796, %v795
      %v831 = vpack.c.bf16 %v798, %v797
      %v832 = vpack.c.bf16 %v800, %v799
      %v833 = vpack.c.bf16 %v802, %v801
      %v834 = vpack.c.bf16 %v804, %v803
      %v835 = vpack.c.bf16 %v806, %v805
      %v836 = vpack.c.bf16 %v808, %v807
      %v837 = vpack.c.bf16 %v810, %v809
      %v838 = vpack.c.bf16 %v812, %v811
      %v839 = vpack.c.bf16 %v814, %v813
      %v840 = vpack.c.bf16 %v816, %v815
      %v841 = vpack.c.bf16 %v818, %v817
      %v842 = vpack.c.bf16 %v820, %v819
      %v843 = vpack.c.bf16 %v822, %v821
      %v844 = vpack.c.bf16 %v824, %v823
      %v845 = vpack.c.bf16 %v826, %v825
      %v846 = vpack.c.bf16 %v828, %v827
      %v847 = vld [vmem:[%s1] sm:$0x8]
      %v848 = vld [vmem:[%s1 + $0x4] sm:$0x1]
      %v851 = vunpack.c.l.b16 %v847
      %v852 = vunpack.c.l.b16 %v848
      %v853 = vpack.c.b16 %v852, %v851
      %v854 = vrot.slane %v853, 3
      %v856 = vsel %vm320, %v829, 0
      %v859 = vsel %vm320, %v830, 0
      %v862 = vsel %vm320, %v831, 0
      %v865 = vsel %vm320, %v832, 0
      %v868 = vsel %vm320, %v833, 0
      %v871 = vsel %vm320, %v834, 0
      %v874 = vsel %vm320, %v835, 0
      %v877 = vsel %vm320, %v836, 0
      %v880 = vsel %vm320, %v837, 0
      %v883 = vsel %vm320, %v838, 0
      %v886 = vsel %vm320, %v839, 0
      %v889 = vsel %vm320, %v840, 0
      %v892 = vsel %vm320, %v841, 0
      %v895 = vsel %vm320, %v842, 0
      %v898 = vsel %vm320, %v843, 0
      %v901 = vsel %vm320, %v844, 0
      %v904 = vsel %vm320, %v845, 0
      %v907 = vsel %vm320, %v846, 0
      %v910 = vand.u32 %v854, %v378
      %912 = vmatprep.subr.bf16.mxu0 0
      %913 = vmatpush1.bf16.msra.mxu0 0
      %914 = vmatprep.subr.bf16.mxu0 0
      %915 = vmatpush1.bf16.msra.mxu0 0
      %916 = vmatprep.subr.bf16.mxu0 0
      %917 = vmatpush1.bf16.msra.mxu0 0
      %918 = vmatprep.subr.bf16.mxu0 0
      %919 = vmatpush1.bf16.msra.mxu0 0
      %920 = vmatprep.subr.bf16.mxu0 0
      %921 = vmatpush1.bf16.msra.mxu0 0
      %922 = vmatprep.subr.bf16.mxu0 0
      %923 = vmatpush1.bf16.msra.mxu0 0
      %924 = vmatprep.subr.bf16.mxu0 0
      %925 = vmatpush1.bf16.msra.mxu0 0
      %926 = vmatprep.subr.bf16.mxu0 0
      %927 = vmatpush1.bf16.msra.mxu0 %v910
      %928 = vmatprep.subr.bf16.mxu0 0
      %929 = vmatpush2.bf16.msra.mxu0 0
      %930 = vmatprep.subr.bf16.mxu0 0
      %931 = vmatpush2.bf16.msra.mxu0 0
      %932 = vmatprep.subr.bf16.mxu0 0
      %933 = vmatpush2.bf16.msra.mxu0 0
      %934 = vmatprep.subr.bf16.mxu0 0
      %935 = vmatpush2.bf16.msra.mxu0 0
      %936 = vmatprep.subr.bf16.mxu0 0
      %937 = vmatpush2.bf16.msra.mxu0 0
      %938 = vmatprep.subr.bf16.mxu0 0
      %939 = vmatpush2.bf16.msra.mxu0 0
      %940 = vmatprep.subr.bf16.mxu0 0
      %941 = vmatpush2.bf16.msra.mxu0 0
      %942 = vmatprep.subr.bf16.mxu0 0
      %943 = vmatpush2.bf16.msra.mxu0 0
      %944 = vmatprep.mubr.bf16.mxu0 0
      %945 = vmatmul.mubr.bf16.gmra.mxu0 %v856
      %v946 = vpop.f32.mrf.mxu0
      %v947 = vadd.f32 0.0, %v946
      %v948 = vpop.f32.mrf.mxu0
      %v949 = vpop.f32.mrf.mxu0
      %v950 = vadd.f32 0.0, %v949
      %v951 = vpop.f32.mrf.mxu0
      %952 = vmatprep.mubr.bf16.mxu0 0
      %953 = vmatmul.mubr.bf16.gmra.mxu0 %v859
      %v954 = vpop.f32.mrf.mxu0
      %v955 = vadd.f32 0.0, %v954
      %v956 = vpop.f32.mrf.mxu0
      %v957 = vpop.f32.mrf.mxu0
      %v958 = vadd.f32 0.0, %v957
      %v959 = vpop.f32.mrf.mxu0
      %960 = vmatprep.mubr.bf16.mxu0 0
      %961 = vmatmul.mubr.bf16.gmra.mxu0 %v862
      %v962 = vpop.f32.mrf.mxu0
      %v963 = vadd.f32 0.0, %v962
      %v964 = vpop.f32.mrf.mxu0
      %v965 = vpop.f32.mrf.mxu0
      %v966 = vadd.f32 0.0, %v965
      %v967 = vpop.f32.mrf.mxu0
      %968 = vmatprep.mubr.bf16.mxu0 0
      %969 = vmatmul.mubr.bf16.gmra.mxu0 %v865
      %v970 = vpop.f32.mrf.mxu0
      %v971 = vadd.f32 0.0, %v970
      %v972 = vpop.f32.mrf.mxu0
      %v973 = vpop.f32.mrf.mxu0
      %v974 = vadd.f32 0.0, %v973
      %v975 = vpop.f32.mrf.mxu0
      %976 = vmatprep.mubr.bf16.mxu0 0
      %977 = vmatmul.mubr.bf16.gmra.mxu0 %v868
      %v978 = vpop.f32.mrf.mxu0
      %v979 = vadd.f32 0.0, %v978
      %v980 = vpop.f32.mrf.mxu0
      %v981 = vpop.f32.mrf.mxu0
      %v982 = vadd.f32 0.0, %v981
      %v983 = vpop.f32.mrf.mxu0
      %984 = vmatprep.mubr.bf16.mxu0 0
      %985 = vmatmul.mubr.bf16.gmra.mxu0 %v871
      %v986 = vpop.f32.mrf.mxu0
      %v987 = vadd.f32 0.0, %v986
      %v988 = vpop.f32.mrf.mxu0
      %v989 = vpop.f32.mrf.mxu0
      %v990 = vadd.f32 0.0, %v989
      %v991 = vpop.f32.mrf.mxu0
      %992 = vmatprep.mubr.bf16.mxu0 0
      %993 = vmatmul.mubr.bf16.gmra.mxu0 %v874
      %v994 = vpop.f32.mrf.mxu0
      %v995 = vadd.f32 0.0, %v994
      %v996 = vpop.f32.mrf.mxu0
      %v997 = vpop.f32.mrf.mxu0
      %v998 = vadd.f32 0.0, %v997
      %v999 = vpop.f32.mrf.mxu0
      %1000 = vmatprep.mubr.bf16.mxu0 0
      %1001 = vmatmul.mubr.bf16.gmra.mxu0 %v877
      %v1002 = vpop.f32.mrf.mxu0
      %v1003 = vadd.f32 0.0, %v1002
      %v1004 = vpop.f32.mrf.mxu0
      %v1005 = vpop.f32.mrf.mxu0
      %v1006 = vadd.f32 0.0, %v1005
      %v1007 = vpop.f32.mrf.mxu0
      %1008 = vmatprep.mubr.bf16.mxu0 0
      %1009 = vmatmul.mubr.bf16.gmra.mxu0 %v880
      %v1010 = vpop.f32.mrf.mxu0
      %v1011 = vadd.f32 0.0, %v1010
      %v1012 = vpop.f32.mrf.mxu0
      %v1013 = vpop.f32.mrf.mxu0
      %v1014 = vadd.f32 0.0, %v1013
      %v1015 = vpop.f32.mrf.mxu0
      %1016 = vmatprep.mubr.bf16.mxu0 0
      %1017 = vmatmul.mubr.bf16.gmra.mxu0 %v883
      %v1018 = vpop.f32.mrf.mxu0
      %v1019 = vadd.f32 0.0, %v1018
      %v1020 = vpop.f32.mrf.mxu0
      %v1021 = vpop.f32.mrf.mxu0
      %v1022 = vadd.f32 0.0, %v1021
      %v1023 = vpop.f32.mrf.mxu0
      %1024 = vmatprep.mubr.bf16.mxu0 0
      %1025 = vmatmul.mubr.bf16.gmra.mxu0 %v886
      %v1026 = vpop.f32.mrf.mxu0
      %v1027 = vadd.f32 0.0, %v1026
      %v1028 = vpop.f32.mrf.mxu0
      %v1029 = vpop.f32.mrf.mxu0
      %v1030 = vadd.f32 0.0, %v1029
      %v1031 = vpop.f32.mrf.mxu0
      %1032 = vmatprep.mubr.bf16.mxu0 0
      %1033 = vmatmul.mubr.bf16.gmra.mxu0 %v889
      %v1034 = vpop.f32.mrf.mxu0
      %v1035 = vadd.f32 0.0, %v1034
      %v1036 = vpop.f32.mrf.mxu0
      %v1037 = vpop.f32.mrf.mxu0
      %v1038 = vadd.f32 0.0, %v1037
      %v1039 = vpop.f32.mrf.mxu0
      %1040 = vmatprep.mubr.bf16.mxu0 0
      %1041 = vmatmul.mubr.bf16.gmra.mxu0 %v892
      %v1042 = vpop.f32.mrf.mxu0
      %v1043 = vadd.f32 0.0, %v1042
      %v1044 = vpop.f32.mrf.mxu0
      %v1045 = vpop.f32.mrf.mxu0
      %v1046 = vadd.f32 0.0, %v1045
      %v1047 = vpop.f32.mrf.mxu0
      %1048 = vmatprep.mubr.bf16.mxu0 0
      %1049 = vmatmul.mubr.bf16.gmra.mxu0 %v895
      %v1050 = vpop.f32.mrf.mxu0
      %v1051 = vadd.f32 0.0, %v1050
      %v1052 = vpop.f32.mrf.mxu0
      %v1053 = vpop.f32.mrf.mxu0
      %v1054 = vadd.f32 0.0, %v1053
      %v1055 = vpop.f32.mrf.mxu0
      %1056 = vmatprep.mubr.bf16.mxu0 0
      %1057 = vmatmul.mubr.bf16.gmra.mxu0 %v898
      %v1058 = vpop.f32.mrf.mxu0
      %v1059 = vadd.f32 0.0, %v1058
      %v1060 = vpop.f32.mrf.mxu0
      %v1061 = vpop.f32.mrf.mxu0
      %v1062 = vadd.f32 0.0, %v1061
      %v1063 = vpop.f32.mrf.mxu0
      %1064 = vmatprep.mubr.bf16.mxu0 0
      %1065 = vmatmul.mubr.bf16.gmra.mxu0 %v901
      %v1066 = vpop.f32.mrf.mxu0
      %v1067 = vadd.f32 0.0, %v1066
      %v1068 = vpop.f32.mrf.mxu0
      %v1069 = vpop.f32.mrf.mxu0
      %v1070 = vadd.f32 0.0, %v1069
      %v1071 = vpop.f32.mrf.mxu0
      %1072 = vmatprep.mubr.bf16.mxu0 0
      %1073 = vmatmul.mubr.bf16.gmra.mxu0 %v904
      %v1074 = vpop.f32.mrf.mxu0
      %v1075 = vadd.f32 0.0, %v1074
      %v1076 = vpop.f32.mrf.mxu0
      %v1077 = vpop.f32.mrf.mxu0
      %v1078 = vadd.f32 0.0, %v1077
      %v1079 = vpop.f32.mrf.mxu0
      %1080 = vmatprep.mubr.bf16.mxu0 0
      %1081 = vmatmul.mubr.bf16.gmra.mxu0 %v907
      %v1082 = vpop.f32.mrf.mxu0
      %v1083 = vadd.f32 0.0, %v1082
      %v1084 = vpop.f32.mrf.mxu0
      %v1085 = vpop.f32.mrf.mxu0
      %v1086 = vadd.f32 0.0, %v1085
      %v1087 = vpop.f32.mrf.mxu0
      %1088 = vdwg.mxu0
      %v1089 = vadd.f32 %v651, %v947
      %v1090 = vadd.f32 %v654, %v950
      %v1091 = vadd.f32 %v659, %v955
      %v1092 = vadd.f32 %v662, %v958
      %v1093 = vadd.f32 %v667, %v963
      %v1094 = vadd.f32 %v670, %v966
      %v1095 = vadd.f32 %v675, %v971
      %v1096 = vadd.f32 %v678, %v974
      %v1097 = vadd.f32 %v683, %v979
      %v1098 = vadd.f32 %v686, %v982
      %v1099 = vadd.f32 %v691, %v987
      %v1100 = vadd.f32 %v694, %v990
      %v1101 = vadd.f32 %v699, %v995
      %v1102 = vadd.f32 %v702, %v998
      %v1103 = vadd.f32 %v707, %v1003
      %v1104 = vadd.f32 %v710, %v1006
      %v1105 = vadd.f32 %v715, %v1011
      %v1106 = vadd.f32 %v718, %v1014
      %v1107 = vadd.f32 %v723, %v1019
      %v1108 = vadd.f32 %v726, %v1022
      %v1109 = vadd.f32 %v731, %v1027
      %v1110 = vadd.f32 %v734, %v1030
      %v1111 = vadd.f32 %v739, %v1035
      %v1112 = vadd.f32 %v742, %v1038
      %v1113 = vadd.f32 %v747, %v1043
      %v1114 = vadd.f32 %v750, %v1046
      %v1115 = vadd.f32 %v755, %v1051
      %v1116 = vadd.f32 %v758, %v1054
      %v1117 = vadd.f32 %v763, %v1059
      %v1118 = vadd.f32 %v766, %v1062
      %v1119 = vadd.f32 %v771, %v1067
      %v1120 = vadd.f32 %v774, %v1070
      %v1121 = vadd.f32 %v779, %v1075
      %v1122 = vadd.f32 %v782, %v1078
      %v1123 = vadd.f32 %v787, %v1083
      %v1124 = vadd.f32 %v790, %v1086
      %v1125 = vld [vmem:[%s192 + $0x12] sm:$0xff]
      %v1126 = vld [vmem:[%s192 + $0x1a] sm:$0xff]
      %v1127 = vld [vmem:[%s192 + $0x22] sm:$0xff]
      %v1128 = vld [vmem:[%s192 + $0x2a] sm:$0xff]
      %v1129 = vld [vmem:[%s192 + $0x32] sm:$0xff]
      %v1130 = vld [vmem:[%s192 + $0x3a] sm:$0xff]
      %v1131 = vld [vmem:[%s192 + $0x42] sm:$0xff]
      %v1132 = vld [vmem:[%s192 + $0x4a] sm:$0xff]
      %v1133 = vld [vmem:[%s192 + $0x52] sm:$0xff]
      %v1134 = vld [vmem:[%s192 + $0x5a] sm:$0xff]
      %v1135 = vld [vmem:[%s192 + $0x62] sm:$0xff]
      %v1136 = vld [vmem:[%s192 + $0x6a] sm:$0xff]
      %v1137 = vld [vmem:[%s192 + $0x72] sm:$0xff]
      %v1138 = vld [vmem:[%s192 + $0x7a] sm:$0xff]
      %v1139 = vld [vmem:[%s192 + $0x82] sm:$0xff]
      %v1140 = vld [vmem:[%s192 + $0x8a] sm:$0xff]
      %v1141 = vld [vmem:[%s192 + $0x92] sm:$0xff]
      %v1142 = vld [vmem:[%s192 + $0x9a] sm:$0xff]
      %v1143 = vld [vmem:[%s192 + $0xa2] sm:$0xff]
      %v1144 = vld [vmem:[%s192 + $0xaa] sm:$0xff]
      %v1145 = vld [vmem:[%s192 + $0xb2] sm:$0xff]
      %v1146 = vld [vmem:[%s192 + $0xba] sm:$0xff]
      %v1147 = vld [vmem:[%s192 + $0xc2] sm:$0xff]
      %v1148 = vld [vmem:[%s192 + $0xca] sm:$0xff]
      %v1149 = vld [vmem:[%s192 + $0xd2] sm:$0xff]
      %v1150 = vld [vmem:[%s192 + $0xda] sm:$0xff]
      %v1151 = vld [vmem:[%s192 + $0xe2] sm:$0xff]
      %v1152 = vld [vmem:[%s192 + $0xea] sm:$0xff]
      %v1153 = vld [vmem:[%s192 + $0xf2] sm:$0xff]
      %v1154 = vld [vmem:[%s192 + $0xfa] sm:$0xff]
      %v1155 = vld [vmem:[%s192 + $0x102] sm:$0xff]
      %v1156 = vld [vmem:[%s192 + $0x10a] sm:$0xff]
      %v1157 = vld [vmem:[%s192 + $0x112] sm:$0xff]
      %v1158 = vld [vmem:[%s192 + $0x11a] sm:$0xff]
      %v1159 = vld [vmem:[%s192 + $0x122] sm:$0xff]
      %v1160 = vld [vmem:[%s192 + $0x12a] sm:$0x3f]
      %v1161 = vpack.c.bf16 %v1126, %v1125
      %v1162 = vpack.c.bf16 %v1128, %v1127
      %v1163 = vpack.c.bf16 %v1130, %v1129
      %v1164 = vpack.c.bf16 %v1132, %v1131
      %v1165 = vpack.c.bf16 %v1134, %v1133
      %v1166 = vpack.c.bf16 %v1136, %v1135
      %v1167 = vpack.c.bf16 %v1138, %v1137
      %v1168 = vpack.c.bf16 %v1140, %v1139
      %v1169 = vpack.c.bf16 %v1142, %v1141
      %v1170 = vpack.c.bf16 %v1144, %v1143
      %v1171 = vpack.c.bf16 %v1146, %v1145
      %v1172 = vpack.c.bf16 %v1148, %v1147
      %v1173 = vpack.c.bf16 %v1150, %v1149
      %v1174 = vpack.c.bf16 %v1152, %v1151
      %v1175 = vpack.c.bf16 %v1154, %v1153
      %v1176 = vpack.c.bf16 %v1156, %v1155
      %v1177 = vpack.c.bf16 %v1158, %v1157
      %v1178 = vpack.c.bf16 %v1160, %v1159
      %v1179 = vld [vmem:[%s1 + $0x4] sm:$0x3]
      %v1181 = vunpack.c.l.b16 %v1179
      %v1182 = vpack.c.b16 %v1181, %v1181
      %v1184 = vshrl.u32 %v1182, 16
      %v1186 = vshll.u32 %v1182, 16
      %v1188 = vrot.slane %v1186, 1
      %v1189 = vor.u32 %v1184, %v1188
      %v1191 = vsel %vm320, %v1161, 0
      %v1194 = vsel %vm320, %v1162, 0
      %v1197 = vsel %vm320, %v1163, 0
      %v1200 = vsel %vm320, %v1164, 0
      %v1203 = vsel %vm320, %v1165, 0
      %v1206 = vsel %vm320, %v1166, 0
      %v1209 = vsel %vm320, %v1167, 0
      %v1212 = vsel %vm320, %v1168, 0
      %v1215 = vsel %vm320, %v1169, 0
      %v1218 = vsel %vm320, %v1170, 0
      %v1221 = vsel %vm320, %v1171, 0
      %v1224 = vsel %vm320, %v1172, 0
      %v1227 = vsel %vm320, %v1173, 0
      %v1230 = vsel %vm320, %v1174, 0
      %v1233 = vsel %vm320, %v1175, 0
      %v1236 = vsel %vm320, %v1176, 0
      %v1239 = vsel %vm320, %v1177, 0
      %v1242 = vsel %vm320, %v1178, 0
      %v1245 = vand.u32 %v1189, %v378
      %1247 = vmatprep.subr.bf16.mxu0 0
      %1248 = vmatpush1.bf16.msra.mxu0 0
      %1249 = vmatprep.subr.bf16.mxu0 0
      %1250 = vmatpush1.bf16.msra.mxu0 0
      %1251 = vmatprep.subr.bf16.mxu0 0
      %1252 = vmatpush1.bf16.msra.mxu0 0
      %1253 = vmatprep.subr.bf16.mxu0 0
      %1254 = vmatpush1.bf16.msra.mxu0 0
      %1255 = vmatprep.subr.bf16.mxu0 0
      %1256 = vmatpush1.bf16.msra.mxu0 0
      %1257 = vmatprep.subr.bf16.mxu0 0
      %1258 = vmatpush1.bf16.msra.mxu0 0
      %1259 = vmatprep.subr.bf16.mxu0 0
      %1260 = vmatpush1.bf16.msra.mxu0 0
      %1261 = vmatprep.subr.bf16.mxu0 0
      %1262 = vmatpush1.bf16.msra.mxu0 %v1245
      %1263 = vmatprep.subr.bf16.mxu0 0
      %1264 = vmatpush2.bf16.msra.mxu0 0
      %1265 = vmatprep.subr.bf16.mxu0 0
      %1266 = vmatpush2.bf16.msra.mxu0 0
      %1267 = vmatprep.subr.bf16.mxu0 0
      %1268 = vmatpush2.bf16.msra.mxu0 0
      %1269 = vmatprep.subr.bf16.mxu0 0
      %1270 = vmatpush2.bf16.msra.mxu0 0
      %1271 = vmatprep.subr.bf16.mxu0 0
      %1272 = vmatpush2.bf16.msra.mxu0 0
      %1273 = vmatprep.subr.bf16.mxu0 0
      %1274 = vmatpush2.bf16.msra.mxu0 0
      %1275 = vmatprep.subr.bf16.mxu0 0
      %1276 = vmatpush2.bf16.msra.mxu0 0
      %1277 = vmatprep.subr.bf16.mxu0 0
      %1278 = vmatpush2.bf16.msra.mxu0 0
      %1279 = vmatprep.mubr.bf16.mxu0 0
      %1280 = vmatmul.mubr.bf16.gmra.mxu0 %v1191
      %v1281 = vpop.f32.mrf.mxu0
      %v1282 = vadd.f32 0.0, %v1281
      %v1283 = vpop.f32.mrf.mxu0
      %v1284 = vpop.f32.mrf.mxu0
      %v1285 = vadd.f32 0.0, %v1284
      %v1286 = vpop.f32.mrf.mxu0
      %1287 = vmatprep.mubr.bf16.mxu0 0
      %1288 = vmatmul.mubr.bf16.gmra.mxu0 %v1194
      %v1289 = vpop.f32.mrf.mxu0
      %v1290 = vadd.f32 0.0, %v1289
      %v1291 = vpop.f32.mrf.mxu0
      %v1292 = vpop.f32.mrf.mxu0
      %v1293 = vadd.f32 0.0, %v1292
      %v1294 = vpop.f32.mrf.mxu0
      %1295 = vmatprep.mubr.bf16.mxu0 0
      %1296 = vmatmul.mubr.bf16.gmra.mxu0 %v1197
      %v1297 = vpop.f32.mrf.mxu0
      %v1298 = vadd.f32 0.0, %v1297
      %v1299 = vpop.f32.mrf.mxu0
      %v1300 = vpop.f32.mrf.mxu0
      %v1301 = vadd.f32 0.0, %v1300
      %v1302 = vpop.f32.mrf.mxu0
      %1303 = vmatprep.mubr.bf16.mxu0 0
      %1304 = vmatmul.mubr.bf16.gmra.mxu0 %v1200
      %v1305 = vpop.f32.mrf.mxu0
      %v1306 = vadd.f32 0.0, %v1305
      %v1307 = vpop.f32.mrf.mxu0
      %v1308 = vpop.f32.mrf.mxu0
      %v1309 = vadd.f32 0.0, %v1308
      %v1310 = vpop.f32.mrf.mxu0
      %1311 = vmatprep.mubr.bf16.mxu0 0
      %1312 = vmatmul.mubr.bf16.gmra.mxu0 %v1203
      %v1313 = vpop.f32.mrf.mxu0
      %v1314 = vadd.f32 0.0, %v1313
      %v1315 = vpop.f32.mrf.mxu0
      %v1316 = vpop.f32.mrf.mxu0
      %v1317 = vadd.f32 0.0, %v1316
      %v1318 = vpop.f32.mrf.mxu0
      %1319 = vmatprep.mubr.bf16.mxu0 0
      %1320 = vmatmul.mubr.bf16.gmra.mxu0 %v1206
      %v1321 = vpop.f32.mrf.mxu0
      %v1322 = vadd.f32 0.0, %v1321
      %v1323 = vpop.f32.mrf.mxu0
      %v1324 = vpop.f32.mrf.mxu0
      %v1325 = vadd.f32 0.0, %v1324
      %v1326 = vpop.f32.mrf.mxu0
      %1327 = vmatprep.mubr.bf16.mxu0 0
      %1328 = vmatmul.mubr.bf16.gmra.mxu0 %v1209
      %v1329 = vpop.f32.mrf.mxu0
      %v1330 = vadd.f32 0.0, %v1329
      %v1331 = vpop.f32.mrf.mxu0
      %v1332 = vpop.f32.mrf.mxu0
      %v1333 = vadd.f32 0.0, %v1332
      %v1334 = vpop.f32.mrf.mxu0
      %1335 = vmatprep.mubr.bf16.mxu0 0
      %1336 = vmatmul.mubr.bf16.gmra.mxu0 %v1212
      %v1337 = vpop.f32.mrf.mxu0
      %v1338 = vadd.f32 0.0, %v1337
      %v1339 = vpop.f32.mrf.mxu0
      %v1340 = vpop.f32.mrf.mxu0
      %v1341 = vadd.f32 0.0, %v1340
      %v1342 = vpop.f32.mrf.mxu0
      %1343 = vmatprep.mubr.bf16.mxu0 0
      %1344 = vmatmul.mubr.bf16.gmra.mxu0 %v1215
      %v1345 = vpop.f32.mrf.mxu0
      %v1346 = vadd.f32 0.0, %v1345
      %v1347 = vpop.f32.mrf.mxu0
      %v1348 = vpop.f32.mrf.mxu0
      %v1349 = vadd.f32 0.0, %v1348
      %v1350 = vpop.f32.mrf.mxu0
      %1351 = vmatprep.mubr.bf16.mxu0 0
      %1352 = vmatmul.mubr.bf16.gmra.mxu0 %v1218
      %v1353 = vpop.f32.mrf.mxu0
      %v1354 = vadd.f32 0.0, %v1353
      %v1355 = vpop.f32.mrf.mxu0
      %v1356 = vpop.f32.mrf.mxu0
      %v1357 = vadd.f32 0.0, %v1356
      %v1358 = vpop.f32.mrf.mxu0
      %1359 = vmatprep.mubr.bf16.mxu0 0
      %1360 = vmatmul.mubr.bf16.gmra.mxu0 %v1221
      %v1361 = vpop.f32.mrf.mxu0
      %v1362 = vadd.f32 0.0, %v1361
      %v1363 = vpop.f32.mrf.mxu0
      %v1364 = vpop.f32.mrf.mxu0
      %v1365 = vadd.f32 0.0, %v1364
      %v1366 = vpop.f32.mrf.mxu0
      %1367 = vmatprep.mubr.bf16.mxu0 0
      %1368 = vmatmul.mubr.bf16.gmra.mxu0 %v1224
      %v1369 = vpop.f32.mrf.mxu0
      %v1370 = vadd.f32 0.0, %v1369
      %v1371 = vpop.f32.mrf.mxu0
      %v1372 = vpop.f32.mrf.mxu0
      %v1373 = vadd.f32 0.0, %v1372
      %v1374 = vpop.f32.mrf.mxu0
      %1375 = vmatprep.mubr.bf16.mxu0 0
      %1376 = vmatmul.mubr.bf16.gmra.mxu0 %v1227
      %v1377 = vpop.f32.mrf.mxu0
      %v1378 = vadd.f32 0.0, %v1377
      %v1379 = vpop.f32.mrf.mxu0
      %v1380 = vpop.f32.mrf.mxu0
      %v1381 = vadd.f32 0.0, %v1380
      %v1382 = vpop.f32.mrf.mxu0
      %1383 = vmatprep.mubr.bf16.mxu0 0
      %1384 = vmatmul.mubr.bf16.gmra.mxu0 %v1230
      %v1385 = vpop.f32.mrf.mxu0
      %v1386 = vadd.f32 0.0, %v1385
      %v1387 = vpop.f32.mrf.mxu0
      %v1388 = vpop.f32.mrf.mxu0
      %v1389 = vadd.f32 0.0, %v1388
      %v1390 = vpop.f32.mrf.mxu0
      %1391 = vmatprep.mubr.bf16.mxu0 0
      %1392 = vmatmul.mubr.bf16.gmra.mxu0 %v1233
      %v1393 = vpop.f32.mrf.mxu0
      %v1394 = vadd.f32 0.0, %v1393
      %v1395 = vpop.f32.mrf.mxu0
      %v1396 = vpop.f32.mrf.mxu0
      %v1397 = vadd.f32 0.0, %v1396
      %v1398 = vpop.f32.mrf.mxu0
      %1399 = vmatprep.mubr.bf16.mxu0 0
      %1400 = vmatmul.mubr.bf16.gmra.mxu0 %v1236
      %v1401 = vpop.f32.mrf.mxu0
      %v1402 = vadd.f32 0.0, %v1401
      %v1403 = vpop.f32.mrf.mxu0
      %v1404 = vpop.f32.mrf.mxu0
      %v1405 = vadd.f32 0.0, %v1404
      %v1406 = vpop.f32.mrf.mxu0
      %1407 = vmatprep.mubr.bf16.mxu0 0
      %1408 = vmatmul.mubr.bf16.gmra.mxu0 %v1239
      %v1409 = vpop.f32.mrf.mxu0
      %v1410 = vadd.f32 0.0, %v1409
      %v1411 = vpop.f32.mrf.mxu0
      %v1412 = vpop.f32.mrf.mxu0
      %v1413 = vadd.f32 0.0, %v1412
      %v1414 = vpop.f32.mrf.mxu0
      %1415 = vmatprep.mubr.bf16.mxu0 0
      %1416 = vmatmul.mubr.bf16.gmra.mxu0 %v1242
      %v1417 = vpop.f32.mrf.mxu0
      %v1418 = vadd.f32 0.0, %v1417
      %v1419 = vpop.f32.mrf.mxu0
      %v1420 = vpop.f32.mrf.mxu0
      %v1421 = vadd.f32 0.0, %v1420
      %v1422 = vpop.f32.mrf.mxu0
      %1423 = vdwg.mxu0
      %v1424 = vadd.f32 %v1089, %v1282
      %v1425 = vadd.f32 %v1090, %v1285
      %v1426 = vadd.f32 %v1091, %v1290
      %v1427 = vadd.f32 %v1092, %v1293
      %v1428 = vadd.f32 %v1093, %v1298
      %v1429 = vadd.f32 %v1094, %v1301
      %v1430 = vadd.f32 %v1095, %v1306
      %v1431 = vadd.f32 %v1096, %v1309
      %v1432 = vadd.f32 %v1097, %v1314
      %v1433 = vadd.f32 %v1098, %v1317
      %v1434 = vadd.f32 %v1099, %v1322
      %v1435 = vadd.f32 %v1100, %v1325
      %v1436 = vadd.f32 %v1101, %v1330
      %v1437 = vadd.f32 %v1102, %v1333
      %v1438 = vadd.f32 %v1103, %v1338
      %v1439 = vadd.f32 %v1104, %v1341
      %v1440 = vadd.f32 %v1105, %v1346
      %v1441 = vadd.f32 %v1106, %v1349
      %v1442 = vadd.f32 %v1107, %v1354
      %v1443 = vadd.f32 %v1108, %v1357
      %v1444 = vadd.f32 %v1109, %v1362
      %v1445 = vadd.f32 %v1110, %v1365
      %v1446 = vadd.f32 %v1111, %v1370
      %v1447 = vadd.f32 %v1112, %v1373
      %v1448 = vadd.f32 %v1113, %v1378
      %v1449 = vadd.f32 %v1114, %v1381
      %v1450 = vadd.f32 %v1115, %v1386
      %v1451 = vadd.f32 %v1116, %v1389
      %v1452 = vadd.f32 %v1117, %v1394
      %v1453 = vadd.f32 %v1118, %v1397
      %v1454 = vadd.f32 %v1119, %v1402
      %v1455 = vadd.f32 %v1120, %v1405
      %v1456 = vadd.f32 %v1121, %v1410
      %v1457 = vadd.f32 %v1122, %v1413
      %v1458 = vadd.f32 %v1123, %v1418
      %v1459 = vadd.f32 %v1124, %v1421
      %v1460 = vld [vmem:[%s192 + $0x13] sm:$0xff]
      %v1461 = vld [vmem:[%s192 + $0x1b] sm:$0xff]
      %v1462 = vld [vmem:[%s192 + $0x23] sm:$0xff]
      %v1463 = vld [vmem:[%s192 + $0x2b] sm:$0xff]
      %v1464 = vld [vmem:[%s192 + $0x33] sm:$0xff]
      %v1465 = vld [vmem:[%s192 + $0x3b] sm:$0xff]
      %v1466 = vld [vmem:[%s192 + $0x43] sm:$0xff]
      %v1467 = vld [vmem:[%s192 + $0x4b] sm:$0xff]
      %v1468 = vld [vmem:[%s192 + $0x53] sm:$0xff]
      %v1469 = vld [vmem:[%s192 + $0x5b] sm:$0xff]
      %v1470 = vld [vmem:[%s192 + $0x63] sm:$0xff]
      %v1471 = vld [vmem:[%s192 + $0x6b] sm:$0xff]
      %v1472 = vld [vmem:[%s192 + $0x73] sm:$0xff]
      %v1473 = vld [vmem:[%s192 + $0x7b] sm:$0xff]
      %v1474 = vld [vmem:[%s192 + $0x83] sm:$0xff]
      %v1475 = vld [vmem:[%s192 + $0x8b] sm:$0xff]
      %v1476 = vld [vmem:[%s192 + $0x93] sm:$0xff]
      %v1477 = vld [vmem:[%s192 + $0x9b] sm:$0xff]
      %v1478 = vld [vmem:[%s192 + $0xa3] sm:$0xff]
      %v1479 = vld [vmem:[%s192 + $0xab] sm:$0xff]
      %v1480 = vld [vmem:[%s192 + $0xb3] sm:$0xff]
      %v1481 = vld [vmem:[%s192 + $0xbb] sm:$0xff]
      %v1482 = vld [vmem:[%s192 + $0xc3] sm:$0xff]
      %v1483 = vld [vmem:[%s192 + $0xcb] sm:$0xff]
      %v1484 = vld [vmem:[%s192 + $0xd3] sm:$0xff]
      %v1485 = vld [vmem:[%s192 + $0xdb] sm:$0xff]
      %v1486 = vld [vmem:[%s192 + $0xe3] sm:$0xff]
      %v1487 = vld [vmem:[%s192 + $0xeb] sm:$0xff]
      %v1488 = vld [vmem:[%s192 + $0xf3] sm:$0xff]
      %v1489 = vld [vmem:[%s192 + $0xfb] sm:$0xff]
      %v1490 = vld [vmem:[%s192 + $0x103] sm:$0xff]
      %v1491 = vld [vmem:[%s192 + $0x10b] sm:$0xff]
      %v1492 = vld [vmem:[%s192 + $0x113] sm:$0xff]
      %v1493 = vld [vmem:[%s192 + $0x11b] sm:$0xff]
      %v1494 = vld [vmem:[%s192 + $0x123] sm:$0xff]
      %v1495 = vld [vmem:[%s192 + $0x12b] sm:$0x3f]
      %v1496 = vpack.c.bf16 %v1461, %v1460
      %v1497 = vpack.c.bf16 %v1463, %v1462
      %v1498 = vpack.c.bf16 %v1465, %v1464
      %v1499 = vpack.c.bf16 %v1467, %v1466
      %v1500 = vpack.c.bf16 %v1469, %v1468
      %v1501 = vpack.c.bf16 %v1471, %v1470
      %v1502 = vpack.c.bf16 %v1473, %v1472
      %v1503 = vpack.c.bf16 %v1475, %v1474
      %v1504 = vpack.c.bf16 %v1477, %v1476
      %v1505 = vpack.c.bf16 %v1479, %v1478
      %v1506 = vpack.c.bf16 %v1481, %v1480
      %v1507 = vpack.c.bf16 %v1483, %v1482
      %v1508 = vpack.c.bf16 %v1485, %v1484
      %v1509 = vpack.c.bf16 %v1487, %v1486
      %v1510 = vpack.c.bf16 %v1489, %v1488
      %v1511 = vpack.c.bf16 %v1491, %v1490
      %v1512 = vpack.c.bf16 %v1493, %v1492
      %v1513 = vpack.c.bf16 %v1495, %v1494
      %v1514 = vld [vmem:[%s1 + $0x4] sm:$0xc]
      %v1516 = vunpack.c.l.b16 %v1514
      %v1517 = vpack.c.b16 %v1516, %v1516
      %v1518 = vrot.slane %v1517, 2
      %v1520 = vsel %vm320, %v1496, 0
      %v1523 = vsel %vm320, %v1497, 0
      %v1526 = vsel %vm320, %v1498, 0
      %v1529 = vsel %vm320, %v1499, 0
      %v1532 = vsel %vm320, %v1500, 0
      %v1535 = vsel %vm320, %v1501, 0
      %v1538 = vsel %vm320, %v1502, 0
      %v1541 = vsel %vm320, %v1503, 0
      %v1544 = vsel %vm320, %v1504, 0
      %v1547 = vsel %vm320, %v1505, 0
      %v1550 = vsel %vm320, %v1506, 0
      %v1553 = vsel %vm320, %v1507, 0
      %v1556 = vsel %vm320, %v1508, 0
      %v1559 = vsel %vm320, %v1509, 0
      %v1562 = vsel %vm320, %v1510, 0
      %v1565 = vsel %vm320, %v1511, 0
      %v1568 = vsel %vm320, %v1512, 0
      %v1571 = vsel %vm320, %v1513, 0
      %v1574 = vand.u32 %v1518, %v378
      %1576 = vmatprep.subr.bf16.mxu0 0
      %1577 = vmatpush1.bf16.msra.mxu0 0
      %1578 = vmatprep.subr.bf16.mxu0 0
      %1579 = vmatpush1.bf16.msra.mxu0 0
      %1580 = vmatprep.subr.bf16.mxu0 0
      %1581 = vmatpush1.bf16.msra.mxu0 0
      %1582 = vmatprep.subr.bf16.mxu0 0
      %1583 = vmatpush1.bf16.msra.mxu0 0
      %1584 = vmatprep.subr.bf16.mxu0 0
      %1585 = vmatpush1.bf16.msra.mxu0 0
      %1586 = vmatprep.subr.bf16.mxu0 0
      %1587 = vmatpush1.bf16.msra.mxu0 0
      %1588 = vmatprep.subr.bf16.mxu0 0
      %1589 = vmatpush1.bf16.msra.mxu0 0
      %1590 = vmatprep.subr.bf16.mxu0 0
      %1591 = vmatpush1.bf16.msra.mxu0 %v1574
      %1592 = vmatprep.subr.bf16.mxu0 0
      %1593 = vmatpush2.bf16.msra.mxu0 0
      %1594 = vmatprep.subr.bf16.mxu0 0
      %1595 = vmatpush2.bf16.msra.mxu0 0
      %1596 = vmatprep.subr.bf16.mxu0 0
      %1597 = vmatpush2.bf16.msra.mxu0 0
      %1598 = vmatprep.subr.bf16.mxu0 0
      %1599 = vmatpush2.bf16.msra.mxu0 0
      %1600 = vmatprep.subr.bf16.mxu0 0
      %1601 = vmatpush2.bf16.msra.mxu0 0
      %1602 = vmatprep.subr.bf16.mxu0 0
      %1603 = vmatpush2.bf16.msra.mxu0 0
      %1604 = vmatprep.subr.bf16.mxu0 0
      %1605 = vmatpush2.bf16.msra.mxu0 0
      %1606 = vmatprep.subr.bf16.mxu0 0
      %1607 = vmatpush2.bf16.msra.mxu0 0
      %1608 = vmatprep.mubr.bf16.mxu0 0
      %1609 = vmatmul.mubr.bf16.gmra.mxu0 %v1520
      %v1610 = vpop.f32.mrf.mxu0
      %v1611 = vadd.f32 0.0, %v1610
      %v1612 = vpop.f32.mrf.mxu0
      %v1613 = vpop.f32.mrf.mxu0
      %v1614 = vadd.f32 0.0, %v1613
      %v1615 = vpop.f32.mrf.mxu0
      %1616 = vmatprep.mubr.bf16.mxu0 0
      %1617 = vmatmul.mubr.bf16.gmra.mxu0 %v1523
      %v1618 = vpop.f32.mrf.mxu0
      %v1619 = vadd.f32 0.0, %v1618
      %v1620 = vpop.f32.mrf.mxu0
      %v1621 = vpop.f32.mrf.mxu0
      %v1622 = vadd.f32 0.0, %v1621
      %v1623 = vpop.f32.mrf.mxu0
      %1624 = vmatprep.mubr.bf16.mxu0 0
      %1625 = vmatmul.mubr.bf16.gmra.mxu0 %v1526
      %v1626 = vpop.f32.mrf.mxu0
      %v1627 = vadd.f32 0.0, %v1626
      %v1628 = vpop.f32.mrf.mxu0
      %v1629 = vpop.f32.mrf.mxu0
      %v1630 = vadd.f32 0.0, %v1629
      %v1631 = vpop.f32.mrf.mxu0
      %1632 = vmatprep.mubr.bf16.mxu0 0
      %1633 = vmatmul.mubr.bf16.gmra.mxu0 %v1529
      %v1634 = vpop.f32.mrf.mxu0
      %v1635 = vadd.f32 0.0, %v1634
      %v1636 = vpop.f32.mrf.mxu0
      %v1637 = vpop.f32.mrf.mxu0
      %v1638 = vadd.f32 0.0, %v1637
      %v1639 = vpop.f32.mrf.mxu0
      %1640 = vmatprep.mubr.bf16.mxu0 0
      %1641 = vmatmul.mubr.bf16.gmra.mxu0 %v1532
      %v1642 = vpop.f32.mrf.mxu0
      %v1643 = vadd.f32 0.0, %v1642
      %v1644 = vpop.f32.mrf.mxu0
      %v1645 = vpop.f32.mrf.mxu0
      %v1646 = vadd.f32 0.0, %v1645
      %v1647 = vpop.f32.mrf.mxu0
      %1648 = vmatprep.mubr.bf16.mxu0 0
      %1649 = vmatmul.mubr.bf16.gmra.mxu0 %v1535
      %v1650 = vpop.f32.mrf.mxu0
      %v1651 = vadd.f32 0.0, %v1650
      %v1652 = vpop.f32.mrf.mxu0
      %v1653 = vpop.f32.mrf.mxu0
      %v1654 = vadd.f32 0.0, %v1653
      %v1655 = vpop.f32.mrf.mxu0
      %1656 = vmatprep.mubr.bf16.mxu0 0
      %1657 = vmatmul.mubr.bf16.gmra.mxu0 %v1538
      %v1658 = vpop.f32.mrf.mxu0
      %v1659 = vadd.f32 0.0, %v1658
      %v1660 = vpop.f32.mrf.mxu0
      %v1661 = vpop.f32.mrf.mxu0
      %v1662 = vadd.f32 0.0, %v1661
      %v1663 = vpop.f32.mrf.mxu0
      %1664 = vmatprep.mubr.bf16.mxu0 0
      %1665 = vmatmul.mubr.bf16.gmra.mxu0 %v1541
      %v1666 = vpop.f32.mrf.mxu0
      %v1667 = vadd.f32 0.0, %v1666
      %v1668 = vpop.f32.mrf.mxu0
      %v1669 = vpop.f32.mrf.mxu0
      %v1670 = vadd.f32 0.0, %v1669
      %v1671 = vpop.f32.mrf.mxu0
      %1672 = vmatprep.mubr.bf16.mxu0 0
      %1673 = vmatmul.mubr.bf16.gmra.mxu0 %v1544
      %v1674 = vpop.f32.mrf.mxu0
      %v1675 = vadd.f32 0.0, %v1674
      %v1676 = vpop.f32.mrf.mxu0
      %v1677 = vpop.f32.mrf.mxu0
      %v1678 = vadd.f32 0.0, %v1677
      %v1679 = vpop.f32.mrf.mxu0
      %1680 = vmatprep.mubr.bf16.mxu0 0
      %1681 = vmatmul.mubr.bf16.gmra.mxu0 %v1547
      %v1682 = vpop.f32.mrf.mxu0
      %v1683 = vadd.f32 0.0, %v1682
      %v1684 = vpop.f32.mrf.mxu0
      %v1685 = vpop.f32.mrf.mxu0
      %v1686 = vadd.f32 0.0, %v1685
      %v1687 = vpop.f32.mrf.mxu0
      %1688 = vmatprep.mubr.bf16.mxu0 0
      %1689 = vmatmul.mubr.bf16.gmra.mxu0 %v1550
      %v1690 = vpop.f32.mrf.mxu0
      %v1691 = vadd.f32 0.0, %v1690
      %v1692 = vpop.f32.mrf.mxu0
      %v1693 = vpop.f32.mrf.mxu0
      %v1694 = vadd.f32 0.0, %v1693
      %v1695 = vpop.f32.mrf.mxu0
      %1696 = vmatprep.mubr.bf16.mxu0 0
      %1697 = vmatmul.mubr.bf16.gmra.mxu0 %v1553
      %v1698 = vpop.f32.mrf.mxu0
      %v1699 = vadd.f32 0.0, %v1698
      %v1700 = vpop.f32.mrf.mxu0
      %v1701 = vpop.f32.mrf.mxu0
      %v1702 = vadd.f32 0.0, %v1701
      %v1703 = vpop.f32.mrf.mxu0
      %1704 = vmatprep.mubr.bf16.mxu0 0
      %1705 = vmatmul.mubr.bf16.gmra.mxu0 %v1556
      %v1706 = vpop.f32.mrf.mxu0
      %v1707 = vadd.f32 0.0, %v1706
      %v1708 = vpop.f32.mrf.mxu0
      %v1709 = vpop.f32.mrf.mxu0
      %v1710 = vadd.f32 0.0, %v1709
      %v1711 = vpop.f32.mrf.mxu0
      %1712 = vmatprep.mubr.bf16.mxu0 0
      %1713 = vmatmul.mubr.bf16.gmra.mxu0 %v1559
      %v1714 = vpop.f32.mrf.mxu0
      %v1715 = vadd.f32 0.0, %v1714
      %v1716 = vpop.f32.mrf.mxu0
      %v1717 = vpop.f32.mrf.mxu0
      %v1718 = vadd.f32 0.0, %v1717
      %v1719 = vpop.f32.mrf.mxu0
      %1720 = vmatprep.mubr.bf16.mxu0 0
      %1721 = vmatmul.mubr.bf16.gmra.mxu0 %v1562
      %v1722 = vpop.f32.mrf.mxu0
      %v1723 = vadd.f32 0.0, %v1722
      %v1724 = vpop.f32.mrf.mxu0
      %v1725 = vpop.f32.mrf.mxu0
      %v1726 = vadd.f32 0.0, %v1725
      %v1727 = vpop.f32.mrf.mxu0
      %1728 = vmatprep.mubr.bf16.mxu0 0
      %1729 = vmatmul.mubr.bf16.gmra.mxu0 %v1565
      %v1730 = vpop.f32.mrf.mxu0
      %v1731 = vadd.f32 0.0, %v1730
      %v1732 = vpop.f32.mrf.mxu0
      %v1733 = vpop.f32.mrf.mxu0
      %v1734 = vadd.f32 0.0, %v1733
      %v1735 = vpop.f32.mrf.mxu0
      %1736 = vmatprep.mubr.bf16.mxu0 0
      %1737 = vmatmul.mubr.bf16.gmra.mxu0 %v1568
      %v1738 = vpop.f32.mrf.mxu0
      %v1739 = vadd.f32 0.0, %v1738
      %v1740 = vpop.f32.mrf.mxu0
      %v1741 = vpop.f32.mrf.mxu0
      %v1742 = vadd.f32 0.0, %v1741
      %v1743 = vpop.f32.mrf.mxu0
      %1744 = vmatprep.mubr.bf16.mxu0 0
      %1745 = vmatmul.mubr.bf16.gmra.mxu0 %v1571
      %v1746 = vpop.f32.mrf.mxu0
      %v1747 = vadd.f32 0.0, %v1746
      %v1748 = vpop.f32.mrf.mxu0
      %v1749 = vpop.f32.mrf.mxu0
      %v1750 = vadd.f32 0.0, %v1749
      %v1751 = vpop.f32.mrf.mxu0
      %1752 = vdwg.mxu0
      %v1753 = vadd.f32 %v1424, %v1611
      %v1754 = vadd.f32 %v1425, %v1614
      %v1755 = vadd.f32 %v1426, %v1619
      %v1756 = vadd.f32 %v1427, %v1622
      %v1757 = vadd.f32 %v1428, %v1627
      %v1758 = vadd.f32 %v1429, %v1630
      %v1759 = vadd.f32 %v1430, %v1635
      %v1760 = vadd.f32 %v1431, %v1638
      %v1761 = vadd.f32 %v1432, %v1643
      %v1762 = vadd.f32 %v1433, %v1646
      %v1763 = vadd.f32 %v1434, %v1651
      %v1764 = vadd.f32 %v1435, %v1654
      %v1765 = vadd.f32 %v1436, %v1659
      %v1766 = vadd.f32 %v1437, %v1662
      %v1767 = vadd.f32 %v1438, %v1667
      %v1768 = vadd.f32 %v1439, %v1670
      %v1769 = vadd.f32 %v1440, %v1675
      %v1770 = vadd.f32 %v1441, %v1678
      %v1771 = vadd.f32 %v1442, %v1683
      %v1772 = vadd.f32 %v1443, %v1686
      %v1773 = vadd.f32 %v1444, %v1691
      %v1774 = vadd.f32 %v1445, %v1694
      %v1775 = vadd.f32 %v1446, %v1699
      %v1776 = vadd.f32 %v1447, %v1702
      %v1777 = vadd.f32 %v1448, %v1707
      %v1778 = vadd.f32 %v1449, %v1710
      %v1779 = vadd.f32 %v1450, %v1715
      %v1780 = vadd.f32 %v1451, %v1718
      %v1781 = vadd.f32 %v1452, %v1723
      %v1782 = vadd.f32 %v1453, %v1726
      %v1783 = vadd.f32 %v1454, %v1731
      %v1784 = vadd.f32 %v1455, %v1734
      %v1785 = vadd.f32 %v1456, %v1739
      %v1786 = vadd.f32 %v1457, %v1742
      %v1787 = vadd.f32 %v1458, %v1747
      %v1788 = vadd.f32 %v1459, %v1750
      %v1789 = vld [vmem:[%s192 + $0x14] sm:$0xff]
      %v1790 = vld [vmem:[%s192 + $0x1c] sm:$0xff]
      %v1791 = vld [vmem:[%s192 + $0x24] sm:$0xff]
      %v1792 = vld [vmem:[%s192 + $0x2c] sm:$0xff]
      %v1793 = vld [vmem:[%s192 + $0x34] sm:$0xff]
      %v1794 = vld [vmem:[%s192 + $0x3c] sm:$0xff]
      %v1795 = vld [vmem:[%s192 + $0x44] sm:$0xff]
      %v1796 = vld [vmem:[%s192 + $0x4c] sm:$0xff]
      %v1797 = vld [vmem:[%s192 + $0x54] sm:$0xff]
      %v1798 = vld [vmem:[%s192 + $0x5c] sm:$0xff]
      %v1799 = vld [vmem:[%s192 + $0x64] sm:$0xff]
      %v1800 = vld [vmem:[%s192 + $0x6c] sm:$0xff]
      %v1801 = vld [vmem:[%s192 + $0x74] sm:$0xff]
      %v1802 = vld [vmem:[%s192 + $0x7c] sm:$0xff]
      %v1803 = vld [vmem:[%s192 + $0x84] sm:$0xff]
      %v1804 = vld [vmem:[%s192 + $0x8c] sm:$0xff]
      %v1805 = vld [vmem:[%s192 + $0x94] sm:$0xff]
      %v1806 = vld [vmem:[%s192 + $0x9c] sm:$0xff]
      %v1807 = vld [vmem:[%s192 + $0xa4] sm:$0xff]
      %v1808 = vld [vmem:[%s192 + $0xac] sm:$0xff]
      %v1809 = vld [vmem:[%s192 + $0xb4] sm:$0xff]
      %v1810 = vld [vmem:[%s192 + $0xbc] sm:$0xff]
      %v1811 = vld [vmem:[%s192 + $0xc4] sm:$0xff]
      %v1812 = vld [vmem:[%s192 + $0xcc] sm:$0xff]
      %v1813 = vld [vmem:[%s192 + $0xd4] sm:$0xff]
      %v1814 = vld [vmem:[%s192 + $0xdc] sm:$0xff]
      %v1815 = vld [vmem:[%s192 + $0xe4] sm:$0xff]
      %v1816 = vld [vmem:[%s192 + $0xec] sm:$0xff]
      %v1817 = vld [vmem:[%s192 + $0xf4] sm:$0xff]
      %v1818 = vld [vmem:[%s192 + $0xfc] sm:$0xff]
      %v1819 = vld [vmem:[%s192 + $0x104] sm:$0xff]
      %v1820 = vld [vmem:[%s192 + $0x10c] sm:$0xff]
      %v1821 = vld [vmem:[%s192 + $0x114] sm:$0xff]
      %v1822 = vld [vmem:[%s192 + $0x11c] sm:$0xff]
      %v1823 = vld [vmem:[%s192 + $0x124] sm:$0xff]
      %v1824 = vld [vmem:[%s192 + $0x12c] sm:$0x3f]
      %v1825 = vpack.c.bf16 %v1790, %v1789
      %v1826 = vpack.c.bf16 %v1792, %v1791
      %v1827 = vpack.c.bf16 %v1794, %v1793
      %v1828 = vpack.c.bf16 %v1796, %v1795
      %v1829 = vpack.c.bf16 %v1798, %v1797
      %v1830 = vpack.c.bf16 %v1800, %v1799
      %v1831 = vpack.c.bf16 %v1802, %v1801
      %v1832 = vpack.c.bf16 %v1804, %v1803
      %v1833 = vpack.c.bf16 %v1806, %v1805
      %v1834 = vpack.c.bf16 %v1808, %v1807
      %v1835 = vpack.c.bf16 %v1810, %v1809
      %v1836 = vpack.c.bf16 %v1812, %v1811
      %v1837 = vpack.c.bf16 %v1814, %v1813
      %v1838 = vpack.c.bf16 %v1816, %v1815
      %v1839 = vpack.c.bf16 %v1818, %v1817
      %v1840 = vpack.c.bf16 %v1820, %v1819
      %v1841 = vpack.c.bf16 %v1822, %v1821
      %v1842 = vpack.c.bf16 %v1824, %v1823
      %v1843 = vld [vmem:[%s1 + $0x4] sm:$0x8]
      %v1844 = vld [vmem:[%s1 + $0x8] sm:$0x1]
      %v1847 = vunpack.c.l.b16 %v1843
      %v1848 = vunpack.c.l.b16 %v1844
      %v1849 = vpack.c.b16 %v1848, %v1847
      %v1851 = vshrl.u32 %v1849, 16
      %v1853 = vrot.slane %v1851, 3
      %v1854 = vshll.u32 %v1849, 16
      %v1856 = vrot.slane %v1854, 4
      %v1857 = vor.u32 %v1853, %v1856
      %v1859 = vsel %vm320, %v1825, 0
      %v1862 = vsel %vm320, %v1826, 0
      %v1865 = vsel %vm320, %v1827, 0
      %v1868 = vsel %vm320, %v1828, 0
      %v1871 = vsel %vm320, %v1829, 0
      %v1874 = vsel %vm320, %v1830, 0
      %v1877 = vsel %vm320, %v1831, 0
      %v1880 = vsel %vm320, %v1832, 0
      %v1883 = vsel %vm320, %v1833, 0
      %v1886 = vsel %vm320, %v1834, 0
      %v1889 = vsel %vm320, %v1835, 0
      %v1892 = vsel %vm320, %v1836, 0
      %v1895 = vsel %vm320, %v1837, 0
      %v1898 = vsel %vm320, %v1838, 0
      %v1901 = vsel %vm320, %v1839, 0
      %v1904 = vsel %vm320, %v1840, 0
      %v1907 = vsel %vm320, %v1841, 0
      %v1910 = vsel %vm320, %v1842, 0
      %v1913 = vand.u32 %v1857, %v378
      %1915 = vmatprep.subr.bf16.mxu0 0
      %1916 = vmatpush1.bf16.msra.mxu0 0
      %1917 = vmatprep.subr.bf16.mxu0 0
      %1918 = vmatpush1.bf16.msra.mxu0 0
      %1919 = vmatprep.subr.bf16.mxu0 0
      %1920 = vmatpush1.bf16.msra.mxu0 0
      %1921 = vmatprep.subr.bf16.mxu0 0
      %1922 = vmatpush1.bf16.msra.mxu0 0
      %1923 = vmatprep.subr.bf16.mxu0 0
      %1924 = vmatpush1.bf16.msra.mxu0 0
      %1925 = vmatprep.subr.bf16.mxu0 0
      %1926 = vmatpush1.bf16.msra.mxu0 0
      %1927 = vmatprep.subr.bf16.mxu0 0
      %1928 = vmatpush1.bf16.msra.mxu0 0
      %1929 = vmatprep.subr.bf16.mxu0 0
      %1930 = vmatpush1.bf16.msra.mxu0 %v1913
      %1931 = vmatprep.subr.bf16.mxu0 0
      %1932 = vmatpush2.bf16.msra.mxu0 0
      %1933 = vmatprep.subr.bf16.mxu0 0
      %1934 = vmatpush2.bf16.msra.mxu0 0
      %1935 = vmatprep.subr.bf16.mxu0 0
      %1936 = vmatpush2.bf16.msra.mxu0 0
      %1937 = vmatprep.subr.bf16.mxu0 0
      %1938 = vmatpush2.bf16.msra.mxu0 0
      %1939 = vmatprep.subr.bf16.mxu0 0
      %1940 = vmatpush2.bf16.msra.mxu0 0
      %1941 = vmatprep.subr.bf16.mxu0 0
      %1942 = vmatpush2.bf16.msra.mxu0 0
      %1943 = vmatprep.subr.bf16.mxu0 0
      %1944 = vmatpush2.bf16.msra.mxu0 0
      %1945 = vmatprep.subr.bf16.mxu0 0
      %1946 = vmatpush2.bf16.msra.mxu0 0
      %1947 = vmatprep.mubr.bf16.mxu0 0
      %1948 = vmatmul.mubr.bf16.gmra.mxu0 %v1859
      %v1949 = vpop.f32.mrf.mxu0
      %v1950 = vadd.f32 0.0, %v1949
      %v1951 = vpop.f32.mrf.mxu0
      %v1952 = vpop.f32.mrf.mxu0
      %v1953 = vadd.f32 0.0, %v1952
      %v1954 = vpop.f32.mrf.mxu0
      %1955 = vmatprep.mubr.bf16.mxu0 0
      %1956 = vmatmul.mubr.bf16.gmra.mxu0 %v1862
      %v1957 = vpop.f32.mrf.mxu0
      %v1958 = vadd.f32 0.0, %v1957
      %v1959 = vpop.f32.mrf.mxu0
      %v1960 = vpop.f32.mrf.mxu0
      %v1961 = vadd.f32 0.0, %v1960
      %v1962 = vpop.f32.mrf.mxu0
      %1963 = vmatprep.mubr.bf16.mxu0 0
      %1964 = vmatmul.mubr.bf16.gmra.mxu0 %v1865
      %v1965 = vpop.f32.mrf.mxu0
      %v1966 = vadd.f32 0.0, %v1965
      %v1967 = vpop.f32.mrf.mxu0
      %v1968 = vpop.f32.mrf.mxu0
      %v1969 = vadd.f32 0.0, %v1968
      %v1970 = vpop.f32.mrf.mxu0
      %1971 = vmatprep.mubr.bf16.mxu0 0
      %1972 = vmatmul.mubr.bf16.gmra.mxu0 %v1868
      %v1973 = vpop.f32.mrf.mxu0
      %v1974 = vadd.f32 0.0, %v1973
      %v1975 = vpop.f32.mrf.mxu0
      %v1976 = vpop.f32.mrf.mxu0
      %v1977 = vadd.f32 0.0, %v1976
      %v1978 = vpop.f32.mrf.mxu0
      %1979 = vmatprep.mubr.bf16.mxu0 0
      %1980 = vmatmul.mubr.bf16.gmra.mxu0 %v1871
      %v1981 = vpop.f32.mrf.mxu0
      %v1982 = vadd.f32 0.0, %v1981
      %v1983 = vpop.f32.mrf.mxu0
      %v1984 = vpop.f32.mrf.mxu0
      %v1985 = vadd.f32 0.0, %v1984
      %v1986 = vpop.f32.mrf.mxu0
      %1987 = vmatprep.mubr.bf16.mxu0 0
      %1988 = vmatmul.mubr.bf16.gmra.mxu0 %v1874
      %v1989 = vpop.f32.mrf.mxu0
      %v1990 = vadd.f32 0.0, %v1989
      %v1991 = vpop.f32.mrf.mxu0
      %v1992 = vpop.f32.mrf.mxu0
      %v1993 = vadd.f32 0.0, %v1992
      %v1994 = vpop.f32.mrf.mxu0
      %1995 = vmatprep.mubr.bf16.mxu0 0
      %1996 = vmatmul.mubr.bf16.gmra.mxu0 %v1877
      %v1997 = vpop.f32.mrf.mxu0
      %v1998 = vadd.f32 0.0, %v1997
      %v1999 = vpop.f32.mrf.mxu0
      %v2000 = vpop.f32.mrf.mxu0
      %v2001 = vadd.f32 0.0, %v2000
      %v2002 = vpop.f32.mrf.mxu0
      %2003 = vmatprep.mubr.bf16.mxu0 0
      %2004 = vmatmul.mubr.bf16.gmra.mxu0 %v1880
      %v2005 = vpop.f32.mrf.mxu0
      %v2006 = vadd.f32 0.0, %v2005
      %v2007 = vpop.f32.mrf.mxu0
      %v2008 = vpop.f32.mrf.mxu0
      %v2009 = vadd.f32 0.0, %v2008
      %v2010 = vpop.f32.mrf.mxu0
      %2011 = vmatprep.mubr.bf16.mxu0 0
      %2012 = vmatmul.mubr.bf16.gmra.mxu0 %v1883
      %v2013 = vpop.f32.mrf.mxu0
      %v2014 = vadd.f32 0.0, %v2013
      %v2015 = vpop.f32.mrf.mxu0
      %v2016 = vpop.f32.mrf.mxu0
      %v2017 = vadd.f32 0.0, %v2016
      %v2018 = vpop.f32.mrf.mxu0
      %2019 = vmatprep.mubr.bf16.mxu0 0
      %2020 = vmatmul.mubr.bf16.gmra.mxu0 %v1886
      %v2021 = vpop.f32.mrf.mxu0
      %v2022 = vadd.f32 0.0, %v2021
      %v2023 = vpop.f32.mrf.mxu0
      %v2024 = vpop.f32.mrf.mxu0
      %v2025 = vadd.f32 0.0, %v2024
      %v2026 = vpop.f32.mrf.mxu0
      %2027 = vmatprep.mubr.bf16.mxu0 0
      %2028 = vmatmul.mubr.bf16.gmra.mxu0 %v1889
      %v2029 = vpop.f32.mrf.mxu0
      %v2030 = vadd.f32 0.0, %v2029
      %v2031 = vpop.f32.mrf.mxu0
      %v2032 = vpop.f32.mrf.mxu0
      %v2033 = vadd.f32 0.0, %v2032
      %v2034 = vpop.f32.mrf.mxu0
      %2035 = vmatprep.mubr.bf16.mxu0 0
      %2036 = vmatmul.mubr.bf16.gmra.mxu0 %v1892
      %v2037 = vpop.f32.mrf.mxu0
      %v2038 = vadd.f32 0.0, %v2037
      %v2039 = vpop.f32.mrf.mxu0
      %v2040 = vpop.f32.mrf.mxu0
      %v2041 = vadd.f32 0.0, %v2040
      %v2042 = vpop.f32.mrf.mxu0
      %2043 = vmatprep.mubr.bf16.mxu0 0
      %2044 = vmatmul.mubr.bf16.gmra.mxu0 %v1895
      %v2045 = vpop.f32.mrf.mxu0
      %v2046 = vadd.f32 0.0, %v2045
      %v2047 = vpop.f32.mrf.mxu0
      %v2048 = vpop.f32.mrf.mxu0
      %v2049 = vadd.f32 0.0, %v2048
      %v2050 = vpop.f32.mrf.mxu0
      %2051 = vmatprep.mubr.bf16.mxu0 0
      %2052 = vmatmul.mubr.bf16.gmra.mxu0 %v1898
      %v2053 = vpop.f32.mrf.mxu0
      %v2054 = vadd.f32 0.0, %v2053
      %v2055 = vpop.f32.mrf.mxu0
      %v2056 = vpop.f32.mrf.mxu0
      %v2057 = vadd.f32 0.0, %v2056
      %v2058 = vpop.f32.mrf.mxu0
      %2059 = vmatprep.mubr.bf16.mxu0 0
      %2060 = vmatmul.mubr.bf16.gmra.mxu0 %v1901
      %v2061 = vpop.f32.mrf.mxu0
      %v2062 = vadd.f32 0.0, %v2061
      %v2063 = vpop.f32.mrf.mxu0
      %v2064 = vpop.f32.mrf.mxu0
      %v2065 = vadd.f32 0.0, %v2064
      %v2066 = vpop.f32.mrf.mxu0
      %2067 = vmatprep.mubr.bf16.mxu0 0
      %2068 = vmatmul.mubr.bf16.gmra.mxu0 %v1904
      %v2069 = vpop.f32.mrf.mxu0
      %v2070 = vadd.f32 0.0, %v2069
      %v2071 = vpop.f32.mrf.mxu0
      %v2072 = vpop.f32.mrf.mxu0
      %v2073 = vadd.f32 0.0, %v2072
      %v2074 = vpop.f32.mrf.mxu0
      %2075 = vmatprep.mubr.bf16.mxu0 0
      %2076 = vmatmul.mubr.bf16.gmra.mxu0 %v1907
      %v2077 = vpop.f32.mrf.mxu0
      %v2078 = vadd.f32 0.0, %v2077
      %v2079 = vpop.f32.mrf.mxu0
      %v2080 = vpop.f32.mrf.mxu0
      %v2081 = vadd.f32 0.0, %v2080
      %v2082 = vpop.f32.mrf.mxu0
      %2083 = vmatprep.mubr.bf16.mxu0 0
      %2084 = vmatmul.mubr.bf16.gmra.mxu0 %v1910
      %v2085 = vpop.f32.mrf.mxu0
      %v2086 = vadd.f32 0.0, %v2085
      %v2087 = vpop.f32.mrf.mxu0
      %v2088 = vpop.f32.mrf.mxu0
      %v2089 = vadd.f32 0.0, %v2088
      %v2090 = vpop.f32.mrf.mxu0
      %2091 = vdwg.mxu0
      %v2092 = vadd.f32 %v1753, %v1950
      %v2093 = vadd.f32 %v1754, %v1953
      %v2094 = vadd.f32 %v1755, %v1958
      %v2095 = vadd.f32 %v1756, %v1961
      %v2096 = vadd.f32 %v1757, %v1966
      %v2097 = vadd.f32 %v1758, %v1969
      %v2098 = vadd.f32 %v1759, %v1974
      %v2099 = vadd.f32 %v1760, %v1977
      %v2100 = vadd.f32 %v1761, %v1982
      %v2101 = vadd.f32 %v1762, %v1985
      %v2102 = vadd.f32 %v1763, %v1990
      %v2103 = vadd.f32 %v1764, %v1993
      %v2104 = vadd.f32 %v1765, %v1998
      %v2105 = vadd.f32 %v1766, %v2001
      %v2106 = vadd.f32 %v1767, %v2006
      %v2107 = vadd.f32 %v1768, %v2009
      %v2108 = vadd.f32 %v1769, %v2014
      %v2109 = vadd.f32 %v1770, %v2017
      %v2110 = vadd.f32 %v1771, %v2022
      %v2111 = vadd.f32 %v1772, %v2025
      %v2112 = vadd.f32 %v1773, %v2030
      %v2113 = vadd.f32 %v1774, %v2033
      %v2114 = vadd.f32 %v1775, %v2038
      %v2115 = vadd.f32 %v1776, %v2041
      %v2116 = vadd.f32 %v1777, %v2046
      %v2117 = vadd.f32 %v1778, %v2049
      %v2118 = vadd.f32 %v1779, %v2054
      %v2119 = vadd.f32 %v1780, %v2057
      %v2120 = vadd.f32 %v1781, %v2062
      %v2121 = vadd.f32 %v1782, %v2065
      %v2122 = vadd.f32 %v1783, %v2070
      %v2123 = vadd.f32 %v1784, %v2073
      %v2124 = vadd.f32 %v1785, %v2078
      %v2125 = vadd.f32 %v1786, %v2081
      %v2126 = vadd.f32 %v1787, %v2086
      %v2127 = vadd.f32 %v1788, %v2089
      %v2128 = vld [vmem:[%s192 + $0x24] sm:$0xff]
      %v2129 = vld [vmem:[%s192 + $0x2c] sm:$0xff]
      %v2130 = vld [vmem:[%s192 + $0x34] sm:$0xff]
      %v2131 = vld [vmem:[%s192 + $0x3c] sm:$0xff]
      %v2132 = vld [vmem:[%s192 + $0x44] sm:$0xff]
      %v2133 = vld [vmem:[%s192 + $0x4c] sm:$0xff]
      %v2134 = vld [vmem:[%s192 + $0x54] sm:$0xff]
      %v2135 = vld [vmem:[%s192 + $0x5c] sm:$0xff]
      %v2136 = vld [vmem:[%s192 + $0x64] sm:$0xff]
      %v2137 = vld [vmem:[%s192 + $0x6c] sm:$0xff]
      %v2138 = vld [vmem:[%s192 + $0x74] sm:$0xff]
      %v2139 = vld [vmem:[%s192 + $0x7c] sm:$0xff]
      %v2140 = vld [vmem:[%s192 + $0x84] sm:$0xff]
      %v2141 = vld [vmem:[%s192 + $0x8c] sm:$0xff]
      %v2142 = vld [vmem:[%s192 + $0x94] sm:$0xff]
      %v2143 = vld [vmem:[%s192 + $0x9c] sm:$0xff]
      %v2144 = vld [vmem:[%s192 + $0xa4] sm:$0xff]
      %v2145 = vld [vmem:[%s192 + $0xac] sm:$0xff]
      %v2146 = vld [vmem:[%s192 + $0xb4] sm:$0xff]
      %v2147 = vld [vmem:[%s192 + $0xbc] sm:$0xff]
      %v2148 = vld [vmem:[%s192 + $0xc4] sm:$0xff]
      %v2149 = vld [vmem:[%s192 + $0xcc] sm:$0xff]
      %v2150 = vld [vmem:[%s192 + $0xd4] sm:$0xff]
      %v2151 = vld [vmem:[%s192 + $0xdc] sm:$0xff]
      %v2152 = vld [vmem:[%s192 + $0xe4] sm:$0xff]
      %v2153 = vld [vmem:[%s192 + $0xec] sm:$0xff]
      %v2154 = vld [vmem:[%s192 + $0xf4] sm:$0xff]
      %v2155 = vld [vmem:[%s192 + $0xfc] sm:$0xff]
      %v2156 = vld [vmem:[%s192 + $0x104] sm:$0xff]
      %v2157 = vld [vmem:[%s192 + $0x10c] sm:$0xff]
      %v2158 = vld [vmem:[%s192 + $0x114] sm:$0xff]
      %v2159 = vld [vmem:[%s192 + $0x11c] sm:$0xff]
      %v2160 = vld [vmem:[%s192 + $0x124] sm:$0xff]
      %v2161 = vld [vmem:[%s192 + $0x12c] sm:$0xff]
      %v2162 = vld [vmem:[%s192 + $0x134] sm:$0xff]
      %v2163 = vld [vmem:[%s192 + $0x13c] sm:$0x3f]
      %v2164 = vpack.c.bf16 %v2129, %v2128
      %v2165 = vpack.c.bf16 %v2131, %v2130
      %v2166 = vpack.c.bf16 %v2133, %v2132
      %v2167 = vpack.c.bf16 %v2135, %v2134
      %v2168 = vpack.c.bf16 %v2137, %v2136
      %v2169 = vpack.c.bf16 %v2139, %v2138
      %v2170 = vpack.c.bf16 %v2141, %v2140
      %v2171 = vpack.c.bf16 %v2143, %v2142
      %v2172 = vpack.c.bf16 %v2145, %v2144
      %v2173 = vpack.c.bf16 %v2147, %v2146
      %v2174 = vpack.c.bf16 %v2149, %v2148
      %v2175 = vpack.c.bf16 %v2151, %v2150
      %v2176 = vpack.c.bf16 %v2153, %v2152
      %v2177 = vpack.c.bf16 %v2155, %v2154
      %v2178 = vpack.c.bf16 %v2157, %v2156
      %v2179 = vpack.c.bf16 %v2159, %v2158
      %v2180 = vpack.c.bf16 %v2161, %v2160
      %v2181 = vpack.c.bf16 %v2163, %v2162
      %v2182 = vld [vmem:[%s1 + $0x8] sm:$0x6]
      %v2184 = vunpack.c.l.b16 %v2182
      %v2185 = vpack.c.b16 %v2184, %v2184
      %v2186 = vrot.slane %v2185, 1
      %v2188 = vsel %vm320, %v2164, 0
      %v2191 = vsel %vm320, %v2165, 0
      %v2194 = vsel %vm320, %v2166, 0
      %v2197 = vsel %vm320, %v2167, 0
      %v2200 = vsel %vm320, %v2168, 0
      %v2203 = vsel %vm320, %v2169, 0
      %v2206 = vsel %vm320, %v2170, 0
      %v2209 = vsel %vm320, %v2171, 0
      %v2212 = vsel %vm320, %v2172, 0
      %v2215 = vsel %vm320, %v2173, 0
      %v2218 = vsel %vm320, %v2174, 0
      %v2221 = vsel %vm320, %v2175, 0
      %v2224 = vsel %vm320, %v2176, 0
      %v2227 = vsel %vm320, %v2177, 0
      %v2230 = vsel %vm320, %v2178, 0
      %v2233 = vsel %vm320, %v2179, 0
      %v2236 = vsel %vm320, %v2180, 0
      %v2239 = vsel %vm320, %v2181, 0
      %v2242 = vand.u32 %v2186, %v378
      %2244 = vmatprep.subr.bf16.mxu0 0
      %2245 = vmatpush1.bf16.msra.mxu0 0
      %2246 = vmatprep.subr.bf16.mxu0 0
      %2247 = vmatpush1.bf16.msra.mxu0 0
      %2248 = vmatprep.subr.bf16.mxu0 0
      %2249 = vmatpush1.bf16.msra.mxu0 0
      %2250 = vmatprep.subr.bf16.mxu0 0
      %2251 = vmatpush1.bf16.msra.mxu0 0
      %2252 = vmatprep.subr.bf16.mxu0 0
      %2253 = vmatpush1.bf16.msra.mxu0 0
      %2254 = vmatprep.subr.bf16.mxu0 0
      %2255 = vmatpush1.bf16.msra.mxu0 0
      %2256 = vmatprep.subr.bf16.mxu0 0
      %2257 = vmatpush1.bf16.msra.mxu0 0
      %2258 = vmatprep.subr.bf16.mxu0 0
      %2259 = vmatpush1.bf16.msra.mxu0 %v2242
      %2260 = vmatprep.subr.bf16.mxu0 0
      %2261 = vmatpush2.bf16.msra.mxu0 0
      %2262 = vmatprep.subr.bf16.mxu0 0
      %2263 = vmatpush2.bf16.msra.mxu0 0
      %2264 = vmatprep.subr.bf16.mxu0 0
      %2265 = vmatpush2.bf16.msra.mxu0 0
      %2266 = vmatprep.subr.bf16.mxu0 0
      %2267 = vmatpush2.bf16.msra.mxu0 0
      %2268 = vmatprep.subr.bf16.mxu0 0
      %2269 = vmatpush2.bf16.msra.mxu0 0
      %2270 = vmatprep.subr.bf16.mxu0 0
      %2271 = vmatpush2.bf16.msra.mxu0 0
      %2272 = vmatprep.subr.bf16.mxu0 0
      %2273 = vmatpush2.bf16.msra.mxu0 0
      %2274 = vmatprep.subr.bf16.mxu0 0
      %2275 = vmatpush2.bf16.msra.mxu0 0
      %2276 = vmatprep.mubr.bf16.mxu0 0
      %2277 = vmatmul.mubr.bf16.gmra.mxu0 %v2188
      %v2278 = vpop.f32.mrf.mxu0
      %v2279 = vadd.f32 0.0, %v2278
      %v2280 = vpop.f32.mrf.mxu0
      %v2281 = vpop.f32.mrf.mxu0
      %v2282 = vadd.f32 0.0, %v2281
      %v2283 = vpop.f32.mrf.mxu0
      %2284 = vmatprep.mubr.bf16.mxu0 0
      %2285 = vmatmul.mubr.bf16.gmra.mxu0 %v2191
      %v2286 = vpop.f32.mrf.mxu0
      %v2287 = vadd.f32 0.0, %v2286
      %v2288 = vpop.f32.mrf.mxu0
      %v2289 = vpop.f32.mrf.mxu0
      %v2290 = vadd.f32 0.0, %v2289
      %v2291 = vpop.f32.mrf.mxu0
      %2292 = vmatprep.mubr.bf16.mxu0 0
      %2293 = vmatmul.mubr.bf16.gmra.mxu0 %v2194
      %v2294 = vpop.f32.mrf.mxu0
      %v2295 = vadd.f32 0.0, %v2294
      %v2296 = vpop.f32.mrf.mxu0
      %v2297 = vpop.f32.mrf.mxu0
      %v2298 = vadd.f32 0.0, %v2297
      %v2299 = vpop.f32.mrf.mxu0
      %2300 = vmatprep.mubr.bf16.mxu0 0
      %2301 = vmatmul.mubr.bf16.gmra.mxu0 %v2197
      %v2302 = vpop.f32.mrf.mxu0
      %v2303 = vadd.f32 0.0, %v2302
      %v2304 = vpop.f32.mrf.mxu0
      %v2305 = vpop.f32.mrf.mxu0
      %v2306 = vadd.f32 0.0, %v2305
      %v2307 = vpop.f32.mrf.mxu0
      %2308 = vmatprep.mubr.bf16.mxu0 0
      %2309 = vmatmul.mubr.bf16.gmra.mxu0 %v2200
      %v2310 = vpop.f32.mrf.mxu0
      %v2311 = vadd.f32 0.0, %v2310
      %v2312 = vpop.f32.mrf.mxu0
      %v2313 = vpop.f32.mrf.mxu0
      %v2314 = vadd.f32 0.0, %v2313
      %v2315 = vpop.f32.mrf.mxu0
      %2316 = vmatprep.mubr.bf16.mxu0 0
      %2317 = vmatmul.mubr.bf16.gmra.mxu0 %v2203
      %v2318 = vpop.f32.mrf.mxu0
      %v2319 = vadd.f32 0.0, %v2318
      %v2320 = vpop.f32.mrf.mxu0
      %v2321 = vpop.f32.mrf.mxu0
      %v2322 = vadd.f32 0.0, %v2321
      %v2323 = vpop.f32.mrf.mxu0
      %2324 = vmatprep.mubr.bf16.mxu0 0
      %2325 = vmatmul.mubr.bf16.gmra.mxu0 %v2206
      %v2326 = vpop.f32.mrf.mxu0
      %v2327 = vadd.f32 0.0, %v2326
      %v2328 = vpop.f32.mrf.mxu0
      %v2329 = vpop.f32.mrf.mxu0
      %v2330 = vadd.f32 0.0, %v2329
      %v2331 = vpop.f32.mrf.mxu0
      %2332 = vmatprep.mubr.bf16.mxu0 0
      %2333 = vmatmul.mubr.bf16.gmra.mxu0 %v2209
      %v2334 = vpop.f32.mrf.mxu0
      %v2335 = vadd.f32 0.0, %v2334
      %v2336 = vpop.f32.mrf.mxu0
      %v2337 = vpop.f32.mrf.mxu0
      %v2338 = vadd.f32 0.0, %v2337
      %v2339 = vpop.f32.mrf.mxu0
      %2340 = vmatprep.mubr.bf16.mxu0 0
      %2341 = vmatmul.mubr.bf16.gmra.mxu0 %v2212
      %v2342 = vpop.f32.mrf.mxu0
      %v2343 = vadd.f32 0.0, %v2342
      %v2344 = vpop.f32.mrf.mxu0
      %v2345 = vpop.f32.mrf.mxu0
      %v2346 = vadd.f32 0.0, %v2345
      %v2347 = vpop.f32.mrf.mxu0
      %2348 = vmatprep.mubr.bf16.mxu0 0
      %2349 = vmatmul.mubr.bf16.gmra.mxu0 %v2215
      %v2350 = vpop.f32.mrf.mxu0
      %v2351 = vadd.f32 0.0, %v2350
      %v2352 = vpop.f32.mrf.mxu0
      %v2353 = vpop.f32.mrf.mxu0
      %v2354 = vadd.f32 0.0, %v2353
      %v2355 = vpop.f32.mrf.mxu0
      %2356 = vmatprep.mubr.bf16.mxu0 0
      %2357 = vmatmul.mubr.bf16.gmra.mxu0 %v2218
      %v2358 = vpop.f32.mrf.mxu0
      %v2359 = vadd.f32 0.0, %v2358
      %v2360 = vpop.f32.mrf.mxu0
      %v2361 = vpop.f32.mrf.mxu0
      %v2362 = vadd.f32 0.0, %v2361
      %v2363 = vpop.f32.mrf.mxu0
      %2364 = vmatprep.mubr.bf16.mxu0 0
      %2365 = vmatmul.mubr.bf16.gmra.mxu0 %v2221
      %v2366 = vpop.f32.mrf.mxu0
      %v2367 = vadd.f32 0.0, %v2366
      %v2368 = vpop.f32.mrf.mxu0
      %v2369 = vpop.f32.mrf.mxu0
      %v2370 = vadd.f32 0.0, %v2369
      %v2371 = vpop.f32.mrf.mxu0
      %2372 = vmatprep.mubr.bf16.mxu0 0
      %2373 = vmatmul.mubr.bf16.gmra.mxu0 %v2224
      %v2374 = vpop.f32.mrf.mxu0
      %v2375 = vadd.f32 0.0, %v2374
      %v2376 = vpop.f32.mrf.mxu0
      %v2377 = vpop.f32.mrf.mxu0
      %v2378 = vadd.f32 0.0, %v2377
      %v2379 = vpop.f32.mrf.mxu0
      %2380 = vmatprep.mubr.bf16.mxu0 0
      %2381 = vmatmul.mubr.bf16.gmra.mxu0 %v2227
      %v2382 = vpop.f32.mrf.mxu0
      %v2383 = vadd.f32 0.0, %v2382
      %v2384 = vpop.f32.mrf.mxu0
      %v2385 = vpop.f32.mrf.mxu0
      %v2386 = vadd.f32 0.0, %v2385
      %v2387 = vpop.f32.mrf.mxu0
      %2388 = vmatprep.mubr.bf16.mxu0 0
      %2389 = vmatmul.mubr.bf16.gmra.mxu0 %v2230
      %v2390 = vpop.f32.mrf.mxu0
      %v2391 = vadd.f32 0.0, %v2390
      %v2392 = vpop.f32.mrf.mxu0
      %v2393 = vpop.f32.mrf.mxu0
      %v2394 = vadd.f32 0.0, %v2393
      %v2395 = vpop.f32.mrf.mxu0
      %2396 = vmatprep.mubr.bf16.mxu0 0
      %2397 = vmatmul.mubr.bf16.gmra.mxu0 %v2233
      %v2398 = vpop.f32.mrf.mxu0
      %v2399 = vadd.f32 0.0, %v2398
      %v2400 = vpop.f32.mrf.mxu0
      %v2401 = vpop.f32.mrf.mxu0
      %v2402 = vadd.f32 0.0, %v2401
      %v2403 = vpop.f32.mrf.mxu0
      %2404 = vmatprep.mubr.bf16.mxu0 0
      %2405 = vmatmul.mubr.bf16.gmra.mxu0 %v2236
      %v2406 = vpop.f32.mrf.mxu0
      %v2407 = vadd.f32 0.0, %v2406
      %v2408 = vpop.f32.mrf.mxu0
      %v2409 = vpop.f32.mrf.mxu0
      %v2410 = vadd.f32 0.0, %v2409
      %v2411 = vpop.f32.mrf.mxu0
      %2412 = vmatprep.mubr.bf16.mxu0 0
      %2413 = vmatmul.mubr.bf16.gmra.mxu0 %v2239
      %v2414 = vpop.f32.mrf.mxu0
      %v2415 = vadd.f32 0.0, %v2414
      %v2416 = vpop.f32.mrf.mxu0
      %v2417 = vpop.f32.mrf.mxu0
      %v2418 = vadd.f32 0.0, %v2417
      %v2419 = vpop.f32.mrf.mxu0
      %2420 = vdwg.mxu0
      %v2421 = vadd.f32 %v2092, %v2279
      %v2422 = vadd.f32 %v2093, %v2282
      %v2423 = vadd.f32 %v2094, %v2287
      %v2424 = vadd.f32 %v2095, %v2290
      %v2425 = vadd.f32 %v2096, %v2295
      %v2426 = vadd.f32 %v2097, %v2298
      %v2427 = vadd.f32 %v2098, %v2303
      %v2428 = vadd.f32 %v2099, %v2306
      %v2429 = vadd.f32 %v2100, %v2311
      %v2430 = vadd.f32 %v2101, %v2314
      %v2431 = vadd.f32 %v2102, %v2319
      %v2432 = vadd.f32 %v2103, %v2322
      %v2433 = vadd.f32 %v2104, %v2327
      %v2434 = vadd.f32 %v2105, %v2330
      %v2435 = vadd.f32 %v2106, %v2335
      %v2436 = vadd.f32 %v2107, %v2338
      %v2437 = vadd.f32 %v2108, %v2343
      %v2438 = vadd.f32 %v2109, %v2346
      %v2439 = vadd.f32 %v2110, %v2351
      %v2440 = vadd.f32 %v2111, %v2354
      %v2441 = vadd.f32 %v2112, %v2359
      %v2442 = vadd.f32 %v2113, %v2362
      %v2443 = vadd.f32 %v2114, %v2367
      %v2444 = vadd.f32 %v2115, %v2370
      %v2445 = vadd.f32 %v2116, %v2375
      %v2446 = vadd.f32 %v2117, %v2378
      %v2447 = vadd.f32 %v2118, %v2383
      %v2448 = vadd.f32 %v2119, %v2386
      %v2449 = vadd.f32 %v2120, %v2391
      %v2450 = vadd.f32 %v2121, %v2394
      %v2451 = vadd.f32 %v2122, %v2399
      %v2452 = vadd.f32 %v2123, %v2402
      %v2453 = vadd.f32 %v2124, %v2407
      %v2454 = vadd.f32 %v2125, %v2410
      %v2455 = vadd.f32 %v2126, %v2415
      %v2456 = vadd.f32 %v2127, %v2418
      %v2457 = vld [vmem:[%s192 + $0x25] sm:$0xff]
      %v2458 = vld [vmem:[%s192 + $0x2d] sm:$0xff]
      %v2459 = vld [vmem:[%s192 + $0x35] sm:$0xff]
      %v2460 = vld [vmem:[%s192 + $0x3d] sm:$0xff]
      %v2461 = vld [vmem:[%s192 + $0x45] sm:$0xff]
      %v2462 = vld [vmem:[%s192 + $0x4d] sm:$0xff]
      %v2463 = vld [vmem:[%s192 + $0x55] sm:$0xff]
      %v2464 = vld [vmem:[%s192 + $0x5d] sm:$0xff]
      %v2465 = vld [vmem:[%s192 + $0x65] sm:$0xff]
      %v2466 = vld [vmem:[%s192 + $0x6d] sm:$0xff]
      %v2467 = vld [vmem:[%s192 + $0x75] sm:$0xff]
      %v2468 = vld [vmem:[%s192 + $0x7d] sm:$0xff]
      %v2469 = vld [vmem:[%s192 + $0x85] sm:$0xff]
      %v2470 = vld [vmem:[%s192 + $0x8d] sm:$0xff]
      %v2471 = vld [vmem:[%s192 + $0x95] sm:$0xff]
      %v2472 = vld [vmem:[%s192 + $0x9d] sm:$0xff]
      %v2473 = vld [vmem:[%s192 + $0xa5] sm:$0xff]
      %v2474 = vld [vmem:[%s192 + $0xad] sm:$0xff]
      %v2475 = vld [vmem:[%s192 + $0xb5] sm:$0xff]
      %v2476 = vld [vmem:[%s192 + $0xbd] sm:$0xff]
      %v2477 = vld [vmem:[%s192 + $0xc5] sm:$0xff]
      %v2478 = vld [vmem:[%s192 + $0xcd] sm:$0xff]
      %v2479 = vld [vmem:[%s192 + $0xd5] sm:$0xff]
      %v2480 = vld [vmem:[%s192 + $0xdd] sm:$0xff]
      %v2481 = vld [vmem:[%s192 + $0xe5] sm:$0xff]
      %v2482 = vld [vmem:[%s192 + $0xed] sm:$0xff]
      %v2483 = vld [vmem:[%s192 + $0xf5] sm:$0xff]
      %v2484 = vld [vmem:[%s192 + $0xfd] sm:$0xff]
      %v2485 = vld [vmem:[%s192 + $0x105] sm:$0xff]
      %v2486 = vld [vmem:[%s192 + $0x10d] sm:$0xff]
      %v2487 = vld [vmem:[%s192 + $0x115] sm:$0xff]
      %v2488 = vld [vmem:[%s192 + $0x11d] sm:$0xff]
      %v2489 = vld [vmem:[%s192 + $0x125] sm:$0xff]
      %v2490 = vld [vmem:[%s192 + $0x12d] sm:$0xff]
      %v2491 = vld [vmem:[%s192 + $0x135] sm:$0xff]
      %v2492 = vld [vmem:[%s192 + $0x13d] sm:$0x3f]
      %v2493 = vpack.c.bf16 %v2458, %v2457
      %v2494 = vpack.c.bf16 %v2460, %v2459
      %v2495 = vpack.c.bf16 %v2462, %v2461
      %v2496 = vpack.c.bf16 %v2464, %v2463
      %v2497 = vpack.c.bf16 %v2466, %v2465
      %v2498 = vpack.c.bf16 %v2468, %v2467
      %v2499 = vpack.c.bf16 %v2470, %v2469
      %v2500 = vpack.c.bf16 %v2472, %v2471
      %v2501 = vpack.c.bf16 %v2474, %v2473
      %v2502 = vpack.c.bf16 %v2476, %v2475
      %v2503 = vpack.c.bf16 %v2478, %v2477
      %v2504 = vpack.c.bf16 %v2480, %v2479
      %v2505 = vpack.c.bf16 %v2482, %v2481
      %v2506 = vpack.c.bf16 %v2484, %v2483
      %v2507 = vpack.c.bf16 %v2486, %v2485
      %v2508 = vpack.c.bf16 %v2488, %v2487
      %v2509 = vpack.c.bf16 %v2490, %v2489
      %v2510 = vpack.c.bf16 %v2492, %v2491
      %v2511 = vld [vmem:[%s1 + $0x8] sm:$0xc]
      %v2513 = vunpack.c.l.b16 %v2511
      %v2514 = vpack.c.b16 %v2513, %v2513
      %v2516 = vshrl.u32 %v2514, 16
      %v2518 = vrot.slane %v2516, 2
      %v2519 = vshll.u32 %v2514, 16
      %v2521 = vrot.slane %v2519, 3
      %v2522 = vor.u32 %v2518, %v2521
      %v2524 = vsel %vm320, %v2493, 0
      %v2527 = vsel %vm320, %v2494, 0
      %v2530 = vsel %vm320, %v2495, 0
      %v2533 = vsel %vm320, %v2496, 0
      %v2536 = vsel %vm320, %v2497, 0
      %v2539 = vsel %vm320, %v2498, 0
      %v2542 = vsel %vm320, %v2499, 0
      %v2545 = vsel %vm320, %v2500, 0
      %v2548 = vsel %vm320, %v2501, 0
      %v2551 = vsel %vm320, %v2502, 0
      %v2554 = vsel %vm320, %v2503, 0
      %v2557 = vsel %vm320, %v2504, 0
      %v2560 = vsel %vm320, %v2505, 0
      %v2563 = vsel %vm320, %v2506, 0
      %v2566 = vsel %vm320, %v2507, 0
      %v2569 = vsel %vm320, %v2508, 0
      %v2572 = vsel %vm320, %v2509, 0
      %v2575 = vsel %vm320, %v2510, 0
      %v2578 = vand.u32 %v2522, %v378
      %2580 = vmatprep.subr.bf16.mxu0 0
      %2581 = vmatpush1.bf16.msra.mxu0 0
      %2582 = vmatprep.subr.bf16.mxu0 0
      %2583 = vmatpush1.bf16.msra.mxu0 0
      %2584 = vmatprep.subr.bf16.mxu0 0
      %2585 = vmatpush1.bf16.msra.mxu0 0
      %2586 = vmatprep.subr.bf16.mxu0 0
      %2587 = vmatpush1.bf16.msra.mxu0 0
      %2588 = vmatprep.subr.bf16.mxu0 0
      %2589 = vmatpush1.bf16.msra.mxu0 0
      %2590 = vmatprep.subr.bf16.mxu0 0
      %2591 = vmatpush1.bf16.msra.mxu0 0
      %2592 = vmatprep.subr.bf16.mxu0 0
      %2593 = vmatpush1.bf16.msra.mxu0 0
      %2594 = vmatprep.subr.bf16.mxu0 0
      %2595 = vmatpush1.bf16.msra.mxu0 %v2578
      %2596 = vmatprep.subr.bf16.mxu0 0
      %2597 = vmatpush2.bf16.msra.mxu0 0
      %2598 = vmatprep.subr.bf16.mxu0 0
      %2599 = vmatpush2.bf16.msra.mxu0 0
      %2600 = vmatprep.subr.bf16.mxu0 0
      %2601 = vmatpush2.bf16.msra.mxu0 0
      %2602 = vmatprep.subr.bf16.mxu0 0
      %2603 = vmatpush2.bf16.msra.mxu0 0
      %2604 = vmatprep.subr.bf16.mxu0 0
      %2605 = vmatpush2.bf16.msra.mxu0 0
      %2606 = vmatprep.subr.bf16.mxu0 0
      %2607 = vmatpush2.bf16.msra.mxu0 0
      %2608 = vmatprep.subr.bf16.mxu0 0
      %2609 = vmatpush2.bf16.msra.mxu0 0
      %2610 = vmatprep.subr.bf16.mxu0 0
      %2611 = vmatpush2.bf16.msra.mxu0 0
      %2612 = vmatprep.mubr.bf16.mxu0 0
      %2613 = vmatmul.mubr.bf16.gmra.mxu0 %v2524
      %v2614 = vpop.f32.mrf.mxu0
      %v2615 = vadd.f32 0.0, %v2614
      %v2616 = vpop.f32.mrf.mxu0
      %v2617 = vpop.f32.mrf.mxu0
      %v2618 = vadd.f32 0.0, %v2617
      %v2619 = vpop.f32.mrf.mxu0
      %2620 = vmatprep.mubr.bf16.mxu0 0
      %2621 = vmatmul.mubr.bf16.gmra.mxu0 %v2527
      %v2622 = vpop.f32.mrf.mxu0
      %v2623 = vadd.f32 0.0, %v2622
      %v2624 = vpop.f32.mrf.mxu0
      %v2625 = vpop.f32.mrf.mxu0
      %v2626 = vadd.f32 0.0, %v2625
      %v2627 = vpop.f32.mrf.mxu0
      %2628 = vmatprep.mubr.bf16.mxu0 0
      %2629 = vmatmul.mubr.bf16.gmra.mxu0 %v2530
      %v2630 = vpop.f32.mrf.mxu0
      %v2631 = vadd.f32 0.0, %v2630
      %v2632 = vpop.f32.mrf.mxu0
      %v2633 = vpop.f32.mrf.mxu0
      %v2634 = vadd.f32 0.0, %v2633
      %v2635 = vpop.f32.mrf.mxu0
      %2636 = vmatprep.mubr.bf16.mxu0 0
      %2637 = vmatmul.mubr.bf16.gmra.mxu0 %v2533
      %v2638 = vpop.f32.mrf.mxu0
      %v2639 = vadd.f32 0.0, %v2638
      %v2640 = vpop.f32.mrf.mxu0
      %v2641 = vpop.f32.mrf.mxu0
      %v2642 = vadd.f32 0.0, %v2641
      %v2643 = vpop.f32.mrf.mxu0
      %2644 = vmatprep.mubr.bf16.mxu0 0
      %2645 = vmatmul.mubr.bf16.gmra.mxu0 %v2536
      %v2646 = vpop.f32.mrf.mxu0
      %v2647 = vadd.f32 0.0, %v2646
      %v2648 = vpop.f32.mrf.mxu0
      %v2649 = vpop.f32.mrf.mxu0
      %v2650 = vadd.f32 0.0, %v2649
      %v2651 = vpop.f32.mrf.mxu0
      %2652 = vmatprep.mubr.bf16.mxu0 0
      %2653 = vmatmul.mubr.bf16.gmra.mxu0 %v2539
      %v2654 = vpop.f32.mrf.mxu0
      %v2655 = vadd.f32 0.0, %v2654
      %v2656 = vpop.f32.mrf.mxu0
      %v2657 = vpop.f32.mrf.mxu0
      %v2658 = vadd.f32 0.0, %v2657
      %v2659 = vpop.f32.mrf.mxu0
      %2660 = vmatprep.mubr.bf16.mxu0 0
      %2661 = vmatmul.mubr.bf16.gmra.mxu0 %v2542
      %v2662 = vpop.f32.mrf.mxu0
      %v2663 = vadd.f32 0.0, %v2662
      %v2664 = vpop.f32.mrf.mxu0
      %v2665 = vpop.f32.mrf.mxu0
      %v2666 = vadd.f32 0.0, %v2665
      %v2667 = vpop.f32.mrf.mxu0
      %2668 = vmatprep.mubr.bf16.mxu0 0
      %2669 = vmatmul.mubr.bf16.gmra.mxu0 %v2545
      %v2670 = vpop.f32.mrf.mxu0
      %v2671 = vadd.f32 0.0, %v2670
      %v2672 = vpop.f32.mrf.mxu0
      %v2673 = vpop.f32.mrf.mxu0
      %v2674 = vadd.f32 0.0, %v2673
      %v2675 = vpop.f32.mrf.mxu0
      %2676 = vmatprep.mubr.bf16.mxu0 0
      %2677 = vmatmul.mubr.bf16.gmra.mxu0 %v2548
      %v2678 = vpop.f32.mrf.mxu0
      %v2679 = vadd.f32 0.0, %v2678
      %v2680 = vpop.f32.mrf.mxu0
      %v2681 = vpop.f32.mrf.mxu0
      %v2682 = vadd.f32 0.0, %v2681
      %v2683 = vpop.f32.mrf.mxu0
      %2684 = vmatprep.mubr.bf16.mxu0 0
      %2685 = vmatmul.mubr.bf16.gmra.mxu0 %v2551
      %v2686 = vpop.f32.mrf.mxu0
      %v2687 = vadd.f32 0.0, %v2686
      %v2688 = vpop.f32.mrf.mxu0
      %v2689 = vpop.f32.mrf.mxu0
      %v2690 = vadd.f32 0.0, %v2689
      %v2691 = vpop.f32.mrf.mxu0
      %2692 = vmatprep.mubr.bf16.mxu0 0
      %2693 = vmatmul.mubr.bf16.gmra.mxu0 %v2554
      %v2694 = vpop.f32.mrf.mxu0
      %v2695 = vadd.f32 0.0, %v2694
      %v2696 = vpop.f32.mrf.mxu0
      %v2697 = vpop.f32.mrf.mxu0
      %v2698 = vadd.f32 0.0, %v2697
      %v2699 = vpop.f32.mrf.mxu0
      %2700 = vmatprep.mubr.bf16.mxu0 0
      %2701 = vmatmul.mubr.bf16.gmra.mxu0 %v2557
      %v2702 = vpop.f32.mrf.mxu0
      %v2703 = vadd.f32 0.0, %v2702
      %v2704 = vpop.f32.mrf.mxu0
      %v2705 = vpop.f32.mrf.mxu0
      %v2706 = vadd.f32 0.0, %v2705
      %v2707 = vpop.f32.mrf.mxu0
      %2708 = vmatprep.mubr.bf16.mxu0 0
      %2709 = vmatmul.mubr.bf16.gmra.mxu0 %v2560
      %v2710 = vpop.f32.mrf.mxu0
      %v2711 = vadd.f32 0.0, %v2710
      %v2712 = vpop.f32.mrf.mxu0
      %v2713 = vpop.f32.mrf.mxu0
      %v2714 = vadd.f32 0.0, %v2713
      %v2715 = vpop.f32.mrf.mxu0
      %2716 = vmatprep.mubr.bf16.mxu0 0
      %2717 = vmatmul.mubr.bf16.gmra.mxu0 %v2563
      %v2718 = vpop.f32.mrf.mxu0
      %v2719 = vadd.f32 0.0, %v2718
      %v2720 = vpop.f32.mrf.mxu0
      %v2721 = vpop.f32.mrf.mxu0
      %v2722 = vadd.f32 0.0, %v2721
      %v2723 = vpop.f32.mrf.mxu0
      %2724 = vmatprep.mubr.bf16.mxu0 0
      %2725 = vmatmul.mubr.bf16.gmra.mxu0 %v2566
      %v2726 = vpop.f32.mrf.mxu0
      %v2727 = vadd.f32 0.0, %v2726
      %v2728 = vpop.f32.mrf.mxu0
      %v2729 = vpop.f32.mrf.mxu0
      %v2730 = vadd.f32 0.0, %v2729
      %v2731 = vpop.f32.mrf.mxu0
      %2732 = vmatprep.mubr.bf16.mxu0 0
      %2733 = vmatmul.mubr.bf16.gmra.mxu0 %v2569
      %v2734 = vpop.f32.mrf.mxu0
      %v2735 = vadd.f32 0.0, %v2734
      %v2736 = vpop.f32.mrf.mxu0
      %v2737 = vpop.f32.mrf.mxu0
      %v2738 = vadd.f32 0.0, %v2737
      %v2739 = vpop.f32.mrf.mxu0
      %2740 = vmatprep.mubr.bf16.mxu0 0
      %2741 = vmatmul.mubr.bf16.gmra.mxu0 %v2572
      %v2742 = vpop.f32.mrf.mxu0
      %v2743 = vadd.f32 0.0, %v2742
      %v2744 = vpop.f32.mrf.mxu0
      %v2745 = vpop.f32.mrf.mxu0
      %v2746 = vadd.f32 0.0, %v2745
      %v2747 = vpop.f32.mrf.mxu0
      %2748 = vmatprep.mubr.bf16.mxu0 0
      %2749 = vmatmul.mubr.bf16.gmra.mxu0 %v2575
      %v2750 = vpop.f32.mrf.mxu0
      %v2751 = vadd.f32 0.0, %v2750
      %v2752 = vpop.f32.mrf.mxu0
      %v2753 = vpop.f32.mrf.mxu0
      %v2754 = vadd.f32 0.0, %v2753
      %v2755 = vpop.f32.mrf.mxu0
      %2756 = vdwg.mxu0
      %v2757 = vadd.f32 %v2421, %v2615
      %v2758 = vadd.f32 %v2422, %v2618
      %v2759 = vadd.f32 %v2423, %v2623
      %v2760 = vadd.f32 %v2424, %v2626
      %v2761 = vadd.f32 %v2425, %v2631
      %v2762 = vadd.f32 %v2426, %v2634
      %v2763 = vadd.f32 %v2427, %v2639
      %v2764 = vadd.f32 %v2428, %v2642
      %v2765 = vadd.f32 %v2429, %v2647
      %v2766 = vadd.f32 %v2430, %v2650
      %v2767 = vadd.f32 %v2431, %v2655
      %v2768 = vadd.f32 %v2432, %v2658
      %v2769 = vadd.f32 %v2433, %v2663
      %v2770 = vadd.f32 %v2434, %v2666
      %v2771 = vadd.f32 %v2435, %v2671
      %v2772 = vadd.f32 %v2436, %v2674
      %v2773 = vadd.f32 %v2437, %v2679
      %v2774 = vadd.f32 %v2438, %v2682
      %v2775 = vadd.f32 %v2439, %v2687
      %v2776 = vadd.f32 %v2440, %v2690
      %v2777 = vadd.f32 %v2441, %v2695
      %v2778 = vadd.f32 %v2442, %v2698
      %v2779 = vadd.f32 %v2443, %v2703
      %v2780 = vadd.f32 %v2444, %v2706
      %v2781 = vadd.f32 %v2445, %v2711
      %v2782 = vadd.f32 %v2446, %v2714
      %v2783 = vadd.f32 %v2447, %v2719
      %v2784 = vadd.f32 %v2448, %v2722
      %v2785 = vadd.f32 %v2449, %v2727
      %v2786 = vadd.f32 %v2450, %v2730
      %v2787 = vadd.f32 %v2451, %v2735
      %v2788 = vadd.f32 %v2452, %v2738
      %v2789 = vadd.f32 %v2453, %v2743
      %v2790 = vadd.f32 %v2454, %v2746
      %v2791 = vadd.f32 %v2455, %v2751
      %v2792 = vadd.f32 %v2456, %v2754
      %v2793 = vld [vmem:[%s192 + $0x26] sm:$0xff]
      %v2794 = vld [vmem:[%s192 + $0x2e] sm:$0xff]
      %v2795 = vld [vmem:[%s192 + $0x36] sm:$0xff]
      %v2796 = vld [vmem:[%s192 + $0x3e] sm:$0xff]
      %v2797 = vld [vmem:[%s192 + $0x46] sm:$0xff]
      %v2798 = vld [vmem:[%s192 + $0x4e] sm:$0xff]
      %v2799 = vld [vmem:[%s192 + $0x56] sm:$0xff]
      %v2800 = vld [vmem:[%s192 + $0x5e] sm:$0xff]
      %v2801 = vld [vmem:[%s192 + $0x66] sm:$0xff]
      %v2802 = vld [vmem:[%s192 + $0x6e] sm:$0xff]
      %v2803 = vld [vmem:[%s192 + $0x76] sm:$0xff]
      %v2804 = vld [vmem:[%s192 + $0x7e] sm:$0xff]
      %v2805 = vld [vmem:[%s192 + $0x86] sm:$0xff]
      %v2806 = vld [vmem:[%s192 + $0x8e] sm:$0xff]
      %v2807 = vld [vmem:[%s192 + $0x96] sm:$0xff]
      %v2808 = vld [vmem:[%s192 + $0x9e] sm:$0xff]
      %v2809 = vld [vmem:[%s192 + $0xa6] sm:$0xff]
      %v2810 = vld [vmem:[%s192 + $0xae] sm:$0xff]
      %v2811 = vld [vmem:[%s192 + $0xb6] sm:$0xff]
      %v2812 = vld [vmem:[%s192 + $0xbe] sm:$0xff]
      %v2813 = vld [vmem:[%s192 + $0xc6] sm:$0xff]
      %v2814 = vld [vmem:[%s192 + $0xce] sm:$0xff]
      %v2815 = vld [vmem:[%s192 + $0xd6] sm:$0xff]
      %v2816 = vld [vmem:[%s192 + $0xde] sm:$0xff]
      %v2817 = vld [vmem:[%s192 + $0xe6] sm:$0xff]
      %v2818 = vld [vmem:[%s192 + $0xee] sm:$0xff]
      %v2819 = vld [vmem:[%s192 + $0xf6] sm:$0xff]
      %v2820 = vld [vmem:[%s192 + $0xfe] sm:$0xff]
      %v2821 = vld [vmem:[%s192 + $0x106] sm:$0xff]
      %v2822 = vld [vmem:[%s192 + $0x10e] sm:$0xff]
      %v2823 = vld [vmem:[%s192 + $0x116] sm:$0xff]
      %v2824 = vld [vmem:[%s192 + $0x11e] sm:$0xff]
      %v2825 = vld [vmem:[%s192 + $0x126] sm:$0xff]
      %v2826 = vld [vmem:[%s192 + $0x12e] sm:$0xff]
      %v2827 = vld [vmem:[%s192 + $0x136] sm:$0xff]
      %v2828 = vld [vmem:[%s192 + $0x13e] sm:$0x3f]
      %v2829 = vpack.c.bf16 %v2794, %v2793
      %v2830 = vpack.c.bf16 %v2796, %v2795
      %v2831 = vpack.c.bf16 %v2798, %v2797
      %v2832 = vpack.c.bf16 %v2800, %v2799
      %v2833 = vpack.c.bf16 %v2802, %v2801
      %v2834 = vpack.c.bf16 %v2804, %v2803
      %v2835 = vpack.c.bf16 %v2806, %v2805
      %v2836 = vpack.c.bf16 %v2808, %v2807
      %v2837 = vpack.c.bf16 %v2810, %v2809
      %v2838 = vpack.c.bf16 %v2812, %v2811
      %v2839 = vpack.c.bf16 %v2814, %v2813
      %v2840 = vpack.c.bf16 %v2816, %v2815
      %v2841 = vpack.c.bf16 %v2818, %v2817
      %v2842 = vpack.c.bf16 %v2820, %v2819
      %v2843 = vpack.c.bf16 %v2822, %v2821
      %v2844 = vpack.c.bf16 %v2824, %v2823
      %v2845 = vpack.c.bf16 %v2826, %v2825
      %v2846 = vpack.c.bf16 %v2828, %v2827
      %v2847 = vld [vmem:[%s1 + $0xc] sm:$0x3]
      %v2849 = vsel %vm320, %v2829, 0
      %v2852 = vsel %vm320, %v2830, 0
      %v2855 = vsel %vm320, %v2831, 0
      %v2858 = vsel %vm320, %v2832, 0
      %v2861 = vsel %vm320, %v2833, 0
      %v2864 = vsel %vm320, %v2834, 0
      %v2867 = vsel %vm320, %v2835, 0
      %v2870 = vsel %vm320, %v2836, 0
      %v2873 = vsel %vm320, %v2837, 0
      %v2876 = vsel %vm320, %v2838, 0
      %v2879 = vsel %vm320, %v2839, 0
      %v2882 = vsel %vm320, %v2840, 0
      %v2885 = vsel %vm320, %v2841, 0
      %v2888 = vsel %vm320, %v2842, 0
      %v2891 = vsel %vm320, %v2843, 0
      %v2894 = vsel %vm320, %v2844, 0
      %v2897 = vsel %vm320, %v2845, 0
      %v2900 = vsel %vm320, %v2846, 0
      %v2903 = vand.u32 %v2847, %v378
      %2905 = vmatprep.subr.bf16.mxu0 0
      %2906 = vmatpush1.bf16.msra.mxu0 0
      %2907 = vmatprep.subr.bf16.mxu0 0
      %2908 = vmatpush1.bf16.msra.mxu0 0
      %2909 = vmatprep.subr.bf16.mxu0 0
      %2910 = vmatpush1.bf16.msra.mxu0 0
      %2911 = vmatprep.subr.bf16.mxu0 0
      %2912 = vmatpush1.bf16.msra.mxu0 0
      %2913 = vmatprep.subr.bf16.mxu0 0
      %2914 = vmatpush1.bf16.msra.mxu0 0
      %2915 = vmatprep.subr.bf16.mxu0 0
      %2916 = vmatpush1.bf16.msra.mxu0 0
      %2917 = vmatprep.subr.bf16.mxu0 0
      %2918 = vmatpush1.bf16.msra.mxu0 0
      %2919 = vmatprep.subr.bf16.mxu0 0
      %2920 = vmatpush1.bf16.msra.mxu0 %v2903
      %2921 = vmatprep.subr.bf16.mxu0 0
      %2922 = vmatpush2.bf16.msra.mxu0 0
      %2923 = vmatprep.subr.bf16.mxu0 0
      %2924 = vmatpush2.bf16.msra.mxu0 0
      %2925 = vmatprep.subr.bf16.mxu0 0
      %2926 = vmatpush2.bf16.msra.mxu0 0
      %2927 = vmatprep.subr.bf16.mxu0 0
      %2928 = vmatpush2.bf16.msra.mxu0 0
      %2929 = vmatprep.subr.bf16.mxu0 0
      %2930 = vmatpush2.bf16.msra.mxu0 0
      %2931 = vmatprep.subr.bf16.mxu0 0
      %2932 = vmatpush2.bf16.msra.mxu0 0
      %2933 = vmatprep.subr.bf16.mxu0 0
      %2934 = vmatpush2.bf16.msra.mxu0 0
      %2935 = vmatprep.subr.bf16.mxu0 0
      %2936 = vmatpush2.bf16.msra.mxu0 0
      %2937 = vmatprep.mubr.bf16.mxu0 0
      %2938 = vmatmul.mubr.bf16.gmra.mxu0 %v2849
      %v2939 = vpop.f32.mrf.mxu0
      %v2940 = vadd.f32 0.0, %v2939
      %v2941 = vpop.f32.mrf.mxu0
      %v2942 = vpop.f32.mrf.mxu0
      %v2943 = vadd.f32 0.0, %v2942
      %v2944 = vpop.f32.mrf.mxu0
      %2945 = vmatprep.mubr.bf16.mxu0 0
      %2946 = vmatmul.mubr.bf16.gmra.mxu0 %v2852
      %v2947 = vpop.f32.mrf.mxu0
      %v2948 = vadd.f32 0.0, %v2947
      %v2949 = vpop.f32.mrf.mxu0
      %v2950 = vpop.f32.mrf.mxu0
      %v2951 = vadd.f32 0.0, %v2950
      %v2952 = vpop.f32.mrf.mxu0
      %2953 = vmatprep.mubr.bf16.mxu0 0
      %2954 = vmatmul.mubr.bf16.gmra.mxu0 %v2855
      %v2955 = vpop.f32.mrf.mxu0
      %v2956 = vadd.f32 0.0, %v2955
      %v2957 = vpop.f32.mrf.mxu0
      %v2958 = vpop.f32.mrf.mxu0
      %v2959 = vadd.f32 0.0, %v2958
      %v2960 = vpop.f32.mrf.mxu0
      %2961 = vmatprep.mubr.bf16.mxu0 0
      %2962 = vmatmul.mubr.bf16.gmra.mxu0 %v2858
      %v2963 = vpop.f32.mrf.mxu0
      %v2964 = vadd.f32 0.0, %v2963
      %v2965 = vpop.f32.mrf.mxu0
      %v2966 = vpop.f32.mrf.mxu0
      %v2967 = vadd.f32 0.0, %v2966
      %v2968 = vpop.f32.mrf.mxu0
      %2969 = vmatprep.mubr.bf16.mxu0 0
      %2970 = vmatmul.mubr.bf16.gmra.mxu0 %v2861
      %v2971 = vpop.f32.mrf.mxu0
      %v2972 = vadd.f32 0.0, %v2971
      %v2973 = vpop.f32.mrf.mxu0
      %v2974 = vpop.f32.mrf.mxu0
      %v2975 = vadd.f32 0.0, %v2974
      %v2976 = vpop.f32.mrf.mxu0
      %2977 = vmatprep.mubr.bf16.mxu0 0
      %2978 = vmatmul.mubr.bf16.gmra.mxu0 %v2864
      %v2979 = vpop.f32.mrf.mxu0
      %v2980 = vadd.f32 0.0, %v2979
      %v2981 = vpop.f32.mrf.mxu0
      %v2982 = vpop.f32.mrf.mxu0
      %v2983 = vadd.f32 0.0, %v2982
      %v2984 = vpop.f32.mrf.mxu0
      %2985 = vmatprep.mubr.bf16.mxu0 0
      %2986 = vmatmul.mubr.bf16.gmra.mxu0 %v2867
      %v2987 = vpop.f32.mrf.mxu0
      %v2988 = vadd.f32 0.0, %v2987
      %v2989 = vpop.f32.mrf.mxu0
      %v2990 = vpop.f32.mrf.mxu0
      %v2991 = vadd.f32 0.0, %v2990
      %v2992 = vpop.f32.mrf.mxu0
      %2993 = vmatprep.mubr.bf16.mxu0 0
      %2994 = vmatmul.mubr.bf16.gmra.mxu0 %v2870
      %v2995 = vpop.f32.mrf.mxu0
      %v2996 = vadd.f32 0.0, %v2995
      %v2997 = vpop.f32.mrf.mxu0
      %v2998 = vpop.f32.mrf.mxu0
      %v2999 = vadd.f32 0.0, %v2998
      %v3000 = vpop.f32.mrf.mxu0
      %3001 = vmatprep.mubr.bf16.mxu0 0
      %3002 = vmatmul.mubr.bf16.gmra.mxu0 %v2873
      %v3003 = vpop.f32.mrf.mxu0
      %v3004 = vadd.f32 0.0, %v3003
      %v3005 = vpop.f32.mrf.mxu0
      %v3006 = vpop.f32.mrf.mxu0
      %v3007 = vadd.f32 0.0, %v3006
      %v3008 = vpop.f32.mrf.mxu0
      %3009 = vmatprep.mubr.bf16.mxu0 0
      %3010 = vmatmul.mubr.bf16.gmra.mxu0 %v2876
      %v3011 = vpop.f32.mrf.mxu0
      %v3012 = vadd.f32 0.0, %v3011
      %v3013 = vpop.f32.mrf.mxu0
      %v3014 = vpop.f32.mrf.mxu0
      %v3015 = vadd.f32 0.0, %v3014
      %v3016 = vpop.f32.mrf.mxu0
      %3017 = vmatprep.mubr.bf16.mxu0 0
      %3018 = vmatmul.mubr.bf16.gmra.mxu0 %v2879
      %v3019 = vpop.f32.mrf.mxu0
      %v3020 = vadd.f32 0.0, %v3019
      %v3021 = vpop.f32.mrf.mxu0
      %v3022 = vpop.f32.mrf.mxu0
      %v3023 = vadd.f32 0.0, %v3022
      %v3024 = vpop.f32.mrf.mxu0
      %3025 = vmatprep.mubr.bf16.mxu0 0
      %3026 = vmatmul.mubr.bf16.gmra.mxu0 %v2882
      %v3027 = vpop.f32.mrf.mxu0
      %v3028 = vadd.f32 0.0, %v3027
      %v3029 = vpop.f32.mrf.mxu0
      %v3030 = vpop.f32.mrf.mxu0
      %v3031 = vadd.f32 0.0, %v3030
      %v3032 = vpop.f32.mrf.mxu0
      %3033 = vmatprep.mubr.bf16.mxu0 0
      %3034 = vmatmul.mubr.bf16.gmra.mxu0 %v2885
      %v3035 = vpop.f32.mrf.mxu0
      %v3036 = vadd.f32 0.0, %v3035
      %v3037 = vpop.f32.mrf.mxu0
      %v3038 = vpop.f32.mrf.mxu0
      %v3039 = vadd.f32 0.0, %v3038
      %v3040 = vpop.f32.mrf.mxu0
      %3041 = vmatprep.mubr.bf16.mxu0 0
      %3042 = vmatmul.mubr.bf16.gmra.mxu0 %v2888
      %v3043 = vpop.f32.mrf.mxu0
      %v3044 = vadd.f32 0.0, %v3043
      %v3045 = vpop.f32.mrf.mxu0
      %v3046 = vpop.f32.mrf.mxu0
      %v3047 = vadd.f32 0.0, %v3046
      %v3048 = vpop.f32.mrf.mxu0
      %3049 = vmatprep.mubr.bf16.mxu0 0
      %3050 = vmatmul.mubr.bf16.gmra.mxu0 %v2891
      %v3051 = vpop.f32.mrf.mxu0
      %v3052 = vadd.f32 0.0, %v3051
      %v3053 = vpop.f32.mrf.mxu0
      %v3054 = vpop.f32.mrf.mxu0
      %v3055 = vadd.f32 0.0, %v3054
      %v3056 = vpop.f32.mrf.mxu0
      %3057 = vmatprep.mubr.bf16.mxu0 0
      %3058 = vmatmul.mubr.bf16.gmra.mxu0 %v2894
      %v3059 = vpop.f32.mrf.mxu0
      %v3060 = vadd.f32 0.0, %v3059
      %v3061 = vpop.f32.mrf.mxu0
      %v3062 = vpop.f32.mrf.mxu0
      %v3063 = vadd.f32 0.0, %v3062
      %v3064 = vpop.f32.mrf.mxu0
      %3065 = vmatprep.mubr.bf16.mxu0 0
      %3066 = vmatmul.mubr.bf16.gmra.mxu0 %v2897
      %v3067 = vpop.f32.mrf.mxu0
      %v3068 = vadd.f32 0.0, %v3067
      %v3069 = vpop.f32.mrf.mxu0
      %v3070 = vpop.f32.mrf.mxu0
      %v3071 = vadd.f32 0.0, %v3070
      %v3072 = vpop.f32.mrf.mxu0
      %3073 = vmatprep.mubr.bf16.mxu0 0
      %3074 = vmatmul.mubr.bf16.gmra.mxu0 %v2900
      %v3075 = vpop.f32.mrf.mxu0
      %v3076 = vadd.f32 0.0, %v3075
      %v3077 = vpop.f32.mrf.mxu0
      %v3078 = vpop.f32.mrf.mxu0
      %v3079 = vadd.f32 0.0, %v3078
      %v3080 = vpop.f32.mrf.mxu0
      %3081 = vdwg.mxu0
      %v3082 = vadd.f32 %v2757, %v2940
      %v3083 = vadd.f32 %v2758, %v2943
      %v3084 = vadd.f32 %v2759, %v2948
      %v3085 = vadd.f32 %v2760, %v2951
      %v3086 = vadd.f32 %v2761, %v2956
      %v3087 = vadd.f32 %v2762, %v2959
      %v3088 = vadd.f32 %v2763, %v2964
      %v3089 = vadd.f32 %v2764, %v2967
      %v3090 = vadd.f32 %v2765, %v2972
      %v3091 = vadd.f32 %v2766, %v2975
      %v3092 = vadd.f32 %v2767, %v2980
      %v3093 = vadd.f32 %v2768, %v2983
      %v3094 = vadd.f32 %v2769, %v2988
      %v3095 = vadd.f32 %v2770, %v2991
      %v3096 = vadd.f32 %v2771, %v2996
      %v3097 = vadd.f32 %v2772, %v2999
      %v3098 = vadd.f32 %v2773, %v3004
      %v3099 = vadd.f32 %v2774, %v3007
      %v3100 = vadd.f32 %v2775, %v3012
      %v3101 = vadd.f32 %v2776, %v3015
      %v3102 = vadd.f32 %v2777, %v3020
      %v3103 = vadd.f32 %v2778, %v3023
      %v3104 = vadd.f32 %v2779, %v3028
      %v3105 = vadd.f32 %v2780, %v3031
      %v3106 = vadd.f32 %v2781, %v3036
      %v3107 = vadd.f32 %v2782, %v3039
      %v3108 = vadd.f32 %v2783, %v3044
      %v3109 = vadd.f32 %v2784, %v3047
      %v3110 = vadd.f32 %v2785, %v3052
      %v3111 = vadd.f32 %v2786, %v3055
      %v3112 = vadd.f32 %v2787, %v3060
      %v3113 = vadd.f32 %v2788, %v3063
      %v3114 = vadd.f32 %v2789, %v3068
      %v3115 = vadd.f32 %v2790, %v3071
      %v3116 = vadd.f32 %v2791, %v3076
      %v3117 = vadd.f32 %v2792, %v3079
      %v3118 = vld [vmem:[%s2] sm:$0x1]
      %v3120 = vlaneseq
      %v3121 = vshrl.u32 %v3120, 7
      %v3122 = vsub.s32 0, %v3121
      %v3123 = vrot.slane %v3118, %v3122
      %v3125 = vmul.f32 %v3082, %v3123
      %v3126 = vmul.f32 %v3083, %v3123
      %v3127 = vmul.f32 %v3084, %v3123
      %v3128 = vmul.f32 %v3085, %v3123
      %v3129 = vmul.f32 %v3086, %v3123
      %v3130 = vmul.f32 %v3087, %v3123
      %v3131 = vmul.f32 %v3088, %v3123
      %v3132 = vmul.f32 %v3089, %v3123
      %v3133 = vmul.f32 %v3090, %v3123
      %v3134 = vmul.f32 %v3091, %v3123
      %v3135 = vmul.f32 %v3092, %v3123
      %v3136 = vmul.f32 %v3093, %v3123
      %v3137 = vmul.f32 %v3094, %v3123
      %v3138 = vmul.f32 %v3095, %v3123
      %v3139 = vmul.f32 %v3096, %v3123
      %v3140 = vmul.f32 %v3097, %v3123
      %v3141 = vmul.f32 %v3098, %v3123
      %v3142 = vmul.f32 %v3099, %v3123
      %v3143 = vmul.f32 %v3100, %v3123
      %v3144 = vmul.f32 %v3101, %v3123
      %v3145 = vmul.f32 %v3102, %v3123
      %v3146 = vmul.f32 %v3103, %v3123
      %v3147 = vmul.f32 %v3104, %v3123
      %v3148 = vmul.f32 %v3105, %v3123
      %v3149 = vmul.f32 %v3106, %v3123
      %v3150 = vmul.f32 %v3107, %v3123
      %v3151 = vmul.f32 %v3108, %v3123
      %v3152 = vmul.f32 %v3109, %v3123
      %v3153 = vmul.f32 %v3110, %v3123
      %v3154 = vmul.f32 %v3111, %v3123
      %v3155 = vmul.f32 %v3112, %v3123
      %v3156 = vmul.f32 %v3113, %v3123
      %v3157 = vmul.f32 %v3114, %v3123
      %v3158 = vmul.f32 %v3115, %v3123
      %v3159 = vmul.f32 %v3116, %v3123
      %v3160 = vmul.f32 %v3117, %v3123
      %v3161 = vld [vmem:[%s3] sm:$0x1]
      %v3163 = vlaneseq
      %v3164 = vshrl.u32 %v3163, 7
      %v3165 = vsub.s32 0, %v3164
      %v3166 = vrot.slane %v3161, %v3165
      %v3168 = vadd.f32 %v3125, %v3166
      %v3169 = vadd.f32 %v3126, %v3166
      %v3170 = vadd.f32 %v3127, %v3166
      %v3171 = vadd.f32 %v3128, %v3166
      %v3172 = vadd.f32 %v3129, %v3166
      %v3173 = vadd.f32 %v3130, %v3166
      %v3174 = vadd.f32 %v3131, %v3166
      %v3175 = vadd.f32 %v3132, %v3166
      %v3176 = vadd.f32 %v3133, %v3166
      %v3177 = vadd.f32 %v3134, %v3166
      %v3178 = vadd.f32 %v3135, %v3166
      %v3179 = vadd.f32 %v3136, %v3166
      %v3180 = vadd.f32 %v3137, %v3166
      %v3181 = vadd.f32 %v3138, %v3166
      %v3182 = vadd.f32 %v3139, %v3166
      %v3183 = vadd.f32 %v3140, %v3166
      %v3184 = vadd.f32 %v3141, %v3166
      %v3185 = vadd.f32 %v3142, %v3166
      %v3186 = vadd.f32 %v3143, %v3166
      %v3187 = vadd.f32 %v3144, %v3166
      %v3188 = vadd.f32 %v3145, %v3166
      %v3189 = vadd.f32 %v3146, %v3166
      %v3190 = vadd.f32 %v3147, %v3166
      %v3191 = vadd.f32 %v3148, %v3166
      %v3192 = vadd.f32 %v3149, %v3166
      %v3193 = vadd.f32 %v3150, %v3166
      %v3194 = vadd.f32 %v3151, %v3166
      %v3195 = vadd.f32 %v3152, %v3166
      %v3196 = vadd.f32 %v3153, %v3166
      %v3197 = vadd.f32 %v3154, %v3166
      %v3198 = vadd.f32 %v3155, %v3166
      %v3199 = vadd.f32 %v3156, %v3166
      %v3200 = vadd.f32 %v3157, %v3166
      %v3201 = vadd.f32 %v3158, %v3166
      %v3202 = vadd.f32 %v3159, %v3166
      %v3203 = vadd.f32 %v3160, %v3166
      %vm3204 = vcmask 97280
      %3205 = vst.msk [vmem:[%s197] sm:$0xff] %vm3204, %v3168
      %3206 = vst.msk [vmem:[%s197 + $0x8] sm:$0xff] %vm3204, %v3169
      %3207 = vst.msk [vmem:[%s197 + $0x10] sm:$0xff] %vm3204, %v3170
      %3208 = vst.msk [vmem:[%s197 + $0x18] sm:$0xff] %vm3204, %v3171
      %3209 = vst.msk [vmem:[%s197 + $0x20] sm:$0xff] %vm3204, %v3172
      %3210 = vst.msk [vmem:[%s197 + $0x28] sm:$0xff] %vm3204, %v3173
      %3211 = vst.msk [vmem:[%s197 + $0x30] sm:$0xff] %vm3204, %v3174
      %3212 = vst.msk [vmem:[%s197 + $0x38] sm:$0xff] %vm3204, %v3175
      %3213 = vst.msk [vmem:[%s197 + $0x40] sm:$0xff] %vm3204, %v3176
      %3214 = vst.msk [vmem:[%s197 + $0x48] sm:$0xff] %vm3204, %v3177
      %3215 = vst.msk [vmem:[%s197 + $0x50] sm:$0xff] %vm3204, %v3178
      %3216 = vst.msk [vmem:[%s197 + $0x58] sm:$0xff] %vm3204, %v3179
      %3217 = vst.msk [vmem:[%s197 + $0x60] sm:$0xff] %vm3204, %v3180
      %3218 = vst.msk [vmem:[%s197 + $0x68] sm:$0xff] %vm3204, %v3181
      %3219 = vst.msk [vmem:[%s197 + $0x70] sm:$0xff] %vm3204, %v3182
      %3220 = vst.msk [vmem:[%s197 + $0x78] sm:$0xff] %vm3204, %v3183
      %3221 = vst.msk [vmem:[%s197 + $0x80] sm:$0xff] %vm3204, %v3184
      %3222 = vst.msk [vmem:[%s197 + $0x88] sm:$0xff] %vm3204, %v3185
      %3223 = vst.msk [vmem:[%s197 + $0x90] sm:$0xff] %vm3204, %v3186
      %3224 = vst.msk [vmem:[%s197 + $0x98] sm:$0xff] %vm3204, %v3187
      %3225 = vst.msk [vmem:[%s197 + $0xa0] sm:$0xff] %vm3204, %v3188
      %3226 = vst.msk [vmem:[%s197 + $0xa8] sm:$0xff] %vm3204, %v3189
      %3227 = vst.msk [vmem:[%s197 + $0xb0] sm:$0xff] %vm3204, %v3190
      %3228 = vst.msk [vmem:[%s197 + $0xb8] sm:$0xff] %vm3204, %v3191
      %3229 = vst.msk [vmem:[%s197 + $0xc0] sm:$0xff] %vm3204, %v3192
      %3230 = vst.msk [vmem:[%s197 + $0xc8] sm:$0xff] %vm3204, %v3193
      %3231 = vst.msk [vmem:[%s197 + $0xd0] sm:$0xff] %vm3204, %v3194
      %3232 = vst.msk [vmem:[%s197 + $0xd8] sm:$0xff] %vm3204, %v3195
      %3233 = vst.msk [vmem:[%s197 + $0xe0] sm:$0xff] %vm3204, %v3196
      %3234 = vst.msk [vmem:[%s197 + $0xe8] sm:$0xff] %vm3204, %v3197
      %3235 = vst.msk [vmem:[%s197 + $0xf0] sm:$0xff] %vm3204, %v3198
      %3236 = vst.msk [vmem:[%s197 + $0xf8] sm:$0xff] %vm3204, %v3199
      %3237 = vst.msk [vmem:[%s197 + $0x100] sm:$0xff] %vm3204, %v3200
      %3238 = vst.msk [vmem:[%s197 + $0x108] sm:$0xff] %vm3204, %v3201
      %3239 = vst.msk [vmem:[%s197 + $0x110] sm:$0xff] %vm3204, %v3202
      %vm3240 = vcmask 95232
      %3241 = vst.msk [vmem:[%s197 + $0x118] sm:$0x3f] %vm3240, %v3203
      %p3242 = scmp.lt.s32.totalorder %s15, 1
      %s3243 = scalar_select %p3242, %s15, 1
      %s3244 = smul.addr %s3243, 36
      %s3245 = smul.addr %s3244, 8
      %s3246 = scalar_lea.vmem %s4, %s3245
      // Predicated region
      $region37: #{_lambda_.13} parent=35 // pred_check
        %p3247 = pneg %p122
      $region38: #{_lambda_.13} parent=35 // pred_check_branch
        %3249 = sbr.rel (%p3247) target = $region40
      $region39: #{_lambda_.13} parent=35 // pred_region
        _
      $region40: #{_lambda_.13} parent=35 // pred_fallthru
        _
    $region36: #{_lambda_.13} parent=5 // pred_fallthru
      _
    %p3250 = scmp.le.s32.totalorder 2, %s10
    // Predicated region
    $region41: #{_lambda_.13} parent=5 // pred_check
      %p3251 = pneg %p3250
    $region42: #{_lambda_.13} parent=5 // pred_check_branch
      %3253 = sbr.rel (%p3251) target = $region44
    $region43: #{_lambda_.13} parent=5 // pred_region
      %s3254 = ssub.s32 %s10, 2
      // Predicated region
      $region45: #{_lambda_.13} parent=43 // pred_check
        %p3255 = pneg %p128
      $region46: #{_lambda_.13} parent=43 // pred_check_branch
        %3257 = sbr.rel (%p3255) target = $region48
      $region47: #{_lambda_.13} parent=43 // pred_region
        %p3258 = scmp.lt.s32.totalorder %s16, 1
        %s3259 = scalar_select %p3258, %s16, 1
        %s3260 = smul.addr %s3259, 36
        %s3261 = smul.addr %s3260, 8
        %s3262 = scalar_lea.vmem %s4, %s3261
      $region48: #{_lambda_.13} parent=43 // pred_fallthru
        _
    $region44: #{_lambda_.13} parent=5 // pred_fallthru
      _
  $region6: #{_lambda_.13} parent=0 // loop_footer
    %s14 = sadd.s32 1, %s10
  $region7: #{_lambda_.13} parent=0 // loop_footer_branch
    %9 = sbr.rel target = $region3
  $region8: #{_lambda_.13} parent=0 // loop_exit
    _

// kernel: _lambda_.14
$region0: #{_lambda_.14}
  #allocation0 [shape = 'u32[]', space=smem, size = 0x4, offset = 0x4, fixed_abs, tag = 'smem constant byte address 0x4 - core index']
  #allocation1 [shape = 'u32[144,128]{1,0:T(1,128)}', space=vmem, size = 0x12000, scoped, tag = 'internal scratch']
  %s0 = inlined_call_operand.vmem [shape: f32[2,256,12], index: 0, kind: input, shape index: {}]
  %s1 = inlined_call_operand.vmem [shape: bf16[12,16], index: 1, kind: input, shape index: {}]
  %s2 = inlined_call_operand.vmem [shape: f32[1,16], index: 2, kind: input, shape index: {}]
  %s3 = inlined_call_operand.vmem [shape: f32[1,16], index: 3, kind: input, shape index: {}]
  %s4 = inlined_call_operand.vmem [shape: f32[2,256,16], index: 4, kind: output, shape index: {}]
  %s5 = sld [smem:[#allocation0]]
  $region49: #{_lambda_.14} parent=0
    _
  %s7 = ssub.s32 1, %s5
  %s8 = scalar_select 0, %s7, %s5
  loop: start=0, step=1, limit=4
  $region2: #{_lambda_.14} parent=0 // loop_pre_header
    _
  $region3: #{_lambda_.14} parent=0 // loop_header
    %s10 = sphi 0, %s14
    %p11 = scmp.ge.s32.totalorder %s10, 4
    %s20 = sphi 0, %s22
    %s23 = sphi 0, %s20
    %s24 = sphi 0, %s23
    %s40 = sphi 0, %s24
    %s44 = sphi 0, %s44
    %s46 = sphi 0, %s44
    %s47 = sphi 0, %s46
    %s61 = sphi 0, %s47
    %s65 = sphi 0, %s65
    %s67 = sphi 0, %s65
    %s68 = sphi 0, %s67
    %s82 = sphi 0, %s68
    %s86 = sphi 0, %s86
    %s88 = sphi 0, %s86
    %s89 = sphi 0, %s88
    %s103 = sphi 0, %s89
    %s109 = sphi 0, %s111
    %s112 = sphi 0, %s109
    %s113 = sphi 0, %s112
    %s129 = sphi 0, %s113
  $region4: #{_lambda_.14} parent=0 // loop_header_branch
    %13 = sbr.rel (%p11) target = $region8
  $region5: #{_lambda_.14} parent=0 // loop_body
    %s15 = ssub.s32 %s10, 1
    %s16 = ssub.s32 %s10, 2
    %s17 = sadd.s32 %s10, 1
    %s18 = ssub.s32 %s10, %s17
    %p19 = scmp.eq.s32.totalorder %s18, 0
    %s21 = sadd.s32 %s20, 1
    %s22 = scalar_select %p19, %s20, %s21
    %p25 = pneg %p19
    %p26 = scmp.eq.s32.totalorder %s10, 1
    %p27 = por %p25, %p26
    %p28 = scmp.ne.s32.totalorder %s20, %s23
    %p29 = scmp.eq.s32.totalorder %s10, 0
    %p30 = por %p28, %p29
    %p31 = scmp.ne.s32.totalorder %s20, %s23
    %p32 = scmp.eq.s32.totalorder %s15, 1
    %p33 = por %p31, %p32
    %p34 = scmp.ne.s32.totalorder %s23, %s24
    %p35 = scmp.eq.s32.totalorder %s15, 0
    %p36 = por %p34, %p35
    %p37 = scmp.ne.s32.totalorder %s23, %s24
    %p38 = scmp.eq.s32.totalorder %s16, 1
    %p39 = por %p37, %p38
    %p41 = scmp.ne.s32.totalorder %s24, %s40
    %p42 = scmp.eq.s32.totalorder %s16, 0
    %p43 = por %p41, %p42
    %s45 = sadd.s32 %s44, 1
    %p48 = scmp.eq.s32.totalorder %s10, 1
    %p49 = scmp.ne.s32.totalorder %s44, %s46
    %p50 = scmp.eq.s32.totalorder %s10, 0
    %p51 = por %p49, %p50
    %p52 = scmp.ne.s32.totalorder %s44, %s46
    %p53 = scmp.eq.s32.totalorder %s15, 1
    %p54 = por %p52, %p53
    %p55 = scmp.ne.s32.totalorder %s46, %s47
    %p56 = scmp.eq.s32.totalorder %s15, 0
    %p57 = por %p55, %p56
    %p58 = scmp.ne.s32.totalorder %s46, %s47
    %p59 = scmp.eq.s32.totalorder %s16, 1
    %p60 = por %p58, %p59
    %p62 = scmp.ne.s32.totalorder %s47, %s61
    %p63 = scmp.eq.s32.totalorder %s16, 0
    %p64 = por %p62, %p63
    %s66 = sadd.s32 %s65, 1
    %p69 = scmp.eq.s32.totalorder %s10, 1
    %p70 = scmp.ne.s32.totalorder %s65, %s67
    %p71 = scmp.eq.s32.totalorder %s10, 0
    %p72 = por %p70, %p71
    %p73 = scmp.ne.s32.totalorder %s65, %s67
    %p74 = scmp.eq.s32.totalorder %s15, 1
    %p75 = por %p73, %p74
    %p76 = scmp.ne.s32.totalorder %s67, %s68
    %p77 = scmp.eq.s32.totalorder %s15, 0
    %p78 = por %p76, %p77
    %p79 = scmp.ne.s32.totalorder %s67, %s68
    %p80 = scmp.eq.s32.totalorder %s16, 1
    %p81 = por %p79, %p80
    %p83 = scmp.ne.s32.totalorder %s68, %s82
    %p84 = scmp.eq.s32.totalorder %s16, 0
    %p85 = por %p83, %p84
    %s87 = sadd.s32 %s86, 1
    %p90 = scmp.eq.s32.totalorder %s10, 1
    %p91 = scmp.ne.s32.totalorder %s86, %s88
    %p92 = scmp.eq.s32.totalorder %s10, 0
    %p93 = por %p91, %p92
    %p94 = scmp.ne.s32.totalorder %s86, %s88
    %p95 = scmp.eq.s32.totalorder %s15, 1
    %p96 = por %p94, %p95
    %p97 = scmp.ne.s32.totalorder %s88, %s89
    %p98 = scmp.eq.s32.totalorder %s15, 0
    %p99 = por %p97, %p98
    %p100 = scmp.ne.s32.totalorder %s88, %s89
    %p101 = scmp.eq.s32.totalorder %s16, 1
    %p102 = por %p100, %p101
    %p104 = scmp.ne.s32.totalorder %s89, %s103
    %p105 = scmp.eq.s32.totalorder %s16, 0
    %p106 = por %p104, %p105
    %s107 = ssub.s32 %s10, %s17
    %p108 = scmp.eq.s32.totalorder %s107, 0
    %s110 = sadd.s32 %s109, 1
    %s111 = scalar_select %p108, %s109, %s110
    %p114 = pneg %p108
    %p115 = scmp.eq.s32.totalorder %s10, 1
    %p116 = por %p114, %p115
    %p117 = scmp.ne.s32.totalorder %s109, %s112
    %p118 = scmp.eq.s32.totalorder %s10, 0
    %p119 = por %p117, %p118
    %p120 = scmp.ne.s32.totalorder %s109, %s112
    %p121 = scmp.eq.s32.totalorder %s15, 1
    %p122 = por %p120, %p121
    %p123 = scmp.ne.s32.totalorder %s112, %s113
    %p124 = scmp.eq.s32.totalorder %s15, 0
    %p125 = por %p123, %p124
    %p126 = scmp.ne.s32.totalorder %s112, %s113
    %p127 = scmp.eq.s32.totalorder %s16, 1
    %p128 = por %p126, %p127
    %p130 = scmp.ne.s32.totalorder %s113, %s129
    %p131 = scmp.eq.s32.totalorder %s16, 0
    %p132 = por %p130, %p131
    %p133 = scmp.le.s32.totalorder 1, %s10
    %p134 = scmp.lt.s32.totalorder %s10, 3
    %p135 = pnand %p133, %p134
    %p136 = pneg %p135
    // Predicated region
    $region9: #{_lambda_.14} parent=5 // pred_check
      _
    $region10: #{_lambda_.14} parent=5 // pred_check_branch
      %138 = sbr.rel (%p135) target = $region12
    $region11: #{_lambda_.14} parent=5 // pred_region
      %s139 = ssub.s32 %s10, 1
      // Predicated region
      $region13: #{_lambda_.14} parent=11 // pred_check
        %p140 = pneg %p57
      $region14: #{_lambda_.14} parent=11 // pred_check_branch
        %142 = sbr.rel (%p140) target = $region16
      $region15: #{_lambda_.14} parent=11 // pred_region
        _
      $region16: #{_lambda_.14} parent=11 // pred_fallthru
        _
      // Predicated region
      $region17: #{_lambda_.14} parent=11 // pred_check
        %p143 = pneg %p78
      $region18: #{_lambda_.14} parent=11 // pred_check_branch
        %145 = sbr.rel (%p143) target = $region20
      $region19: #{_lambda_.14} parent=11 // pred_region
        _
      $region20: #{_lambda_.14} parent=11 // pred_fallthru
        _
      // Predicated region
      $region21: #{_lambda_.14} parent=11 // pred_check
        %p146 = pneg %p99
      $region22: #{_lambda_.14} parent=11 // pred_check_branch
        %148 = sbr.rel (%p146) target = $region24
      $region23: #{_lambda_.14} parent=11 // pred_region
        _
      $region24: #{_lambda_.14} parent=11 // pred_fallthru
        _
    $region12: #{_lambda_.14} parent=5 // pred_fallthru
      _
    %p149 = scmp.lt.s32.totalorder %s10, 2
    // Predicated region
    $region25: #{_lambda_.14} parent=5 // pred_check
      %p150 = pneg %p149
    $region26: #{_lambda_.14} parent=5 // pred_check_branch
      %152 = sbr.rel (%p150) target = $region28
    $region27: #{_lambda_.14} parent=5 // pred_region
      // Predicated region
      $region29: #{_lambda_.14} parent=27 // pred_check
        %p153 = pneg %p30
      $region30: #{_lambda_.14} parent=27 // pred_check_branch
        %155 = sbr.rel (%p153) target = $region32
      $region31: #{_lambda_.14} parent=27 // pred_region
        %p156 = scmp.lt.s32.totalorder %s10, 1
        %s157 = scalar_select %p156, %s10, 1
        %s158 = smul.addr %s157, 32
        %s159 = smul.addr %s158, 8
        %s160 = scalar_lea.vmem %s0, %s159
      $region32: #{_lambda_.14} parent=27 // pred_fallthru
        _
    $region28: #{_lambda_.14} parent=5 // pred_fallthru
      _
    %p161 = scmp.le.s32.totalorder 1, %s10
    %p162 = scmp.lt.s32.totalorder %s10, 3
    %p163 = pnand %p161, %p162
    %p164 = pneg %p163
    // Predicated region
    $region33: #{_lambda_.14} parent=5 // pred_check
      _
    $region34: #{_lambda_.14} parent=5 // pred_check_branch
      %166 = sbr.rel (%p163) target = $region36
    $region35: #{_lambda_.14} parent=5 // pred_region
      %s167 = ssub.s32 %s10, 1
      %p168 = scmp.lt.s32.totalorder %s15, 1
      %s169 = scalar_select %p168, %s15, 1
      %s170 = smul.addr %s169, 32
      %s171 = smul.addr %s170, 8
      %s172 = scalar_lea.vmem %s0, %s171
      %p173 = pneg %p36
      %p174 = pneg %p33
      %p175 = pneg %p57
      %p176 = pneg %p54
      %p177 = pneg %p78
      %p178 = pneg %p75
      %p179 = pneg %p99
      %p180 = pneg %p96
      %p181 = pneg %p125
      %p182 = pneg %p122
      %p183 = scmp.lt.s32.totalorder %s15, 1
      %s184 = scalar_select %p183, %s15, 1
      %s185 = smul.addr %s184, 32
      %s186 = smul.addr %s185, 8
      %s187 = scalar_lea.vmem %s4, %s186
      %p188 = scmp.lt.s32.totalorder %s15, 1
      %s189 = scalar_select %p188, %s15, 1
      %s190 = smul.addr %s189, 32
      %s191 = smul.addr %s190, 8
      %s192 = scalar_lea.vmem %s0, %s191
      %p193 = scmp.lt.s32.totalorder %s15, 1
      %s194 = scalar_select %p193, %s15, 1
      %s195 = smul.addr %s194, 32
      %s196 = smul.addr %s195, 8
      %s197 = scalar_lea.vmem %s4, %s196
      %v199 = vld [vmem:[%s192] sm:$0xff]
      %v200 = vld [vmem:[%s192 + $0x8] sm:$0xff]
      %v201 = vld [vmem:[%s192 + $0x10] sm:$0xff]
      %v202 = vld [vmem:[%s192 + $0x18] sm:$0xff]
      %v203 = vld [vmem:[%s192 + $0x20] sm:$0xff]
      %v204 = vld [vmem:[%s192 + $0x28] sm:$0xff]
      %v205 = vld [vmem:[%s192 + $0x30] sm:$0xff]
      %v206 = vld [vmem:[%s192 + $0x38] sm:$0xff]
      %v207 = vld [vmem:[%s192 + $0x40] sm:$0xff]
      %v208 = vld [vmem:[%s192 + $0x48] sm:$0xff]
      %v209 = vld [vmem:[%s192 + $0x50] sm:$0xff]
      %v210 = vld [vmem:[%s192 + $0x58] sm:$0xff]
      %v211 = vld [vmem:[%s192 + $0x60] sm:$0xff]
      %v212 = vld [vmem:[%s192 + $0x68] sm:$0xff]
      %v213 = vld [vmem:[%s192 + $0x70] sm:$0xff]
      %v214 = vld [vmem:[%s192 + $0x78] sm:$0xff]
      %v215 = vld [vmem:[%s192 + $0x80] sm:$0xff]
      %v216 = vld [vmem:[%s192 + $0x88] sm:$0xff]
      %v217 = vld [vmem:[%s192 + $0x90] sm:$0xff]
      %v218 = vld [vmem:[%s192 + $0x98] sm:$0xff]
      %v219 = vld [vmem:[%s192 + $0xa0] sm:$0xff]
      %v220 = vld [vmem:[%s192 + $0xa8] sm:$0xff]
      %v221 = vld [vmem:[%s192 + $0xb0] sm:$0xff]
      %v222 = vld [vmem:[%s192 + $0xb8] sm:$0xff]
      %v223 = vld [vmem:[%s192 + $0xc0] sm:$0xff]
      %v224 = vld [vmem:[%s192 + $0xc8] sm:$0xff]
      %v225 = vld [vmem:[%s192 + $0xd0] sm:$0xff]
      %v226 = vld [vmem:[%s192 + $0xd8] sm:$0xff]
      %v227 = vld [vmem:[%s192 + $0xe0] sm:$0xff]
      %v228 = vld [vmem:[%s192 + $0xe8] sm:$0xff]
      %v229 = vld [vmem:[%s192 + $0xf0] sm:$0xff]
      %v230 = vld [vmem:[%s192 + $0xf8] sm:$0xff]
      %v231 = vmax.f32 %v199, 0.0
      %v232 = vmax.f32 %v200, 0.0
      %v233 = vmax.f32 %v201, 0.0
      %v234 = vmax.f32 %v202, 0.0
      %v235 = vmax.f32 %v203, 0.0
      %v236 = vmax.f32 %v204, 0.0
      %v237 = vmax.f32 %v205, 0.0
      %v238 = vmax.f32 %v206, 0.0
      %v239 = vmax.f32 %v207, 0.0
      %v240 = vmax.f32 %v208, 0.0
      %v241 = vmax.f32 %v209, 0.0
      %v242 = vmax.f32 %v210, 0.0
      %v243 = vmax.f32 %v211, 0.0
      %v244 = vmax.f32 %v212, 0.0
      %v245 = vmax.f32 %v213, 0.0
      %v246 = vmax.f32 %v214, 0.0
      %v247 = vmax.f32 %v215, 0.0
      %v248 = vmax.f32 %v216, 0.0
      %v249 = vmax.f32 %v217, 0.0
      %v250 = vmax.f32 %v218, 0.0
      %v251 = vmax.f32 %v219, 0.0
      %v252 = vmax.f32 %v220, 0.0
      %v253 = vmax.f32 %v221, 0.0
      %v254 = vmax.f32 %v222, 0.0
      %v255 = vmax.f32 %v223, 0.0
      %v256 = vmax.f32 %v224, 0.0
      %v257 = vmax.f32 %v225, 0.0
      %v258 = vmax.f32 %v226, 0.0
      %v259 = vmax.f32 %v227, 0.0
      %v260 = vmax.f32 %v228, 0.0
      %v261 = vmax.f32 %v229, 0.0
      %v262 = vmax.f32 %v230, 0.0
      %v263 = vpack.c.bf16 %v232, %v231
      %v264 = vpack.c.bf16 %v234, %v233
      %v265 = vpack.c.bf16 %v236, %v235
      %v266 = vpack.c.bf16 %v238, %v237
      %v267 = vpack.c.bf16 %v240, %v239
      %v268 = vpack.c.bf16 %v242, %v241
      %v269 = vpack.c.bf16 %v244, %v243
      %v270 = vpack.c.bf16 %v246, %v245
      %v271 = vpack.c.bf16 %v248, %v247
      %v272 = vpack.c.bf16 %v250, %v249
      %v273 = vpack.c.bf16 %v252, %v251
      %v274 = vpack.c.bf16 %v254, %v253
      %v275 = vpack.c.bf16 %v256, %v255
      %v276 = vpack.c.bf16 %v258, %v257
      %v277 = vpack.c.bf16 %v260, %v259
      %v278 = vpack.c.bf16 %v262, %v261
      %v279 = vld [vmem:[%s1] sm:$0xf]
      %v280 = vld [vmem:[%s1 + $0x4] sm:$0x3]
      %v283 = vunpack.c.l.b16 %v279
      %v284 = vunpack.c.l.b16 %v280
      %v285 = vpack.c.b16 %v284, %v283
      %vm286 = vcmask 97280
      %v288 = vsel %vm286, %v263, 0
      %v291 = vsel %vm286, %v264, 0
      %v294 = vsel %vm286, %v265, 0
      %v297 = vsel %vm286, %v266, 0
      %v300 = vsel %vm286, %v267, 0
      %v303 = vsel %vm286, %v268, 0
      %v306 = vsel %vm286, %v269, 0
      %v309 = vsel %vm286, %v270, 0
      %v312 = vsel %vm286, %v271, 0
      %v315 = vsel %vm286, %v272, 0
      %v318 = vsel %vm286, %v273, 0
      %v321 = vsel %vm286, %v274, 0
      %v324 = vsel %vm286, %v275, 0
      %v327 = vsel %vm286, %v276, 0
      %v330 = vsel %vm286, %v277, 0
      %v333 = vsel %vm286, %v278, 0
      %vm335 = vcmask 1045504
      %v337 = vsel %vm335, %v285, 0
      %339 = vmatprep.subr.bf16.mxu0 0
      %340 = vmatpush1.bf16.msra.mxu0 0
      %341 = vmatprep.subr.bf16.mxu0 0
      %342 = vmatpush1.bf16.msra.mxu0 0
      %343 = vmatprep.subr.bf16.mxu0 0
      %344 = vmatpush1.bf16.msra.mxu0 0
      %345 = vmatprep.subr.bf16.mxu0 0
      %346 = vmatpush1.bf16.msra.mxu0 0
      %347 = vmatprep.subr.bf16.mxu0 0
      %348 = vmatpush1.bf16.msra.mxu0 0
      %349 = vmatprep.subr.bf16.mxu0 0
      %350 = vmatpush1.bf16.msra.mxu0 0
      %351 = vmatprep.subr.bf16.mxu0 0
      %352 = vmatpush1.bf16.msra.mxu0 0
      %353 = vmatprep.subr.bf16.mxu0 0
      %354 = vmatpush1.bf16.msra.mxu0 %v337
      %355 = vmatprep.subr.bf16.mxu0 0
      %356 = vmatpush2.bf16.msra.mxu0 0
      %357 = vmatprep.subr.bf16.mxu0 0
      %358 = vmatpush2.bf16.msra.mxu0 0
      %359 = vmatprep.subr.bf16.mxu0 0
      %360 = vmatpush2.bf16.msra.mxu0 0
      %361 = vmatprep.subr.bf16.mxu0 0
      %362 = vmatpush2.bf16.msra.mxu0 0
      %363 = vmatprep.subr.bf16.mxu0 0
      %364 = vmatpush2.bf16.msra.mxu0 0
      %365 = vmatprep.subr.bf16.mxu0 0
      %366 = vmatpush2.bf16.msra.mxu0 0
      %367 = vmatprep.subr.bf16.mxu0 0
      %368 = vmatpush2.bf16.msra.mxu0 0
      %369 = vmatprep.subr.bf16.mxu0 0
      %370 = vmatpush2.bf16.msra.mxu0 0
      %371 = vmatprep.mubr.bf16.mxu0 0
      %372 = vmatmul.mubr.bf16.gmra.mxu0 %v288
      %v373 = vpop.f32.mrf.mxu0
      %v374 = vadd.f32 0.0, %v373
      %v375 = vpop.f32.mrf.mxu0
      %v376 = vpop.f32.mrf.mxu0
      %v377 = vadd.f32 0.0, %v376
      %v378 = vpop.f32.mrf.mxu0
      %379 = vmatprep.mubr.bf16.mxu0 0
      %380 = vmatmul.mubr.bf16.gmra.mxu0 %v291
      %v381 = vpop.f32.mrf.mxu0
      %v382 = vadd.f32 0.0, %v381
      %v383 = vpop.f32.mrf.mxu0
      %v384 = vpop.f32.mrf.mxu0
      %v385 = vadd.f32 0.0, %v384
      %v386 = vpop.f32.mrf.mxu0
      %387 = vmatprep.mubr.bf16.mxu0 0
      %388 = vmatmul.mubr.bf16.gmra.mxu0 %v294
      %v389 = vpop.f32.mrf.mxu0
      %v390 = vadd.f32 0.0, %v389
      %v391 = vpop.f32.mrf.mxu0
      %v392 = vpop.f32.mrf.mxu0
      %v393 = vadd.f32 0.0, %v392
      %v394 = vpop.f32.mrf.mxu0
      %395 = vmatprep.mubr.bf16.mxu0 0
      %396 = vmatmul.mubr.bf16.gmra.mxu0 %v297
      %v397 = vpop.f32.mrf.mxu0
      %v398 = vadd.f32 0.0, %v397
      %v399 = vpop.f32.mrf.mxu0
      %v400 = vpop.f32.mrf.mxu0
      %v401 = vadd.f32 0.0, %v400
      %v402 = vpop.f32.mrf.mxu0
      %403 = vmatprep.mubr.bf16.mxu0 0
      %404 = vmatmul.mubr.bf16.gmra.mxu0 %v300
      %v405 = vpop.f32.mrf.mxu0
      %v406 = vadd.f32 0.0, %v405
      %v407 = vpop.f32.mrf.mxu0
      %v408 = vpop.f32.mrf.mxu0
      %v409 = vadd.f32 0.0, %v408
      %v410 = vpop.f32.mrf.mxu0
      %411 = vmatprep.mubr.bf16.mxu0 0
      %412 = vmatmul.mubr.bf16.gmra.mxu0 %v303
      %v413 = vpop.f32.mrf.mxu0
      %v414 = vadd.f32 0.0, %v413
      %v415 = vpop.f32.mrf.mxu0
      %v416 = vpop.f32.mrf.mxu0
      %v417 = vadd.f32 0.0, %v416
      %v418 = vpop.f32.mrf.mxu0
      %419 = vmatprep.mubr.bf16.mxu0 0
      %420 = vmatmul.mubr.bf16.gmra.mxu0 %v306
      %v421 = vpop.f32.mrf.mxu0
      %v422 = vadd.f32 0.0, %v421
      %v423 = vpop.f32.mrf.mxu0
      %v424 = vpop.f32.mrf.mxu0
      %v425 = vadd.f32 0.0, %v424
      %v426 = vpop.f32.mrf.mxu0
      %427 = vmatprep.mubr.bf16.mxu0 0
      %428 = vmatmul.mubr.bf16.gmra.mxu0 %v309
      %v429 = vpop.f32.mrf.mxu0
      %v430 = vadd.f32 0.0, %v429
      %v431 = vpop.f32.mrf.mxu0
      %v432 = vpop.f32.mrf.mxu0
      %v433 = vadd.f32 0.0, %v432
      %v434 = vpop.f32.mrf.mxu0
      %435 = vmatprep.mubr.bf16.mxu0 0
      %436 = vmatmul.mubr.bf16.gmra.mxu0 %v312
      %v437 = vpop.f32.mrf.mxu0
      %v438 = vadd.f32 0.0, %v437
      %v439 = vpop.f32.mrf.mxu0
      %v440 = vpop.f32.mrf.mxu0
      %v441 = vadd.f32 0.0, %v440
      %v442 = vpop.f32.mrf.mxu0
      %443 = vmatprep.mubr.bf16.mxu0 0
      %444 = vmatmul.mubr.bf16.gmra.mxu0 %v315
      %v445 = vpop.f32.mrf.mxu0
      %v446 = vadd.f32 0.0, %v445
      %v447 = vpop.f32.mrf.mxu0
      %v448 = vpop.f32.mrf.mxu0
      %v449 = vadd.f32 0.0, %v448
      %v450 = vpop.f32.mrf.mxu0
      %451 = vmatprep.mubr.bf16.mxu0 0
      %452 = vmatmul.mubr.bf16.gmra.mxu0 %v318
      %v453 = vpop.f32.mrf.mxu0
      %v454 = vadd.f32 0.0, %v453
      %v455 = vpop.f32.mrf.mxu0
      %v456 = vpop.f32.mrf.mxu0
      %v457 = vadd.f32 0.0, %v456
      %v458 = vpop.f32.mrf.mxu0
      %459 = vmatprep.mubr.bf16.mxu0 0
      %460 = vmatmul.mubr.bf16.gmra.mxu0 %v321
      %v461 = vpop.f32.mrf.mxu0
      %v462 = vadd.f32 0.0, %v461
      %v463 = vpop.f32.mrf.mxu0
      %v464 = vpop.f32.mrf.mxu0
      %v465 = vadd.f32 0.0, %v464
      %v466 = vpop.f32.mrf.mxu0
      %467 = vmatprep.mubr.bf16.mxu0 0
      %468 = vmatmul.mubr.bf16.gmra.mxu0 %v324
      %v469 = vpop.f32.mrf.mxu0
      %v470 = vadd.f32 0.0, %v469
      %v471 = vpop.f32.mrf.mxu0
      %v472 = vpop.f32.mrf.mxu0
      %v473 = vadd.f32 0.0, %v472
      %v474 = vpop.f32.mrf.mxu0
      %475 = vmatprep.mubr.bf16.mxu0 0
      %476 = vmatmul.mubr.bf16.gmra.mxu0 %v327
      %v477 = vpop.f32.mrf.mxu0
      %v478 = vadd.f32 0.0, %v477
      %v479 = vpop.f32.mrf.mxu0
      %v480 = vpop.f32.mrf.mxu0
      %v481 = vadd.f32 0.0, %v480
      %v482 = vpop.f32.mrf.mxu0
      %483 = vmatprep.mubr.bf16.mxu0 0
      %484 = vmatmul.mubr.bf16.gmra.mxu0 %v330
      %v485 = vpop.f32.mrf.mxu0
      %v486 = vadd.f32 0.0, %v485
      %v487 = vpop.f32.mrf.mxu0
      %v488 = vpop.f32.mrf.mxu0
      %v489 = vadd.f32 0.0, %v488
      %v490 = vpop.f32.mrf.mxu0
      %491 = vmatprep.mubr.bf16.mxu0 0
      %492 = vmatmul.mubr.bf16.gmra.mxu0 %v333
      %v493 = vpop.f32.mrf.mxu0
      %v494 = vadd.f32 0.0, %v493
      %v495 = vpop.f32.mrf.mxu0
      %v496 = vpop.f32.mrf.mxu0
      %v497 = vadd.f32 0.0, %v496
      %v498 = vpop.f32.mrf.mxu0
      %499 = vdwg.mxu0
      %v500 = vld [vmem:[%s2] sm:$0x1]
      %v502 = vlaneseq
      %v503 = vshrl.u32 %v502, 7
      %v504 = vsub.s32 0, %v503
      %v505 = vrot.slane %v500, %v504
      %v507 = vmul.f32 %v374, %v505
      %v508 = vmul.f32 %v377, %v505
      %v509 = vmul.f32 %v382, %v505
      %v510 = vmul.f32 %v385, %v505
      %v511 = vmul.f32 %v390, %v505
      %v512 = vmul.f32 %v393, %v505
      %v513 = vmul.f32 %v398, %v505
      %v514 = vmul.f32 %v401, %v505
      %v515 = vmul.f32 %v406, %v505
      %v516 = vmul.f32 %v409, %v505
      %v517 = vmul.f32 %v414, %v505
      %v518 = vmul.f32 %v417, %v505
      %v519 = vmul.f32 %v422, %v505
      %v520 = vmul.f32 %v425, %v505
      %v521 = vmul.f32 %v430, %v505
      %v522 = vmul.f32 %v433, %v505
      %v523 = vmul.f32 %v438, %v505
      %v524 = vmul.f32 %v441, %v505
      %v525 = vmul.f32 %v446, %v505
      %v526 = vmul.f32 %v449, %v505
      %v527 = vmul.f32 %v454, %v505
      %v528 = vmul.f32 %v457, %v505
      %v529 = vmul.f32 %v462, %v505
      %v530 = vmul.f32 %v465, %v505
      %v531 = vmul.f32 %v470, %v505
      %v532 = vmul.f32 %v473, %v505
      %v533 = vmul.f32 %v478, %v505
      %v534 = vmul.f32 %v481, %v505
      %v535 = vmul.f32 %v486, %v505
      %v536 = vmul.f32 %v489, %v505
      %v537 = vmul.f32 %v494, %v505
      %v538 = vmul.f32 %v497, %v505
      %v539 = vld [vmem:[%s3] sm:$0x1]
      %v541 = vlaneseq
      %v542 = vshrl.u32 %v541, 7
      %v543 = vsub.s32 0, %v542
      %v544 = vrot.slane %v539, %v543
      %v546 = vadd.f32 %v507, %v544
      %v547 = vadd.f32 %v508, %v544
      %v548 = vadd.f32 %v509, %v544
      %v549 = vadd.f32 %v510, %v544
      %v550 = vadd.f32 %v511, %v544
      %v551 = vadd.f32 %v512, %v544
      %v552 = vadd.f32 %v513, %v544
      %v553 = vadd.f32 %v514, %v544
      %v554 = vadd.f32 %v515, %v544
      %v555 = vadd.f32 %v516, %v544
      %v556 = vadd.f32 %v517, %v544
      %v557 = vadd.f32 %v518, %v544
      %v558 = vadd.f32 %v519, %v544
      %v559 = vadd.f32 %v520, %v544
      %v560 = vadd.f32 %v521, %v544
      %v561 = vadd.f32 %v522, %v544
      %v562 = vadd.f32 %v523, %v544
      %v563 = vadd.f32 %v524, %v544
      %v564 = vadd.f32 %v525, %v544
      %v565 = vadd.f32 %v526, %v544
      %v566 = vadd.f32 %v527, %v544
      %v567 = vadd.f32 %v528, %v544
      %v568 = vadd.f32 %v529, %v544
      %v569 = vadd.f32 %v530, %v544
      %v570 = vadd.f32 %v531, %v544
      %v571 = vadd.f32 %v532, %v544
      %v572 = vadd.f32 %v533, %v544
      %v573 = vadd.f32 %v534, %v544
      %v574 = vadd.f32 %v535, %v544
      %v575 = vadd.f32 %v536, %v544
      %v576 = vadd.f32 %v537, %v544
      %v577 = vadd.f32 %v538, %v544
      %vm578 = vcmask 130048
      %579 = vst.msk [vmem:[%s197] sm:$0xff] %vm578, %v546
      %580 = vst.msk [vmem:[%s197 + $0x8] sm:$0xff] %vm578, %v547
      %581 = vst.msk [vmem:[%s197 + $0x10] sm:$0xff] %vm578, %v548
      %582 = vst.msk [vmem:[%s197 + $0x18] sm:$0xff] %vm578, %v549
      %583 = vst.msk [vmem:[%s197 + $0x20] sm:$0xff] %vm578, %v550
      %584 = vst.msk [vmem:[%s197 + $0x28] sm:$0xff] %vm578, %v551
      %585 = vst.msk [vmem:[%s197 + $0x30] sm:$0xff] %vm578, %v552
      %586 = vst.msk [vmem:[%s197 + $0x38] sm:$0xff] %vm578, %v553
      %587 = vst.msk [vmem:[%s197 + $0x40] sm:$0xff] %vm578, %v554
      %588 = vst.msk [vmem:[%s197 + $0x48] sm:$0xff] %vm578, %v555
      %589 = vst.msk [vmem:[%s197 + $0x50] sm:$0xff] %vm578, %v556
      %590 = vst.msk [vmem:[%s197 + $0x58] sm:$0xff] %vm578, %v557
      %591 = vst.msk [vmem:[%s197 + $0x60] sm:$0xff] %vm578, %v558
      %592 = vst.msk [vmem:[%s197 + $0x68] sm:$0xff] %vm578, %v559
      %593 = vst.msk [vmem:[%s197 + $0x70] sm:$0xff] %vm578, %v560
      %594 = vst.msk [vmem:[%s197 + $0x78] sm:$0xff] %vm578, %v561
      %595 = vst.msk [vmem:[%s197 + $0x80] sm:$0xff] %vm578, %v562
      %596 = vst.msk [vmem:[%s197 + $0x88] sm:$0xff] %vm578, %v563
      %597 = vst.msk [vmem:[%s197 + $0x90] sm:$0xff] %vm578, %v564
      %598 = vst.msk [vmem:[%s197 + $0x98] sm:$0xff] %vm578, %v565
      %599 = vst.msk [vmem:[%s197 + $0xa0] sm:$0xff] %vm578, %v566
      %600 = vst.msk [vmem:[%s197 + $0xa8] sm:$0xff] %vm578, %v567
      %601 = vst.msk [vmem:[%s197 + $0xb0] sm:$0xff] %vm578, %v568
      %602 = vst.msk [vmem:[%s197 + $0xb8] sm:$0xff] %vm578, %v569
      %603 = vst.msk [vmem:[%s197 + $0xc0] sm:$0xff] %vm578, %v570
      %604 = vst.msk [vmem:[%s197 + $0xc8] sm:$0xff] %vm578, %v571
      %605 = vst.msk [vmem:[%s197 + $0xd0] sm:$0xff] %vm578, %v572
      %606 = vst.msk [vmem:[%s197 + $0xd8] sm:$0xff] %vm578, %v573
      %607 = vst.msk [vmem:[%s197 + $0xe0] sm:$0xff] %vm578, %v574
      %608 = vst.msk [vmem:[%s197 + $0xe8] sm:$0xff] %vm578, %v575
      %609 = vst.msk [vmem:[%s197 + $0xf0] sm:$0xff] %vm578, %v576
      %610 = vst.msk [vmem:[%s197 + $0xf8] sm:$0xff] %vm578, %v577
      %p611 = scmp.lt.s32.totalorder %s15, 1
      %s612 = scalar_select %p611, %s15, 1
      %s613 = smul.addr %s612, 32
      %s614 = smul.addr %s613, 8
      %s615 = scalar_lea.vmem %s4, %s614
      // Predicated region
      $region37: #{_lambda_.14} parent=35 // pred_check
        %p616 = pneg %p122
      $region38: #{_lambda_.14} parent=35 // pred_check_branch
        %618 = sbr.rel (%p616) target = $region40
      $region39: #{_lambda_.14} parent=35 // pred_region
        _
      $region40: #{_lambda_.14} parent=35 // pred_fallthru
        _
    $region36: #{_lambda_.14} parent=5 // pred_fallthru
      _
    %p619 = scmp.le.s32.totalorder 2, %s10
    // Predicated region
    $region41: #{_lambda_.14} parent=5 // pred_check
      %p620 = pneg %p619
    $region42: #{_lambda_.14} parent=5 // pred_check_branch
      %622 = sbr.rel (%p620) target = $region44
    $region43: #{_lambda_.14} parent=5 // pred_region
      %s623 = ssub.s32 %s10, 2
      // Predicated region
      $region45: #{_lambda_.14} parent=43 // pred_check
        %p624 = pneg %p128
      $region46: #{_lambda_.14} parent=43 // pred_check_branch
        %626 = sbr.rel (%p624) target = $region48
      $region47: #{_lambda_.14} parent=43 // pred_region
        %p627 = scmp.lt.s32.totalorder %s16, 1
        %s628 = scalar_select %p627, %s16, 1
        %s629 = smul.addr %s628, 32
        %s630 = smul.addr %s629, 8
        %s631 = scalar_lea.vmem %s4, %s630
      $region48: #{_lambda_.14} parent=43 // pred_fallthru
        _
    $region44: #{_lambda_.14} parent=5 // pred_fallthru
      _
  $region6: #{_lambda_.14} parent=0 // loop_footer
    %s14 = sadd.s32 1, %s10
  $region7: #{_lambda_.14} parent=0 // loop_footer_branch
    %9 = sbr.rel target = $region3
  $region8: #{_lambda_.14} parent=0 // loop_exit
    _

// kernel: _lambda_.16
$region0: #{_lambda_.16}
  #allocation0 [shape = 'u32[]', space=smem, size = 0x4, offset = 0x4, fixed_abs, tag = 'smem constant byte address 0x4 - core index']
  #allocation1 [shape = 'u32[144,128]{1,0:T(1,128)}', space=vmem, size = 0x12000, scoped, tag = 'internal scratch']
  %s0 = inlined_call_operand.vmem [shape: f32[2,64,16], index: 0, kind: input, shape index: {}]
  %s1 = inlined_call_operand.vmem [shape: bf16[16,8], index: 1, kind: input, shape index: {}]
  %s2 = inlined_call_operand.vmem [shape: f32[1,8], index: 2, kind: input, shape index: {}]
  %s3 = inlined_call_operand.vmem [shape: f32[1,8], index: 3, kind: input, shape index: {}]
  %s4 = inlined_call_operand.vmem [shape: f32[2,64,8], index: 4, kind: input, shape index: {}]
  %s5 = inlined_call_operand.vmem [shape: f32[2,64,8], index: 5, kind: output, shape index: {}]
  %s6 = sld [smem:[#allocation0]]
  $region53: #{_lambda_.16} parent=0
    _
  %s8 = ssub.s32 1, %s6
  %s9 = scalar_select 0, %s8, %s6
  loop: start=0, step=1, limit=4
  $region2: #{_lambda_.16} parent=0 // loop_pre_header
    _
  $region3: #{_lambda_.16} parent=0 // loop_header
    %s11 = sphi 0, %s15
    %p12 = scmp.ge.s32.totalorder %s11, 4
    %s21 = sphi 0, %s23
    %s24 = sphi 0, %s21
    %s25 = sphi 0, %s24
    %s41 = sphi 0, %s25
    %s45 = sphi 0, %s45
    %s47 = sphi 0, %s45
    %s48 = sphi 0, %s47
    %s62 = sphi 0, %s48
    %s66 = sphi 0, %s66
    %s68 = sphi 0, %s66
    %s69 = sphi 0, %s68
    %s83 = sphi 0, %s69
    %s87 = sphi 0, %s87
    %s89 = sphi 0, %s87
    %s90 = sphi 0, %s89
    %s104 = sphi 0, %s90
    %s110 = sphi 0, %s112
    %s113 = sphi 0, %s110
    %s114 = sphi 0, %s113
    %s130 = sphi 0, %s114
    %s136 = sphi 0, %s138
    %s139 = sphi 0, %s136
    %s140 = sphi 0, %s139
    %s156 = sphi 0, %s140
  $region4: #{_lambda_.16} parent=0 // loop_header_branch
    %14 = sbr.rel (%p12) target = $region8
  $region5: #{_lambda_.16} parent=0 // loop_body
    %s16 = ssub.s32 %s11, 1
    %s17 = ssub.s32 %s11, 2
    %s18 = sadd.s32 %s11, 1
    %s19 = ssub.s32 %s11, %s18
    %p20 = scmp.eq.s32.totalorder %s19, 0
    %s22 = sadd.s32 %s21, 1
    %s23 = scalar_select %p20, %s21, %s22
    %p26 = pneg %p20
    %p27 = scmp.eq.s32.totalorder %s11, 1
    %p28 = por %p26, %p27
    %p29 = scmp.ne.s32.totalorder %s21, %s24
    %p30 = scmp.eq.s32.totalorder %s11, 0
    %p31 = por %p29, %p30
    %p32 = scmp.ne.s32.totalorder %s21, %s24
    %p33 = scmp.eq.s32.totalorder %s16, 1
    %p34 = por %p32, %p33
    %p35 = scmp.ne.s32.totalorder %s24, %s25
    %p36 = scmp.eq.s32.totalorder %s16, 0
    %p37 = por %p35, %p36
    %p38 = scmp.ne.s32.totalorder %s24, %s25
    %p39 = scmp.eq.s32.totalorder %s17, 1
    %p40 = por %p38, %p39
    %p42 = scmp.ne.s32.totalorder %s25, %s41
    %p43 = scmp.eq.s32.totalorder %s17, 0
    %p44 = por %p42, %p43
    %s46 = sadd.s32 %s45, 1
    %p49 = scmp.eq.s32.totalorder %s11, 1
    %p50 = scmp.ne.s32.totalorder %s45, %s47
    %p51 = scmp.eq.s32.totalorder %s11, 0
    %p52 = por %p50, %p51
    %p53 = scmp.ne.s32.totalorder %s45, %s47
    %p54 = scmp.eq.s32.totalorder %s16, 1
    %p55 = por %p53, %p54
    %p56 = scmp.ne.s32.totalorder %s47, %s48
    %p57 = scmp.eq.s32.totalorder %s16, 0
    %p58 = por %p56, %p57
    %p59 = scmp.ne.s32.totalorder %s47, %s48
    %p60 = scmp.eq.s32.totalorder %s17, 1
    %p61 = por %p59, %p60
    %p63 = scmp.ne.s32.totalorder %s48, %s62
    %p64 = scmp.eq.s32.totalorder %s17, 0
    %p65 = por %p63, %p64
    %s67 = sadd.s32 %s66, 1
    %p70 = scmp.eq.s32.totalorder %s11, 1
    %p71 = scmp.ne.s32.totalorder %s66, %s68
    %p72 = scmp.eq.s32.totalorder %s11, 0
    %p73 = por %p71, %p72
    %p74 = scmp.ne.s32.totalorder %s66, %s68
    %p75 = scmp.eq.s32.totalorder %s16, 1
    %p76 = por %p74, %p75
    %p77 = scmp.ne.s32.totalorder %s68, %s69
    %p78 = scmp.eq.s32.totalorder %s16, 0
    %p79 = por %p77, %p78
    %p80 = scmp.ne.s32.totalorder %s68, %s69
    %p81 = scmp.eq.s32.totalorder %s17, 1
    %p82 = por %p80, %p81
    %p84 = scmp.ne.s32.totalorder %s69, %s83
    %p85 = scmp.eq.s32.totalorder %s17, 0
    %p86 = por %p84, %p85
    %s88 = sadd.s32 %s87, 1
    %p91 = scmp.eq.s32.totalorder %s11, 1
    %p92 = scmp.ne.s32.totalorder %s87, %s89
    %p93 = scmp.eq.s32.totalorder %s11, 0
    %p94 = por %p92, %p93
    %p95 = scmp.ne.s32.totalorder %s87, %s89
    %p96 = scmp.eq.s32.totalorder %s16, 1
    %p97 = por %p95, %p96
    %p98 = scmp.ne.s32.totalorder %s89, %s90
    %p99 = scmp.eq.s32.totalorder %s16, 0
    %p100 = por %p98, %p99
    %p101 = scmp.ne.s32.totalorder %s89, %s90
    %p102 = scmp.eq.s32.totalorder %s17, 1
    %p103 = por %p101, %p102
    %p105 = scmp.ne.s32.totalorder %s90, %s104
    %p106 = scmp.eq.s32.totalorder %s17, 0
    %p107 = por %p105, %p106
    %s108 = ssub.s32 %s11, %s18
    %p109 = scmp.eq.s32.totalorder %s108, 0
    %s111 = sadd.s32 %s110, 1
    %s112 = scalar_select %p109, %s110, %s111
    %p115 = pneg %p109
    %p116 = scmp.eq.s32.totalorder %s11, 1
    %p117 = por %p115, %p116
    %p118 = scmp.ne.s32.totalorder %s110, %s113
    %p119 = scmp.eq.s32.totalorder %s11, 0
    %p120 = por %p118, %p119
    %p121 = scmp.ne.s32.totalorder %s110, %s113
    %p122 = scmp.eq.s32.totalorder %s16, 1
    %p123 = por %p121, %p122
    %p124 = scmp.ne.s32.totalorder %s113, %s114
    %p125 = scmp.eq.s32.totalorder %s16, 0
    %p126 = por %p124, %p125
    %p127 = scmp.ne.s32.totalorder %s113, %s114
    %p128 = scmp.eq.s32.totalorder %s17, 1
    %p129 = por %p127, %p128
    %p131 = scmp.ne.s32.totalorder %s114, %s130
    %p132 = scmp.eq.s32.totalorder %s17, 0
    %p133 = por %p131, %p132
    %s134 = ssub.s32 %s11, %s18
    %p135 = scmp.eq.s32.totalorder %s134, 0
    %s137 = sadd.s32 %s136, 1
    %s138 = scalar_select %p135, %s136, %s137
    %p141 = pneg %p135
    %p142 = scmp.eq.s32.totalorder %s11, 1
    %p143 = por %p141, %p142
    %p144 = scmp.ne.s32.totalorder %s136, %s139
    %p145 = scmp.eq.s32.totalorder %s11, 0
    %p146 = por %p144, %p145
    %p147 = scmp.ne.s32.totalorder %s136, %s139
    %p148 = scmp.eq.s32.totalorder %s16, 1
    %p149 = por %p147, %p148
    %p150 = scmp.ne.s32.totalorder %s139, %s140
    %p151 = scmp.eq.s32.totalorder %s16, 0
    %p152 = por %p150, %p151
    %p153 = scmp.ne.s32.totalorder %s139, %s140
    %p154 = scmp.eq.s32.totalorder %s17, 1
    %p155 = por %p153, %p154
    %p157 = scmp.ne.s32.totalorder %s140, %s156
    %p158 = scmp.eq.s32.totalorder %s17, 0
    %p159 = por %p157, %p158
    %p160 = scmp.le.s32.totalorder 1, %s11
    %p161 = scmp.lt.s32.totalorder %s11, 3
    %p162 = pnand %p160, %p161
    %p163 = pneg %p162
    // Predicated region
    $region9: #{_lambda_.16} parent=5 // pred_check
      _
    $region10: #{_lambda_.16} parent=5 // pred_check_branch
      %165 = sbr.rel (%p162) target = $region12
    $region11: #{_lambda_.16} parent=5 // pred_region
      %s166 = ssub.s32 %s11, 1
      // Predicated region
      $region13: #{_lambda_.16} parent=11 // pred_check
        %p167 = pneg %p58
      $region14: #{_lambda_.16} parent=11 // pred_check_branch
        %169 = sbr.rel (%p167) target = $region16
      $region15: #{_lambda_.16} parent=11 // pred_region
        _
      $region16: #{_lambda_.16} parent=11 // pred_fallthru
        _
      // Predicated region
      $region17: #{_lambda_.16} parent=11 // pred_check
        %p170 = pneg %p79
      $region18: #{_lambda_.16} parent=11 // pred_check_branch
        %172 = sbr.rel (%p170) target = $region20
      $region19: #{_lambda_.16} parent=11 // pred_region
        _
      $region20: #{_lambda_.16} parent=11 // pred_fallthru
        _
      // Predicated region
      $region21: #{_lambda_.16} parent=11 // pred_check
        %p173 = pneg %p100
      $region22: #{_lambda_.16} parent=11 // pred_check_branch
        %175 = sbr.rel (%p173) target = $region24
      $region23: #{_lambda_.16} parent=11 // pred_region
        _
      $region24: #{_lambda_.16} parent=11 // pred_fallthru
        _
    $region12: #{_lambda_.16} parent=5 // pred_fallthru
      _
    %p176 = scmp.lt.s32.totalorder %s11, 2
    // Predicated region
    $region25: #{_lambda_.16} parent=5 // pred_check
      %p177 = pneg %p176
    $region26: #{_lambda_.16} parent=5 // pred_check_branch
      %179 = sbr.rel (%p177) target = $region28
    $region27: #{_lambda_.16} parent=5 // pred_region
      // Predicated region
      $region29: #{_lambda_.16} parent=27 // pred_check
        %p180 = pneg %p31
      $region30: #{_lambda_.16} parent=27 // pred_check_branch
        %182 = sbr.rel (%p180) target = $region32
      $region31: #{_lambda_.16} parent=27 // pred_region
        %p183 = scmp.lt.s32.totalorder %s11, 1
        %s184 = scalar_select %p183, %s11, 1
        %s185 = smul.addr %s184, 8
        %s186 = smul.addr %s185, 8
        %s187 = scalar_lea.vmem %s0, %s186
      $region32: #{_lambda_.16} parent=27 // pred_fallthru
        _
      // Predicated region
      $region33: #{_lambda_.16} parent=27 // pred_check
        %p188 = pneg %p120
      $region34: #{_lambda_.16} parent=27 // pred_check_branch
        %190 = sbr.rel (%p188) target = $region36
      $region35: #{_lambda_.16} parent=27 // pred_region
        %p191 = scmp.lt.s32.totalorder %s11, 1
        %s192 = scalar_select %p191, %s11, 1
        %s193 = smul.addr %s192, 8
        %s194 = smul.addr %s193, 8
        %s195 = scalar_lea.vmem %s4, %s194
      $region36: #{_lambda_.16} parent=27 // pred_fallthru
        _
    $region28: #{_lambda_.16} parent=5 // pred_fallthru
      _
    %p196 = scmp.le.s32.totalorder 1, %s11
    %p197 = scmp.lt.s32.totalorder %s11, 3
    %p198 = pnand %p196, %p197
    %p199 = pneg %p198
    // Predicated region
    $region37: #{_lambda_.16} parent=5 // pred_check
      _
    $region38: #{_lambda_.16} parent=5 // pred_check_branch
      %201 = sbr.rel (%p198) target = $region40
    $region39: #{_lambda_.16} parent=5 // pred_region
      %s202 = ssub.s32 %s11, 1
      %p203 = scmp.lt.s32.totalorder %s16, 1
      %s204 = scalar_select %p203, %s16, 1
      %s205 = smul.addr %s204, 8
      %s206 = smul.addr %s205, 8
      %s207 = scalar_lea.vmem %s0, %s206
      %p208 = pneg %p37
      %p209 = pneg %p34
      %p210 = pneg %p58
      %p211 = pneg %p55
      %p212 = pneg %p79
      %p213 = pneg %p76
      %p214 = pneg %p100
      %p215 = pneg %p97
      %p216 = scmp.lt.s32.totalorder %s16, 1
      %s217 = scalar_select %p216, %s16, 1
      %s218 = smul.addr %s217, 8
      %s219 = smul.addr %s218, 8
      %s220 = scalar_lea.vmem %s4, %s219
      %p221 = pneg %p126
      %p222 = pneg %p123
      %p223 = pneg %p152
      %p224 = pneg %p149
      %p225 = scmp.lt.s32.totalorder %s16, 1
      %s226 = scalar_select %p225, %s16, 1
      %s227 = smul.addr %s226, 8
      %s228 = smul.addr %s227, 8
      %s229 = scalar_lea.vmem %s5, %s228
      %p230 = scmp.lt.s32.totalorder %s16, 1
      %s231 = scalar_select %p230, %s16, 1
      %s232 = smul.addr %s231, 8
      %s233 = smul.addr %s232, 8
      %s234 = scalar_lea.vmem %s0, %s233
      %p235 = scmp.lt.s32.totalorder %s16, 1
      %s236 = scalar_select %p235, %s16, 1
      %s237 = smul.addr %s236, 8
      %s238 = smul.addr %s237, 8
      %s239 = scalar_lea.vmem %s4, %s238
      %p240 = scmp.lt.s32.totalorder %s16, 1
      %s241 = scalar_select %p240, %s16, 1
      %s242 = smul.addr %s241, 8
      %s243 = smul.addr %s242, 8
      %s244 = scalar_lea.vmem %s5, %s243
      %v246 = vld [vmem:[%s234] sm:$0xff]
      %v247 = vld [vmem:[%s234 + $0x8] sm:$0xff]
      %v248 = vld [vmem:[%s234 + $0x10] sm:$0xff]
      %v249 = vld [vmem:[%s234 + $0x18] sm:$0xff]
      %v250 = vld [vmem:[%s234 + $0x20] sm:$0xff]
      %v251 = vld [vmem:[%s234 + $0x28] sm:$0xff]
      %v252 = vld [vmem:[%s234 + $0x30] sm:$0xff]
      %v253 = vld [vmem:[%s234 + $0x38] sm:$0xff]
      %v254 = vmax.f32 %v246, 0.0
      %v255 = vmax.f32 %v247, 0.0
      %v256 = vmax.f32 %v248, 0.0
      %v257 = vmax.f32 %v249, 0.0
      %v258 = vmax.f32 %v250, 0.0
      %v259 = vmax.f32 %v251, 0.0
      %v260 = vmax.f32 %v252, 0.0
      %v261 = vmax.f32 %v253, 0.0
      %v262 = vpack.c.bf16 %v255, %v254
      %v263 = vpack.c.bf16 %v257, %v256
      %v264 = vpack.c.bf16 %v259, %v258
      %v265 = vpack.c.bf16 %v261, %v260
      %v266 = vld [vmem:[%s1] sm:$0xf]
      %v267 = vld [vmem:[%s1 + $0x4] sm:$0xf]
      %v270 = vunpack.c.l.b16 %v266
      %v271 = vunpack.c.l.b16 %v267
      %v272 = vpack.c.b16 %v271, %v270
      %vm274 = vcmask 130048
      %v276 = vsel %vm274, %v262, 0
      %v279 = vsel %vm274, %v263, 0
      %v282 = vsel %vm274, %v264, 0
      %v285 = vsel %vm274, %v265, 0
      %287 = vmatprep.subr.bf16.mxu0 0
      %288 = vmatpush1.bf16.msra.mxu0 0
      %289 = vmatprep.subr.bf16.mxu0 0
      %290 = vmatpush1.bf16.msra.mxu0 0
      %291 = vmatprep.subr.bf16.mxu0 0
      %292 = vmatpush1.bf16.msra.mxu0 0
      %293 = vmatprep.subr.bf16.mxu0 0
      %294 = vmatpush1.bf16.msra.mxu0 0
      %295 = vmatprep.subr.bf16.mxu0 0
      %296 = vmatpush1.bf16.msra.mxu0 0
      %297 = vmatprep.subr.bf16.mxu0 0
      %298 = vmatpush1.bf16.msra.mxu0 0
      %299 = vmatprep.subr.bf16.mxu0 0
      %300 = vmatpush1.bf16.msra.mxu0 0
      %301 = vmatprep.subr.bf16.mxu0 0
      %302 = vmatpush1.bf16.msra.mxu0 %v272
      %303 = vmatprep.subr.bf16.mxu0 0
      %304 = vmatpush2.bf16.msra.mxu0 0
      %305 = vmatprep.subr.bf16.mxu0 0
      %306 = vmatpush2.bf16.msra.mxu0 0
      %307 = vmatprep.subr.bf16.mxu0 0
      %308 = vmatpush2.bf16.msra.mxu0 0
      %309 = vmatprep.subr.bf16.mxu0 0
      %310 = vmatpush2.bf16.msra.mxu0 0
      %311 = vmatprep.subr.bf16.mxu0 0
      %312 = vmatpush2.bf16.msra.mxu0 0
      %313 = vmatprep.subr.bf16.mxu0 0
      %314 = vmatpush2.bf16.msra.mxu0 0
      %315 = vmatprep.subr.bf16.mxu0 0
      %316 = vmatpush2.bf16.msra.mxu0 0
      %317 = vmatprep.subr.bf16.mxu0 0
      %318 = vmatpush2.bf16.msra.mxu0 0
      %319 = vmatprep.mubr.bf16.mxu0 0
      %320 = vmatmul.mubr.bf16.gmra.mxu0 %v276
      %v321 = vpop.f32.mrf.mxu0
      %v322 = vadd.f32 0.0, %v321
      %v323 = vpop.f32.mrf.mxu0
      %v324 = vpop.f32.mrf.mxu0
      %v325 = vadd.f32 0.0, %v324
      %v326 = vpop.f32.mrf.mxu0
      %327 = vmatprep.mubr.bf16.mxu0 0
      %328 = vmatmul.mubr.bf16.gmra.mxu0 %v279
      %v329 = vpop.f32.mrf.mxu0
      %v330 = vadd.f32 0.0, %v329
      %v331 = vpop.f32.mrf.mxu0
      %v332 = vpop.f32.mrf.mxu0
      %v333 = vadd.f32 0.0, %v332
      %v334 = vpop.f32.mrf.mxu0
      %335 = vmatprep.mubr.bf16.mxu0 0
      %336 = vmatmul.mubr.bf16.gmra.mxu0 %v282
      %v337 = vpop.f32.mrf.mxu0
      %v338 = vadd.f32 0.0, %v337
      %v339 = vpop.f32.mrf.mxu0
      %v340 = vpop.f32.mrf.mxu0
      %v341 = vadd.f32 0.0, %v340
      %v342 = vpop.f32.mrf.mxu0
      %343 = vmatprep.mubr.bf16.mxu0 0
      %344 = vmatmul.mubr.bf16.gmra.mxu0 %v285
      %v345 = vpop.f32.mrf.mxu0
      %v346 = vadd.f32 0.0, %v345
      %v347 = vpop.f32.mrf.mxu0
      %v348 = vpop.f32.mrf.mxu0
      %v349 = vadd.f32 0.0, %v348
      %v350 = vpop.f32.mrf.mxu0
      %351 = vdwg.mxu0
      %v352 = vld [vmem:[%s2] sm:$0x1]
      %v354 = vlaneseq
      %v355 = vshrl.u32 %v354, 7
      %v356 = vsub.s32 0, %v355
      %v357 = vrot.slane %v352, %v356
      %v359 = vmul.f32 %v322, %v357
      %v360 = vmul.f32 %v325, %v357
      %v361 = vmul.f32 %v330, %v357
      %v362 = vmul.f32 %v333, %v357
      %v363 = vmul.f32 %v338, %v357
      %v364 = vmul.f32 %v341, %v357
      %v365 = vmul.f32 %v346, %v357
      %v366 = vmul.f32 %v349, %v357
      %v367 = vld [vmem:[%s3] sm:$0x1]
      %v369 = vlaneseq
      %v370 = vshrl.u32 %v369, 7
      %v371 = vsub.s32 0, %v370
      %v372 = vrot.slane %v367, %v371
      %v374 = vadd.f32 %v359, %v372
      %v375 = vadd.f32 %v360, %v372
      %v376 = vadd.f32 %v361, %v372
      %v377 = vadd.f32 %v362, %v372
      %v378 = vadd.f32 %v363, %v372
      %v379 = vadd.f32 %v364, %v372
      %v380 = vadd.f32 %v365, %v372
      %v381 = vadd.f32 %v366, %v372
      %v382 = vld [vmem:[%s239] sm:$0xff]
      %v383 = vld [vmem:[%s239 + $0x8] sm:$0xff]
      %v384 = vld [vmem:[%s239 + $0x10] sm:$0xff]
      %v385 = vld [vmem:[%s239 + $0x18] sm:$0xff]
      %v386 = vld [vmem:[%s239 + $0x20] sm:$0xff]
      %v387 = vld [vmem:[%s239 + $0x28] sm:$0xff]
      %v388 = vld [vmem:[%s239 + $0x30] sm:$0xff]
      %v389 = vld [vmem:[%s239 + $0x38] sm:$0xff]
      %v390 = vadd.f32 %v374, %v382
      %v391 = vadd.f32 %v375, %v383
      %v392 = vadd.f32 %v376, %v384
      %v393 = vadd.f32 %v377, %v385
      %v394 = vadd.f32 %v378, %v386
      %v395 = vadd.f32 %v379, %v387
      %v396 = vadd.f32 %v380, %v388
      %v397 = vadd.f32 %v381, %v389
      %vm398 = vcmask 64512
      %399 = vst.msk [vmem:[%s244] sm:$0xff] %vm398, %v390
      %400 = vst.msk [vmem:[%s244 + $0x8] sm:$0xff] %vm398, %v391
      %401 = vst.msk [vmem:[%s244 + $0x10] sm:$0xff] %vm398, %v392
      %402 = vst.msk [vmem:[%s244 + $0x18] sm:$0xff] %vm398, %v393
      %403 = vst.msk [vmem:[%s244 + $0x20] sm:$0xff] %vm398, %v394
      %404 = vst.msk [vmem:[%s244 + $0x28] sm:$0xff] %vm398, %v395
      %405 = vst.msk [vmem:[%s244 + $0x30] sm:$0xff] %vm398, %v396
      %406 = vst.msk [vmem:[%s244 + $0x38] sm:$0xff] %vm398, %v397
      %p407 = scmp.lt.s32.totalorder %s16, 1
      %s408 = scalar_select %p407, %s16, 1
      %s409 = smul.addr %s408, 8
      %s410 = smul.addr %s409, 8
      %s411 = scalar_lea.vmem %s5, %s410
      // Predicated region
      $region41: #{_lambda_.16} parent=39 // pred_check
        %p412 = pneg %p149
      $region42: #{_lambda_.16} parent=39 // pred_check_branch
        %414 = sbr.rel (%p412) target = $region44
      $region43: #{_lambda_.16} parent=39 // pred_region
        _
      $region44: #{_lambda_.16} parent=39 // pred_fallthru
        _
    $region40: #{_lambda_.16} parent=5 // pred_fallthru
      _
    %p415 = scmp.le.s32.totalorder 2, %s11
    // Predicated region
    $region45: #{_lambda_.16} parent=5 // pred_check
      %p416 = pneg %p415
    $region46: #{_lambda_.16} parent=5 // pred_check_branch
      %418 = sbr.rel (%p416) target = $region48
    $region47: #{_lambda_.16} parent=5 // pred_region
      %s419 = ssub.s32 %s11, 2
      // Predicated region
      $region49: #{_lambda_.16} parent=47 // pred_check
        %p420 = pneg %p155
      $region50: #{_lambda_.16} parent=47 // pred_check_branch
        %422 = sbr.rel (%p420) target = $region52
      $region51: #{_lambda_.16} parent=47 // pred_region
        %p423 = scmp.lt.s32.totalorder %s17, 1
        %s424 = scalar_select %p423, %s17, 1
        %s425 = smul.addr %s424, 8
        %s426 = smul.addr %s425, 8
        %s427 = scalar_lea.vmem %s5, %s426
      $region52: #{_lambda_.16} parent=47 // pred_fallthru
        _
    $region48: #{_lambda_.16} parent=5 // pred_fallthru
      _
  $region6: #{_lambda_.16} parent=0 // loop_footer
    %s15 = sadd.s32 1, %s11
  $region7: #{_lambda_.16} parent=0 // loop_footer_branch
    %10 = sbr.rel target = $region3
  $region8: #{_lambda_.16} parent=0 // loop_exit
    _

// kernel: _lambda_.17
$region0: #{_lambda_.17}
  #allocation0 [shape = 'u32[]', space=smem, size = 0x4, offset = 0x4, fixed_abs, tag = 'smem constant byte address 0x4 - core index']
  #allocation1 [shape = 'u32[144,128]{1,0:T(1,128)}', space=vmem, size = 0x12000, scoped, tag = 'internal scratch']
  %s0 = inlined_call_operand.vmem [shape: f32[2,324,8], index: 0, kind: input, shape index: {}]
  %s1 = inlined_call_operand.vmem [shape: f32[2,286,8], index: 1, kind: output, shape index: {}]
  %s2 = sld [smem:[#allocation0]]
  $region37: #{_lambda_.17} parent=0
    _
  %s4 = ssub.s32 1, %s2
  %s5 = scalar_select 0, %s4, %s2
  loop: start=0, step=1, limit=4
  $region2: #{_lambda_.17} parent=0 // loop_pre_header
    _
  $region3: #{_lambda_.17} parent=0 // loop_header
    %s7 = sphi 0, %s11
    %p8 = scmp.ge.s32.totalorder %s7, 4
    %s17 = sphi 0, %s19
    %s20 = sphi 0, %s17
    %s21 = sphi 0, %s20
    %s37 = sphi 0, %s21
    %s43 = sphi 0, %s45
    %s46 = sphi 0, %s43
    %s47 = sphi 0, %s46
    %s63 = sphi 0, %s47
  $region4: #{_lambda_.17} parent=0 // loop_header_branch
    %10 = sbr.rel (%p8) target = $region8
  $region5: #{_lambda_.17} parent=0 // loop_body
    %s12 = ssub.s32 %s7, 1
    %s13 = ssub.s32 %s7, 2
    %s14 = sadd.s32 %s7, 1
    %s15 = ssub.s32 %s7, %s14
    %p16 = scmp.eq.s32.totalorder %s15, 0
    %s18 = sadd.s32 %s17, 1
    %s19 = scalar_select %p16, %s17, %s18
    %p22 = pneg %p16
    %p23 = scmp.eq.s32.totalorder %s7, 1
    %p24 = por %p22, %p23
    %p25 = scmp.ne.s32.totalorder %s17, %s20
    %p26 = scmp.eq.s32.totalorder %s7, 0
    %p27 = por %p25, %p26
    %p28 = scmp.ne.s32.totalorder %s17, %s20
    %p29 = scmp.eq.s32.totalorder %s12, 1
    %p30 = por %p28, %p29
    %p31 = scmp.ne.s32.totalorder %s20, %s21
    %p32 = scmp.eq.s32.totalorder %s12, 0
    %p33 = por %p31, %p32
    %p34 = scmp.ne.s32.totalorder %s20, %s21
    %p35 = scmp.eq.s32.totalorder %s13, 1
    %p36 = por %p34, %p35
    %p38 = scmp.ne.s32.totalorder %s21, %s37
    %p39 = scmp.eq.s32.totalorder %s13, 0
    %p40 = por %p38, %p39
    %s41 = ssub.s32 %s7, %s14
    %p42 = scmp.eq.s32.totalorder %s41, 0
    %s44 = sadd.s32 %s43, 1
    %s45 = scalar_select %p42, %s43, %s44
    %p48 = pneg %p42
    %p49 = scmp.eq.s32.totalorder %s7, 1
    %p50 = por %p48, %p49
    %p51 = scmp.ne.s32.totalorder %s43, %s46
    %p52 = scmp.eq.s32.totalorder %s7, 0
    %p53 = por %p51, %p52
    %p54 = scmp.ne.s32.totalorder %s43, %s46
    %p55 = scmp.eq.s32.totalorder %s12, 1
    %p56 = por %p54, %p55
    %p57 = scmp.ne.s32.totalorder %s46, %s47
    %p58 = scmp.eq.s32.totalorder %s12, 0
    %p59 = por %p57, %p58
    %p60 = scmp.ne.s32.totalorder %s46, %s47
    %p61 = scmp.eq.s32.totalorder %s13, 1
    %p62 = por %p60, %p61
    %p64 = scmp.ne.s32.totalorder %s47, %s63
    %p65 = scmp.eq.s32.totalorder %s13, 0
    %p66 = por %p64, %p65
    %p67 = scmp.le.s32.totalorder 1, %s7
    %p68 = scmp.lt.s32.totalorder %s7, 3
    %p69 = pnand %p67, %p68
    %p70 = pneg %p69
    // Predicated region
    $region9: #{_lambda_.17} parent=5 // pred_check
      _
    $region10: #{_lambda_.17} parent=5 // pred_check_branch
      %72 = sbr.rel (%p69) target = $region12
    $region11: #{_lambda_.17} parent=5 // pred_region
      %s73 = ssub.s32 %s7, 1
    $region12: #{_lambda_.17} parent=5 // pred_fallthru
      _
    %p74 = scmp.lt.s32.totalorder %s7, 2
    // Predicated region
    $region13: #{_lambda_.17} parent=5 // pred_check
      %p75 = pneg %p74
    $region14: #{_lambda_.17} parent=5 // pred_check_branch
      %77 = sbr.rel (%p75) target = $region16
    $region15: #{_lambda_.17} parent=5 // pred_region
      // Predicated region
      $region17: #{_lambda_.17} parent=15 // pred_check
        %p78 = pneg %p27
      $region18: #{_lambda_.17} parent=15 // pred_check_branch
        %80 = sbr.rel (%p78) target = $region20
      $region19: #{_lambda_.17} parent=15 // pred_region
        %p81 = scmp.lt.s32.totalorder %s7, 1
        %s82 = scalar_select %p81, %s7, 1
        %s83 = smul.addr %s82, 41
        %s84 = smul.addr %s83, 8
        %s85 = scalar_lea.vmem %s0, %s84
      $region20: #{_lambda_.17} parent=15 // pred_fallthru
        _
    $region16: #{_lambda_.17} parent=5 // pred_fallthru
      _
    %p86 = scmp.le.s32.totalorder 1, %s7
    %p87 = scmp.lt.s32.totalorder %s7, 3
    %p88 = pnand %p86, %p87
    %p89 = pneg %p88
    // Predicated region
    $region21: #{_lambda_.17} parent=5 // pred_check
      _
    $region22: #{_lambda_.17} parent=5 // pred_check_branch
      %91 = sbr.rel (%p88) target = $region24
    $region23: #{_lambda_.17} parent=5 // pred_region
      %s92 = ssub.s32 %s7, 1
      %p93 = scmp.lt.s32.totalorder %s12, 1
      %s94 = scalar_select %p93, %s12, 1
      %s95 = smul.addr %s94, 41
      %s96 = smul.addr %s95, 8
      %s97 = scalar_lea.vmem %s0, %s96
      %p98 = pneg %p33
      %p99 = pneg %p30
      %p100 = pneg %p59
      %p101 = pneg %p56
      %p102 = scmp.lt.s32.totalorder %s12, 1
      %s103 = scalar_select %p102, %s12, 1
      %s104 = smul.addr %s103, 36
      %s105 = smul.addr %s104, 8
      %s106 = scalar_lea.vmem %s1, %s105
      %p107 = scmp.lt.s32.totalorder %s12, 1
      %s108 = scalar_select %p107, %s12, 1
      %s109 = smul.addr %s108, 41
      %s110 = smul.addr %s109, 8
      %s111 = scalar_lea.vmem %s0, %s110
      %p112 = scmp.lt.s32.totalorder %s12, 1
      %s113 = scalar_select %p112, %s12, 1
      %s114 = smul.addr %s113, 36
      %s115 = smul.addr %s114, 8
      %s116 = scalar_lea.vmem %s1, %s115
      %v117 = vld [vmem:[%s111] sm:$0xff]
      %v118 = vld [vmem:[%s111 + $0x8] sm:$0xff]
      %v119 = vld [vmem:[%s111 + $0x10] sm:$0xff]
      %v120 = vld [vmem:[%s111 + $0x18] sm:$0xff]
      %v121 = vld [vmem:[%s111 + $0x20] sm:$0xff]
      %v122 = vld [vmem:[%s111 + $0x28] sm:$0xff]
      %v123 = vld [vmem:[%s111 + $0x30] sm:$0xff]
      %v124 = vld [vmem:[%s111 + $0x38] sm:$0xff]
      %v125 = vld [vmem:[%s111 + $0x40] sm:$0xff]
      %v126 = vld [vmem:[%s111 + $0x48] sm:$0xff]
      %v127 = vld [vmem:[%s111 + $0x50] sm:$0xff]
      %v128 = vld [vmem:[%s111 + $0x58] sm:$0xff]
      %v129 = vld [vmem:[%s111 + $0x60] sm:$0xff]
      %v130 = vld [vmem:[%s111 + $0x68] sm:$0xff]
      %v131 = vld [vmem:[%s111 + $0x70] sm:$0xff]
      %v132 = vld [vmem:[%s111 + $0x78] sm:$0xff]
      %v133 = vld [vmem:[%s111 + $0x80] sm:$0xff]
      %v134 = vld [vmem:[%s111 + $0x88] sm:$0xff]
      %v135 = vld [vmem:[%s111 + $0x90] sm:$0xff]
      %v136 = vld [vmem:[%s111 + $0x98] sm:$0xff]
      %v137 = vld [vmem:[%s111 + $0xa0] sm:$0xff]
      %v138 = vld [vmem:[%s111 + $0xa8] sm:$0xff]
      %v139 = vld [vmem:[%s111 + $0xb0] sm:$0xff]
      %v140 = vld [vmem:[%s111 + $0xb8] sm:$0xff]
      %v141 = vld [vmem:[%s111 + $0xc0] sm:$0xff]
      %v142 = vld [vmem:[%s111 + $0xc8] sm:$0xff]
      %v143 = vld [vmem:[%s111 + $0xd0] sm:$0xff]
      %v144 = vld [vmem:[%s111 + $0xd8] sm:$0xff]
      %v145 = vld [vmem:[%s111 + $0xe0] sm:$0xff]
      %v146 = vld [vmem:[%s111 + $0xe8] sm:$0xff]
      %v147 = vld [vmem:[%s111 + $0xf0] sm:$0xff]
      %v148 = vld [vmem:[%s111 + $0xf8] sm:$0xff]
      %v149 = vld [vmem:[%s111 + $0x100] sm:$0xff]
      %v150 = vld [vmem:[%s111 + $0x108] sm:$0xff]
      %v151 = vld [vmem:[%s111 + $0x110] sm:$0xff]
      %v152 = vld [vmem:[%s111 + $0x118] sm:$0x3f]
      %v153 = vld [vmem:[%s111 + $0x1] sm:$0xff]
      %v154 = vld [vmem:[%s111 + $0x9] sm:$0xff]
      %v155 = vld [vmem:[%s111 + $0x11] sm:$0xff]
      %v156 = vld [vmem:[%s111 + $0x19] sm:$0xff]
      %v157 = vld [vmem:[%s111 + $0x21] sm:$0xff]
      %v158 = vld [vmem:[%s111 + $0x29] sm:$0xff]
      %v159 = vld [vmem:[%s111 + $0x31] sm:$0xff]
      %v160 = vld [vmem:[%s111 + $0x39] sm:$0xff]
      %v161 = vld [vmem:[%s111 + $0x41] sm:$0xff]
      %v162 = vld [vmem:[%s111 + $0x49] sm:$0xff]
      %v163 = vld [vmem:[%s111 + $0x51] sm:$0xff]
      %v164 = vld [vmem:[%s111 + $0x59] sm:$0xff]
      %v165 = vld [vmem:[%s111 + $0x61] sm:$0xff]
      %v166 = vld [vmem:[%s111 + $0x69] sm:$0xff]
      %v167 = vld [vmem:[%s111 + $0x71] sm:$0xff]
      %v168 = vld [vmem:[%s111 + $0x79] sm:$0xff]
      %v169 = vld [vmem:[%s111 + $0x81] sm:$0xff]
      %v170 = vld [vmem:[%s111 + $0x89] sm:$0xff]
      %v171 = vld [vmem:[%s111 + $0x91] sm:$0xff]
      %v172 = vld [vmem:[%s111 + $0x99] sm:$0xff]
      %v173 = vld [vmem:[%s111 + $0xa1] sm:$0xff]
      %v174 = vld [vmem:[%s111 + $0xa9] sm:$0xff]
      %v175 = vld [vmem:[%s111 + $0xb1] sm:$0xff]
      %v176 = vld [vmem:[%s111 + $0xb9] sm:$0xff]
      %v177 = vld [vmem:[%s111 + $0xc1] sm:$0xff]
      %v178 = vld [vmem:[%s111 + $0xc9] sm:$0xff]
      %v179 = vld [vmem:[%s111 + $0xd1] sm:$0xff]
      %v180 = vld [vmem:[%s111 + $0xd9] sm:$0xff]
      %v181 = vld [vmem:[%s111 + $0xe1] sm:$0xff]
      %v182 = vld [vmem:[%s111 + $0xe9] sm:$0xff]
      %v183 = vld [vmem:[%s111 + $0xf1] sm:$0xff]
      %v184 = vld [vmem:[%s111 + $0xf9] sm:$0xff]
      %v185 = vld [vmem:[%s111 + $0x101] sm:$0xff]
      %v186 = vld [vmem:[%s111 + $0x109] sm:$0xff]
      %v187 = vld [vmem:[%s111 + $0x111] sm:$0xff]
      %v188 = vld [vmem:[%s111 + $0x119] sm:$0x3f]
      %v189 = vmax.f32 %v117, %v153
      %v190 = vmax.f32 %v118, %v154
      %v191 = vmax.f32 %v119, %v155
      %v192 = vmax.f32 %v120, %v156
      %v193 = vmax.f32 %v121, %v157
      %v194 = vmax.f32 %v122, %v158
      %v195 = vmax.f32 %v123, %v159
      %v196 = vmax.f32 %v124, %v160
      %v197 = vmax.f32 %v125, %v161
      %v198 = vmax.f32 %v126, %v162
      %v199 = vmax.f32 %v127, %v163
      %v200 = vmax.f32 %v128, %v164
      %v201 = vmax.f32 %v129, %v165
      %v202 = vmax.f32 %v130, %v166
      %v203 = vmax.f32 %v131, %v167
      %v204 = vmax.f32 %v132, %v168
      %v205 = vmax.f32 %v133, %v169
      %v206 = vmax.f32 %v134, %v170
      %v207 = vmax.f32 %v135, %v171
      %v208 = vmax.f32 %v136, %v172
      %v209 = vmax.f32 %v137, %v173
      %v210 = vmax.f32 %v138, %v174
      %v211 = vmax.f32 %v139, %v175
      %v212 = vmax.f32 %v140, %v176
      %v213 = vmax.f32 %v141, %v177
      %v214 = vmax.f32 %v142, %v178
      %v215 = vmax.f32 %v143, %v179
      %v216 = vmax.f32 %v144, %v180
      %v217 = vmax.f32 %v145, %v181
      %v218 = vmax.f32 %v146, %v182
      %v219 = vmax.f32 %v147, %v183
      %v220 = vmax.f32 %v148, %v184
      %v221 = vmax.f32 %v149, %v185
      %v222 = vmax.f32 %v150, %v186
      %v223 = vmax.f32 %v151, %v187
      %v224 = vmax.f32 %v152, %v188
      %v225 = vld [vmem:[%s111 + $0x2] sm:$0xff]
      %v226 = vld [vmem:[%s111 + $0xa] sm:$0xff]
      %v227 = vld [vmem:[%s111 + $0x12] sm:$0xff]
      %v228 = vld [vmem:[%s111 + $0x1a] sm:$0xff]
      %v229 = vld [vmem:[%s111 + $0x22] sm:$0xff]
      %v230 = vld [vmem:[%s111 + $0x2a] sm:$0xff]
      %v231 = vld [vmem:[%s111 + $0x32] sm:$0xff]
      %v232 = vld [vmem:[%s111 + $0x3a] sm:$0xff]
      %v233 = vld [vmem:[%s111 + $0x42] sm:$0xff]
      %v234 = vld [vmem:[%s111 + $0x4a] sm:$0xff]
      %v235 = vld [vmem:[%s111 + $0x52] sm:$0xff]
      %v236 = vld [vmem:[%s111 + $0x5a] sm:$0xff]
      %v237 = vld [vmem:[%s111 + $0x62] sm:$0xff]
      %v238 = vld [vmem:[%s111 + $0x6a] sm:$0xff]
      %v239 = vld [vmem:[%s111 + $0x72] sm:$0xff]
      %v240 = vld [vmem:[%s111 + $0x7a] sm:$0xff]
      %v241 = vld [vmem:[%s111 + $0x82] sm:$0xff]
      %v242 = vld [vmem:[%s111 + $0x8a] sm:$0xff]
      %v243 = vld [vmem:[%s111 + $0x92] sm:$0xff]
      %v244 = vld [vmem:[%s111 + $0x9a] sm:$0xff]
      %v245 = vld [vmem:[%s111 + $0xa2] sm:$0xff]
      %v246 = vld [vmem:[%s111 + $0xaa] sm:$0xff]
      %v247 = vld [vmem:[%s111 + $0xb2] sm:$0xff]
      %v248 = vld [vmem:[%s111 + $0xba] sm:$0xff]
      %v249 = vld [vmem:[%s111 + $0xc2] sm:$0xff]
      %v250 = vld [vmem:[%s111 + $0xca] sm:$0xff]
      %v251 = vld [vmem:[%s111 + $0xd2] sm:$0xff]
      %v252 = vld [vmem:[%s111 + $0xda] sm:$0xff]
      %v253 = vld [vmem:[%s111 + $0xe2] sm:$0xff]
      %v254 = vld [vmem:[%s111 + $0xea] sm:$0xff]
      %v255 = vld [vmem:[%s111 + $0xf2] sm:$0xff]
      %v256 = vld [vmem:[%s111 + $0xfa] sm:$0xff]
      %v257 = vld [vmem:[%s111 + $0x102] sm:$0xff]
      %v258 = vld [vmem:[%s111 + $0x10a] sm:$0xff]
      %v259 = vld [vmem:[%s111 + $0x112] sm:$0xff]
      %v260 = vld [vmem:[%s111 + $0x11a] sm:$0x3f]
      %v261 = vmax.f32 %v189, %v225
      %v262 = vmax.f32 %v190, %v226
      %v263 = vmax.f32 %v191, %v227
      %v264 = vmax.f32 %v192, %v228
      %v265 = vmax.f32 %v193, %v229
      %v266 = vmax.f32 %v194, %v230
      %v267 = vmax.f32 %v195, %v231
      %v268 = vmax.f32 %v196, %v232
      %v269 = vmax.f32 %v197, %v233
      %v270 = vmax.f32 %v198, %v234
      %v271 = vmax.f32 %v199, %v235
      %v272 = vmax.f32 %v200, %v236
      %v273 = vmax.f32 %v201, %v237
      %v274 = vmax.f32 %v202, %v238
      %v275 = vmax.f32 %v203, %v239
      %v276 = vmax.f32 %v204, %v240
      %v277 = vmax.f32 %v205, %v241
      %v278 = vmax.f32 %v206, %v242
      %v279 = vmax.f32 %v207, %v243
      %v280 = vmax.f32 %v208, %v244
      %v281 = vmax.f32 %v209, %v245
      %v282 = vmax.f32 %v210, %v246
      %v283 = vmax.f32 %v211, %v247
      %v284 = vmax.f32 %v212, %v248
      %v285 = vmax.f32 %v213, %v249
      %v286 = vmax.f32 %v214, %v250
      %v287 = vmax.f32 %v215, %v251
      %v288 = vmax.f32 %v216, %v252
      %v289 = vmax.f32 %v217, %v253
      %v290 = vmax.f32 %v218, %v254
      %v291 = vmax.f32 %v219, %v255
      %v292 = vmax.f32 %v220, %v256
      %v293 = vmax.f32 %v221, %v257
      %v294 = vmax.f32 %v222, %v258
      %v295 = vmax.f32 %v223, %v259
      %v296 = vmax.f32 %v224, %v260
      %v297 = vld [vmem:[%s111 + $0x11a] sm:$0xff]
      %v298 = vld [vmem:[%s111 + $0x122] sm:$0xff]
      %v299 = vld [vmem:[%s111 + $0x12a] sm:$0x3f]
      %v300 = vmax.f32 %v261, %v227
      %v301 = vmax.f32 %v262, %v228
      %v302 = vmax.f32 %v263, %v229
      %v303 = vmax.f32 %v264, %v230
      %v304 = vmax.f32 %v265, %v231
      %v305 = vmax.f32 %v266, %v232
      %v306 = vmax.f32 %v267, %v233
      %v307 = vmax.f32 %v268, %v234
      %v308 = vmax.f32 %v269, %v235
      %v309 = vmax.f32 %v270, %v236
      %v310 = vmax.f32 %v271, %v237
      %v311 = vmax.f32 %v272, %v238
      %v312 = vmax.f32 %v273, %v239
      %v313 = vmax.f32 %v274, %v240
      %v314 = vmax.f32 %v275, %v241
      %v315 = vmax.f32 %v276, %v242
      %v316 = vmax.f32 %v277, %v243
      %v317 = vmax.f32 %v278, %v244
      %v318 = vmax.f32 %v279, %v245
      %v319 = vmax.f32 %v280, %v246
      %v320 = vmax.f32 %v281, %v247
      %v321 = vmax.f32 %v282, %v248
      %v322 = vmax.f32 %v283, %v249
      %v323 = vmax.f32 %v284, %v250
      %v324 = vmax.f32 %v285, %v251
      %v325 = vmax.f32 %v286, %v252
      %v326 = vmax.f32 %v287, %v253
      %v327 = vmax.f32 %v288, %v254
      %v328 = vmax.f32 %v289, %v255
      %v329 = vmax.f32 %v290, %v256
      %v330 = vmax.f32 %v291, %v257
      %v331 = vmax.f32 %v292, %v258
      %v332 = vmax.f32 %v293, %v259
      %v333 = vmax.f32 %v294, %v297
      %v334 = vmax.f32 %v295, %v298
      %v335 = vmax.f32 %v296, %v299
      %v336 = vld [vmem:[%s111 + $0x13] sm:$0xff]
      %v337 = vld [vmem:[%s111 + $0x1b] sm:$0xff]
      %v338 = vld [vmem:[%s111 + $0x23] sm:$0xff]
      %v339 = vld [vmem:[%s111 + $0x2b] sm:$0xff]
      %v340 = vld [vmem:[%s111 + $0x33] sm:$0xff]
      %v341 = vld [vmem:[%s111 + $0x3b] sm:$0xff]
      %v342 = vld [vmem:[%s111 + $0x43] sm:$0xff]
      %v343 = vld [vmem:[%s111 + $0x4b] sm:$0xff]
      %v344 = vld [vmem:[%s111 + $0x53] sm:$0xff]
      %v345 = vld [vmem:[%s111 + $0x5b] sm:$0xff]
      %v346 = vld [vmem:[%s111 + $0x63] sm:$0xff]
      %v347 = vld [vmem:[%s111 + $0x6b] sm:$0xff]
      %v348 = vld [vmem:[%s111 + $0x73] sm:$0xff]
      %v349 = vld [vmem:[%s111 + $0x7b] sm:$0xff]
      %v350 = vld [vmem:[%s111 + $0x83] sm:$0xff]
      %v351 = vld [vmem:[%s111 + $0x8b] sm:$0xff]
      %v352 = vld [vmem:[%s111 + $0x93] sm:$0xff]
      %v353 = vld [vmem:[%s111 + $0x9b] sm:$0xff]
      %v354 = vld [vmem:[%s111 + $0xa3] sm:$0xff]
      %v355 = vld [vmem:[%s111 + $0xab] sm:$0xff]
      %v356 = vld [vmem:[%s111 + $0xb3] sm:$0xff]
      %v357 = vld [vmem:[%s111 + $0xbb] sm:$0xff]
      %v358 = vld [vmem:[%s111 + $0xc3] sm:$0xff]
      %v359 = vld [vmem:[%s111 + $0xcb] sm:$0xff]
      %v360 = vld [vmem:[%s111 + $0xd3] sm:$0xff]
      %v361 = vld [vmem:[%s111 + $0xdb] sm:$0xff]
      %v362 = vld [vmem:[%s111 + $0xe3] sm:$0xff]
      %v363 = vld [vmem:[%s111 + $0xeb] sm:$0xff]
      %v364 = vld [vmem:[%s111 + $0xf3] sm:$0xff]
      %v365 = vld [vmem:[%s111 + $0xfb] sm:$0xff]
      %v366 = vld [vmem:[%s111 + $0x103] sm:$0xff]
      %v367 = vld [vmem:[%s111 + $0x10b] sm:$0xff]
      %v368 = vld [vmem:[%s111 + $0x113] sm:$0xff]
      %v369 = vld [vmem:[%s111 + $0x11b] sm:$0xff]
      %v370 = vld [vmem:[%s111 + $0x123] sm:$0xff]
      %v371 = vld [vmem:[%s111 + $0x12b] sm:$0x3f]
      %v372 = vmax.f32 %v300, %v336
      %v373 = vmax.f32 %v301, %v337
      %v374 = vmax.f32 %v302, %v338
      %v375 = vmax.f32 %v303, %v339
      %v376 = vmax.f32 %v304, %v340
      %v377 = vmax.f32 %v305, %v341
      %v378 = vmax.f32 %v306, %v342
      %v379 = vmax.f32 %v307, %v343
      %v380 = vmax.f32 %v308, %v344
      %v381 = vmax.f32 %v309, %v345
      %v382 = vmax.f32 %v310, %v346
      %v383 = vmax.f32 %v311, %v347
      %v384 = vmax.f32 %v312, %v348
      %v385 = vmax.f32 %v313, %v349
      %v386 = vmax.f32 %v314, %v350
      %v387 = vmax.f32 %v315, %v351
      %v388 = vmax.f32 %v316, %v352
      %v389 = vmax.f32 %v317, %v353
      %v390 = vmax.f32 %v318, %v354
      %v391 = vmax.f32 %v319, %v355
      %v392 = vmax.f32 %v320, %v356
      %v393 = vmax.f32 %v321, %v357
      %v394 = vmax.f32 %v322, %v358
      %v395 = vmax.f32 %v323, %v359
      %v396 = vmax.f32 %v324, %v360
      %v397 = vmax.f32 %v325, %v361
      %v398 = vmax.f32 %v326, %v362
      %v399 = vmax.f32 %v327, %v363
      %v400 = vmax.f32 %v328, %v364
      %v401 = vmax.f32 %v329, %v365
      %v402 = vmax.f32 %v330, %v366
      %v403 = vmax.f32 %v331, %v367
      %v404 = vmax.f32 %v332, %v368
      %v405 = vmax.f32 %v333, %v369
      %v406 = vmax.f32 %v334, %v370
      %v407 = vmax.f32 %v335, %v371
      %v408 = vld [vmem:[%s111 + $0x14] sm:$0xff]
      %v409 = vld [vmem:[%s111 + $0x1c] sm:$0xff]
      %v410 = vld [vmem:[%s111 + $0x24] sm:$0xff]
      %v411 = vld [vmem:[%s111 + $0x2c] sm:$0xff]
      %v412 = vld [vmem:[%s111 + $0x34] sm:$0xff]
      %v413 = vld [vmem:[%s111 + $0x3c] sm:$0xff]
      %v414 = vld [vmem:[%s111 + $0x44] sm:$0xff]
      %v415 = vld [vmem:[%s111 + $0x4c] sm:$0xff]
      %v416 = vld [vmem:[%s111 + $0x54] sm:$0xff]
      %v417 = vld [vmem:[%s111 + $0x5c] sm:$0xff]
      %v418 = vld [vmem:[%s111 + $0x64] sm:$0xff]
      %v419 = vld [vmem:[%s111 + $0x6c] sm:$0xff]
      %v420 = vld [vmem:[%s111 + $0x74] sm:$0xff]
      %v421 = vld [vmem:[%s111 + $0x7c] sm:$0xff]
      %v422 = vld [vmem:[%s111 + $0x84] sm:$0xff]
      %v423 = vld [vmem:[%s111 + $0x8c] sm:$0xff]
      %v424 = vld [vmem:[%s111 + $0x94] sm:$0xff]
      %v425 = vld [vmem:[%s111 + $0x9c] sm:$0xff]
      %v426 = vld [vmem:[%s111 + $0xa4] sm:$0xff]
      %v427 = vld [vmem:[%s111 + $0xac] sm:$0xff]
      %v428 = vld [vmem:[%s111 + $0xb4] sm:$0xff]
      %v429 = vld [vmem:[%s111 + $0xbc] sm:$0xff]
      %v430 = vld [vmem:[%s111 + $0xc4] sm:$0xff]
      %v431 = vld [vmem:[%s111 + $0xcc] sm:$0xff]
      %v432 = vld [vmem:[%s111 + $0xd4] sm:$0xff]
      %v433 = vld [vmem:[%s111 + $0xdc] sm:$0xff]
      %v434 = vld [vmem:[%s111 + $0xe4] sm:$0xff]
      %v435 = vld [vmem:[%s111 + $0xec] sm:$0xff]
      %v436 = vld [vmem:[%s111 + $0xf4] sm:$0xff]
      %v437 = vld [vmem:[%s111 + $0xfc] sm:$0xff]
      %v438 = vld [vmem:[%s111 + $0x104] sm:$0xff]
      %v439 = vld [vmem:[%s111 + $0x10c] sm:$0xff]
      %v440 = vld [vmem:[%s111 + $0x114] sm:$0xff]
      %v441 = vld [vmem:[%s111 + $0x11c] sm:$0xff]
      %v442 = vld [vmem:[%s111 + $0x124] sm:$0xff]
      %v443 = vld [vmem:[%s111 + $0x12c] sm:$0x3f]
      %v444 = vmax.f32 %v372, %v408
      %v445 = vmax.f32 %v373, %v409
      %v446 = vmax.f32 %v374, %v410
      %v447 = vmax.f32 %v375, %v411
      %v448 = vmax.f32 %v376, %v412
      %v449 = vmax.f32 %v377, %v413
      %v450 = vmax.f32 %v378, %v414
      %v451 = vmax.f32 %v379, %v415
      %v452 = vmax.f32 %v380, %v416
      %v453 = vmax.f32 %v381, %v417
      %v454 = vmax.f32 %v382, %v418
      %v455 = vmax.f32 %v383, %v419
      %v456 = vmax.f32 %v384, %v420
      %v457 = vmax.f32 %v385, %v421
      %v458 = vmax.f32 %v386, %v422
      %v459 = vmax.f32 %v387, %v423
      %v460 = vmax.f32 %v388, %v424
      %v461 = vmax.f32 %v389, %v425
      %v462 = vmax.f32 %v390, %v426
      %v463 = vmax.f32 %v391, %v427
      %v464 = vmax.f32 %v392, %v428
      %v465 = vmax.f32 %v393, %v429
      %v466 = vmax.f32 %v394, %v430
      %v467 = vmax.f32 %v395, %v431
      %v468 = vmax.f32 %v396, %v432
      %v469 = vmax.f32 %v397, %v433
      %v470 = vmax.f32 %v398, %v434
      %v471 = vmax.f32 %v399, %v435
      %v472 = vmax.f32 %v400, %v436
      %v473 = vmax.f32 %v401, %v437
      %v474 = vmax.f32 %v402, %v438
      %v475 = vmax.f32 %v403, %v439
      %v476 = vmax.f32 %v404, %v440
      %v477 = vmax.f32 %v405, %v441
      %v478 = vmax.f32 %v406, %v442
      %v479 = vmax.f32 %v407, %v443
      %v480 = vld [vmem:[%s111 + $0x12c] sm:$0xff]
      %v481 = vld [vmem:[%s111 + $0x134] sm:$0xff]
      %v482 = vld [vmem:[%s111 + $0x13c] sm:$0x3f]
      %v483 = vmax.f32 %v444, %v410
      %v484 = vmax.f32 %v445, %v411
      %v485 = vmax.f32 %v446, %v412
      %v486 = vmax.f32 %v447, %v413
      %v487 = vmax.f32 %v448, %v414
      %v488 = vmax.f32 %v449, %v415
      %v489 = vmax.f32 %v450, %v416
      %v490 = vmax.f32 %v451, %v417
      %v491 = vmax.f32 %v452, %v418
      %v492 = vmax.f32 %v453, %v419
      %v493 = vmax.f32 %v454, %v420
      %v494 = vmax.f32 %v455, %v421
      %v495 = vmax.f32 %v456, %v422
      %v496 = vmax.f32 %v457, %v423
      %v497 = vmax.f32 %v458, %v424
      %v498 = vmax.f32 %v459, %v425
      %v499 = vmax.f32 %v460, %v426
      %v500 = vmax.f32 %v461, %v427
      %v501 = vmax.f32 %v462, %v428
      %v502 = vmax.f32 %v463, %v429
      %v503 = vmax.f32 %v464, %v430
      %v504 = vmax.f32 %v465, %v431
      %v505 = vmax.f32 %v466, %v432
      %v506 = vmax.f32 %v467, %v433
      %v507 = vmax.f32 %v468, %v434
      %v508 = vmax.f32 %v469, %v435
      %v509 = vmax.f32 %v470, %v436
      %v510 = vmax.f32 %v471, %v437
      %v511 = vmax.f32 %v472, %v438
      %v512 = vmax.f32 %v473, %v439
      %v513 = vmax.f32 %v474, %v440
      %v514 = vmax.f32 %v475, %v441
      %v515 = vmax.f32 %v476, %v442
      %v516 = vmax.f32 %v477, %v480
      %v517 = vmax.f32 %v478, %v481
      %v518 = vmax.f32 %v479, %v482
      %v519 = vld [vmem:[%s111 + $0x25] sm:$0xff]
      %v520 = vld [vmem:[%s111 + $0x2d] sm:$0xff]
      %v521 = vld [vmem:[%s111 + $0x35] sm:$0xff]
      %v522 = vld [vmem:[%s111 + $0x3d] sm:$0xff]
      %v523 = vld [vmem:[%s111 + $0x45] sm:$0xff]
      %v524 = vld [vmem:[%s111 + $0x4d] sm:$0xff]
      %v525 = vld [vmem:[%s111 + $0x55] sm:$0xff]
      %v526 = vld [vmem:[%s111 + $0x5d] sm:$0xff]
      %v527 = vld [vmem:[%s111 + $0x65] sm:$0xff]
      %v528 = vld [vmem:[%s111 + $0x6d] sm:$0xff]
      %v529 = vld [vmem:[%s111 + $0x75] sm:$0xff]
      %v530 = vld [vmem:[%s111 + $0x7d] sm:$0xff]
      %v531 = vld [vmem:[%s111 + $0x85] sm:$0xff]
      %v532 = vld [vmem:[%s111 + $0x8d] sm:$0xff]
      %v533 = vld [vmem:[%s111 + $0x95] sm:$0xff]
      %v534 = vld [vmem:[%s111 + $0x9d] sm:$0xff]
      %v535 = vld [vmem:[%s111 + $0xa5] sm:$0xff]
      %v536 = vld [vmem:[%s111 + $0xad] sm:$0xff]
      %v537 = vld [vmem:[%s111 + $0xb5] sm:$0xff]
      %v538 = vld [vmem:[%s111 + $0xbd] sm:$0xff]
      %v539 = vld [vmem:[%s111 + $0xc5] sm:$0xff]
      %v540 = vld [vmem:[%s111 + $0xcd] sm:$0xff]
      %v541 = vld [vmem:[%s111 + $0xd5] sm:$0xff]
      %v542 = vld [vmem:[%s111 + $0xdd] sm:$0xff]
      %v543 = vld [vmem:[%s111 + $0xe5] sm:$0xff]
      %v544 = vld [vmem:[%s111 + $0xed] sm:$0xff]
      %v545 = vld [vmem:[%s111 + $0xf5] sm:$0xff]
      %v546 = vld [vmem:[%s111 + $0xfd] sm:$0xff]
      %v547 = vld [vmem:[%s111 + $0x105] sm:$0xff]
      %v548 = vld [vmem:[%s111 + $0x10d] sm:$0xff]
      %v549 = vld [vmem:[%s111 + $0x115] sm:$0xff]
      %v550 = vld [vmem:[%s111 + $0x11d] sm:$0xff]
      %v551 = vld [vmem:[%s111 + $0x125] sm:$0xff]
      %v552 = vld [vmem:[%s111 + $0x12d] sm:$0xff]
      %v553 = vld [vmem:[%s111 + $0x135] sm:$0xff]
      %v554 = vld [vmem:[%s111 + $0x13d] sm:$0x3f]
      %v555 = vmax.f32 %v483, %v519
      %v556 = vmax.f32 %v484, %v520
      %v557 = vmax.f32 %v485, %v521
      %v558 = vmax.f32 %v486, %v522
      %v559 = vmax.f32 %v487, %v523
      %v560 = vmax.f32 %v488, %v524
      %v561 = vmax.f32 %v489, %v525
      %v562 = vmax.f32 %v490, %v526
      %v563 = vmax.f32 %v491, %v527
      %v564 = vmax.f32 %v492, %v528
      %v565 = vmax.f32 %v493, %v529
      %v566 = vmax.f32 %v494, %v530
      %v567 = vmax.f32 %v495, %v531
      %v568 = vmax.f32 %v496, %v532
      %v569 = vmax.f32 %v497, %v533
      %v570 = vmax.f32 %v498, %v534
      %v571 = vmax.f32 %v499, %v535
      %v572 = vmax.f32 %v500, %v536
      %v573 = vmax.f32 %v501, %v537
      %v574 = vmax.f32 %v502, %v538
      %v575 = vmax.f32 %v503, %v539
      %v576 = vmax.f32 %v504, %v540
      %v577 = vmax.f32 %v505, %v541
      %v578 = vmax.f32 %v506, %v542
      %v579 = vmax.f32 %v507, %v543
      %v580 = vmax.f32 %v508, %v544
      %v581 = vmax.f32 %v509, %v545
      %v582 = vmax.f32 %v510, %v546
      %v583 = vmax.f32 %v511, %v547
      %v584 = vmax.f32 %v512, %v548
      %v585 = vmax.f32 %v513, %v549
      %v586 = vmax.f32 %v514, %v550
      %v587 = vmax.f32 %v515, %v551
      %v588 = vmax.f32 %v516, %v552
      %v589 = vmax.f32 %v517, %v553
      %v590 = vmax.f32 %v518, %v554
      %v591 = vld [vmem:[%s111 + $0x26] sm:$0xff]
      %v592 = vld [vmem:[%s111 + $0x2e] sm:$0xff]
      %v593 = vld [vmem:[%s111 + $0x36] sm:$0xff]
      %v594 = vld [vmem:[%s111 + $0x3e] sm:$0xff]
      %v595 = vld [vmem:[%s111 + $0x46] sm:$0xff]
      %v596 = vld [vmem:[%s111 + $0x4e] sm:$0xff]
      %v597 = vld [vmem:[%s111 + $0x56] sm:$0xff]
      %v598 = vld [vmem:[%s111 + $0x5e] sm:$0xff]
      %v599 = vld [vmem:[%s111 + $0x66] sm:$0xff]
      %v600 = vld [vmem:[%s111 + $0x6e] sm:$0xff]
      %v601 = vld [vmem:[%s111 + $0x76] sm:$0xff]
      %v602 = vld [vmem:[%s111 + $0x7e] sm:$0xff]
      %v603 = vld [vmem:[%s111 + $0x86] sm:$0xff]
      %v604 = vld [vmem:[%s111 + $0x8e] sm:$0xff]
      %v605 = vld [vmem:[%s111 + $0x96] sm:$0xff]
      %v606 = vld [vmem:[%s111 + $0x9e] sm:$0xff]
      %v607 = vld [vmem:[%s111 + $0xa6] sm:$0xff]
      %v608 = vld [vmem:[%s111 + $0xae] sm:$0xff]
      %v609 = vld [vmem:[%s111 + $0xb6] sm:$0xff]
      %v610 = vld [vmem:[%s111 + $0xbe] sm:$0xff]
      %v611 = vld [vmem:[%s111 + $0xc6] sm:$0xff]
      %v612 = vld [vmem:[%s111 + $0xce] sm:$0xff]
      %v613 = vld [vmem:[%s111 + $0xd6] sm:$0xff]
      %v614 = vld [vmem:[%s111 + $0xde] sm:$0xff]
      %v615 = vld [vmem:[%s111 + $0xe6] sm:$0xff]
      %v616 = vld [vmem:[%s111 + $0xee] sm:$0xff]
      %v617 = vld [vmem:[%s111 + $0xf6] sm:$0xff]
      %v618 = vld [vmem:[%s111 + $0xfe] sm:$0xff]
      %v619 = vld [vmem:[%s111 + $0x106] sm:$0xff]
      %v620 = vld [vmem:[%s111 + $0x10e] sm:$0xff]
      %v621 = vld [vmem:[%s111 + $0x116] sm:$0xff]
      %v622 = vld [vmem:[%s111 + $0x11e] sm:$0xff]
      %v623 = vld [vmem:[%s111 + $0x126] sm:$0xff]
      %v624 = vld [vmem:[%s111 + $0x12e] sm:$0xff]
      %v625 = vld [vmem:[%s111 + $0x136] sm:$0xff]
      %v626 = vld [vmem:[%s111 + $0x13e] sm:$0x3f]
      %v627 = vmax.f32 %v555, %v591
      %v628 = vmax.f32 %v556, %v592
      %v629 = vmax.f32 %v557, %v593
      %v630 = vmax.f32 %v558, %v594
      %v631 = vmax.f32 %v559, %v595
      %v632 = vmax.f32 %v560, %v596
      %v633 = vmax.f32 %v561, %v597
      %v634 = vmax.f32 %v562, %v598
      %v635 = vmax.f32 %v563, %v599
      %v636 = vmax.f32 %v564, %v600
      %v637 = vmax.f32 %v565, %v601
      %v638 = vmax.f32 %v566, %v602
      %v639 = vmax.f32 %v567, %v603
      %v640 = vmax.f32 %v568, %v604
      %v641 = vmax.f32 %v569, %v605
      %v642 = vmax.f32 %v570, %v606
      %v643 = vmax.f32 %v571, %v607
      %v644 = vmax.f32 %v572, %v608
      %v645 = vmax.f32 %v573, %v609
      %v646 = vmax.f32 %v574, %v610
      %v647 = vmax.f32 %v575, %v611
      %v648 = vmax.f32 %v576, %v612
      %v649 = vmax.f32 %v577, %v613
      %v650 = vmax.f32 %v578, %v614
      %v651 = vmax.f32 %v579, %v615
      %v652 = vmax.f32 %v580, %v616
      %v653 = vmax.f32 %v581, %v617
      %v654 = vmax.f32 %v582, %v618
      %v655 = vmax.f32 %v583, %v619
      %v656 = vmax.f32 %v584, %v620
      %v657 = vmax.f32 %v585, %v621
      %v658 = vmax.f32 %v586, %v622
      %v659 = vmax.f32 %v587, %v623
      %v660 = vmax.f32 %v588, %v624
      %v661 = vmax.f32 %v589, %v625
      %v662 = vmax.f32 %v590, %v626
      %vm663 = vcmask 64512
      %664 = vst.msk [vmem:[%s116] sm:$0xff] %vm663, %v627
      %665 = vst.msk [vmem:[%s116 + $0x8] sm:$0xff] %vm663, %v628
      %666 = vst.msk [vmem:[%s116 + $0x10] sm:$0xff] %vm663, %v629
      %667 = vst.msk [vmem:[%s116 + $0x18] sm:$0xff] %vm663, %v630
      %668 = vst.msk [vmem:[%s116 + $0x20] sm:$0xff] %vm663, %v631
      %669 = vst.msk [vmem:[%s116 + $0x28] sm:$0xff] %vm663, %v632
      %670 = vst.msk [vmem:[%s116 + $0x30] sm:$0xff] %vm663, %v633
      %671 = vst.msk [vmem:[%s116 + $0x38] sm:$0xff] %vm663, %v634
      %672 = vst.msk [vmem:[%s116 + $0x40] sm:$0xff] %vm663, %v635
      %673 = vst.msk [vmem:[%s116 + $0x48] sm:$0xff] %vm663, %v636
      %674 = vst.msk [vmem:[%s116 + $0x50] sm:$0xff] %vm663, %v637
      %675 = vst.msk [vmem:[%s116 + $0x58] sm:$0xff] %vm663, %v638
      %676 = vst.msk [vmem:[%s116 + $0x60] sm:$0xff] %vm663, %v639
      %677 = vst.msk [vmem:[%s116 + $0x68] sm:$0xff] %vm663, %v640
      %678 = vst.msk [vmem:[%s116 + $0x70] sm:$0xff] %vm663, %v641
      %679 = vst.msk [vmem:[%s116 + $0x78] sm:$0xff] %vm663, %v642
      %680 = vst.msk [vmem:[%s116 + $0x80] sm:$0xff] %vm663, %v643
      %681 = vst.msk [vmem:[%s116 + $0x88] sm:$0xff] %vm663, %v644
      %682 = vst.msk [vmem:[%s116 + $0x90] sm:$0xff] %vm663, %v645
      %683 = vst.msk [vmem:[%s116 + $0x98] sm:$0xff] %vm663, %v646
      %684 = vst.msk [vmem:[%s116 + $0xa0] sm:$0xff] %vm663, %v647
      %685 = vst.msk [vmem:[%s116 + $0xa8] sm:$0xff] %vm663, %v648
      %686 = vst.msk [vmem:[%s116 + $0xb0] sm:$0xff] %vm663, %v649
      %687 = vst.msk [vmem:[%s116 + $0xb8] sm:$0xff] %vm663, %v650
      %688 = vst.msk [vmem:[%s116 + $0xc0] sm:$0xff] %vm663, %v651
      %689 = vst.msk [vmem:[%s116 + $0xc8] sm:$0xff] %vm663, %v652
      %690 = vst.msk [vmem:[%s116 + $0xd0] sm:$0xff] %vm663, %v653
      %691 = vst.msk [vmem:[%s116 + $0xd8] sm:$0xff] %vm663, %v654
      %692 = vst.msk [vmem:[%s116 + $0xe0] sm:$0xff] %vm663, %v655
      %693 = vst.msk [vmem:[%s116 + $0xe8] sm:$0xff] %vm663, %v656
      %694 = vst.msk [vmem:[%s116 + $0xf0] sm:$0xff] %vm663, %v657
      %695 = vst.msk [vmem:[%s116 + $0xf8] sm:$0xff] %vm663, %v658
      %696 = vst.msk [vmem:[%s116 + $0x100] sm:$0xff] %vm663, %v659
      %697 = vst.msk [vmem:[%s116 + $0x108] sm:$0xff] %vm663, %v660
      %698 = vst.msk [vmem:[%s116 + $0x110] sm:$0xff] %vm663, %v661
      %vm699 = vcmask 62464
      %700 = vst.msk [vmem:[%s116 + $0x118] sm:$0x3f] %vm699, %v662
      %p701 = scmp.lt.s32.totalorder %s12, 1
      %s702 = scalar_select %p701, %s12, 1
      %s703 = smul.addr %s702, 36
      %s704 = smul.addr %s703, 8
      %s705 = scalar_lea.vmem %s1, %s704
      // Predicated region
      $region25: #{_lambda_.17} parent=23 // pred_check
        %p706 = pneg %p56
      $region26: #{_lambda_.17} parent=23 // pred_check_branch
        %708 = sbr.rel (%p706) target = $region28
      $region27: #{_lambda_.17} parent=23 // pred_region
        _
      $region28: #{_lambda_.17} parent=23 // pred_fallthru
        _
    $region24: #{_lambda_.17} parent=5 // pred_fallthru
      _
    %p709 = scmp.le.s32.totalorder 2, %s7
    // Predicated region
    $region29: #{_lambda_.17} parent=5 // pred_check
      %p710 = pneg %p709
    $region30: #{_lambda_.17} parent=5 // pred_check_branch
      %712 = sbr.rel (%p710) target = $region32
    $region31: #{_lambda_.17} parent=5 // pred_region
      %s713 = ssub.s32 %s7, 2
      // Predicated region
      $region33: #{_lambda_.17} parent=31 // pred_check
        %p714 = pneg %p62
      $region34: #{_lambda_.17} parent=31 // pred_check_branch
        %716 = sbr.rel (%p714) target = $region36
      $region35: #{_lambda_.17} parent=31 // pred_region
        %p717 = scmp.lt.s32.totalorder %s13, 1
        %s718 = scalar_select %p717, %s13, 1
        %s719 = smul.addr %s718, 36
        %s720 = smul.addr %s719, 8
        %s721 = scalar_lea.vmem %s1, %s720
      $region36: #{_lambda_.17} parent=31 // pred_fallthru
        _
    $region32: #{_lambda_.17} parent=5 // pred_fallthru
      _
  $region6: #{_lambda_.17} parent=0 // loop_footer
    %s11 = sadd.s32 1, %s7
  $region7: #{_lambda_.17} parent=0 // loop_footer_branch
    %6 = sbr.rel target = $region3
  $region8: #{_lambda_.17} parent=0 // loop_exit
    _

// kernel: _lambda_.20
$region0: #{_lambda_.20}
  #allocation0 [shape = 'u32[]', space=smem, size = 0x4, offset = 0x4, fixed_abs, tag = 'smem constant byte address 0x4 - core index']
  #allocation1 [shape = 'u32[144,128]{1,0:T(1,128)}', space=vmem, size = 0x12000, scoped, tag = 'internal scratch']
  %s0 = inlined_call_operand.vmem [shape: f32[2,64,16], index: 0, kind: input, shape index: {}]
  %s1 = inlined_call_operand.vmem [shape: bf16[16,16], index: 1, kind: input, shape index: {}]
  %s2 = inlined_call_operand.vmem [shape: f32[1,16], index: 2, kind: input, shape index: {}]
  %s3 = inlined_call_operand.vmem [shape: f32[1,16], index: 3, kind: input, shape index: {}]
  %s4 = inlined_call_operand.vmem [shape: f32[2,64,16], index: 4, kind: output, shape index: {}]
  %s5 = sld [smem:[#allocation0]]
  $region49: #{_lambda_.20} parent=0
    _
  %s7 = ssub.s32 1, %s5
  %s8 = scalar_select 0, %s7, %s5
  loop: start=0, step=1, limit=4
  $region2: #{_lambda_.20} parent=0 // loop_pre_header
    _
  $region3: #{_lambda_.20} parent=0 // loop_header
    %s10 = sphi 0, %s14
    %p11 = scmp.ge.s32.totalorder %s10, 4
    %s20 = sphi 0, %s22
    %s23 = sphi 0, %s20
    %s24 = sphi 0, %s23
    %s40 = sphi 0, %s24
    %s44 = sphi 0, %s44
    %s46 = sphi 0, %s44
    %s47 = sphi 0, %s46
    %s61 = sphi 0, %s47
    %s65 = sphi 0, %s65
    %s67 = sphi 0, %s65
    %s68 = sphi 0, %s67
    %s82 = sphi 0, %s68
    %s86 = sphi 0, %s86
    %s88 = sphi 0, %s86
    %s89 = sphi 0, %s88
    %s103 = sphi 0, %s89
    %s109 = sphi 0, %s111
    %s112 = sphi 0, %s109
    %s113 = sphi 0, %s112
    %s129 = sphi 0, %s113
  $region4: #{_lambda_.20} parent=0 // loop_header_branch
    %13 = sbr.rel (%p11) target = $region8
  $region5: #{_lambda_.20} parent=0 // loop_body
    %s15 = ssub.s32 %s10, 1
    %s16 = ssub.s32 %s10, 2
    %s17 = sadd.s32 %s10, 1
    %s18 = ssub.s32 %s10, %s17
    %p19 = scmp.eq.s32.totalorder %s18, 0
    %s21 = sadd.s32 %s20, 1
    %s22 = scalar_select %p19, %s20, %s21
    %p25 = pneg %p19
    %p26 = scmp.eq.s32.totalorder %s10, 1
    %p27 = por %p25, %p26
    %p28 = scmp.ne.s32.totalorder %s20, %s23
    %p29 = scmp.eq.s32.totalorder %s10, 0
    %p30 = por %p28, %p29
    %p31 = scmp.ne.s32.totalorder %s20, %s23
    %p32 = scmp.eq.s32.totalorder %s15, 1
    %p33 = por %p31, %p32
    %p34 = scmp.ne.s32.totalorder %s23, %s24
    %p35 = scmp.eq.s32.totalorder %s15, 0
    %p36 = por %p34, %p35
    %p37 = scmp.ne.s32.totalorder %s23, %s24
    %p38 = scmp.eq.s32.totalorder %s16, 1
    %p39 = por %p37, %p38
    %p41 = scmp.ne.s32.totalorder %s24, %s40
    %p42 = scmp.eq.s32.totalorder %s16, 0
    %p43 = por %p41, %p42
    %s45 = sadd.s32 %s44, 1
    %p48 = scmp.eq.s32.totalorder %s10, 1
    %p49 = scmp.ne.s32.totalorder %s44, %s46
    %p50 = scmp.eq.s32.totalorder %s10, 0
    %p51 = por %p49, %p50
    %p52 = scmp.ne.s32.totalorder %s44, %s46
    %p53 = scmp.eq.s32.totalorder %s15, 1
    %p54 = por %p52, %p53
    %p55 = scmp.ne.s32.totalorder %s46, %s47
    %p56 = scmp.eq.s32.totalorder %s15, 0
    %p57 = por %p55, %p56
    %p58 = scmp.ne.s32.totalorder %s46, %s47
    %p59 = scmp.eq.s32.totalorder %s16, 1
    %p60 = por %p58, %p59
    %p62 = scmp.ne.s32.totalorder %s47, %s61
    %p63 = scmp.eq.s32.totalorder %s16, 0
    %p64 = por %p62, %p63
    %s66 = sadd.s32 %s65, 1
    %p69 = scmp.eq.s32.totalorder %s10, 1
    %p70 = scmp.ne.s32.totalorder %s65, %s67
    %p71 = scmp.eq.s32.totalorder %s10, 0
    %p72 = por %p70, %p71
    %p73 = scmp.ne.s32.totalorder %s65, %s67
    %p74 = scmp.eq.s32.totalorder %s15, 1
    %p75 = por %p73, %p74
    %p76 = scmp.ne.s32.totalorder %s67, %s68
    %p77 = scmp.eq.s32.totalorder %s15, 0
    %p78 = por %p76, %p77
    %p79 = scmp.ne.s32.totalorder %s67, %s68
    %p80 = scmp.eq.s32.totalorder %s16, 1
    %p81 = por %p79, %p80
    %p83 = scmp.ne.s32.totalorder %s68, %s82
    %p84 = scmp.eq.s32.totalorder %s16, 0
    %p85 = por %p83, %p84
    %s87 = sadd.s32 %s86, 1
    %p90 = scmp.eq.s32.totalorder %s10, 1
    %p91 = scmp.ne.s32.totalorder %s86, %s88
    %p92 = scmp.eq.s32.totalorder %s10, 0
    %p93 = por %p91, %p92
    %p94 = scmp.ne.s32.totalorder %s86, %s88
    %p95 = scmp.eq.s32.totalorder %s15, 1
    %p96 = por %p94, %p95
    %p97 = scmp.ne.s32.totalorder %s88, %s89
    %p98 = scmp.eq.s32.totalorder %s15, 0
    %p99 = por %p97, %p98
    %p100 = scmp.ne.s32.totalorder %s88, %s89
    %p101 = scmp.eq.s32.totalorder %s16, 1
    %p102 = por %p100, %p101
    %p104 = scmp.ne.s32.totalorder %s89, %s103
    %p105 = scmp.eq.s32.totalorder %s16, 0
    %p106 = por %p104, %p105
    %s107 = ssub.s32 %s10, %s17
    %p108 = scmp.eq.s32.totalorder %s107, 0
    %s110 = sadd.s32 %s109, 1
    %s111 = scalar_select %p108, %s109, %s110
    %p114 = pneg %p108
    %p115 = scmp.eq.s32.totalorder %s10, 1
    %p116 = por %p114, %p115
    %p117 = scmp.ne.s32.totalorder %s109, %s112
    %p118 = scmp.eq.s32.totalorder %s10, 0
    %p119 = por %p117, %p118
    %p120 = scmp.ne.s32.totalorder %s109, %s112
    %p121 = scmp.eq.s32.totalorder %s15, 1
    %p122 = por %p120, %p121
    %p123 = scmp.ne.s32.totalorder %s112, %s113
    %p124 = scmp.eq.s32.totalorder %s15, 0
    %p125 = por %p123, %p124
    %p126 = scmp.ne.s32.totalorder %s112, %s113
    %p127 = scmp.eq.s32.totalorder %s16, 1
    %p128 = por %p126, %p127
    %p130 = scmp.ne.s32.totalorder %s113, %s129
    %p131 = scmp.eq.s32.totalorder %s16, 0
    %p132 = por %p130, %p131
    %p133 = scmp.le.s32.totalorder 1, %s10
    %p134 = scmp.lt.s32.totalorder %s10, 3
    %p135 = pnand %p133, %p134
    %p136 = pneg %p135
    // Predicated region
    $region9: #{_lambda_.20} parent=5 // pred_check
      _
    $region10: #{_lambda_.20} parent=5 // pred_check_branch
      %138 = sbr.rel (%p135) target = $region12
    $region11: #{_lambda_.20} parent=5 // pred_region
      %s139 = ssub.s32 %s10, 1
      // Predicated region
      $region13: #{_lambda_.20} parent=11 // pred_check
        %p140 = pneg %p57
      $region14: #{_lambda_.20} parent=11 // pred_check_branch
        %142 = sbr.rel (%p140) target = $region16
      $region15: #{_lambda_.20} parent=11 // pred_region
        _
      $region16: #{_lambda_.20} parent=11 // pred_fallthru
        _
      // Predicated region
      $region17: #{_lambda_.20} parent=11 // pred_check
        %p143 = pneg %p78
      $region18: #{_lambda_.20} parent=11 // pred_check_branch
        %145 = sbr.rel (%p143) target = $region20
      $region19: #{_lambda_.20} parent=11 // pred_region
        _
      $region20: #{_lambda_.20} parent=11 // pred_fallthru
        _
      // Predicated region
      $region21: #{_lambda_.20} parent=11 // pred_check
        %p146 = pneg %p99
      $region22: #{_lambda_.20} parent=11 // pred_check_branch
        %148 = sbr.rel (%p146) target = $region24
      $region23: #{_lambda_.20} parent=11 // pred_region
        _
      $region24: #{_lambda_.20} parent=11 // pred_fallthru
        _
    $region12: #{_lambda_.20} parent=5 // pred_fallthru
      _
    %p149 = scmp.lt.s32.totalorder %s10, 2
    // Predicated region
    $region25: #{_lambda_.20} parent=5 // pred_check
      %p150 = pneg %p149
    $region26: #{_lambda_.20} parent=5 // pred_check_branch
      %152 = sbr.rel (%p150) target = $region28
    $region27: #{_lambda_.20} parent=5 // pred_region
      // Predicated region
      $region29: #{_lambda_.20} parent=27 // pred_check
        %p153 = pneg %p30
      $region30: #{_lambda_.20} parent=27 // pred_check_branch
        %155 = sbr.rel (%p153) target = $region32
      $region31: #{_lambda_.20} parent=27 // pred_region
        %p156 = scmp.lt.s32.totalorder %s10, 1
        %s157 = scalar_select %p156, %s10, 1
        %s158 = smul.addr %s157, 8
        %s159 = smul.addr %s158, 8
        %s160 = scalar_lea.vmem %s0, %s159
      $region32: #{_lambda_.20} parent=27 // pred_fallthru
        _
    $region28: #{_lambda_.20} parent=5 // pred_fallthru
      _
    %p161 = scmp.le.s32.totalorder 1, %s10
    %p162 = scmp.lt.s32.totalorder %s10, 3
    %p163 = pnand %p161, %p162
    %p164 = pneg %p163
    // Predicated region
    $region33: #{_lambda_.20} parent=5 // pred_check
      _
    $region34: #{_lambda_.20} parent=5 // pred_check_branch
      %166 = sbr.rel (%p163) target = $region36
    $region35: #{_lambda_.20} parent=5 // pred_region
      %s167 = ssub.s32 %s10, 1
      %p168 = scmp.lt.s32.totalorder %s15, 1
      %s169 = scalar_select %p168, %s15, 1
      %s170 = smul.addr %s169, 8
      %s171 = smul.addr %s170, 8
      %s172 = scalar_lea.vmem %s0, %s171
      %p173 = pneg %p36
      %p174 = pneg %p33
      %p175 = pneg %p57
      %p176 = pneg %p54
      %p177 = pneg %p78
      %p178 = pneg %p75
      %p179 = pneg %p99
      %p180 = pneg %p96
      %p181 = pneg %p125
      %p182 = pneg %p122
      %p183 = scmp.lt.s32.totalorder %s15, 1
      %s184 = scalar_select %p183, %s15, 1
      %s185 = smul.addr %s184, 8
      %s186 = smul.addr %s185, 8
      %s187 = scalar_lea.vmem %s4, %s186
      %p188 = scmp.lt.s32.totalorder %s15, 1
      %s189 = scalar_select %p188, %s15, 1
      %s190 = smul.addr %s189, 8
      %s191 = smul.addr %s190, 8
      %s192 = scalar_lea.vmem %s0, %s191
      %p193 = scmp.lt.s32.totalorder %s15, 1
      %s194 = scalar_select %p193, %s15, 1
      %s195 = smul.addr %s194, 8
      %s196 = smul.addr %s195, 8
      %s197 = scalar_lea.vmem %s4, %s196
      %v199 = vld [vmem:[%s192] sm:$0xff]
      %v200 = vld [vmem:[%s192 + $0x8] sm:$0xff]
      %v201 = vld [vmem:[%s192 + $0x10] sm:$0xff]
      %v202 = vld [vmem:[%s192 + $0x18] sm:$0xff]
      %v203 = vld [vmem:[%s192 + $0x20] sm:$0xff]
      %v204 = vld [vmem:[%s192 + $0x28] sm:$0xff]
      %v205 = vld [vmem:[%s192 + $0x30] sm:$0xff]
      %v206 = vld [vmem:[%s192 + $0x38] sm:$0xff]
      %v207 = vmax.f32 %v199, 0.0
      %v208 = vmax.f32 %v200, 0.0
      %v209 = vmax.f32 %v201, 0.0
      %v210 = vmax.f32 %v202, 0.0
      %v211 = vmax.f32 %v203, 0.0
      %v212 = vmax.f32 %v204, 0.0
      %v213 = vmax.f32 %v205, 0.0
      %v214 = vmax.f32 %v206, 0.0
      %v215 = vpack.c.bf16 %v208, %v207
      %v216 = vpack.c.bf16 %v210, %v209
      %v217 = vpack.c.bf16 %v212, %v211
      %v218 = vpack.c.bf16 %v214, %v213
      %v219 = vld [vmem:[%s1] sm:$0xf]
      %v220 = vld [vmem:[%s1 + $0x4] sm:$0xf]
      %v223 = vunpack.c.l.b16 %v219
      %v224 = vunpack.c.l.b16 %v220
      %v225 = vpack.c.b16 %v224, %v223
      %vm227 = vcmask 130048
      %v229 = vsel %vm227, %v215, 0
      %v232 = vsel %vm227, %v216, 0
      %v235 = vsel %vm227, %v217, 0
      %v238 = vsel %vm227, %v218, 0
      %240 = vmatprep.subr.bf16.mxu0 0
      %241 = vmatpush1.bf16.msra.mxu0 0
      %242 = vmatprep.subr.bf16.mxu0 0
      %243 = vmatpush1.bf16.msra.mxu0 0
      %244 = vmatprep.subr.bf16.mxu0 0
      %245 = vmatpush1.bf16.msra.mxu0 0
      %246 = vmatprep.subr.bf16.mxu0 0
      %247 = vmatpush1.bf16.msra.mxu0 0
      %248 = vmatprep.subr.bf16.mxu0 0
      %249 = vmatpush1.bf16.msra.mxu0 0
      %250 = vmatprep.subr.bf16.mxu0 0
      %251 = vmatpush1.bf16.msra.mxu0 0
      %252 = vmatprep.subr.bf16.mxu0 0
      %253 = vmatpush1.bf16.msra.mxu0 0
      %254 = vmatprep.subr.bf16.mxu0 0
      %255 = vmatpush1.bf16.msra.mxu0 %v225
      %256 = vmatprep.subr.bf16.mxu0 0
      %257 = vmatpush2.bf16.msra.mxu0 0
      %258 = vmatprep.subr.bf16.mxu0 0
      %259 = vmatpush2.bf16.msra.mxu0 0
      %260 = vmatprep.subr.bf16.mxu0 0
      %261 = vmatpush2.bf16.msra.mxu0 0
      %262 = vmatprep.subr.bf16.mxu0 0
      %263 = vmatpush2.bf16.msra.mxu0 0
      %264 = vmatprep.subr.bf16.mxu0 0
      %265 = vmatpush2.bf16.msra.mxu0 0
      %266 = vmatprep.subr.bf16.mxu0 0
      %267 = vmatpush2.bf16.msra.mxu0 0
      %268 = vmatprep.subr.bf16.mxu0 0
      %269 = vmatpush2.bf16.msra.mxu0 0
      %270 = vmatprep.subr.bf16.mxu0 0
      %271 = vmatpush2.bf16.msra.mxu0 0
      %272 = vmatprep.mubr.bf16.mxu0 0
      %273 = vmatmul.mubr.bf16.gmra.mxu0 %v229
      %v274 = vpop.f32.mrf.mxu0
      %v275 = vadd.f32 0.0, %v274
      %v276 = vpop.f32.mrf.mxu0
      %v277 = vpop.f32.mrf.mxu0
      %v278 = vadd.f32 0.0, %v277
      %v279 = vpop.f32.mrf.mxu0
      %280 = vmatprep.mubr.bf16.mxu0 0
      %281 = vmatmul.mubr.bf16.gmra.mxu0 %v232
      %v282 = vpop.f32.mrf.mxu0
      %v283 = vadd.f32 0.0, %v282
      %v284 = vpop.f32.mrf.mxu0
      %v285 = vpop.f32.mrf.mxu0
      %v286 = vadd.f32 0.0, %v285
      %v287 = vpop.f32.mrf.mxu0
      %288 = vmatprep.mubr.bf16.mxu0 0
      %289 = vmatmul.mubr.bf16.gmra.mxu0 %v235
      %v290 = vpop.f32.mrf.mxu0
      %v291 = vadd.f32 0.0, %v290
      %v292 = vpop.f32.mrf.mxu0
      %v293 = vpop.f32.mrf.mxu0
      %v294 = vadd.f32 0.0, %v293
      %v295 = vpop.f32.mrf.mxu0
      %296 = vmatprep.mubr.bf16.mxu0 0
      %297 = vmatmul.mubr.bf16.gmra.mxu0 %v238
      %v298 = vpop.f32.mrf.mxu0
      %v299 = vadd.f32 0.0, %v298
      %v300 = vpop.f32.mrf.mxu0
      %v301 = vpop.f32.mrf.mxu0
      %v302 = vadd.f32 0.0, %v301
      %v303 = vpop.f32.mrf.mxu0
      %304 = vdwg.mxu0
      %v305 = vld [vmem:[%s2] sm:$0x1]
      %v307 = vlaneseq
      %v308 = vshrl.u32 %v307, 7
      %v309 = vsub.s32 0, %v308
      %v310 = vrot.slane %v305, %v309
      %v312 = vmul.f32 %v275, %v310
      %v313 = vmul.f32 %v278, %v310
      %v314 = vmul.f32 %v283, %v310
      %v315 = vmul.f32 %v286, %v310
      %v316 = vmul.f32 %v291, %v310
      %v317 = vmul.f32 %v294, %v310
      %v318 = vmul.f32 %v299, %v310
      %v319 = vmul.f32 %v302, %v310
      %v320 = vld [vmem:[%s3] sm:$0x1]
      %v322 = vlaneseq
      %v323 = vshrl.u32 %v322, 7
      %v324 = vsub.s32 0, %v323
      %v325 = vrot.slane %v320, %v324
      %v327 = vadd.f32 %v312, %v325
      %v328 = vadd.f32 %v313, %v325
      %v329 = vadd.f32 %v314, %v325
      %v330 = vadd.f32 %v315, %v325
      %v331 = vadd.f32 %v316, %v325
      %v332 = vadd.f32 %v317, %v325
      %v333 = vadd.f32 %v318, %v325
      %v334 = vadd.f32 %v319, %v325
      %335 = vst.msk [vmem:[%s197] sm:$0xff] %vm227, %v327
      %336 = vst.msk [vmem:[%s197 + $0x8] sm:$0xff] %vm227, %v328
      %337 = vst.msk [vmem:[%s197 + $0x10] sm:$0xff] %vm227, %v329
      %338 = vst.msk [vmem:[%s197 + $0x18] sm:$0xff] %vm227, %v330
      %339 = vst.msk [vmem:[%s197 + $0x20] sm:$0xff] %vm227, %v331
      %340 = vst.msk [vmem:[%s197 + $0x28] sm:$0xff] %vm227, %v332
      %341 = vst.msk [vmem:[%s197 + $0x30] sm:$0xff] %vm227, %v333
      %342 = vst.msk [vmem:[%s197 + $0x38] sm:$0xff] %vm227, %v334
      %p343 = scmp.lt.s32.totalorder %s15, 1
      %s344 = scalar_select %p343, %s15, 1
      %s345 = smul.addr %s344, 8
      %s346 = smul.addr %s345, 8
      %s347 = scalar_lea.vmem %s4, %s346
      // Predicated region
      $region37: #{_lambda_.20} parent=35 // pred_check
        %p348 = pneg %p122
      $region38: #{_lambda_.20} parent=35 // pred_check_branch
        %350 = sbr.rel (%p348) target = $region40
      $region39: #{_lambda_.20} parent=35 // pred_region
        _
      $region40: #{_lambda_.20} parent=35 // pred_fallthru
        _
    $region36: #{_lambda_.20} parent=5 // pred_fallthru
      _
    %p351 = scmp.le.s32.totalorder 2, %s10
    // Predicated region
    $region41: #{_lambda_.20} parent=5 // pred_check
      %p352 = pneg %p351
    $region42: #{_lambda_.20} parent=5 // pred_check_branch
      %354 = sbr.rel (%p352) target = $region44
    $region43: #{_lambda_.20} parent=5 // pred_region
      %s355 = ssub.s32 %s10, 2
      // Predicated region
      $region45: #{_lambda_.20} parent=43 // pred_check
        %p356 = pneg %p128
      $region46: #{_lambda_.20} parent=43 // pred_check_branch
        %358 = sbr.rel (%p356) target = $region48
      $region47: #{_lambda_.20} parent=43 // pred_region
        %p359 = scmp.lt.s32.totalorder %s16, 1
        %s360 = scalar_select %p359, %s16, 1
        %s361 = smul.addr %s360, 8
        %s362 = smul.addr %s361, 8
        %s363 = scalar_lea.vmem %s4, %s362
      $region48: #{_lambda_.20} parent=43 // pred_fallthru
        _
    $region44: #{_lambda_.20} parent=5 // pred_fallthru
      _
  $region6: #{_lambda_.20} parent=0 // loop_footer
    %s14 = sadd.s32 1, %s10
  $region7: #{_lambda_.20} parent=0 // loop_footer_branch
    %9 = sbr.rel target = $region3
  $region8: #{_lambda_.20} parent=0 // loop_exit
    _

// kernel: _lambda_.18
$region0: #{_lambda_.18}
  #allocation0 [shape = 'u32[]', space=smem, size = 0x4, offset = 0x4, fixed_abs, tag = 'smem constant byte address 0x4 - core index']
  #allocation1 [shape = 'u32[144,128]{1,0:T(1,128)}', space=vmem, size = 0x12000, scoped, tag = 'internal scratch']
  #allocation2 [shape = 'f32[100,8]{1,0:T(8,128)}', space=vmem, size = 0xd000, scoped, tag = 'scratch operand']
  %s0 = inlined_call_operand.vmem [shape: f32[2,100,8], index: 0, kind: input, shape index: {}]
  %s1 = inlined_call_operand.vmem [shape: f32[9,8], index: 1, kind: input, shape index: {}]
  %s2 = inlined_call_operand.vmem [shape: bf16[8,8], index: 2, kind: input, shape index: {}]
  %s3 = inlined_call_operand.vmem [shape: f32[1,8], index: 3, kind: input, shape index: {}]
  %s4 = inlined_call_operand.vmem [shape: f32[1,8], index: 4, kind: input, shape index: {}]
  %s5 = inlined_call_operand.vmem [shape: f32[9,8], index: 5, kind: input, shape index: {}]
  %s6 = inlined_call_operand.vmem [shape: bf16[8,8], index: 6, kind: input, shape index: {}]
  %s7 = inlined_call_operand.vmem [shape: f32[1,8], index: 7, kind: input, shape index: {}]
  %s8 = inlined_call_operand.vmem [shape: f32[1,8], index: 8, kind: input, shape index: {}]
  %s9 = inlined_call_operand.vmem [shape: f32[78,1], index: 9, kind: input, shape index: {}]
  %s10 = inlined_call_operand.vmem [shape: f32[2,78,8], index: 10, kind: input, shape index: {}]
  %s11 = inlined_call_operand.vmem [shape: f32[2,78,8], index: 11, kind: output, shape index: {}]
  %s12 = sld [smem:[#allocation0]]
  $region77: #{_lambda_.18} parent=0
    _
  %s14 = ssub.s32 1, %s12
  %s15 = scalar_select 0, %s14, %s12
  loop: start=0, step=1, limit=4
  $region2: #{_lambda_.18} parent=0 // loop_pre_header
    _
  $region3: #{_lambda_.18} parent=0 // loop_header
    %s17 = sphi 0, %s21
    %p18 = scmp.ge.s32.totalorder %s17, 4
    %s27 = sphi 0, %s29
    %s30 = sphi 0, %s27
    %s31 = sphi 0, %s30
    %s47 = sphi 0, %s31
    %s51 = sphi 0, %s51
    %s53 = sphi 0, %s51
    %s54 = sphi 0, %s53
    %s68 = sphi 0, %s54
    %s72 = sphi 0, %s72
    %s74 = sphi 0, %s72
    %s75 = sphi 0, %s74
    %s89 = sphi 0, %s75
    %s93 = sphi 0, %s93
    %s95 = sphi 0, %s93
    %s96 = sphi 0, %s95
    %s110 = sphi 0, %s96
    %s114 = sphi 0, %s114
    %s116 = sphi 0, %s114
    %s117 = sphi 0, %s116
    %s131 = sphi 0, %s117
    %s135 = sphi 0, %s135
    %s137 = sphi 0, %s135
    %s138 = sphi 0, %s137
    %s152 = sphi 0, %s138
    %s156 = sphi 0, %s156
    %s158 = sphi 0, %s156
    %s159 = sphi 0, %s158
    %s173 = sphi 0, %s159
    %s177 = sphi 0, %s177
    %s179 = sphi 0, %s177
    %s180 = sphi 0, %s179
    %s194 = sphi 0, %s180
    %s198 = sphi 0, %s198
    %s200 = sphi 0, %s198
    %s201 = sphi 0, %s200
    %s215 = sphi 0, %s201
    %s219 = sphi 0, %s219
    %s221 = sphi 0, %s219
    %s222 = sphi 0, %s221
    %s236 = sphi 0, %s222
    %s242 = sphi 0, %s244
    %s245 = sphi 0, %s242
    %s246 = sphi 0, %s245
    %s262 = sphi 0, %s246
    %s268 = sphi 0, %s270
    %s271 = sphi 0, %s268
    %s272 = sphi 0, %s271
    %s288 = sphi 0, %s272
  $region4: #{_lambda_.18} parent=0 // loop_header_branch
    %20 = sbr.rel (%p18) target = $region8
  $region5: #{_lambda_.18} parent=0 // loop_body
    %s22 = ssub.s32 %s17, 1
    %s23 = ssub.s32 %s17, 2
    %s24 = sadd.s32 %s17, 1
    %s25 = ssub.s32 %s17, %s24
    %p26 = scmp.eq.s32.totalorder %s25, 0
    %s28 = sadd.s32 %s27, 1
    %s29 = scalar_select %p26, %s27, %s28
    %p32 = pneg %p26
    %p33 = scmp.eq.s32.totalorder %s17, 1
    %p34 = por %p32, %p33
    %p35 = scmp.ne.s32.totalorder %s27, %s30
    %p36 = scmp.eq.s32.totalorder %s17, 0
    %p37 = por %p35, %p36
    %p38 = scmp.ne.s32.totalorder %s27, %s30
    %p39 = scmp.eq.s32.totalorder %s22, 1
    %p40 = por %p38, %p39
    %p41 = scmp.ne.s32.totalorder %s30, %s31
    %p42 = scmp.eq.s32.totalorder %s22, 0
    %p43 = por %p41, %p42
    %p44 = scmp.ne.s32.totalorder %s30, %s31
    %p45 = scmp.eq.s32.totalorder %s23, 1
    %p46 = por %p44, %p45
    %p48 = scmp.ne.s32.totalorder %s31, %s47
    %p49 = scmp.eq.s32.totalorder %s23, 0
    %p50 = por %p48, %p49
    %s52 = sadd.s32 %s51, 1
    %p55 = scmp.eq.s32.totalorder %s17, 1
    %p56 = scmp.ne.s32.totalorder %s51, %s53
    %p57 = scmp.eq.s32.totalorder %s17, 0
    %p58 = por %p56, %p57
    %p59 = scmp.ne.s32.totalorder %s51, %s53
    %p60 = scmp.eq.s32.totalorder %s22, 1
    %p61 = por %p59, %p60
    %p62 = scmp.ne.s32.totalorder %s53, %s54
    %p63 = scmp.eq.s32.totalorder %s22, 0
    %p64 = por %p62, %p63
    %p65 = scmp.ne.s32.totalorder %s53, %s54
    %p66 = scmp.eq.s32.totalorder %s23, 1
    %p67 = por %p65, %p66
    %p69 = scmp.ne.s32.totalorder %s54, %s68
    %p70 = scmp.eq.s32.totalorder %s23, 0
    %p71 = por %p69, %p70
    %s73 = sadd.s32 %s72, 1
    %p76 = scmp.eq.s32.totalorder %s17, 1
    %p77 = scmp.ne.s32.totalorder %s72, %s74
    %p78 = scmp.eq.s32.totalorder %s17, 0
    %p79 = por %p77, %p78
    %p80 = scmp.ne.s32.totalorder %s72, %s74
    %p81 = scmp.eq.s32.totalorder %s22, 1
    %p82 = por %p80, %p81
    %p83 = scmp.ne.s32.totalorder %s74, %s75
    %p84 = scmp.eq.s32.totalorder %s22, 0
    %p85 = por %p83, %p84
    %p86 = scmp.ne.s32.totalorder %s74, %s75
    %p87 = scmp.eq.s32.totalorder %s23, 1
    %p88 = por %p86, %p87
    %p90 = scmp.ne.s32.totalorder %s75, %s89
    %p91 = scmp.eq.s32.totalorder %s23, 0
    %p92 = por %p90, %p91
    %s94 = sadd.s32 %s93, 1
    %p97 = scmp.eq.s32.totalorder %s17, 1
    %p98 = scmp.ne.s32.totalorder %s93, %s95
    %p99 = scmp.eq.s32.totalorder %s17, 0
    %p100 = por %p98, %p99
    %p101 = scmp.ne.s32.totalorder %s93, %s95
    %p102 = scmp.eq.s32.totalorder %s22, 1
    %p103 = por %p101, %p102
    %p104 = scmp.ne.s32.totalorder %s95, %s96
    %p105 = scmp.eq.s32.totalorder %s22, 0
    %p106 = por %p104, %p105
    %p107 = scmp.ne.s32.totalorder %s95, %s96
    %p108 = scmp.eq.s32.totalorder %s23, 1
    %p109 = por %p107, %p108
    %p111 = scmp.ne.s32.totalorder %s96, %s110
    %p112 = scmp.eq.s32.totalorder %s23, 0
    %p113 = por %p111, %p112
    %s115 = sadd.s32 %s114, 1
    %p118 = scmp.eq.s32.totalorder %s17, 1
    %p119 = scmp.ne.s32.totalorder %s114, %s116
    %p120 = scmp.eq.s32.totalorder %s17, 0
    %p121 = por %p119, %p120
    %p122 = scmp.ne.s32.totalorder %s114, %s116
    %p123 = scmp.eq.s32.totalorder %s22, 1
    %p124 = por %p122, %p123
    %p125 = scmp.ne.s32.totalorder %s116, %s117
    %p126 = scmp.eq.s32.totalorder %s22, 0
    %p127 = por %p125, %p126
    %p128 = scmp.ne.s32.totalorder %s116, %s117
    %p129 = scmp.eq.s32.totalorder %s23, 1
    %p130 = por %p128, %p129
    %p132 = scmp.ne.s32.totalorder %s117, %s131
    %p133 = scmp.eq.s32.totalorder %s23, 0
    %p134 = por %p132, %p133
    %s136 = sadd.s32 %s135, 1
    %p139 = scmp.eq.s32.totalorder %s17, 1
    %p140 = scmp.ne.s32.totalorder %s135, %s137
    %p141 = scmp.eq.s32.totalorder %s17, 0
    %p142 = por %p140, %p141
    %p143 = scmp.ne.s32.totalorder %s135, %s137
    %p144 = scmp.eq.s32.totalorder %s22, 1
    %p145 = por %p143, %p144
    %p146 = scmp.ne.s32.totalorder %s137, %s138
    %p147 = scmp.eq.s32.totalorder %s22, 0
    %p148 = por %p146, %p147
    %p149 = scmp.ne.s32.totalorder %s137, %s138
    %p150 = scmp.eq.s32.totalorder %s23, 1
    %p151 = por %p149, %p150
    %p153 = scmp.ne.s32.totalorder %s138, %s152
    %p154 = scmp.eq.s32.totalorder %s23, 0
    %p155 = por %p153, %p154
    %s157 = sadd.s32 %s156, 1
    %p160 = scmp.eq.s32.totalorder %s17, 1
    %p161 = scmp.ne.s32.totalorder %s156, %s158
    %p162 = scmp.eq.s32.totalorder %s17, 0
    %p163 = por %p161, %p162
    %p164 = scmp.ne.s32.totalorder %s156, %s158
    %p165 = scmp.eq.s32.totalorder %s22, 1
    %p166 = por %p164, %p165
    %p167 = scmp.ne.s32.totalorder %s158, %s159
    %p168 = scmp.eq.s32.totalorder %s22, 0
    %p169 = por %p167, %p168
    %p170 = scmp.ne.s32.totalorder %s158, %s159
    %p171 = scmp.eq.s32.totalorder %s23, 1
    %p172 = por %p170, %p171
    %p174 = scmp.ne.s32.totalorder %s159, %s173
    %p175 = scmp.eq.s32.totalorder %s23, 0
    %p176 = por %p174, %p175
    %s178 = sadd.s32 %s177, 1
    %p181 = scmp.eq.s32.totalorder %s17, 1
    %p182 = scmp.ne.s32.totalorder %s177, %s179
    %p183 = scmp.eq.s32.totalorder %s17, 0
    %p184 = por %p182, %p183
    %p185 = scmp.ne.s32.totalorder %s177, %s179
    %p186 = scmp.eq.s32.totalorder %s22, 1
    %p187 = por %p185, %p186
    %p188 = scmp.ne.s32.totalorder %s179, %s180
    %p189 = scmp.eq.s32.totalorder %s22, 0
    %p190 = por %p188, %p189
    %p191 = scmp.ne.s32.totalorder %s179, %s180
    %p192 = scmp.eq.s32.totalorder %s23, 1
    %p193 = por %p191, %p192
    %p195 = scmp.ne.s32.totalorder %s180, %s194
    %p196 = scmp.eq.s32.totalorder %s23, 0
    %p197 = por %p195, %p196
    %s199 = sadd.s32 %s198, 1
    %p202 = scmp.eq.s32.totalorder %s17, 1
    %p203 = scmp.ne.s32.totalorder %s198, %s200
    %p204 = scmp.eq.s32.totalorder %s17, 0
    %p205 = por %p203, %p204
    %p206 = scmp.ne.s32.totalorder %s198, %s200
    %p207 = scmp.eq.s32.totalorder %s22, 1
    %p208 = por %p206, %p207
    %p209 = scmp.ne.s32.totalorder %s200, %s201
    %p210 = scmp.eq.s32.totalorder %s22, 0
    %p211 = por %p209, %p210
    %p212 = scmp.ne.s32.totalorder %s200, %s201
    %p213 = scmp.eq.s32.totalorder %s23, 1
    %p214 = por %p212, %p213
    %p216 = scmp.ne.s32.totalorder %s201, %s215
    %p217 = scmp.eq.s32.totalorder %s23, 0
    %p218 = por %p216, %p217
    %s220 = sadd.s32 %s219, 1
    %p223 = scmp.eq.s32.totalorder %s17, 1
    %p224 = scmp.ne.s32.totalorder %s219, %s221
    %p225 = scmp.eq.s32.totalorder %s17, 0
    %p226 = por %p224, %p225
    %p227 = scmp.ne.s32.totalorder %s219, %s221
    %p228 = scmp.eq.s32.totalorder %s22, 1
    %p229 = por %p227, %p228
    %p230 = scmp.ne.s32.totalorder %s221, %s222
    %p231 = scmp.eq.s32.totalorder %s22, 0
    %p232 = por %p230, %p231
    %p233 = scmp.ne.s32.totalorder %s221, %s222
    %p234 = scmp.eq.s32.totalorder %s23, 1
    %p235 = por %p233, %p234
    %p237 = scmp.ne.s32.totalorder %s222, %s236
    %p238 = scmp.eq.s32.totalorder %s23, 0
    %p239 = por %p237, %p238
    %s240 = ssub.s32 %s17, %s24
    %p241 = scmp.eq.s32.totalorder %s240, 0
    %s243 = sadd.s32 %s242, 1
    %s244 = scalar_select %p241, %s242, %s243
    %p247 = pneg %p241
    %p248 = scmp.eq.s32.totalorder %s17, 1
    %p249 = por %p247, %p248
    %p250 = scmp.ne.s32.totalorder %s242, %s245
    %p251 = scmp.eq.s32.totalorder %s17, 0
    %p252 = por %p250, %p251
    %p253 = scmp.ne.s32.totalorder %s242, %s245
    %p254 = scmp.eq.s32.totalorder %s22, 1
    %p255 = por %p253, %p254
    %p256 = scmp.ne.s32.totalorder %s245, %s246
    %p257 = scmp.eq.s32.totalorder %s22, 0
    %p258 = por %p256, %p257
    %p259 = scmp.ne.s32.totalorder %s245, %s246
    %p260 = scmp.eq.s32.totalorder %s23, 1
    %p261 = por %p259, %p260
    %p263 = scmp.ne.s32.totalorder %s246, %s262
    %p264 = scmp.eq.s32.totalorder %s23, 0
    %p265 = por %p263, %p264
    %s266 = ssub.s32 %s17, %s24
    %p267 = scmp.eq.s32.totalorder %s266, 0
    %s269 = sadd.s32 %s268, 1
    %s270 = scalar_select %p267, %s268, %s269
    %p273 = pneg %p267
    %p274 = scmp.eq.s32.totalorder %s17, 1
    %p275 = por %p273, %p274
    %p276 = scmp.ne.s32.totalorder %s268, %s271
    %p277 = scmp.eq.s32.totalorder %s17, 0
    %p278 = por %p276, %p277
    %p279 = scmp.ne.s32.totalorder %s268, %s271
    %p280 = scmp.eq.s32.totalorder %s22, 1
    %p281 = por %p279, %p280
    %p282 = scmp.ne.s32.totalorder %s271, %s272
    %p283 = scmp.eq.s32.totalorder %s22, 0
    %p284 = por %p282, %p283
    %p285 = scmp.ne.s32.totalorder %s271, %s272
    %p286 = scmp.eq.s32.totalorder %s23, 1
    %p287 = por %p285, %p286
    %p289 = scmp.ne.s32.totalorder %s272, %s288
    %p290 = scmp.eq.s32.totalorder %s23, 0
    %p291 = por %p289, %p290
    %p292 = scmp.le.s32.totalorder 1, %s17
    %p293 = scmp.lt.s32.totalorder %s17, 3
    %p294 = pnand %p292, %p293
    %p295 = pneg %p294
    // Predicated region
    $region9: #{_lambda_.18} parent=5 // pred_check
      _
    $region10: #{_lambda_.18} parent=5 // pred_check_branch
      %297 = sbr.rel (%p294) target = $region12
    $region11: #{_lambda_.18} parent=5 // pred_region
      %s298 = ssub.s32 %s17, 1
      // Predicated region
      $region13: #{_lambda_.18} parent=11 // pred_check
        %p299 = pneg %p64
      $region14: #{_lambda_.18} parent=11 // pred_check_branch
        %301 = sbr.rel (%p299) target = $region16
      $region15: #{_lambda_.18} parent=11 // pred_region
        _
      $region16: #{_lambda_.18} parent=11 // pred_fallthru
        _
      // Predicated region
      $region17: #{_lambda_.18} parent=11 // pred_check
        %p302 = pneg %p85
      $region18: #{_lambda_.18} parent=11 // pred_check_branch
        %304 = sbr.rel (%p302) target = $region20
      $region19: #{_lambda_.18} parent=11 // pred_region
        _
      $region20: #{_lambda_.18} parent=11 // pred_fallthru
        _
      // Predicated region
      $region21: #{_lambda_.18} parent=11 // pred_check
        %p305 = pneg %p106
      $region22: #{_lambda_.18} parent=11 // pred_check_branch
        %307 = sbr.rel (%p305) target = $region24
      $region23: #{_lambda_.18} parent=11 // pred_region
        _
      $region24: #{_lambda_.18} parent=11 // pred_fallthru
        _
      // Predicated region
      $region25: #{_lambda_.18} parent=11 // pred_check
        %p308 = pneg %p127
      $region26: #{_lambda_.18} parent=11 // pred_check_branch
        %310 = sbr.rel (%p308) target = $region28
      $region27: #{_lambda_.18} parent=11 // pred_region
        _
      $region28: #{_lambda_.18} parent=11 // pred_fallthru
        _
      // Predicated region
      $region29: #{_lambda_.18} parent=11 // pred_check
        %p311 = pneg %p148
      $region30: #{_lambda_.18} parent=11 // pred_check_branch
        %313 = sbr.rel (%p311) target = $region32
      $region31: #{_lambda_.18} parent=11 // pred_region
        _
      $region32: #{_lambda_.18} parent=11 // pred_fallthru
        _
      // Predicated region
      $region33: #{_lambda_.18} parent=11 // pred_check
        %p314 = pneg %p169
      $region34: #{_lambda_.18} parent=11 // pred_check_branch
        %316 = sbr.rel (%p314) target = $region36
      $region35: #{_lambda_.18} parent=11 // pred_region
        _
      $region36: #{_lambda_.18} parent=11 // pred_fallthru
        _
      // Predicated region
      $region37: #{_lambda_.18} parent=11 // pred_check
        %p317 = pneg %p190
      $region38: #{_lambda_.18} parent=11 // pred_check_branch
        %319 = sbr.rel (%p317) target = $region40
      $region39: #{_lambda_.18} parent=11 // pred_region
        _
      $region40: #{_lambda_.18} parent=11 // pred_fallthru
        _
      // Predicated region
      $region41: #{_lambda_.18} parent=11 // pred_check
        %p320 = pneg %p211
      $region42: #{_lambda_.18} parent=11 // pred_check_branch
        %322 = sbr.rel (%p320) target = $region44
      $region43: #{_lambda_.18} parent=11 // pred_region
        _
      $region44: #{_lambda_.18} parent=11 // pred_fallthru
        _
      // Predicated region
      $region45: #{_lambda_.18} parent=11 // pred_check
        %p323 = pneg %p232
      $region46: #{_lambda_.18} parent=11 // pred_check_branch
        %325 = sbr.rel (%p323) target = $region48
      $region47: #{_lambda_.18} parent=11 // pred_region
        _
      $region48: #{_lambda_.18} parent=11 // pred_fallthru
        _
    $region12: #{_lambda_.18} parent=5 // pred_fallthru
      _
    %p326 = scmp.lt.s32.totalorder %s17, 2
    // Predicated region
    $region49: #{_lambda_.18} parent=5 // pred_check
      %p327 = pneg %p326
    $region50: #{_lambda_.18} parent=5 // pred_check_branch
      %329 = sbr.rel (%p327) target = $region52
    $region51: #{_lambda_.18} parent=5 // pred_region
      // Predicated region
      $region53: #{_lambda_.18} parent=51 // pred_check
        %p330 = pneg %p37
      $region54: #{_lambda_.18} parent=51 // pred_check_branch
        %332 = sbr.rel (%p330) target = $region56
      $region55: #{_lambda_.18} parent=51 // pred_region
        %p333 = scmp.lt.s32.totalorder %s17, 1
        %s334 = scalar_select %p333, %s17, 1
        %s335 = smul.addr %s334, 13
        %s336 = smul.addr %s335, 8
        %s337 = scalar_lea.vmem %s0, %s336
      $region56: #{_lambda_.18} parent=51 // pred_fallthru
        _
      // Predicated region
      $region57: #{_lambda_.18} parent=51 // pred_check
        %p338 = pneg %p252
      $region58: #{_lambda_.18} parent=51 // pred_check_branch
        %340 = sbr.rel (%p338) target = $region60
      $region59: #{_lambda_.18} parent=51 // pred_region
        %p341 = scmp.lt.s32.totalorder %s17, 1
        %s342 = scalar_select %p341, %s17, 1
        %s343 = smul.addr %s342, 10
        %s344 = smul.addr %s343, 8
        %s345 = scalar_lea.vmem %s10, %s344
      $region60: #{_lambda_.18} parent=51 // pred_fallthru
        _
    $region52: #{_lambda_.18} parent=5 // pred_fallthru
      _
    %p346 = scmp.le.s32.totalorder 1, %s17
    %p347 = scmp.lt.s32.totalorder %s17, 3
    %p348 = pnand %p346, %p347
    %p349 = pneg %p348
    // Predicated region
    $region61: #{_lambda_.18} parent=5 // pred_check
      _
    $region62: #{_lambda_.18} parent=5 // pred_check_branch
      %351 = sbr.rel (%p348) target = $region64
    $region63: #{_lambda_.18} parent=5 // pred_region
      %s352 = ssub.s32 %s17, 1
      %p353 = scmp.lt.s32.totalorder %s22, 1
      %s354 = scalar_select %p353, %s22, 1
      %s355 = smul.addr %s354, 13
      %s356 = smul.addr %s355, 8
      %s357 = scalar_lea.vmem %s0, %s356
      %p358 = pneg %p43
      %p359 = pneg %p40
      %p360 = pneg %p64
      %p361 = pneg %p61
      %p362 = pneg %p85
      %p363 = pneg %p82
      %p364 = pneg %p106
      %p365 = pneg %p103
      %p366 = pneg %p127
      %p367 = pneg %p124
      %p368 = pneg %p148
      %p369 = pneg %p145
      %p370 = pneg %p169
      %p371 = pneg %p166
      %p372 = pneg %p190
      %p373 = pneg %p187
      %p374 = pneg %p211
      %p375 = pneg %p208
      %p376 = pneg %p232
      %p377 = pneg %p229
      %p378 = scmp.lt.s32.totalorder %s22, 1
      %s379 = scalar_select %p378, %s22, 1
      %s380 = smul.addr %s379, 10
      %s381 = smul.addr %s380, 8
      %s382 = scalar_lea.vmem %s10, %s381
      %p383 = pneg %p258
      %p384 = pneg %p255
      %p385 = pneg %p284
      %p386 = pneg %p281
      %p387 = scmp.lt.s32.totalorder %s22, 1
      %s388 = scalar_select %p387, %s22, 1
      %s389 = smul.addr %s388, 10
      %s390 = smul.addr %s389, 8
      %s391 = scalar_lea.vmem %s11, %s390
      %p392 = scmp.lt.s32.totalorder %s22, 1
      %s393 = scalar_select %p392, %s22, 1
      %s394 = smul.addr %s393, 13
      %s395 = smul.addr %s394, 8
      %s396 = scalar_lea.vmem %s0, %s395
      %p397 = scmp.lt.s32.totalorder %s22, 1
      %s398 = scalar_select %p397, %s22, 1
      %s399 = smul.addr %s398, 10
      %s400 = smul.addr %s399, 8
      %s401 = scalar_lea.vmem %s10, %s400
      %p402 = scmp.lt.s32.totalorder %s22, 1
      %s403 = scalar_select %p402, %s22, 1
      %s404 = smul.addr %s403, 10
      %s405 = smul.addr %s404, 8
      %s406 = scalar_lea.vmem %s11, %s405
      %v408 = vld [vmem:[%s396] sm:$0xff]
      %v409 = vld [vmem:[%s396 + $0x8] sm:$0xff]
      %v410 = vld [vmem:[%s396 + $0x10] sm:$0xff]
      %v411 = vld [vmem:[%s396 + $0x18] sm:$0xff]
      %v412 = vld [vmem:[%s396 + $0x20] sm:$0xff]
      %v413 = vld [vmem:[%s396 + $0x28] sm:$0xff]
      %v414 = vld [vmem:[%s396 + $0x30] sm:$0xff]
      %v415 = vld [vmem:[%s396 + $0x38] sm:$0xff]
      %v416 = vld [vmem:[%s396 + $0x40] sm:$0xff]
      %v417 = vld [vmem:[%s396 + $0x48] sm:$0x3f]
      %v418 = vmax.f32 %v408, 0.0
      %v419 = vmax.f32 %v409, 0.0
      %v420 = vmax.f32 %v410, 0.0
      %v421 = vmax.f32 %v411, 0.0
      %v422 = vmax.f32 %v412, 0.0
      %v423 = vmax.f32 %v413, 0.0
      %v424 = vmax.f32 %v414, 0.0
      %v425 = vmax.f32 %v415, 0.0
      %v426 = vmax.f32 %v416, 0.0
      %v427 = vmax.f32 %v417, 0.0
      %v428 = vld [vmem:[%s1] sm:$0x1]
      %v429 = vlaneseq
      %v430 = vshrl.u32 %v429, 7
      %v431 = vsub.s32 0, %v430
      %v432 = vrot.slane %v428, %v431
      %v433 = vmul.f32 %v418, %v432
      %v434 = vmul.f32 %v419, %v432
      %v435 = vmul.f32 %v420, %v432
      %v436 = vmul.f32 %v421, %v432
      %v437 = vmul.f32 %v422, %v432
      %v438 = vmul.f32 %v423, %v432
      %v439 = vmul.f32 %v424, %v432
      %v440 = vmul.f32 %v425, %v432
      %v441 = vmul.f32 %v426, %v432
      %v442 = vmul.f32 %v427, %v432
      %v443 = vadd.f32 %v433, 0.0
      %v444 = vadd.f32 %v434, 0.0
      %v445 = vadd.f32 %v435, 0.0
      %v446 = vadd.f32 %v436, 0.0
      %v447 = vadd.f32 %v437, 0.0
      %v448 = vadd.f32 %v438, 0.0
      %v449 = vadd.f32 %v439, 0.0
      %v450 = vadd.f32 %v440, 0.0
      %v451 = vadd.f32 %v441, 0.0
      %v452 = vadd.f32 %v442, 0.0
      %v453 = vld [vmem:[%s396 + $0x1] sm:$0xff]
      %v454 = vld [vmem:[%s396 + $0x9] sm:$0xff]
      %v455 = vld [vmem:[%s396 + $0x11] sm:$0xff]
      %v456 = vld [vmem:[%s396 + $0x19] sm:$0xff]
      %v457 = vld [vmem:[%s396 + $0x21] sm:$0xff]
      %v458 = vld [vmem:[%s396 + $0x29] sm:$0xff]
      %v459 = vld [vmem:[%s396 + $0x31] sm:$0xff]
      %v460 = vld [vmem:[%s396 + $0x39] sm:$0xff]
      %v461 = vld [vmem:[%s396 + $0x41] sm:$0xff]
      %v462 = vld [vmem:[%s396 + $0x49] sm:$0x3f]
      %v463 = vmax.f32 %v453, 0.0
      %v464 = vmax.f32 %v454, 0.0
      %v465 = vmax.f32 %v455, 0.0
      %v466 = vmax.f32 %v456, 0.0
      %v467 = vmax.f32 %v457, 0.0
      %v468 = vmax.f32 %v458, 0.0
      %v469 = vmax.f32 %v459, 0.0
      %v470 = vmax.f32 %v460, 0.0
      %v471 = vmax.f32 %v461, 0.0
      %v472 = vmax.f32 %v462, 0.0
      %v473 = vld [vmem:[%s1 + $0x1] sm:$0x1]
      %v474 = vlaneseq
      %v475 = vshrl.u32 %v474, 7
      %v476 = vsub.s32 0, %v475
      %v477 = vrot.slane %v473, %v476
      %v478 = vmul.f32 %v463, %v477
      %v479 = vmul.f32 %v464, %v477
      %v480 = vmul.f32 %v465, %v477
      %v481 = vmul.f32 %v466, %v477
      %v482 = vmul.f32 %v467, %v477
      %v483 = vmul.f32 %v468, %v477
      %v484 = vmul.f32 %v469, %v477
      %v485 = vmul.f32 %v470, %v477
      %v486 = vmul.f32 %v471, %v477
      %v487 = vmul.f32 %v472, %v477
      %v488 = vadd.f32 %v443, %v478
      %v489 = vadd.f32 %v444, %v479
      %v490 = vadd.f32 %v445, %v480
      %v491 = vadd.f32 %v446, %v481
      %v492 = vadd.f32 %v447, %v482
      %v493 = vadd.f32 %v448, %v483
      %v494 = vadd.f32 %v449, %v484
      %v495 = vadd.f32 %v450, %v485
      %v496 = vadd.f32 %v451, %v486
      %v497 = vadd.f32 %v452, %v487
      %v498 = vld [vmem:[%s396 + $0x2] sm:$0xff]
      %v499 = vld [vmem:[%s396 + $0xa] sm:$0xff]
      %v500 = vld [vmem:[%s396 + $0x12] sm:$0xff]
      %v501 = vld [vmem:[%s396 + $0x1a] sm:$0xff]
      %v502 = vld [vmem:[%s396 + $0x22] sm:$0xff]
      %v503 = vld [vmem:[%s396 + $0x2a] sm:$0xff]
      %v504 = vld [vmem:[%s396 + $0x32] sm:$0xff]
      %v505 = vld [vmem:[%s396 + $0x3a] sm:$0xff]
      %v506 = vld [vmem:[%s396 + $0x42] sm:$0xff]
      %v507 = vld [vmem:[%s396 + $0x4a] sm:$0x3f]
      %v508 = vmax.f32 %v498, 0.0
      %v509 = vmax.f32 %v499, 0.0
      %v510 = vmax.f32 %v500, 0.0
      %v511 = vmax.f32 %v501, 0.0
      %v512 = vmax.f32 %v502, 0.0
      %v513 = vmax.f32 %v503, 0.0
      %v514 = vmax.f32 %v504, 0.0
      %v515 = vmax.f32 %v505, 0.0
      %v516 = vmax.f32 %v506, 0.0
      %v517 = vmax.f32 %v507, 0.0
      %v518 = vld [vmem:[%s1 + $0x2] sm:$0x1]
      %v519 = vlaneseq
      %v520 = vshrl.u32 %v519, 7
      %v521 = vsub.s32 0, %v520
      %v522 = vrot.slane %v518, %v521
      %v523 = vmul.f32 %v508, %v522
      %v524 = vmul.f32 %v509, %v522
      %v525 = vmul.f32 %v510, %v522
      %v526 = vmul.f32 %v511, %v522
      %v527 = vmul.f32 %v512, %v522
      %v528 = vmul.f32 %v513, %v522
      %v529 = vmul.f32 %v514, %v522
      %v530 = vmul.f32 %v515, %v522
      %v531 = vmul.f32 %v516, %v522
      %v532 = vmul.f32 %v517, %v522
      %v533 = vadd.f32 %v488, %v523
      %v534 = vadd.f32 %v489, %v524
      %v535 = vadd.f32 %v490, %v525
      %v536 = vadd.f32 %v491, %v526
      %v537 = vadd.f32 %v492, %v527
      %v538 = vadd.f32 %v493, %v528
      %v539 = vadd.f32 %v494, %v529
      %v540 = vadd.f32 %v495, %v530
      %v541 = vadd.f32 %v496, %v531
      %v542 = vadd.f32 %v497, %v532
      %v543 = vld [vmem:[%s396 + $0x4a] sm:$0xff]
      %v544 = vld [vmem:[%s396 + $0x52] sm:$0x3f]
      %v545 = vmax.f32 %v543, 0.0
      %v546 = vmax.f32 %v544, 0.0
      %v547 = vld [vmem:[%s1 + $0x3] sm:$0x1]
      %v548 = vlaneseq
      %v549 = vshrl.u32 %v548, 7
      %v550 = vsub.s32 0, %v549
      %v551 = vrot.slane %v547, %v550
      %v552 = vmul.f32 %v509, %v551
      %v553 = vmul.f32 %v510, %v551
      %v554 = vmul.f32 %v511, %v551
      %v555 = vmul.f32 %v512, %v551
      %v556 = vmul.f32 %v513, %v551
      %v557 = vmul.f32 %v514, %v551
      %v558 = vmul.f32 %v515, %v551
      %v559 = vmul.f32 %v516, %v551
      %v560 = vmul.f32 %v545, %v551
      %v561 = vmul.f32 %v546, %v551
      %v562 = vadd.f32 %v533, %v552
      %v563 = vadd.f32 %v534, %v553
      %v564 = vadd.f32 %v535, %v554
      %v565 = vadd.f32 %v536, %v555
      %v566 = vadd.f32 %v537, %v556
      %v567 = vadd.f32 %v538, %v557
      %v568 = vadd.f32 %v539, %v558
      %v569 = vadd.f32 %v540, %v559
      %v570 = vadd.f32 %v541, %v560
      %v571 = vadd.f32 %v542, %v561
      %v572 = vld [vmem:[%s396 + $0xb] sm:$0xff]
      %v573 = vld [vmem:[%s396 + $0x13] sm:$0xff]
      %v574 = vld [vmem:[%s396 + $0x1b] sm:$0xff]
      %v575 = vld [vmem:[%s396 + $0x23] sm:$0xff]
      %v576 = vld [vmem:[%s396 + $0x2b] sm:$0xff]
      %v577 = vld [vmem:[%s396 + $0x33] sm:$0xff]
      %v578 = vld [vmem:[%s396 + $0x3b] sm:$0xff]
      %v579 = vld [vmem:[%s396 + $0x43] sm:$0xff]
      %v580 = vld [vmem:[%s396 + $0x4b] sm:$0xff]
      %v581 = vld [vmem:[%s396 + $0x53] sm:$0x3f]
      %v582 = vmax.f32 %v572, 0.0
      %v583 = vmax.f32 %v573, 0.0
      %v584 = vmax.f32 %v574, 0.0
      %v585 = vmax.f32 %v575, 0.0
      %v586 = vmax.f32 %v576, 0.0
      %v587 = vmax.f32 %v577, 0.0
      %v588 = vmax.f32 %v578, 0.0
      %v589 = vmax.f32 %v579, 0.0
      %v590 = vmax.f32 %v580, 0.0
      %v591 = vmax.f32 %v581, 0.0
      %v592 = vld [vmem:[%s1 + $0x4] sm:$0x1]
      %v593 = vlaneseq
      %v594 = vshrl.u32 %v593, 7
      %v595 = vsub.s32 0, %v594
      %v596 = vrot.slane %v592, %v595
      %v597 = vmul.f32 %v582, %v596
      %v598 = vmul.f32 %v583, %v596
      %v599 = vmul.f32 %v584, %v596
      %v600 = vmul.f32 %v585, %v596
      %v601 = vmul.f32 %v586, %v596
      %v602 = vmul.f32 %v587, %v596
      %v603 = vmul.f32 %v588, %v596
      %v604 = vmul.f32 %v589, %v596
      %v605 = vmul.f32 %v590, %v596
      %v606 = vmul.f32 %v591, %v596
      %v607 = vadd.f32 %v562, %v597
      %v608 = vadd.f32 %v563, %v598
      %v609 = vadd.f32 %v564, %v599
      %v610 = vadd.f32 %v565, %v600
      %v611 = vadd.f32 %v566, %v601
      %v612 = vadd.f32 %v567, %v602
      %v613 = vadd.f32 %v568, %v603
      %v614 = vadd.f32 %v569, %v604
      %v615 = vadd.f32 %v570, %v605
      %v616 = vadd.f32 %v571, %v606
      %v617 = vld [vmem:[%s396 + $0xc] sm:$0xff]
      %v618 = vld [vmem:[%s396 + $0x14] sm:$0xff]
      %v619 = vld [vmem:[%s396 + $0x1c] sm:$0xff]
      %v620 = vld [vmem:[%s396 + $0x24] sm:$0xff]
      %v621 = vld [vmem:[%s396 + $0x2c] sm:$0xff]
      %v622 = vld [vmem:[%s396 + $0x34] sm:$0xff]
      %v623 = vld [vmem:[%s396 + $0x3c] sm:$0xff]
      %v624 = vld [vmem:[%s396 + $0x44] sm:$0xff]
      %v625 = vld [vmem:[%s396 + $0x4c] sm:$0xff]
      %v626 = vld [vmem:[%s396 + $0x54] sm:$0x3f]
      %v627 = vmax.f32 %v617, 0.0
      %v628 = vmax.f32 %v618, 0.0
      %v629 = vmax.f32 %v619, 0.0
      %v630 = vmax.f32 %v620, 0.0
      %v631 = vmax.f32 %v621, 0.0
      %v632 = vmax.f32 %v622, 0.0
      %v633 = vmax.f32 %v623, 0.0
      %v634 = vmax.f32 %v624, 0.0
      %v635 = vmax.f32 %v625, 0.0
      %v636 = vmax.f32 %v626, 0.0
      %v637 = vld [vmem:[%s1 + $0x5] sm:$0x1]
      %v638 = vlaneseq
      %v639 = vshrl.u32 %v638, 7
      %v640 = vsub.s32 0, %v639
      %v641 = vrot.slane %v637, %v640
      %v642 = vmul.f32 %v627, %v641
      %v643 = vmul.f32 %v628, %v641
      %v644 = vmul.f32 %v629, %v641
      %v645 = vmul.f32 %v630, %v641
      %v646 = vmul.f32 %v631, %v641
      %v647 = vmul.f32 %v632, %v641
      %v648 = vmul.f32 %v633, %v641
      %v649 = vmul.f32 %v634, %v641
      %v650 = vmul.f32 %v635, %v641
      %v651 = vmul.f32 %v636, %v641
      %v652 = vadd.f32 %v607, %v642
      %v653 = vadd.f32 %v608, %v643
      %v654 = vadd.f32 %v609, %v644
      %v655 = vadd.f32 %v610, %v645
      %v656 = vadd.f32 %v611, %v646
      %v657 = vadd.f32 %v612, %v647
      %v658 = vadd.f32 %v613, %v648
      %v659 = vadd.f32 %v614, %v649
      %v660 = vadd.f32 %v615, %v650
      %v661 = vadd.f32 %v616, %v651
      %v662 = vld [vmem:[%s396 + $0x54] sm:$0xff]
      %v663 = vld [vmem:[%s396 + $0x5c] sm:$0x3f]
      %v664 = vmax.f32 %v662, 0.0
      %v665 = vmax.f32 %v663, 0.0
      %v666 = vld [vmem:[%s1 + $0x6] sm:$0x1]
      %v667 = vlaneseq
      %v668 = vshrl.u32 %v667, 7
      %v669 = vsub.s32 0, %v668
      %v670 = vrot.slane %v666, %v669
      %v671 = vmul.f32 %v628, %v670
      %v672 = vmul.f32 %v629, %v670
      %v673 = vmul.f32 %v630, %v670
      %v674 = vmul.f32 %v631, %v670
      %v675 = vmul.f32 %v632, %v670
      %v676 = vmul.f32 %v633, %v670
      %v677 = vmul.f32 %v634, %v670
      %v678 = vmul.f32 %v635, %v670
      %v679 = vmul.f32 %v664, %v670
      %v680 = vmul.f32 %v665, %v670
      %v681 = vadd.f32 %v652, %v671
      %v682 = vadd.f32 %v653, %v672
      %v683 = vadd.f32 %v654, %v673
      %v684 = vadd.f32 %v655, %v674
      %v685 = vadd.f32 %v656, %v675
      %v686 = vadd.f32 %v657, %v676
      %v687 = vadd.f32 %v658, %v677
      %v688 = vadd.f32 %v659, %v678
      %v689 = vadd.f32 %v660, %v679
      %v690 = vadd.f32 %v661, %v680
      %v691 = vld [vmem:[%s396 + $0x15] sm:$0xff]
      %v692 = vld [vmem:[%s396 + $0x1d] sm:$0xff]
      %v693 = vld [vmem:[%s396 + $0x25] sm:$0xff]
      %v694 = vld [vmem:[%s396 + $0x2d] sm:$0xff]
      %v695 = vld [vmem:[%s396 + $0x35] sm:$0xff]
      %v696 = vld [vmem:[%s396 + $0x3d] sm:$0xff]
      %v697 = vld [vmem:[%s396 + $0x45] sm:$0xff]
      %v698 = vld [vmem:[%s396 + $0x4d] sm:$0xff]
      %v699 = vld [vmem:[%s396 + $0x55] sm:$0xff]
      %v700 = vld [vmem:[%s396 + $0x5d] sm:$0x3f]
      %v701 = vmax.f32 %v691, 0.0
      %v702 = vmax.f32 %v692, 0.0
      %v703 = vmax.f32 %v693, 0.0
      %v704 = vmax.f32 %v694, 0.0
      %v705 = vmax.f32 %v695, 0.0
      %v706 = vmax.f32 %v696, 0.0
      %v707 = vmax.f32 %v697, 0.0
      %v708 = vmax.f32 %v698, 0.0
      %v709 = vmax.f32 %v699, 0.0
      %v710 = vmax.f32 %v700, 0.0
      %v711 = vld [vmem:[%s1 + $0x7] sm:$0x1]
      %v712 = vlaneseq
      %v713 = vshrl.u32 %v712, 7
      %v714 = vsub.s32 0, %v713
      %v715 = vrot.slane %v711, %v714
      %v716 = vmul.f32 %v701, %v715
      %v717 = vmul.f32 %v702, %v715
      %v718 = vmul.f32 %v703, %v715
      %v719 = vmul.f32 %v704, %v715
      %v720 = vmul.f32 %v705, %v715
      %v721 = vmul.f32 %v706, %v715
      %v722 = vmul.f32 %v707, %v715
      %v723 = vmul.f32 %v708, %v715
      %v724 = vmul.f32 %v709, %v715
      %v725 = vmul.f32 %v710, %v715
      %v726 = vadd.f32 %v681, %v716
      %v727 = vadd.f32 %v682, %v717
      %v728 = vadd.f32 %v683, %v718
      %v729 = vadd.f32 %v684, %v719
      %v730 = vadd.f32 %v685, %v720
      %v731 = vadd.f32 %v686, %v721
      %v732 = vadd.f32 %v687, %v722
      %v733 = vadd.f32 %v688, %v723
      %v734 = vadd.f32 %v689, %v724
      %v735 = vadd.f32 %v690, %v725
      %v736 = vld [vmem:[%s396 + $0x16] sm:$0xff]
      %v737 = vld [vmem:[%s396 + $0x1e] sm:$0xff]
      %v738 = vld [vmem:[%s396 + $0x26] sm:$0xff]
      %v739 = vld [vmem:[%s396 + $0x2e] sm:$0xff]
      %v740 = vld [vmem:[%s396 + $0x36] sm:$0xff]
      %v741 = vld [vmem:[%s396 + $0x3e] sm:$0xff]
      %v742 = vld [vmem:[%s396 + $0x46] sm:$0xff]
      %v743 = vld [vmem:[%s396 + $0x4e] sm:$0xff]
      %v744 = vld [vmem:[%s396 + $0x56] sm:$0xff]
      %v745 = vld [vmem:[%s396 + $0x5e] sm:$0x3f]
      %v746 = vmax.f32 %v736, 0.0
      %v747 = vmax.f32 %v737, 0.0
      %v748 = vmax.f32 %v738, 0.0
      %v749 = vmax.f32 %v739, 0.0
      %v750 = vmax.f32 %v740, 0.0
      %v751 = vmax.f32 %v741, 0.0
      %v752 = vmax.f32 %v742, 0.0
      %v753 = vmax.f32 %v743, 0.0
      %v754 = vmax.f32 %v744, 0.0
      %v755 = vmax.f32 %v745, 0.0
      %v756 = vld [vmem:[%s1 + $0x8] sm:$0x1]
      %v757 = vlaneseq
      %v758 = vshrl.u32 %v757, 7
      %v759 = vsub.s32 0, %v758
      %v760 = vrot.slane %v756, %v759
      %v761 = vmul.f32 %v746, %v760
      %v762 = vmul.f32 %v747, %v760
      %v763 = vmul.f32 %v748, %v760
      %v764 = vmul.f32 %v749, %v760
      %v765 = vmul.f32 %v750, %v760
      %v766 = vmul.f32 %v751, %v760
      %v767 = vmul.f32 %v752, %v760
      %v768 = vmul.f32 %v753, %v760
      %v769 = vmul.f32 %v754, %v760
      %v770 = vmul.f32 %v755, %v760
      %v771 = vadd.f32 %v726, %v761
      %v772 = vadd.f32 %v727, %v762
      %v773 = vadd.f32 %v728, %v763
      %v774 = vadd.f32 %v729, %v764
      %v775 = vadd.f32 %v730, %v765
      %v776 = vadd.f32 %v731, %v766
      %v777 = vadd.f32 %v732, %v767
      %v778 = vadd.f32 %v733, %v768
      %v779 = vadd.f32 %v734, %v769
      %v780 = vadd.f32 %v735, %v770
      %v781 = vpack.c.bf16 %v772, %v771
      %v782 = vpack.c.bf16 %v774, %v773
      %v783 = vpack.c.bf16 %v776, %v775
      %v784 = vpack.c.bf16 %v778, %v777
      %v785 = vpack.c.bf16 %v780, %v779
      %v786 = vld [vmem:[%s2] sm:$0xf]
      %vm787 = vcmask 64512
      %v789 = vsel %vm787, %v781, 0
      %v792 = vsel %vm787, %v782, 0
      %v795 = vsel %vm787, %v783, 0
      %v798 = vsel %vm787, %v784, 0
      %v801 = vsel %vm787, %v785, 0
      %vm803 = vcmask 1043456
      %v805 = vsel %vm803, %v786, 0
      %807 = vmatprep.subr.bf16.mxu0 0
      %808 = vmatpush1.bf16.msra.mxu0 0
      %809 = vmatprep.subr.bf16.mxu0 0
      %810 = vmatpush1.bf16.msra.mxu0 0
      %811 = vmatprep.subr.bf16.mxu0 0
      %812 = vmatpush1.bf16.msra.mxu0 0
      %813 = vmatprep.subr.bf16.mxu0 0
      %814 = vmatpush1.bf16.msra.mxu0 0
      %815 = vmatprep.subr.bf16.mxu0 0
      %816 = vmatpush1.bf16.msra.mxu0 0
      %817 = vmatprep.subr.bf16.mxu0 0
      %818 = vmatpush1.bf16.msra.mxu0 0
      %819 = vmatprep.subr.bf16.mxu0 0
      %820 = vmatpush1.bf16.msra.mxu0 0
      %821 = vmatprep.subr.bf16.mxu0 0
      %822 = vmatpush1.bf16.msra.mxu0 %v805
      %823 = vmatprep.subr.bf16.mxu0 0
      %824 = vmatpush2.bf16.msra.mxu0 0
      %825 = vmatprep.subr.bf16.mxu0 0
      %826 = vmatpush2.bf16.msra.mxu0 0
      %827 = vmatprep.subr.bf16.mxu0 0
      %828 = vmatpush2.bf16.msra.mxu0 0
      %829 = vmatprep.subr.bf16.mxu0 0
      %830 = vmatpush2.bf16.msra.mxu0 0
      %831 = vmatprep.subr.bf16.mxu0 0
      %832 = vmatpush2.bf16.msra.mxu0 0
      %833 = vmatprep.subr.bf16.mxu0 0
      %834 = vmatpush2.bf16.msra.mxu0 0
      %835 = vmatprep.subr.bf16.mxu0 0
      %836 = vmatpush2.bf16.msra.mxu0 0
      %837 = vmatprep.subr.bf16.mxu0 0
      %838 = vmatpush2.bf16.msra.mxu0 0
      %839 = vmatprep.mubr.bf16.mxu0 0
      %840 = vmatmul.mubr.bf16.gmra.mxu0 %v789
      %v841 = vpop.f32.mrf.mxu0
      %v842 = vadd.f32 0.0, %v841
      %v843 = vpop.f32.mrf.mxu0
      %v844 = vpop.f32.mrf.mxu0
      %v845 = vadd.f32 0.0, %v844
      %v846 = vpop.f32.mrf.mxu0
      %847 = vmatprep.mubr.bf16.mxu0 0
      %848 = vmatmul.mubr.bf16.gmra.mxu0 %v792
      %v849 = vpop.f32.mrf.mxu0
      %v850 = vadd.f32 0.0, %v849
      %v851 = vpop.f32.mrf.mxu0
      %v852 = vpop.f32.mrf.mxu0
      %v853 = vadd.f32 0.0, %v852
      %v854 = vpop.f32.mrf.mxu0
      %855 = vmatprep.mubr.bf16.mxu0 0
      %856 = vmatmul.mubr.bf16.gmra.mxu0 %v795
      %v857 = vpop.f32.mrf.mxu0
      %v858 = vadd.f32 0.0, %v857
      %v859 = vpop.f32.mrf.mxu0
      %v860 = vpop.f32.mrf.mxu0
      %v861 = vadd.f32 0.0, %v860
      %v862 = vpop.f32.mrf.mxu0
      %863 = vmatprep.mubr.bf16.mxu0 0
      %864 = vmatmul.mubr.bf16.gmra.mxu0 %v798
      %v865 = vpop.f32.mrf.mxu0
      %v866 = vadd.f32 0.0, %v865
      %v867 = vpop.f32.mrf.mxu0
      %v868 = vpop.f32.mrf.mxu0
      %v869 = vadd.f32 0.0, %v868
      %v870 = vpop.f32.mrf.mxu0
      %871 = vmatprep.mubr.bf16.mxu0 0
      %872 = vmatmul.mubr.bf16.gmra.mxu0 %v801
      %v873 = vpop.f32.mrf.mxu0
      %v874 = vadd.f32 0.0, %v873
      %v875 = vpop.f32.mrf.mxu0
      %v876 = vpop.f32.mrf.mxu0
      %v877 = vadd.f32 0.0, %v876
      %v878 = vpop.f32.mrf.mxu0
      %879 = vdwg.mxu0
      %v880 = vld [vmem:[%s3] sm:$0x1]
      %v882 = vlaneseq
      %v883 = vshrl.u32 %v882, 7
      %v884 = vsub.s32 0, %v883
      %v885 = vrot.slane %v880, %v884
      %v887 = vmul.f32 %v842, %v885
      %v888 = vmul.f32 %v845, %v885
      %v889 = vmul.f32 %v850, %v885
      %v890 = vmul.f32 %v853, %v885
      %v891 = vmul.f32 %v858, %v885
      %v892 = vmul.f32 %v861, %v885
      %v893 = vmul.f32 %v866, %v885
      %v894 = vmul.f32 %v869, %v885
      %v895 = vmul.f32 %v874, %v885
      %v896 = vmul.f32 %v877, %v885
      %v897 = vld [vmem:[%s4] sm:$0x1]
      %v899 = vlaneseq
      %v900 = vshrl.u32 %v899, 7
      %v901 = vsub.s32 0, %v900
      %v902 = vrot.slane %v897, %v901
      %v904 = vadd.f32 %v887, %v902
      %v905 = vadd.f32 %v888, %v902
      %v906 = vadd.f32 %v889, %v902
      %v907 = vadd.f32 %v890, %v902
      %v908 = vadd.f32 %v891, %v902
      %v909 = vadd.f32 %v892, %v902
      %v910 = vadd.f32 %v893, %v902
      %v911 = vadd.f32 %v894, %v902
      %v912 = vadd.f32 %v895, %v902
      %v913 = vadd.f32 %v896, %v902
      %v914 = vld [vmem:[%s9] sm:$0xff]
      %v915 = vld [vmem:[%s9 + $0x8] sm:$0xff]
      %v916 = vld [vmem:[%s9 + $0x10] sm:$0xff]
      %v917 = vld [vmem:[%s9 + $0x18] sm:$0xff]
      %v918 = vld [vmem:[%s9 + $0x20] sm:$0xff]
      %v919 = vld [vmem:[%s9 + $0x28] sm:$0xff]
      %v920 = vld [vmem:[%s9 + $0x30] sm:$0xff]
      %v921 = vld [vmem:[%s9 + $0x38] sm:$0xff]
      %v922 = vld [vmem:[%s9 + $0x40] sm:$0xff]
      %v923 = vld [vmem:[%s9 + $0x48] sm:$0x3f]
      %925 = vset.pattern.permute.xlu0 0
      %926 = vperm.xlu0 %925, %v914
      %v927 = vpop.permute.xlu0 %926
      %930 = vset.pattern.permute.xlu0 0
      %931 = vperm.xlu0 %930, %v915
      %v932 = vpop.permute.xlu0 %931
      %935 = vset.pattern.permute.xlu0 0
      %936 = vperm.xlu0 %935, %v916
      %v937 = vpop.permute.xlu0 %936
      %940 = vset.pattern.permute.xlu0 0
      %941 = vperm.xlu0 %940, %v917
      %v942 = vpop.permute.xlu0 %941
      %945 = vset.pattern.permute.xlu0 0
      %946 = vperm.xlu0 %945, %v918
      %v947 = vpop.permute.xlu0 %946
      %950 = vset.pattern.permute.xlu0 0
      %951 = vperm.xlu0 %950, %v919
      %v952 = vpop.permute.xlu0 %951
      %955 = vset.pattern.permute.xlu0 0
      %956 = vperm.xlu0 %955, %v920
      %v957 = vpop.permute.xlu0 %956
      %960 = vset.pattern.permute.xlu0 0
      %961 = vperm.xlu0 %960, %v921
      %v962 = vpop.permute.xlu0 %961
      %965 = vset.pattern.permute.xlu0 0
      %966 = vperm.xlu0 %965, %v922
      %v967 = vpop.permute.xlu0 %966
      %970 = vset.pattern.permute.xlu0 0
      %971 = vperm.xlu0 %970, %v923
      %v972 = vpop.permute.xlu0 %971
      %v974 = vmul.f32 %v904, %v927
      %v975 = vmul.f32 %v905, %v932
      %v976 = vmul.f32 %v906, %v937
      %v977 = vmul.f32 %v907, %v942
      %v978 = vmul.f32 %v908, %v947
      %v979 = vmul.f32 %v909, %v952
      %v980 = vmul.f32 %v910, %v957
      %v981 = vmul.f32 %v911, %v962
      %v982 = vmul.f32 %v912, %v967
      %v983 = vmul.f32 %v913, %v972
      %984 = vst.msk [vmem:[#allocation2] sm:$0xff] %vm787, 0.0
      %985 = vst.msk [vmem:[#allocation2 + $0x8] sm:$0xff] %vm787, 0.0
      %986 = vst.msk [vmem:[#allocation2 + $0x10] sm:$0xff] %vm787, 0.0
      %987 = vst.msk [vmem:[#allocation2 + $0x18] sm:$0xff] %vm787, 0.0
      %988 = vst.msk [vmem:[#allocation2 + $0x20] sm:$0xff] %vm787, 0.0
      %989 = vst.msk [vmem:[#allocation2 + $0x28] sm:$0xff] %vm787, 0.0
      %990 = vst.msk [vmem:[#allocation2 + $0x30] sm:$0xff] %vm787, 0.0
      %991 = vst.msk [vmem:[#allocation2 + $0x38] sm:$0xff] %vm787, 0.0
      %992 = vst.msk [vmem:[#allocation2 + $0x40] sm:$0xff] %vm787, 0.0
      %993 = vst.msk [vmem:[#allocation2 + $0x48] sm:$0xff] %vm787, 0.0
      %994 = vst.msk [vmem:[#allocation2 + $0x50] sm:$0xff] %vm787, 0.0
      %995 = vst.msk [vmem:[#allocation2 + $0x58] sm:$0xff] %vm787, 0.0
      %vm996 = vcmask 60416
      %997 = vst.msk [vmem:[#allocation2 + $0x60] sm:$0xf] %vm996, 0.0
      %998 = vst.msk [vmem:[#allocation2 + $0xb] sm:$0xff] %vm787, %v974
      %999 = vst.msk [vmem:[#allocation2 + $0x13] sm:$0xff] %vm787, %v975
      %1000 = vst.msk [vmem:[#allocation2 + $0x1b] sm:$0xff] %vm787, %v976
      %1001 = vst.msk [vmem:[#allocation2 + $0x23] sm:$0xff] %vm787, %v977
      %1002 = vst.msk [vmem:[#allocation2 + $0x2b] sm:$0xff] %vm787, %v978
      %1003 = vst.msk [vmem:[#allocation2 + $0x33] sm:$0xff] %vm787, %v979
      %1004 = vst.msk [vmem:[#allocation2 + $0x3b] sm:$0xff] %vm787, %v980
      %1005 = vst.msk [vmem:[#allocation2 + $0x43] sm:$0xff] %vm787, %v981
      %1006 = vst.msk [vmem:[#allocation2 + $0x4b] sm:$0xff] %vm787, %v982
      %vm1007 = vcmask 62464
      %1008 = vst.msk [vmem:[#allocation2 + $0x53] sm:$0x3f] %vm1007, %v983
      %v1009 = vld [vmem:[#allocation2] sm:$0xff]
      %v1010 = vld [vmem:[#allocation2 + $0x8] sm:$0xff]
      %v1011 = vld [vmem:[#allocation2 + $0x10] sm:$0xff]
      %v1012 = vld [vmem:[#allocation2 + $0x18] sm:$0xff]
      %v1013 = vld [vmem:[#allocation2 + $0x20] sm:$0xff]
      %v1014 = vld [vmem:[#allocation2 + $0x28] sm:$0xff]
      %v1015 = vld [vmem:[#allocation2 + $0x30] sm:$0xff]
      %v1016 = vld [vmem:[#allocation2 + $0x38] sm:$0xff]
      %v1017 = vld [vmem:[#allocation2 + $0x40] sm:$0xff]
      %v1018 = vld [vmem:[#allocation2 + $0x48] sm:$0x3f]
      %v1019 = vmax.f32 %v1009, 0.0
      %v1020 = vmax.f32 %v1010, 0.0
      %v1021 = vmax.f32 %v1011, 0.0
      %v1022 = vmax.f32 %v1012, 0.0
      %v1023 = vmax.f32 %v1013, 0.0
      %v1024 = vmax.f32 %v1014, 0.0
      %v1025 = vmax.f32 %v1015, 0.0
      %v1026 = vmax.f32 %v1016, 0.0
      %v1027 = vmax.f32 %v1017, 0.0
      %v1028 = vmax.f32 %v1018, 0.0
      %v1029 = vld [vmem:[%s5] sm:$0x1]
      %v1030 = vlaneseq
      %v1031 = vshrl.u32 %v1030, 7
      %v1032 = vsub.s32 0, %v1031
      %v1033 = vrot.slane %v1029, %v1032
      %v1034 = vmul.f32 %v1019, %v1033
      %v1035 = vmul.f32 %v1020, %v1033
      %v1036 = vmul.f32 %v1021, %v1033
      %v1037 = vmul.f32 %v1022, %v1033
      %v1038 = vmul.f32 %v1023, %v1033
      %v1039 = vmul.f32 %v1024, %v1033
      %v1040 = vmul.f32 %v1025, %v1033
      %v1041 = vmul.f32 %v1026, %v1033
      %v1042 = vmul.f32 %v1027, %v1033
      %v1043 = vmul.f32 %v1028, %v1033
      %v1044 = vadd.f32 %v1034, 0.0
      %v1045 = vadd.f32 %v1035, 0.0
      %v1046 = vadd.f32 %v1036, 0.0
      %v1047 = vadd.f32 %v1037, 0.0
      %v1048 = vadd.f32 %v1038, 0.0
      %v1049 = vadd.f32 %v1039, 0.0
      %v1050 = vadd.f32 %v1040, 0.0
      %v1051 = vadd.f32 %v1041, 0.0
      %v1052 = vadd.f32 %v1042, 0.0
      %v1053 = vadd.f32 %v1043, 0.0
      %v1054 = vld [vmem:[#allocation2 + $0x1] sm:$0xff]
      %v1055 = vld [vmem:[#allocation2 + $0x9] sm:$0xff]
      %v1056 = vld [vmem:[#allocation2 + $0x11] sm:$0xff]
      %v1057 = vld [vmem:[#allocation2 + $0x19] sm:$0xff]
      %v1058 = vld [vmem:[#allocation2 + $0x21] sm:$0xff]
      %v1059 = vld [vmem:[#allocation2 + $0x29] sm:$0xff]
      %v1060 = vld [vmem:[#allocation2 + $0x31] sm:$0xff]
      %v1061 = vld [vmem:[#allocation2 + $0x39] sm:$0xff]
      %v1062 = vld [vmem:[#allocation2 + $0x41] sm:$0xff]
      %v1063 = vld [vmem:[#allocation2 + $0x49] sm:$0x3f]
      %v1064 = vmax.f32 %v1054, 0.0
      %v1065 = vmax.f32 %v1055, 0.0
      %v1066 = vmax.f32 %v1056, 0.0
      %v1067 = vmax.f32 %v1057, 0.0
      %v1068 = vmax.f32 %v1058, 0.0
      %v1069 = vmax.f32 %v1059, 0.0
      %v1070 = vmax.f32 %v1060, 0.0
      %v1071 = vmax.f32 %v1061, 0.0
      %v1072 = vmax.f32 %v1062, 0.0
      %v1073 = vmax.f32 %v1063, 0.0
      %v1074 = vld [vmem:[%s5 + $0x1] sm:$0x1]
      %v1075 = vlaneseq
      %v1076 = vshrl.u32 %v1075, 7
      %v1077 = vsub.s32 0, %v1076
      %v1078 = vrot.slane %v1074, %v1077
      %v1079 = vmul.f32 %v1064, %v1078
      %v1080 = vmul.f32 %v1065, %v1078
      %v1081 = vmul.f32 %v1066, %v1078
      %v1082 = vmul.f32 %v1067, %v1078
      %v1083 = vmul.f32 %v1068, %v1078
      %v1084 = vmul.f32 %v1069, %v1078
      %v1085 = vmul.f32 %v1070, %v1078
      %v1086 = vmul.f32 %v1071, %v1078
      %v1087 = vmul.f32 %v1072, %v1078
      %v1088 = vmul.f32 %v1073, %v1078
      %v1089 = vadd.f32 %v1044, %v1079
      %v1090 = vadd.f32 %v1045, %v1080
      %v1091 = vadd.f32 %v1046, %v1081
      %v1092 = vadd.f32 %v1047, %v1082
      %v1093 = vadd.f32 %v1048, %v1083
      %v1094 = vadd.f32 %v1049, %v1084
      %v1095 = vadd.f32 %v1050, %v1085
      %v1096 = vadd.f32 %v1051, %v1086
      %v1097 = vadd.f32 %v1052, %v1087
      %v1098 = vadd.f32 %v1053, %v1088
      %v1099 = vld [vmem:[#allocation2 + $0x2] sm:$0xff]
      %v1100 = vld [vmem:[#allocation2 + $0xa] sm:$0xff]
      %v1101 = vld [vmem:[#allocation2 + $0x12] sm:$0xff]
      %v1102 = vld [vmem:[#allocation2 + $0x1a] sm:$0xff]
      %v1103 = vld [vmem:[#allocation2 + $0x22] sm:$0xff]
      %v1104 = vld [vmem:[#allocation2 + $0x2a] sm:$0xff]
      %v1105 = vld [vmem:[#allocation2 + $0x32] sm:$0xff]
      %v1106 = vld [vmem:[#allocation2 + $0x3a] sm:$0xff]
      %v1107 = vld [vmem:[#allocation2 + $0x42] sm:$0xff]
      %v1108 = vld [vmem:[#allocation2 + $0x4a] sm:$0x3f]
      %v1109 = vmax.f32 %v1099, 0.0
      %v1110 = vmax.f32 %v1100, 0.0
      %v1111 = vmax.f32 %v1101, 0.0
      %v1112 = vmax.f32 %v1102, 0.0
      %v1113 = vmax.f32 %v1103, 0.0
      %v1114 = vmax.f32 %v1104, 0.0
      %v1115 = vmax.f32 %v1105, 0.0
      %v1116 = vmax.f32 %v1106, 0.0
      %v1117 = vmax.f32 %v1107, 0.0
      %v1118 = vmax.f32 %v1108, 0.0
      %v1119 = vld [vmem:[%s5 + $0x2] sm:$0x1]
      %v1120 = vlaneseq
      %v1121 = vshrl.u32 %v1120, 7
      %v1122 = vsub.s32 0, %v1121
      %v1123 = vrot.slane %v1119, %v1122
      %v1124 = vmul.f32 %v1109, %v1123
      %v1125 = vmul.f32 %v1110, %v1123
      %v1126 = vmul.f32 %v1111, %v1123
      %v1127 = vmul.f32 %v1112, %v1123
      %v1128 = vmul.f32 %v1113, %v1123
      %v1129 = vmul.f32 %v1114, %v1123
      %v1130 = vmul.f32 %v1115, %v1123
      %v1131 = vmul.f32 %v1116, %v1123
      %v1132 = vmul.f32 %v1117, %v1123
      %v1133 = vmul.f32 %v1118, %v1123
      %v1134 = vadd.f32 %v1089, %v1124
      %v1135 = vadd.f32 %v1090, %v1125
      %v1136 = vadd.f32 %v1091, %v1126
      %v1137 = vadd.f32 %v1092, %v1127
      %v1138 = vadd.f32 %v1093, %v1128
      %v1139 = vadd.f32 %v1094, %v1129
      %v1140 = vadd.f32 %v1095, %v1130
      %v1141 = vadd.f32 %v1096, %v1131
      %v1142 = vadd.f32 %v1097, %v1132
      %v1143 = vadd.f32 %v1098, %v1133
      %v1144 = vld [vmem:[#allocation2 + $0x4a] sm:$0xff]
      %v1145 = vld [vmem:[#allocation2 + $0x52] sm:$0x3f]
      %v1146 = vmax.f32 %v1144, 0.0
      %v1147 = vmax.f32 %v1145, 0.0
      %v1148 = vld [vmem:[%s5 + $0x3] sm:$0x1]
      %v1149 = vlaneseq
      %v1150 = vshrl.u32 %v1149, 7
      %v1151 = vsub.s32 0, %v1150
      %v1152 = vrot.slane %v1148, %v1151
      %v1153 = vmul.f32 %v1110, %v1152
      %v1154 = vmul.f32 %v1111, %v1152
      %v1155 = vmul.f32 %v1112, %v1152
      %v1156 = vmul.f32 %v1113, %v1152
      %v1157 = vmul.f32 %v1114, %v1152
      %v1158 = vmul.f32 %v1115, %v1152
      %v1159 = vmul.f32 %v1116, %v1152
      %v1160 = vmul.f32 %v1117, %v1152
      %v1161 = vmul.f32 %v1146, %v1152
      %v1162 = vmul.f32 %v1147, %v1152
      %v1163 = vadd.f32 %v1134, %v1153
      %v1164 = vadd.f32 %v1135, %v1154
      %v1165 = vadd.f32 %v1136, %v1155
      %v1166 = vadd.f32 %v1137, %v1156
      %v1167 = vadd.f32 %v1138, %v1157
      %v1168 = vadd.f32 %v1139, %v1158
      %v1169 = vadd.f32 %v1140, %v1159
      %v1170 = vadd.f32 %v1141, %v1160
      %v1171 = vadd.f32 %v1142, %v1161
      %v1172 = vadd.f32 %v1143, %v1162
      %v1173 = vld [vmem:[#allocation2 + $0xb] sm:$0xff]
      %v1174 = vld [vmem:[#allocation2 + $0x13] sm:$0xff]
      %v1175 = vld [vmem:[#allocation2 + $0x1b] sm:$0xff]
      %v1176 = vld [vmem:[#allocation2 + $0x23] sm:$0xff]
      %v1177 = vld [vmem:[#allocation2 + $0x2b] sm:$0xff]
      %v1178 = vld [vmem:[#allocation2 + $0x33] sm:$0xff]
      %v1179 = vld [vmem:[#allocation2 + $0x3b] sm:$0xff]
      %v1180 = vld [vmem:[#allocation2 + $0x43] sm:$0xff]
      %v1181 = vld [vmem:[#allocation2 + $0x4b] sm:$0xff]
      %v1182 = vld [vmem:[#allocation2 + $0x53] sm:$0x3f]
      %v1183 = vmax.f32 %v1173, 0.0
      %v1184 = vmax.f32 %v1174, 0.0
      %v1185 = vmax.f32 %v1175, 0.0
      %v1186 = vmax.f32 %v1176, 0.0
      %v1187 = vmax.f32 %v1177, 0.0
      %v1188 = vmax.f32 %v1178, 0.0
      %v1189 = vmax.f32 %v1179, 0.0
      %v1190 = vmax.f32 %v1180, 0.0
      %v1191 = vmax.f32 %v1181, 0.0
      %v1192 = vmax.f32 %v1182, 0.0
      %v1193 = vld [vmem:[%s5 + $0x4] sm:$0x1]
      %v1194 = vlaneseq
      %v1195 = vshrl.u32 %v1194, 7
      %v1196 = vsub.s32 0, %v1195
      %v1197 = vrot.slane %v1193, %v1196
      %v1198 = vmul.f32 %v1183, %v1197
      %v1199 = vmul.f32 %v1184, %v1197
      %v1200 = vmul.f32 %v1185, %v1197
      %v1201 = vmul.f32 %v1186, %v1197
      %v1202 = vmul.f32 %v1187, %v1197
      %v1203 = vmul.f32 %v1188, %v1197
      %v1204 = vmul.f32 %v1189, %v1197
      %v1205 = vmul.f32 %v1190, %v1197
      %v1206 = vmul.f32 %v1191, %v1197
      %v1207 = vmul.f32 %v1192, %v1197
      %v1208 = vadd.f32 %v1163, %v1198
      %v1209 = vadd.f32 %v1164, %v1199
      %v1210 = vadd.f32 %v1165, %v1200
      %v1211 = vadd.f32 %v1166, %v1201
      %v1212 = vadd.f32 %v1167, %v1202
      %v1213 = vadd.f32 %v1168, %v1203
      %v1214 = vadd.f32 %v1169, %v1204
      %v1215 = vadd.f32 %v1170, %v1205
      %v1216 = vadd.f32 %v1171, %v1206
      %v1217 = vadd.f32 %v1172, %v1207
      %v1218 = vld [vmem:[#allocation2 + $0xc] sm:$0xff]
      %v1219 = vld [vmem:[#allocation2 + $0x14] sm:$0xff]
      %v1220 = vld [vmem:[#allocation2 + $0x1c] sm:$0xff]
      %v1221 = vld [vmem:[#allocation2 + $0x24] sm:$0xff]
      %v1222 = vld [vmem:[#allocation2 + $0x2c] sm:$0xff]
      %v1223 = vld [vmem:[#allocation2 + $0x34] sm:$0xff]
      %v1224 = vld [vmem:[#allocation2 + $0x3c] sm:$0xff]
      %v1225 = vld [vmem:[#allocation2 + $0x44] sm:$0xff]
      %v1226 = vld [vmem:[#allocation2 + $0x4c] sm:$0xff]
      %v1227 = vld [vmem:[#allocation2 + $0x54] sm:$0x3f]
      %v1228 = vmax.f32 %v1218, 0.0
      %v1229 = vmax.f32 %v1219, 0.0
      %v1230 = vmax.f32 %v1220, 0.0
      %v1231 = vmax.f32 %v1221, 0.0
      %v1232 = vmax.f32 %v1222, 0.0
      %v1233 = vmax.f32 %v1223, 0.0
      %v1234 = vmax.f32 %v1224, 0.0
      %v1235 = vmax.f32 %v1225, 0.0
      %v1236 = vmax.f32 %v1226, 0.0
      %v1237 = vmax.f32 %v1227, 0.0
      %v1238 = vld [vmem:[%s5 + $0x5] sm:$0x1]
      %v1239 = vlaneseq
      %v1240 = vshrl.u32 %v1239, 7
      %v1241 = vsub.s32 0, %v1240
      %v1242 = vrot.slane %v1238, %v1241
      %v1243 = vmul.f32 %v1228, %v1242
      %v1244 = vmul.f32 %v1229, %v1242
      %v1245 = vmul.f32 %v1230, %v1242
      %v1246 = vmul.f32 %v1231, %v1242
      %v1247 = vmul.f32 %v1232, %v1242
      %v1248 = vmul.f32 %v1233, %v1242
      %v1249 = vmul.f32 %v1234, %v1242
      %v1250 = vmul.f32 %v1235, %v1242
      %v1251 = vmul.f32 %v1236, %v1242
      %v1252 = vmul.f32 %v1237, %v1242
      %v1253 = vadd.f32 %v1208, %v1243
      %v1254 = vadd.f32 %v1209, %v1244
      %v1255 = vadd.f32 %v1210, %v1245
      %v1256 = vadd.f32 %v1211, %v1246
      %v1257 = vadd.f32 %v1212, %v1247
      %v1258 = vadd.f32 %v1213, %v1248
      %v1259 = vadd.f32 %v1214, %v1249
      %v1260 = vadd.f32 %v1215, %v1250
      %v1261 = vadd.f32 %v1216, %v1251
      %v1262 = vadd.f32 %v1217, %v1252
      %v1263 = vld [vmem:[#allocation2 + $0x54] sm:$0xff]
      %v1264 = vld [vmem:[#allocation2 + $0x5c] sm:$0x3f]
      %v1265 = vmax.f32 %v1263, 0.0
      %v1266 = vmax.f32 %v1264, 0.0
      %v1267 = vld [vmem:[%s5 + $0x6] sm:$0x1]
      %v1268 = vlaneseq
      %v1269 = vshrl.u32 %v1268, 7
      %v1270 = vsub.s32 0, %v1269
      %v1271 = vrot.slane %v1267, %v1270
      %v1272 = vmul.f32 %v1229, %v1271
      %v1273 = vmul.f32 %v1230, %v1271
      %v1274 = vmul.f32 %v1231, %v1271
      %v1275 = vmul.f32 %v1232, %v1271
      %v1276 = vmul.f32 %v1233, %v1271
      %v1277 = vmul.f32 %v1234, %v1271
      %v1278 = vmul.f32 %v1235, %v1271
      %v1279 = vmul.f32 %v1236, %v1271
      %v1280 = vmul.f32 %v1265, %v1271
      %v1281 = vmul.f32 %v1266, %v1271
      %v1282 = vadd.f32 %v1253, %v1272
      %v1283 = vadd.f32 %v1254, %v1273
      %v1284 = vadd.f32 %v1255, %v1274
      %v1285 = vadd.f32 %v1256, %v1275
      %v1286 = vadd.f32 %v1257, %v1276
      %v1287 = vadd.f32 %v1258, %v1277
      %v1288 = vadd.f32 %v1259, %v1278
      %v1289 = vadd.f32 %v1260, %v1279
      %v1290 = vadd.f32 %v1261, %v1280
      %v1291 = vadd.f32 %v1262, %v1281
      %v1292 = vld [vmem:[#allocation2 + $0x15] sm:$0xff]
      %v1293 = vld [vmem:[#allocation2 + $0x1d] sm:$0xff]
      %v1294 = vld [vmem:[#allocation2 + $0x25] sm:$0xff]
      %v1295 = vld [vmem:[#allocation2 + $0x2d] sm:$0xff]
      %v1296 = vld [vmem:[#allocation2 + $0x35] sm:$0xff]
      %v1297 = vld [vmem:[#allocation2 + $0x3d] sm:$0xff]
      %v1298 = vld [vmem:[#allocation2 + $0x45] sm:$0xff]
      %v1299 = vld [vmem:[#allocation2 + $0x4d] sm:$0xff]
      %v1300 = vld [vmem:[#allocation2 + $0x55] sm:$0xff]
      %v1301 = vld [vmem:[#allocation2 + $0x5d] sm:$0x3f]
      %v1302 = vmax.f32 %v1292, 0.0
      %v1303 = vmax.f32 %v1293, 0.0
      %v1304 = vmax.f32 %v1294, 0.0
      %v1305 = vmax.f32 %v1295, 0.0
      %v1306 = vmax.f32 %v1296, 0.0
      %v1307 = vmax.f32 %v1297, 0.0
      %v1308 = vmax.f32 %v1298, 0.0
      %v1309 = vmax.f32 %v1299, 0.0
      %v1310 = vmax.f32 %v1300, 0.0
      %v1311 = vmax.f32 %v1301, 0.0
      %v1312 = vld [vmem:[%s5 + $0x7] sm:$0x1]
      %v1313 = vlaneseq
      %v1314 = vshrl.u32 %v1313, 7
      %v1315 = vsub.s32 0, %v1314
      %v1316 = vrot.slane %v1312, %v1315
      %v1317 = vmul.f32 %v1302, %v1316
      %v1318 = vmul.f32 %v1303, %v1316
      %v1319 = vmul.f32 %v1304, %v1316
      %v1320 = vmul.f32 %v1305, %v1316
      %v1321 = vmul.f32 %v1306, %v1316
      %v1322 = vmul.f32 %v1307, %v1316
      %v1323 = vmul.f32 %v1308, %v1316
      %v1324 = vmul.f32 %v1309, %v1316
      %v1325 = vmul.f32 %v1310, %v1316
      %v1326 = vmul.f32 %v1311, %v1316
      %v1327 = vadd.f32 %v1282, %v1317
      %v1328 = vadd.f32 %v1283, %v1318
      %v1329 = vadd.f32 %v1284, %v1319
      %v1330 = vadd.f32 %v1285, %v1320
      %v1331 = vadd.f32 %v1286, %v1321
      %v1332 = vadd.f32 %v1287, %v1322
      %v1333 = vadd.f32 %v1288, %v1323
      %v1334 = vadd.f32 %v1289, %v1324
      %v1335 = vadd.f32 %v1290, %v1325
      %v1336 = vadd.f32 %v1291, %v1326
      %v1337 = vld [vmem:[#allocation2 + $0x16] sm:$0xff]
      %v1338 = vld [vmem:[#allocation2 + $0x1e] sm:$0xff]
      %v1339 = vld [vmem:[#allocation2 + $0x26] sm:$0xff]
      %v1340 = vld [vmem:[#allocation2 + $0x2e] sm:$0xff]
      %v1341 = vld [vmem:[#allocation2 + $0x36] sm:$0xff]
      %v1342 = vld [vmem:[#allocation2 + $0x3e] sm:$0xff]
      %v1343 = vld [vmem:[#allocation2 + $0x46] sm:$0xff]
      %v1344 = vld [vmem:[#allocation2 + $0x4e] sm:$0xff]
      %v1345 = vld [vmem:[#allocation2 + $0x56] sm:$0xff]
      %v1346 = vld [vmem:[#allocation2 + $0x5e] sm:$0x3f]
      %v1347 = vmax.f32 %v1337, 0.0
      %v1348 = vmax.f32 %v1338, 0.0
      %v1349 = vmax.f32 %v1339, 0.0
      %v1350 = vmax.f32 %v1340, 0.0
      %v1351 = vmax.f32 %v1341, 0.0
      %v1352 = vmax.f32 %v1342, 0.0
      %v1353 = vmax.f32 %v1343, 0.0
      %v1354 = vmax.f32 %v1344, 0.0
      %v1355 = vmax.f32 %v1345, 0.0
      %v1356 = vmax.f32 %v1346, 0.0
      %v1357 = vld [vmem:[%s5 + $0x8] sm:$0x1]
      %v1358 = vlaneseq
      %v1359 = vshrl.u32 %v1358, 7
      %v1360 = vsub.s32 0, %v1359
      %v1361 = vrot.slane %v1357, %v1360
      %v1362 = vmul.f32 %v1347, %v1361
      %v1363 = vmul.f32 %v1348, %v1361
      %v1364 = vmul.f32 %v1349, %v1361
      %v1365 = vmul.f32 %v1350, %v1361
      %v1366 = vmul.f32 %v1351, %v1361
      %v1367 = vmul.f32 %v1352, %v1361
      %v1368 = vmul.f32 %v1353, %v1361
      %v1369 = vmul.f32 %v1354, %v1361
      %v1370 = vmul.f32 %v1355, %v1361
      %v1371 = vmul.f32 %v1356, %v1361
      %v1372 = vadd.f32 %v1327, %v1362
      %v1373 = vadd.f32 %v1328, %v1363
      %v1374 = vadd.f32 %v1329, %v1364
      %v1375 = vadd.f32 %v1330, %v1365
      %v1376 = vadd.f32 %v1331, %v1366
      %v1377 = vadd.f32 %v1332, %v1367
      %v1378 = vadd.f32 %v1333, %v1368
      %v1379 = vadd.f32 %v1334, %v1369
      %v1380 = vadd.f32 %v1335, %v1370
      %v1381 = vadd.f32 %v1336, %v1371
      %v1382 = vpack.c.bf16 %v1373, %v1372
      %v1383 = vpack.c.bf16 %v1375, %v1374
      %v1384 = vpack.c.bf16 %v1377, %v1376
      %v1385 = vpack.c.bf16 %v1379, %v1378
      %v1386 = vpack.c.bf16 %v1381, %v1380
      %v1387 = vld [vmem:[%s6] sm:$0xf]
      %v1389 = vsel %vm787, %v1382, 0
      %v1392 = vsel %vm787, %v1383, 0
      %v1395 = vsel %vm787, %v1384, 0
      %v1398 = vsel %vm787, %v1385, 0
      %v1401 = vsel %vm787, %v1386, 0
      %v1404 = vsel %vm803, %v1387, 0
      %1406 = vmatprep.subr.bf16.mxu0 0
      %1407 = vmatpush1.bf16.msra.mxu0 0
      %1408 = vmatprep.subr.bf16.mxu0 0
      %1409 = vmatpush1.bf16.msra.mxu0 0
      %1410 = vmatprep.subr.bf16.mxu0 0
      %1411 = vmatpush1.bf16.msra.mxu0 0
      %1412 = vmatprep.subr.bf16.mxu0 0
      %1413 = vmatpush1.bf16.msra.mxu0 0
      %1414 = vmatprep.subr.bf16.mxu0 0
      %1415 = vmatpush1.bf16.msra.mxu0 0
      %1416 = vmatprep.subr.bf16.mxu0 0
      %1417 = vmatpush1.bf16.msra.mxu0 0
      %1418 = vmatprep.subr.bf16.mxu0 0
      %1419 = vmatpush1.bf16.msra.mxu0 0
      %1420 = vmatprep.subr.bf16.mxu0 0
      %1421 = vmatpush1.bf16.msra.mxu0 %v1404
      %1422 = vmatprep.subr.bf16.mxu0 0
      %1423 = vmatpush2.bf16.msra.mxu0 0
      %1424 = vmatprep.subr.bf16.mxu0 0
      %1425 = vmatpush2.bf16.msra.mxu0 0
      %1426 = vmatprep.subr.bf16.mxu0 0
      %1427 = vmatpush2.bf16.msra.mxu0 0
      %1428 = vmatprep.subr.bf16.mxu0 0
      %1429 = vmatpush2.bf16.msra.mxu0 0
      %1430 = vmatprep.subr.bf16.mxu0 0
      %1431 = vmatpush2.bf16.msra.mxu0 0
      %1432 = vmatprep.subr.bf16.mxu0 0
      %1433 = vmatpush2.bf16.msra.mxu0 0
      %1434 = vmatprep.subr.bf16.mxu0 0
      %1435 = vmatpush2.bf16.msra.mxu0 0
      %1436 = vmatprep.subr.bf16.mxu0 0
      %1437 = vmatpush2.bf16.msra.mxu0 0
      %1438 = vmatprep.mubr.bf16.mxu0 0
      %1439 = vmatmul.mubr.bf16.gmra.mxu0 %v1389
      %v1440 = vpop.f32.mrf.mxu0
      %v1441 = vadd.f32 0.0, %v1440
      %v1442 = vpop.f32.mrf.mxu0
      %v1443 = vpop.f32.mrf.mxu0
      %v1444 = vadd.f32 0.0, %v1443
      %v1445 = vpop.f32.mrf.mxu0
      %1446 = vmatprep.mubr.bf16.mxu0 0
      %1447 = vmatmul.mubr.bf16.gmra.mxu0 %v1392
      %v1448 = vpop.f32.mrf.mxu0
      %v1449 = vadd.f32 0.0, %v1448
      %v1450 = vpop.f32.mrf.mxu0
      %v1451 = vpop.f32.mrf.mxu0
      %v1452 = vadd.f32 0.0, %v1451
      %v1453 = vpop.f32.mrf.mxu0
      %1454 = vmatprep.mubr.bf16.mxu0 0
      %1455 = vmatmul.mubr.bf16.gmra.mxu0 %v1395
      %v1456 = vpop.f32.mrf.mxu0
      %v1457 = vadd.f32 0.0, %v1456
      %v1458 = vpop.f32.mrf.mxu0
      %v1459 = vpop.f32.mrf.mxu0
      %v1460 = vadd.f32 0.0, %v1459
      %v1461 = vpop.f32.mrf.mxu0
      %1462 = vmatprep.mubr.bf16.mxu0 0
      %1463 = vmatmul.mubr.bf16.gmra.mxu0 %v1398
      %v1464 = vpop.f32.mrf.mxu0
      %v1465 = vadd.f32 0.0, %v1464
      %v1466 = vpop.f32.mrf.mxu0
      %v1467 = vpop.f32.mrf.mxu0
      %v1468 = vadd.f32 0.0, %v1467
      %v1469 = vpop.f32.mrf.mxu0
      %1470 = vmatprep.mubr.bf16.mxu0 0
      %1471 = vmatmul.mubr.bf16.gmra.mxu0 %v1401
      %v1472 = vpop.f32.mrf.mxu0
      %v1473 = vadd.f32 0.0, %v1472
      %v1474 = vpop.f32.mrf.mxu0
      %v1475 = vpop.f32.mrf.mxu0
      %v1476 = vadd.f32 0.0, %v1475
      %v1477 = vpop.f32.mrf.mxu0
      %1478 = vdwg.mxu0
      %v1479 = vld [vmem:[%s7] sm:$0x1]
      %v1481 = vlaneseq
      %v1482 = vshrl.u32 %v1481, 7
      %v1483 = vsub.s32 0, %v1482
      %v1484 = vrot.slane %v1479, %v1483
      %v1486 = vmul.f32 %v1441, %v1484
      %v1487 = vmul.f32 %v1444, %v1484
      %v1488 = vmul.f32 %v1449, %v1484
      %v1489 = vmul.f32 %v1452, %v1484
      %v1490 = vmul.f32 %v1457, %v1484
      %v1491 = vmul.f32 %v1460, %v1484
      %v1492 = vmul.f32 %v1465, %v1484
      %v1493 = vmul.f32 %v1468, %v1484
      %v1494 = vmul.f32 %v1473, %v1484
      %v1495 = vmul.f32 %v1476, %v1484
      %v1496 = vld [vmem:[%s8] sm:$0x1]
      %v1498 = vlaneseq
      %v1499 = vshrl.u32 %v1498, 7
      %v1500 = vsub.s32 0, %v1499
      %v1501 = vrot.slane %v1496, %v1500
      %v1503 = vadd.f32 %v1486, %v1501
      %v1504 = vadd.f32 %v1487, %v1501
      %v1505 = vadd.f32 %v1488, %v1501
      %v1506 = vadd.f32 %v1489, %v1501
      %v1507 = vadd.f32 %v1490, %v1501
      %v1508 = vadd.f32 %v1491, %v1501
      %v1509 = vadd.f32 %v1492, %v1501
      %v1510 = vadd.f32 %v1493, %v1501
      %v1511 = vadd.f32 %v1494, %v1501
      %v1512 = vadd.f32 %v1495, %v1501
      %v1513 = vld [vmem:[%s401] sm:$0xff]
      %v1514 = vld [vmem:[%s401 + $0x8] sm:$0xff]
      %v1515 = vld [vmem:[%s401 + $0x10] sm:$0xff]
      %v1516 = vld [vmem:[%s401 + $0x18] sm:$0xff]
      %v1517 = vld [vmem:[%s401 + $0x20] sm:$0xff]
      %v1518 = vld [vmem:[%s401 + $0x28] sm:$0xff]
      %v1519 = vld [vmem:[%s401 + $0x30] sm:$0xff]
      %v1520 = vld [vmem:[%s401 + $0x38] sm:$0xff]
      %v1521 = vld [vmem:[%s401 + $0x40] sm:$0xff]
      %v1522 = vld [vmem:[%s401 + $0x48] sm:$0x3f]
      %v1523 = vadd.f32 %v1503, %v1513
      %v1524 = vadd.f32 %v1504, %v1514
      %v1525 = vadd.f32 %v1505, %v1515
      %v1526 = vadd.f32 %v1506, %v1516
      %v1527 = vadd.f32 %v1507, %v1517
      %v1528 = vadd.f32 %v1508, %v1518
      %v1529 = vadd.f32 %v1509, %v1519
      %v1530 = vadd.f32 %v1510, %v1520
      %v1531 = vadd.f32 %v1511, %v1521
      %v1532 = vadd.f32 %v1512, %v1522
      %1533 = vst.msk [vmem:[%s406] sm:$0xff] %vm787, %v1523
      %1534 = vst.msk [vmem:[%s406 + $0x8] sm:$0xff] %vm787, %v1524
      %1535 = vst.msk [vmem:[%s406 + $0x10] sm:$0xff] %vm787, %v1525
      %1536 = vst.msk [vmem:[%s406 + $0x18] sm:$0xff] %vm787, %v1526
      %1537 = vst.msk [vmem:[%s406 + $0x20] sm:$0xff] %vm787, %v1527
      %1538 = vst.msk [vmem:[%s406 + $0x28] sm:$0xff] %vm787, %v1528
      %1539 = vst.msk [vmem:[%s406 + $0x30] sm:$0xff] %vm787, %v1529
      %1540 = vst.msk [vmem:[%s406 + $0x38] sm:$0xff] %vm787, %v1530
      %1541 = vst.msk [vmem:[%s406 + $0x40] sm:$0xff] %vm787, %v1531
      %1542 = vst.msk [vmem:[%s406 + $0x48] sm:$0x3f] %vm1007, %v1532
      %p1543 = scmp.lt.s32.totalorder %s22, 1
      %s1544 = scalar_select %p1543, %s22, 1
      %s1545 = smul.addr %s1544, 10
      %s1546 = smul.addr %s1545, 8
      %s1547 = scalar_lea.vmem %s11, %s1546
      // Predicated region
      $region65: #{_lambda_.18} parent=63 // pred_check
        %p1548 = pneg %p281
      $region66: #{_lambda_.18} parent=63 // pred_check_branch
        %1550 = sbr.rel (%p1548) target = $region68
      $region67: #{_lambda_.18} parent=63 // pred_region
        _
      $region68: #{_lambda_.18} parent=63 // pred_fallthru
        _
    $region64: #{_lambda_.18} parent=5 // pred_fallthru
      _
    %p1551 = scmp.le.s32.totalorder 2, %s17
    // Predicated region
    $region69: #{_lambda_.18} parent=5 // pred_check
      %p1552 = pneg %p1551
    $region70: #{_lambda_.18} parent=5 // pred_check_branch
      %1554 = sbr.rel (%p1552) target = $region72
    $region71: #{_lambda_.18} parent=5 // pred_region
      %s1555 = ssub.s32 %s17, 2
      // Predicated region
      $region73: #{_lambda_.18} parent=71 // pred_check
        %p1556 = pneg %p287
      $region74: #{_lambda_.18} parent=71 // pred_check_branch
        %1558 = sbr.rel (%p1556) target = $region76
      $region75: #{_lambda_.18} parent=71 // pred_region
        %p1559 = scmp.lt.s32.totalorder %s23, 1
        %s1560 = scalar_select %p1559, %s23, 1
        %s1561 = smul.addr %s1560, 10
        %s1562 = smul.addr %s1561, 8
        %s1563 = scalar_lea.vmem %s11, %s1562
      $region76: #{_lambda_.18} parent=71 // pred_fallthru
        _
    $region72: #{_lambda_.18} parent=5 // pred_fallthru
      _
  $region6: #{_lambda_.18} parent=0 // loop_footer
    %s21 = sadd.s32 1, %s17
  $region7: #{_lambda_.18} parent=0 // loop_footer_branch
    %16 = sbr.rel target = $region3
  $region8: #{_lambda_.18} parent=0 // loop_exit
    _

// kernel: _lambda_.22
$region0: #{_lambda_.22}
  #allocation0 [shape = 'u32[]', space=smem, size = 0x4, offset = 0x4, fixed_abs, tag = 'smem constant byte address 0x4 - core index']
  #allocation1 [shape = 'u32[144,128]{1,0:T(1,128)}', space=vmem, size = 0x12000, scoped, tag = 'internal scratch']
  %s0 = inlined_call_operand.vmem [shape: f32[2,16,32], index: 0, kind: input, shape index: {}]
  %s1 = inlined_call_operand.vmem [shape: bf16[32,16], index: 1, kind: input, shape index: {}]
  %s2 = inlined_call_operand.vmem [shape: f32[1,16], index: 2, kind: input, shape index: {}]
  %s3 = inlined_call_operand.vmem [shape: f32[1,16], index: 3, kind: input, shape index: {}]
  %s4 = inlined_call_operand.vmem [shape: f32[2,16,16], index: 4, kind: input, shape index: {}]
  %s5 = inlined_call_operand.vmem [shape: f32[2,16,16], index: 5, kind: output, shape index: {}]
  %s6 = sld [smem:[#allocation0]]
  $region53: #{_lambda_.22} parent=0
    _
  %s8 = ssub.s32 1, %s6
  %s9 = scalar_select 0, %s8, %s6
  loop: start=0, step=1, limit=4
  $region2: #{_lambda_.22} parent=0 // loop_pre_header
    _
  $region3: #{_lambda_.22} parent=0 // loop_header
    %s11 = sphi 0, %s15
    %p12 = scmp.ge.s32.totalorder %s11, 4
    %s21 = sphi 0, %s23
    %s24 = sphi 0, %s21
    %s25 = sphi 0, %s24
    %s41 = sphi 0, %s25
    %s45 = sphi 0, %s45
    %s47 = sphi 0, %s45
    %s48 = sphi 0, %s47
    %s62 = sphi 0, %s48
    %s66 = sphi 0, %s66
    %s68 = sphi 0, %s66
    %s69 = sphi 0, %s68
    %s83 = sphi 0, %s69
    %s87 = sphi 0, %s87
    %s89 = sphi 0, %s87
    %s90 = sphi 0, %s89
    %s104 = sphi 0, %s90
    %s110 = sphi 0, %s112
    %s113 = sphi 0, %s110
    %s114 = sphi 0, %s113
    %s130 = sphi 0, %s114
    %s136 = sphi 0, %s138
    %s139 = sphi 0, %s136
    %s140 = sphi 0, %s139
    %s156 = sphi 0, %s140
  $region4: #{_lambda_.22} parent=0 // loop_header_branch
    %14 = sbr.rel (%p12) target = $region8
  $region5: #{_lambda_.22} parent=0 // loop_body
    %s16 = ssub.s32 %s11, 1
    %s17 = ssub.s32 %s11, 2
    %s18 = sadd.s32 %s11, 1
    %s19 = ssub.s32 %s11, %s18
    %p20 = scmp.eq.s32.totalorder %s19, 0
    %s22 = sadd.s32 %s21, 1
    %s23 = scalar_select %p20, %s21, %s22
    %p26 = pneg %p20
    %p27 = scmp.eq.s32.totalorder %s11, 1
    %p28 = por %p26, %p27
    %p29 = scmp.ne.s32.totalorder %s21, %s24
    %p30 = scmp.eq.s32.totalorder %s11, 0
    %p31 = por %p29, %p30
    %p32 = scmp.ne.s32.totalorder %s21, %s24
    %p33 = scmp.eq.s32.totalorder %s16, 1
    %p34 = por %p32, %p33
    %p35 = scmp.ne.s32.totalorder %s24, %s25
    %p36 = scmp.eq.s32.totalorder %s16, 0
    %p37 = por %p35, %p36
    %p38 = scmp.ne.s32.totalorder %s24, %s25
    %p39 = scmp.eq.s32.totalorder %s17, 1
    %p40 = por %p38, %p39
    %p42 = scmp.ne.s32.totalorder %s25, %s41
    %p43 = scmp.eq.s32.totalorder %s17, 0
    %p44 = por %p42, %p43
    %s46 = sadd.s32 %s45, 1
    %p49 = scmp.eq.s32.totalorder %s11, 1
    %p50 = scmp.ne.s32.totalorder %s45, %s47
    %p51 = scmp.eq.s32.totalorder %s11, 0
    %p52 = por %p50, %p51
    %p53 = scmp.ne.s32.totalorder %s45, %s47
    %p54 = scmp.eq.s32.totalorder %s16, 1
    %p55 = por %p53, %p54
    %p56 = scmp.ne.s32.totalorder %s47, %s48
    %p57 = scmp.eq.s32.totalorder %s16, 0
    %p58 = por %p56, %p57
    %p59 = scmp.ne.s32.totalorder %s47, %s48
    %p60 = scmp.eq.s32.totalorder %s17, 1
    %p61 = por %p59, %p60
    %p63 = scmp.ne.s32.totalorder %s48, %s62
    %p64 = scmp.eq.s32.totalorder %s17, 0
    %p65 = por %p63, %p64
    %s67 = sadd.s32 %s66, 1
    %p70 = scmp.eq.s32.totalorder %s11, 1
    %p71 = scmp.ne.s32.totalorder %s66, %s68
    %p72 = scmp.eq.s32.totalorder %s11, 0
    %p73 = por %p71, %p72
    %p74 = scmp.ne.s32.totalorder %s66, %s68
    %p75 = scmp.eq.s32.totalorder %s16, 1
    %p76 = por %p74, %p75
    %p77 = scmp.ne.s32.totalorder %s68, %s69
    %p78 = scmp.eq.s32.totalorder %s16, 0
    %p79 = por %p77, %p78
    %p80 = scmp.ne.s32.totalorder %s68, %s69
    %p81 = scmp.eq.s32.totalorder %s17, 1
    %p82 = por %p80, %p81
    %p84 = scmp.ne.s32.totalorder %s69, %s83
    %p85 = scmp.eq.s32.totalorder %s17, 0
    %p86 = por %p84, %p85
    %s88 = sadd.s32 %s87, 1
    %p91 = scmp.eq.s32.totalorder %s11, 1
    %p92 = scmp.ne.s32.totalorder %s87, %s89
    %p93 = scmp.eq.s32.totalorder %s11, 0
    %p94 = por %p92, %p93
    %p95 = scmp.ne.s32.totalorder %s87, %s89
    %p96 = scmp.eq.s32.totalorder %s16, 1
    %p97 = por %p95, %p96
    %p98 = scmp.ne.s32.totalorder %s89, %s90
    %p99 = scmp.eq.s32.totalorder %s16, 0
    %p100 = por %p98, %p99
    %p101 = scmp.ne.s32.totalorder %s89, %s90
    %p102 = scmp.eq.s32.totalorder %s17, 1
    %p103 = por %p101, %p102
    %p105 = scmp.ne.s32.totalorder %s90, %s104
    %p106 = scmp.eq.s32.totalorder %s17, 0
    %p107 = por %p105, %p106
    %s108 = ssub.s32 %s11, %s18
    %p109 = scmp.eq.s32.totalorder %s108, 0
    %s111 = sadd.s32 %s110, 1
    %s112 = scalar_select %p109, %s110, %s111
    %p115 = pneg %p109
    %p116 = scmp.eq.s32.totalorder %s11, 1
    %p117 = por %p115, %p116
    %p118 = scmp.ne.s32.totalorder %s110, %s113
    %p119 = scmp.eq.s32.totalorder %s11, 0
    %p120 = por %p118, %p119
    %p121 = scmp.ne.s32.totalorder %s110, %s113
    %p122 = scmp.eq.s32.totalorder %s16, 1
    %p123 = por %p121, %p122
    %p124 = scmp.ne.s32.totalorder %s113, %s114
    %p125 = scmp.eq.s32.totalorder %s16, 0
    %p126 = por %p124, %p125
    %p127 = scmp.ne.s32.totalorder %s113, %s114
    %p128 = scmp.eq.s32.totalorder %s17, 1
    %p129 = por %p127, %p128
    %p131 = scmp.ne.s32.totalorder %s114, %s130
    %p132 = scmp.eq.s32.totalorder %s17, 0
    %p133 = por %p131, %p132
    %s134 = ssub.s32 %s11, %s18
    %p135 = scmp.eq.s32.totalorder %s134, 0
    %s137 = sadd.s32 %s136, 1
    %s138 = scalar_select %p135, %s136, %s137
    %p141 = pneg %p135
    %p142 = scmp.eq.s32.totalorder %s11, 1
    %p143 = por %p141, %p142
    %p144 = scmp.ne.s32.totalorder %s136, %s139
    %p145 = scmp.eq.s32.totalorder %s11, 0
    %p146 = por %p144, %p145
    %p147 = scmp.ne.s32.totalorder %s136, %s139
    %p148 = scmp.eq.s32.totalorder %s16, 1
    %p149 = por %p147, %p148
    %p150 = scmp.ne.s32.totalorder %s139, %s140
    %p151 = scmp.eq.s32.totalorder %s16, 0
    %p152 = por %p150, %p151
    %p153 = scmp.ne.s32.totalorder %s139, %s140
    %p154 = scmp.eq.s32.totalorder %s17, 1
    %p155 = por %p153, %p154
    %p157 = scmp.ne.s32.totalorder %s140, %s156
    %p158 = scmp.eq.s32.totalorder %s17, 0
    %p159 = por %p157, %p158
    %p160 = scmp.le.s32.totalorder 1, %s11
    %p161 = scmp.lt.s32.totalorder %s11, 3
    %p162 = pnand %p160, %p161
    %p163 = pneg %p162
    // Predicated region
    $region9: #{_lambda_.22} parent=5 // pred_check
      _
    $region10: #{_lambda_.22} parent=5 // pred_check_branch
      %165 = sbr.rel (%p162) target = $region12
    $region11: #{_lambda_.22} parent=5 // pred_region
      %s166 = ssub.s32 %s11, 1
      // Predicated region
      $region13: #{_lambda_.22} parent=11 // pred_check
        %p167 = pneg %p58
      $region14: #{_lambda_.22} parent=11 // pred_check_branch
        %169 = sbr.rel (%p167) target = $region16
      $region15: #{_lambda_.22} parent=11 // pred_region
        _
      $region16: #{_lambda_.22} parent=11 // pred_fallthru
        _
      // Predicated region
      $region17: #{_lambda_.22} parent=11 // pred_check
        %p170 = pneg %p79
      $region18: #{_lambda_.22} parent=11 // pred_check_branch
        %172 = sbr.rel (%p170) target = $region20
      $region19: #{_lambda_.22} parent=11 // pred_region
        _
      $region20: #{_lambda_.22} parent=11 // pred_fallthru
        _
      // Predicated region
      $region21: #{_lambda_.22} parent=11 // pred_check
        %p173 = pneg %p100
      $region22: #{_lambda_.22} parent=11 // pred_check_branch
        %175 = sbr.rel (%p173) target = $region24
      $region23: #{_lambda_.22} parent=11 // pred_region
        _
      $region24: #{_lambda_.22} parent=11 // pred_fallthru
        _
    $region12: #{_lambda_.22} parent=5 // pred_fallthru
      _
    %p176 = scmp.lt.s32.totalorder %s11, 2
    // Predicated region
    $region25: #{_lambda_.22} parent=5 // pred_check
      %p177 = pneg %p176
    $region26: #{_lambda_.22} parent=5 // pred_check_branch
      %179 = sbr.rel (%p177) target = $region28
    $region27: #{_lambda_.22} parent=5 // pred_region
      // Predicated region
      $region29: #{_lambda_.22} parent=27 // pred_check
        %p180 = pneg %p31
      $region30: #{_lambda_.22} parent=27 // pred_check_branch
        %182 = sbr.rel (%p180) target = $region32
      $region31: #{_lambda_.22} parent=27 // pred_region
        %p183 = scmp.lt.s32.totalorder %s11, 1
        %s184 = scalar_select %p183, %s11, 1
        %s185 = smul.addr %s184, 2
        %s186 = smul.addr %s185, 8
        %s187 = scalar_lea.vmem %s0, %s186
      $region32: #{_lambda_.22} parent=27 // pred_fallthru
        _
      // Predicated region
      $region33: #{_lambda_.22} parent=27 // pred_check
        %p188 = pneg %p120
      $region34: #{_lambda_.22} parent=27 // pred_check_branch
        %190 = sbr.rel (%p188) target = $region36
      $region35: #{_lambda_.22} parent=27 // pred_region
        %p191 = scmp.lt.s32.totalorder %s11, 1
        %s192 = scalar_select %p191, %s11, 1
        %s193 = smul.addr %s192, 2
        %s194 = smul.addr %s193, 8
        %s195 = scalar_lea.vmem %s4, %s194
      $region36: #{_lambda_.22} parent=27 // pred_fallthru
        _
    $region28: #{_lambda_.22} parent=5 // pred_fallthru
      _
    %p196 = scmp.le.s32.totalorder 1, %s11
    %p197 = scmp.lt.s32.totalorder %s11, 3
    %p198 = pnand %p196, %p197
    %p199 = pneg %p198
    // Predicated region
    $region37: #{_lambda_.22} parent=5 // pred_check
      _
    $region38: #{_lambda_.22} parent=5 // pred_check_branch
      %201 = sbr.rel (%p198) target = $region40
    $region39: #{_lambda_.22} parent=5 // pred_region
      %s202 = ssub.s32 %s11, 1
      %p203 = scmp.lt.s32.totalorder %s16, 1
      %s204 = scalar_select %p203, %s16, 1
      %s205 = smul.addr %s204, 2
      %s206 = smul.addr %s205, 8
      %s207 = scalar_lea.vmem %s0, %s206
      %p208 = pneg %p37
      %p209 = pneg %p34
      %p210 = pneg %p58
      %p211 = pneg %p55
      %p212 = pneg %p79
      %p213 = pneg %p76
      %p214 = pneg %p100
      %p215 = pneg %p97
      %p216 = scmp.lt.s32.totalorder %s16, 1
      %s217 = scalar_select %p216, %s16, 1
      %s218 = smul.addr %s217, 2
      %s219 = smul.addr %s218, 8
      %s220 = scalar_lea.vmem %s4, %s219
      %p221 = pneg %p126
      %p222 = pneg %p123
      %p223 = pneg %p152
      %p224 = pneg %p149
      %p225 = scmp.lt.s32.totalorder %s16, 1
      %s226 = scalar_select %p225, %s16, 1
      %s227 = smul.addr %s226, 2
      %s228 = smul.addr %s227, 8
      %s229 = scalar_lea.vmem %s5, %s228
      %p230 = scmp.lt.s32.totalorder %s16, 1
      %s231 = scalar_select %p230, %s16, 1
      %s232 = smul.addr %s231, 2
      %s233 = smul.addr %s232, 8
      %s234 = scalar_lea.vmem %s0, %s233
      %p235 = scmp.lt.s32.totalorder %s16, 1
      %s236 = scalar_select %p235, %s16, 1
      %s237 = smul.addr %s236, 2
      %s238 = smul.addr %s237, 8
      %s239 = scalar_lea.vmem %s4, %s238
      %p240 = scmp.lt.s32.totalorder %s16, 1
      %s241 = scalar_select %p240, %s16, 1
      %s242 = smul.addr %s241, 2
      %s243 = smul.addr %s242, 8
      %s244 = scalar_lea.vmem %s5, %s243
      %v246 = vld [vmem:[%s234] sm:$0xff]
      %v247 = vld [vmem:[%s234 + $0x8] sm:$0xff]
      %v248 = vmax.f32 %v246, 0.0
      %v249 = vmax.f32 %v247, 0.0
      %v250 = vpack.c.bf16 %v249, %v248
      %v251 = vld [vmem:[%s1] sm:$0xf]
      %v252 = vld [vmem:[%s1 + $0x4] sm:$0xf]
      %v253 = vld [vmem:[%s1 + $0x8] sm:$0xf]
      %v254 = vld [vmem:[%s1 + $0xc] sm:$0xf]
      %v259 = vunpack.c.l.b16 %v251
      %v260 = vunpack.c.l.b16 %v252
      %v261 = vunpack.c.l.b16 %v253
      %v262 = vunpack.c.l.b16 %v254
      %v263 = vpack.c.b16 %v260, %v259
      %v264 = vpack.c.b16 %v262, %v261
      %vm267 = vcmask 261120
      %v269 = vsel %vm267, %v250, 0
      %271 = vmatprep.subr.bf16.mxu0 0
      %272 = vmatpush1.bf16.msra.mxu0 0
      %273 = vmatprep.subr.bf16.mxu0 0
      %274 = vmatpush1.bf16.msra.mxu0 0
      %275 = vmatprep.subr.bf16.mxu0 0
      %276 = vmatpush1.bf16.msra.mxu0 0
      %277 = vmatprep.subr.bf16.mxu0 0
      %278 = vmatpush1.bf16.msra.mxu0 0
      %279 = vmatprep.subr.bf16.mxu0 0
      %280 = vmatpush1.bf16.msra.mxu0 0
      %281 = vmatprep.subr.bf16.mxu0 0
      %282 = vmatpush1.bf16.msra.mxu0 0
      %283 = vmatprep.subr.bf16.mxu0 0
      %284 = vmatpush1.bf16.msra.mxu0 %v264
      %285 = vmatprep.subr.bf16.mxu0 0
      %286 = vmatpush1.bf16.msra.mxu0 %v263
      %287 = vmatprep.subr.bf16.mxu0 0
      %288 = vmatpush2.bf16.msra.mxu0 0
      %289 = vmatprep.subr.bf16.mxu0 0
      %290 = vmatpush2.bf16.msra.mxu0 0
      %291 = vmatprep.subr.bf16.mxu0 0
      %292 = vmatpush2.bf16.msra.mxu0 0
      %293 = vmatprep.subr.bf16.mxu0 0
      %294 = vmatpush2.bf16.msra.mxu0 0
      %295 = vmatprep.subr.bf16.mxu0 0
      %296 = vmatpush2.bf16.msra.mxu0 0
      %297 = vmatprep.subr.bf16.mxu0 0
      %298 = vmatpush2.bf16.msra.mxu0 0
      %299 = vmatprep.subr.bf16.mxu0 0
      %300 = vmatpush2.bf16.msra.mxu0 0
      %301 = vmatprep.subr.bf16.mxu0 0
      %302 = vmatpush2.bf16.msra.mxu0 0
      %303 = vmatprep.mubr.bf16.mxu0 0
      %304 = vmatmul.mubr.bf16.gmra.mxu0 %v269
      %v305 = vpop.f32.mrf.mxu0
      %v306 = vadd.f32 0.0, %v305
      %v307 = vpop.f32.mrf.mxu0
      %v308 = vpop.f32.mrf.mxu0
      %v309 = vadd.f32 0.0, %v308
      %v310 = vpop.f32.mrf.mxu0
      %311 = vdwg.mxu0
      %v312 = vld [vmem:[%s2] sm:$0x1]
      %v314 = vlaneseq
      %v315 = vshrl.u32 %v314, 7
      %v316 = vsub.s32 0, %v315
      %v317 = vrot.slane %v312, %v316
      %v319 = vmul.f32 %v306, %v317
      %v320 = vmul.f32 %v309, %v317
      %v321 = vld [vmem:[%s3] sm:$0x1]
      %v323 = vlaneseq
      %v324 = vshrl.u32 %v323, 7
      %v325 = vsub.s32 0, %v324
      %v326 = vrot.slane %v321, %v325
      %v328 = vadd.f32 %v319, %v326
      %v329 = vadd.f32 %v320, %v326
      %v330 = vld [vmem:[%s239] sm:$0xff]
      %v331 = vld [vmem:[%s239 + $0x8] sm:$0xff]
      %v332 = vadd.f32 %v328, %v330
      %v333 = vadd.f32 %v329, %v331
      %vm334 = vcmask 130048
      %335 = vst.msk [vmem:[%s244] sm:$0xff] %vm334, %v332
      %336 = vst.msk [vmem:[%s244 + $0x8] sm:$0xff] %vm334, %v333
      %p337 = scmp.lt.s32.totalorder %s16, 1
      %s338 = scalar_select %p337, %s16, 1
      %s339 = smul.addr %s338, 2
      %s340 = smul.addr %s339, 8
      %s341 = scalar_lea.vmem %s5, %s340
      // Predicated region
      $region41: #{_lambda_.22} parent=39 // pred_check
        %p342 = pneg %p149
      $region42: #{_lambda_.22} parent=39 // pred_check_branch
        %344 = sbr.rel (%p342) target = $region44
      $region43: #{_lambda_.22} parent=39 // pred_region
        _
      $region44: #{_lambda_.22} parent=39 // pred_fallthru
        _
    $region40: #{_lambda_.22} parent=5 // pred_fallthru
      _
    %p345 = scmp.le.s32.totalorder 2, %s11
    // Predicated region
    $region45: #{_lambda_.22} parent=5 // pred_check
      %p346 = pneg %p345
    $region46: #{_lambda_.22} parent=5 // pred_check_branch
      %348 = sbr.rel (%p346) target = $region48
    $region47: #{_lambda_.22} parent=5 // pred_region
      %s349 = ssub.s32 %s11, 2
      // Predicated region
      $region49: #{_lambda_.22} parent=47 // pred_check
        %p350 = pneg %p155
      $region50: #{_lambda_.22} parent=47 // pred_check_branch
        %352 = sbr.rel (%p350) target = $region52
      $region51: #{_lambda_.22} parent=47 // pred_region
        %p353 = scmp.lt.s32.totalorder %s17, 1
        %s354 = scalar_select %p353, %s17, 1
        %s355 = smul.addr %s354, 2
        %s356 = smul.addr %s355, 8
        %s357 = scalar_lea.vmem %s5, %s356
      $region52: #{_lambda_.22} parent=47 // pred_fallthru
        _
    $region48: #{_lambda_.22} parent=5 // pred_fallthru
      _
  $region6: #{_lambda_.22} parent=0 // loop_footer
    %s15 = sadd.s32 1, %s11
  $region7: #{_lambda_.22} parent=0 // loop_footer_branch
    %10 = sbr.rel target = $region3
  $region8: #{_lambda_.22} parent=0 // loop_exit
    _

// kernel: _lambda_.25
$region0: #{_lambda_.25}
  #allocation0 [shape = 'u32[]', space=smem, size = 0x4, offset = 0x4, fixed_abs, tag = 'smem constant byte address 0x4 - core index']
  #allocation1 [shape = 'u32[144,128]{1,0:T(1,128)}', space=vmem, size = 0x12000, scoped, tag = 'internal scratch']
  %s0 = inlined_call_operand.vmem [shape: f32[2,16,32], index: 0, kind: input, shape index: {}]
  %s1 = inlined_call_operand.vmem [shape: bf16[32,8], index: 1, kind: input, shape index: {}]
  %s2 = inlined_call_operand.vmem [shape: f32[1,8], index: 2, kind: input, shape index: {}]
  %s3 = inlined_call_operand.vmem [shape: f32[2,1,8], index: 3, kind: output, shape index: {}]
  %s4 = sld [smem:[#allocation0]]
  $region45: #{_lambda_.25} parent=0
    _
  %s6 = ssub.s32 1, %s4
  %s7 = scalar_select 0, %s6, %s4
  loop: start=0, step=1, limit=4
  $region2: #{_lambda_.25} parent=0 // loop_pre_header
    _
  $region3: #{_lambda_.25} parent=0 // loop_header
    %s9 = sphi 0, %s13
    %p10 = scmp.ge.s32.totalorder %s9, 4
    %s19 = sphi 0, %s21
    %s22 = sphi 0, %s19
    %s23 = sphi 0, %s22
    %s39 = sphi 0, %s23
    %s43 = sphi 0, %s43
    %s45 = sphi 0, %s43
    %s46 = sphi 0, %s45
    %s60 = sphi 0, %s46
    %s64 = sphi 0, %s64
    %s66 = sphi 0, %s64
    %s67 = sphi 0, %s66
    %s81 = sphi 0, %s67
    %s87 = sphi 0, %s89
    %s90 = sphi 0, %s87
    %s91 = sphi 0, %s90
    %s107 = sphi 0, %s91
  $region4: #{_lambda_.25} parent=0 // loop_header_branch
    %12 = sbr.rel (%p10) target = $region8
  $region5: #{_lambda_.25} parent=0 // loop_body
    %s14 = ssub.s32 %s9, 1
    %s15 = ssub.s32 %s9, 2
    %s16 = sadd.s32 %s9, 1
    %s17 = ssub.s32 %s9, %s16
    %p18 = scmp.eq.s32.totalorder %s17, 0
    %s20 = sadd.s32 %s19, 1
    %s21 = scalar_select %p18, %s19, %s20
    %p24 = pneg %p18
    %p25 = scmp.eq.s32.totalorder %s9, 1
    %p26 = por %p24, %p25
    %p27 = scmp.ne.s32.totalorder %s19, %s22
    %p28 = scmp.eq.s32.totalorder %s9, 0
    %p29 = por %p27, %p28
    %p30 = scmp.ne.s32.totalorder %s19, %s22
    %p31 = scmp.eq.s32.totalorder %s14, 1
    %p32 = por %p30, %p31
    %p33 = scmp.ne.s32.totalorder %s22, %s23
    %p34 = scmp.eq.s32.totalorder %s14, 0
    %p35 = por %p33, %p34
    %p36 = scmp.ne.s32.totalorder %s22, %s23
    %p37 = scmp.eq.s32.totalorder %s15, 1
    %p38 = por %p36, %p37
    %p40 = scmp.ne.s32.totalorder %s23, %s39
    %p41 = scmp.eq.s32.totalorder %s15, 0
    %p42 = por %p40, %p41
    %s44 = sadd.s32 %s43, 1
    %p47 = scmp.eq.s32.totalorder %s9, 1
    %p48 = scmp.ne.s32.totalorder %s43, %s45
    %p49 = scmp.eq.s32.totalorder %s9, 0
    %p50 = por %p48, %p49
    %p51 = scmp.ne.s32.totalorder %s43, %s45
    %p52 = scmp.eq.s32.totalorder %s14, 1
    %p53 = por %p51, %p52
    %p54 = scmp.ne.s32.totalorder %s45, %s46
    %p55 = scmp.eq.s32.totalorder %s14, 0
    %p56 = por %p54, %p55
    %p57 = scmp.ne.s32.totalorder %s45, %s46
    %p58 = scmp.eq.s32.totalorder %s15, 1
    %p59 = por %p57, %p58
    %p61 = scmp.ne.s32.totalorder %s46, %s60
    %p62 = scmp.eq.s32.totalorder %s15, 0
    %p63 = por %p61, %p62
    %s65 = sadd.s32 %s64, 1
    %p68 = scmp.eq.s32.totalorder %s9, 1
    %p69 = scmp.ne.s32.totalorder %s64, %s66
    %p70 = scmp.eq.s32.totalorder %s9, 0
    %p71 = por %p69, %p70
    %p72 = scmp.ne.s32.totalorder %s64, %s66
    %p73 = scmp.eq.s32.totalorder %s14, 1
    %p74 = por %p72, %p73
    %p75 = scmp.ne.s32.totalorder %s66, %s67
    %p76 = scmp.eq.s32.totalorder %s14, 0
    %p77 = por %p75, %p76
    %p78 = scmp.ne.s32.totalorder %s66, %s67
    %p79 = scmp.eq.s32.totalorder %s15, 1
    %p80 = por %p78, %p79
    %p82 = scmp.ne.s32.totalorder %s67, %s81
    %p83 = scmp.eq.s32.totalorder %s15, 0
    %p84 = por %p82, %p83
    %s85 = ssub.s32 %s9, %s16
    %p86 = scmp.eq.s32.totalorder %s85, 0
    %s88 = sadd.s32 %s87, 1
    %s89 = scalar_select %p86, %s87, %s88
    %p92 = pneg %p86
    %p93 = scmp.eq.s32.totalorder %s9, 1
    %p94 = por %p92, %p93
    %p95 = scmp.ne.s32.totalorder %s87, %s90
    %p96 = scmp.eq.s32.totalorder %s9, 0
    %p97 = por %p95, %p96
    %p98 = scmp.ne.s32.totalorder %s87, %s90
    %p99 = scmp.eq.s32.totalorder %s14, 1
    %p100 = por %p98, %p99
    %p101 = scmp.ne.s32.totalorder %s90, %s91
    %p102 = scmp.eq.s32.totalorder %s14, 0
    %p103 = por %p101, %p102
    %p104 = scmp.ne.s32.totalorder %s90, %s91
    %p105 = scmp.eq.s32.totalorder %s15, 1
    %p106 = por %p104, %p105
    %p108 = scmp.ne.s32.totalorder %s91, %s107
    %p109 = scmp.eq.s32.totalorder %s15, 0
    %p110 = por %p108, %p109
    %p111 = scmp.le.s32.totalorder 1, %s9
    %p112 = scmp.lt.s32.totalorder %s9, 3
    %p113 = pnand %p111, %p112
    %p114 = pneg %p113
    // Predicated region
    $region9: #{_lambda_.25} parent=5 // pred_check
      _
    $region10: #{_lambda_.25} parent=5 // pred_check_branch
      %116 = sbr.rel (%p113) target = $region12
    $region11: #{_lambda_.25} parent=5 // pred_region
      %s117 = ssub.s32 %s9, 1
      // Predicated region
      $region13: #{_lambda_.25} parent=11 // pred_check
        %p118 = pneg %p56
      $region14: #{_lambda_.25} parent=11 // pred_check_branch
        %120 = sbr.rel (%p118) target = $region16
      $region15: #{_lambda_.25} parent=11 // pred_region
        _
      $region16: #{_lambda_.25} parent=11 // pred_fallthru
        _
      // Predicated region
      $region17: #{_lambda_.25} parent=11 // pred_check
        %p121 = pneg %p77
      $region18: #{_lambda_.25} parent=11 // pred_check_branch
        %123 = sbr.rel (%p121) target = $region20
      $region19: #{_lambda_.25} parent=11 // pred_region
        _
      $region20: #{_lambda_.25} parent=11 // pred_fallthru
        _
    $region12: #{_lambda_.25} parent=5 // pred_fallthru
      _
    %p124 = scmp.lt.s32.totalorder %s9, 2
    // Predicated region
    $region21: #{_lambda_.25} parent=5 // pred_check
      %p125 = pneg %p124
    $region22: #{_lambda_.25} parent=5 // pred_check_branch
      %127 = sbr.rel (%p125) target = $region24
    $region23: #{_lambda_.25} parent=5 // pred_region
      // Predicated region
      $region25: #{_lambda_.25} parent=23 // pred_check
        %p128 = pneg %p29
      $region26: #{_lambda_.25} parent=23 // pred_check_branch
        %130 = sbr.rel (%p128) target = $region28
      $region27: #{_lambda_.25} parent=23 // pred_region
        %p131 = scmp.lt.s32.totalorder %s9, 1
        %s132 = scalar_select %p131, %s9, 1
        %s133 = smul.addr %s132, 2
        %s134 = smul.addr %s133, 8
        %s135 = scalar_lea.vmem %s0, %s134
      $region28: #{_lambda_.25} parent=23 // pred_fallthru
        _
    $region24: #{_lambda_.25} parent=5 // pred_fallthru
      _
    %p136 = scmp.le.s32.totalorder 1, %s9
    %p137 = scmp.lt.s32.totalorder %s9, 3
    %p138 = pnand %p136, %p137
    %p139 = pneg %p138
    // Predicated region
    $region29: #{_lambda_.25} parent=5 // pred_check
      _
    $region30: #{_lambda_.25} parent=5 // pred_check_branch
      %141 = sbr.rel (%p138) target = $region32
    $region31: #{_lambda_.25} parent=5 // pred_region
      %s142 = ssub.s32 %s9, 1
      %p143 = scmp.lt.s32.totalorder %s14, 1
      %s144 = scalar_select %p143, %s14, 1
      %s145 = smul.addr %s144, 2
      %s146 = smul.addr %s145, 8
      %s147 = scalar_lea.vmem %s0, %s146
      %p148 = pneg %p35
      %p149 = pneg %p32
      %p150 = pneg %p56
      %p151 = pneg %p53
      %p152 = pneg %p77
      %p153 = pneg %p74
      %p154 = pneg %p103
      %p155 = pneg %p100
      %p156 = scmp.lt.s32.totalorder %s14, 1
      %s157 = scalar_select %p156, %s14, 1
      %s158 = scalar_lea.vmem %s3, %s157
      %p159 = scmp.lt.s32.totalorder %s14, 1
      %s160 = scalar_select %p159, %s14, 1
      %s161 = smul.addr %s160, 2
      %s162 = smul.addr %s161, 8
      %s163 = scalar_lea.vmem %s0, %s162
      %p164 = scmp.lt.s32.totalorder %s14, 1
      %s165 = scalar_select %p164, %s14, 1
      %s166 = scalar_lea.vmem %s3, %s165
      %v168 = vld [vmem:[%s163] sm:$0xff]
      %v169 = vld [vmem:[%s163 + $0x8] sm:$0xff]
      %vm170 = vcmask 261120
      %v171 = vsel %vm170, %v168, 0.0
      %v172 = vsel %vm170, %v169, 0.0
      %v173 = vadd.f32 %v171, %v172
      %v174 = vrot.slane %v173, 4
      %v175 = vadd.f32 %v173, %v174
      %v176 = vrot.slane %v175, 2
      %v177 = vadd.f32 %v175, %v176
      %v178 = vrot.slane %v177, 1
      %v179 = vadd.f32 %v177, %v178
      %v180 = vrcp.pop 16.0
      %v181 = vmul.f32 %v179, %v180
      %v182 = vpack.c.bf16 %v181, %v181
      %v183 = vld [vmem:[%s1] sm:$0xf]
      %v184 = vld [vmem:[%s1 + $0x4] sm:$0xf]
      %v185 = vld [vmem:[%s1 + $0x8] sm:$0xf]
      %v186 = vld [vmem:[%s1 + $0xc] sm:$0xf]
      %v187 = vld [vmem:[%s2] sm:$0x1]
      %v192 = vunpack.c.l.b16 %v183
      %v193 = vunpack.c.l.b16 %v184
      %v194 = vunpack.c.l.b16 %v185
      %v195 = vunpack.c.l.b16 %v186
      %v196 = vpack.c.b16 %v193, %v192
      %v197 = vpack.c.b16 %v195, %v194
      %v201 = vsel %vm170, %v182, 0
      %203 = vmatprep.subr.bf16.mxu0 0
      %204 = vmatpush1.bf16.msra.mxu0 0
      %205 = vmatprep.subr.bf16.mxu0 0
      %206 = vmatpush1.bf16.msra.mxu0 0
      %207 = vmatprep.subr.bf16.mxu0 0
      %208 = vmatpush1.bf16.msra.mxu0 0
      %209 = vmatprep.subr.bf16.mxu0 0
      %210 = vmatpush1.bf16.msra.mxu0 0
      %211 = vmatprep.subr.bf16.mxu0 0
      %212 = vmatpush1.bf16.msra.mxu0 0
      %213 = vmatprep.subr.bf16.mxu0 0
      %214 = vmatpush1.bf16.msra.mxu0 0
      %215 = vmatprep.subr.bf16.mxu0 0
      %216 = vmatpush1.bf16.msra.mxu0 %v197
      %217 = vmatprep.subr.bf16.mxu0 0
      %218 = vmatpush1.bf16.msra.mxu0 %v196
      %219 = vmatprep.subr.bf16.mxu0 0
      %220 = vmatpush2.bf16.msra.mxu0 0
      %221 = vmatprep.subr.bf16.mxu0 0
      %222 = vmatpush2.bf16.msra.mxu0 0
      %223 = vmatprep.subr.bf16.mxu0 0
      %224 = vmatpush2.bf16.msra.mxu0 0
      %225 = vmatprep.subr.bf16.mxu0 0
      %226 = vmatpush2.bf16.msra.mxu0 0
      %227 = vmatprep.subr.bf16.mxu0 0
      %228 = vmatpush2.bf16.msra.mxu0 0
      %229 = vmatprep.subr.bf16.mxu0 0
      %230 = vmatpush2.bf16.msra.mxu0 0
      %231 = vmatprep.subr.bf16.mxu0 0
      %232 = vmatpush2.bf16.msra.mxu0 0
      %233 = vmatprep.subr.bf16.mxu0 0
      %234 = vmatpush2.bf16.msra.mxu0 0
      %235 = vmatprep.mubr.bf16.mxu0 0
      %236 = vmatmul.mubr.bf16.gmra.mxu0 %v201
      %v237 = vpop.f32.mrf.mxu0
      %v238 = vadd.f32 %v187, %v237
      %v239 = vpop.f32.mrf.mxu0
      %v240 = vpop.f32.mrf.mxu0
      %v241 = vpop.f32.mrf.mxu0
      %242 = vdwg.mxu0
      %vm243 = vcmask 57344
      %244 = vst.msk [vmem:[%s166] sm:$0x1] %vm243, %v238
      %p245 = scmp.lt.s32.totalorder %s14, 1
      %s246 = scalar_select %p245, %s14, 1
      %s247 = scalar_lea.vmem %s3, %s246
      // Predicated region
      $region33: #{_lambda_.25} parent=31 // pred_check
        %p248 = pneg %p100
      $region34: #{_lambda_.25} parent=31 // pred_check_branch
        %250 = sbr.rel (%p248) target = $region36
      $region35: #{_lambda_.25} parent=31 // pred_region
        _
      $region36: #{_lambda_.25} parent=31 // pred_fallthru
        _
    $region32: #{_lambda_.25} parent=5 // pred_fallthru
      _
    %p251 = scmp.le.s32.totalorder 2, %s9
    // Predicated region
    $region37: #{_lambda_.25} parent=5 // pred_check
      %p252 = pneg %p251
    $region38: #{_lambda_.25} parent=5 // pred_check_branch
      %254 = sbr.rel (%p252) target = $region40
    $region39: #{_lambda_.25} parent=5 // pred_region
      %s255 = ssub.s32 %s9, 2
      // Predicated region
      $region41: #{_lambda_.25} parent=39 // pred_check
        %p256 = pneg %p106
      $region42: #{_lambda_.25} parent=39 // pred_check_branch
        %258 = sbr.rel (%p256) target = $region44
      $region43: #{_lambda_.25} parent=39 // pred_region
        %p259 = scmp.lt.s32.totalorder %s15, 1
        %s260 = scalar_select %p259, %s15, 1
        %s261 = scalar_lea.vmem %s3, %s260
      $region44: #{_lambda_.25} parent=39 // pred_fallthru
        _
    $region40: #{_lambda_.25} parent=5 // pred_fallthru
      _
  $region6: #{_lambda_.25} parent=0 // loop_footer
    %s13 = sadd.s32 1, %s9
  $region7: #{_lambda_.25} parent=0 // loop_footer_branch
    %8 = sbr.rel target = $region3
  $region8: #{_lambda_.25} parent=0 // loop_exit
    _

// kernel: _lambda_.24
$region0: #{_lambda_.24}
  #allocation0 [shape = 'u32[]', space=smem, size = 0x4, offset = 0x4, fixed_abs, tag = 'smem constant byte address 0x4 - core index']
  #allocation1 [shape = 'u32[144,128]{1,0:T(1,128)}', space=vmem, size = 0x12000, scoped, tag = 'internal scratch']
  #allocation2 [shape = 'f32[36,16]{1,0:T(8,128)}', space=vmem, size = 0x5000, scoped, tag = 'scratch operand']
  %s0 = inlined_call_operand.vmem [shape: f32[2,36,16], index: 0, kind: input, shape index: {}]
  %s1 = inlined_call_operand.vmem [shape: f32[9,16], index: 1, kind: input, shape index: {}]
  %s2 = inlined_call_operand.vmem [shape: bf16[16,16], index: 2, kind: input, shape index: {}]
  %s3 = inlined_call_operand.vmem [shape: f32[1,16], index: 3, kind: input, shape index: {}]
  %s4 = inlined_call_operand.vmem [shape: f32[1,16], index: 4, kind: input, shape index: {}]
  %s5 = inlined_call_operand.vmem [shape: f32[9,16], index: 5, kind: input, shape index: {}]
  %s6 = inlined_call_operand.vmem [shape: bf16[16,16], index: 6, kind: input, shape index: {}]
  %s7 = inlined_call_operand.vmem [shape: f32[1,16], index: 7, kind: input, shape index: {}]
  %s8 = inlined_call_operand.vmem [shape: f32[1,16], index: 8, kind: input, shape index: {}]
  %s9 = inlined_call_operand.vmem [shape: f32[22,1], index: 9, kind: input, shape index: {}]
  %s10 = inlined_call_operand.vmem [shape: f32[2,22,16], index: 10, kind: input, shape index: {}]
  %s11 = inlined_call_operand.vmem [shape: f32[2,22,16], index: 11, kind: output, shape index: {}]
  %s12 = sld [smem:[#allocation0]]
  $region77: #{_lambda_.24} parent=0
    _
  %s14 = ssub.s32 1, %s12
  %s15 = scalar_select 0, %s14, %s12
  loop: start=0, step=1, limit=4
  $region2: #{_lambda_.24} parent=0 // loop_pre_header
    _
  $region3: #{_lambda_.24} parent=0 // loop_header
    %s17 = sphi 0, %s21
    %p18 = scmp.ge.s32.totalorder %s17, 4
    %s27 = sphi 0, %s29
    %s30 = sphi 0, %s27
    %s31 = sphi 0, %s30
    %s47 = sphi 0, %s31
    %s51 = sphi 0, %s51
    %s53 = sphi 0, %s51
    %s54 = sphi 0, %s53
    %s68 = sphi 0, %s54
    %s72 = sphi 0, %s72
    %s74 = sphi 0, %s72
    %s75 = sphi 0, %s74
    %s89 = sphi 0, %s75
    %s93 = sphi 0, %s93
    %s95 = sphi 0, %s93
    %s96 = sphi 0, %s95
    %s110 = sphi 0, %s96
    %s114 = sphi 0, %s114
    %s116 = sphi 0, %s114
    %s117 = sphi 0, %s116
    %s131 = sphi 0, %s117
    %s135 = sphi 0, %s135
    %s137 = sphi 0, %s135
    %s138 = sphi 0, %s137
    %s152 = sphi 0, %s138
    %s156 = sphi 0, %s156
    %s158 = sphi 0, %s156
    %s159 = sphi 0, %s158
    %s173 = sphi 0, %s159
    %s177 = sphi 0, %s177
    %s179 = sphi 0, %s177
    %s180 = sphi 0, %s179
    %s194 = sphi 0, %s180
    %s198 = sphi 0, %s198
    %s200 = sphi 0, %s198
    %s201 = sphi 0, %s200
    %s215 = sphi 0, %s201
    %s219 = sphi 0, %s219
    %s221 = sphi 0, %s219
    %s222 = sphi 0, %s221
    %s236 = sphi 0, %s222
    %s242 = sphi 0, %s244
    %s245 = sphi 0, %s242
    %s246 = sphi 0, %s245
    %s262 = sphi 0, %s246
    %s268 = sphi 0, %s270
    %s271 = sphi 0, %s268
    %s272 = sphi 0, %s271
    %s288 = sphi 0, %s272
  $region4: #{_lambda_.24} parent=0 // loop_header_branch
    %20 = sbr.rel (%p18) target = $region8
  $region5: #{_lambda_.24} parent=0 // loop_body
    %s22 = ssub.s32 %s17, 1
    %s23 = ssub.s32 %s17, 2
    %s24 = sadd.s32 %s17, 1
    %s25 = ssub.s32 %s17, %s24
    %p26 = scmp.eq.s32.totalorder %s25, 0
    %s28 = sadd.s32 %s27, 1
    %s29 = scalar_select %p26, %s27, %s28
    %p32 = pneg %p26
    %p33 = scmp.eq.s32.totalorder %s17, 1
    %p34 = por %p32, %p33
    %p35 = scmp.ne.s32.totalorder %s27, %s30
    %p36 = scmp.eq.s32.totalorder %s17, 0
    %p37 = por %p35, %p36
    %p38 = scmp.ne.s32.totalorder %s27, %s30
    %p39 = scmp.eq.s32.totalorder %s22, 1
    %p40 = por %p38, %p39
    %p41 = scmp.ne.s32.totalorder %s30, %s31
    %p42 = scmp.eq.s32.totalorder %s22, 0
    %p43 = por %p41, %p42
    %p44 = scmp.ne.s32.totalorder %s30, %s31
    %p45 = scmp.eq.s32.totalorder %s23, 1
    %p46 = por %p44, %p45
    %p48 = scmp.ne.s32.totalorder %s31, %s47
    %p49 = scmp.eq.s32.totalorder %s23, 0
    %p50 = por %p48, %p49
    %s52 = sadd.s32 %s51, 1
    %p55 = scmp.eq.s32.totalorder %s17, 1
    %p56 = scmp.ne.s32.totalorder %s51, %s53
    %p57 = scmp.eq.s32.totalorder %s17, 0
    %p58 = por %p56, %p57
    %p59 = scmp.ne.s32.totalorder %s51, %s53
    %p60 = scmp.eq.s32.totalorder %s22, 1
    %p61 = por %p59, %p60
    %p62 = scmp.ne.s32.totalorder %s53, %s54
    %p63 = scmp.eq.s32.totalorder %s22, 0
    %p64 = por %p62, %p63
    %p65 = scmp.ne.s32.totalorder %s53, %s54
    %p66 = scmp.eq.s32.totalorder %s23, 1
    %p67 = por %p65, %p66
    %p69 = scmp.ne.s32.totalorder %s54, %s68
    %p70 = scmp.eq.s32.totalorder %s23, 0
    %p71 = por %p69, %p70
    %s73 = sadd.s32 %s72, 1
    %p76 = scmp.eq.s32.totalorder %s17, 1
    %p77 = scmp.ne.s32.totalorder %s72, %s74
    %p78 = scmp.eq.s32.totalorder %s17, 0
    %p79 = por %p77, %p78
    %p80 = scmp.ne.s32.totalorder %s72, %s74
    %p81 = scmp.eq.s32.totalorder %s22, 1
    %p82 = por %p80, %p81
    %p83 = scmp.ne.s32.totalorder %s74, %s75
    %p84 = scmp.eq.s32.totalorder %s22, 0
    %p85 = por %p83, %p84
    %p86 = scmp.ne.s32.totalorder %s74, %s75
    %p87 = scmp.eq.s32.totalorder %s23, 1
    %p88 = por %p86, %p87
    %p90 = scmp.ne.s32.totalorder %s75, %s89
    %p91 = scmp.eq.s32.totalorder %s23, 0
    %p92 = por %p90, %p91
    %s94 = sadd.s32 %s93, 1
    %p97 = scmp.eq.s32.totalorder %s17, 1
    %p98 = scmp.ne.s32.totalorder %s93, %s95
    %p99 = scmp.eq.s32.totalorder %s17, 0
    %p100 = por %p98, %p99
    %p101 = scmp.ne.s32.totalorder %s93, %s95
    %p102 = scmp.eq.s32.totalorder %s22, 1
    %p103 = por %p101, %p102
    %p104 = scmp.ne.s32.totalorder %s95, %s96
    %p105 = scmp.eq.s32.totalorder %s22, 0
    %p106 = por %p104, %p105
    %p107 = scmp.ne.s32.totalorder %s95, %s96
    %p108 = scmp.eq.s32.totalorder %s23, 1
    %p109 = por %p107, %p108
    %p111 = scmp.ne.s32.totalorder %s96, %s110
    %p112 = scmp.eq.s32.totalorder %s23, 0
    %p113 = por %p111, %p112
    %s115 = sadd.s32 %s114, 1
    %p118 = scmp.eq.s32.totalorder %s17, 1
    %p119 = scmp.ne.s32.totalorder %s114, %s116
    %p120 = scmp.eq.s32.totalorder %s17, 0
    %p121 = por %p119, %p120
    %p122 = scmp.ne.s32.totalorder %s114, %s116
    %p123 = scmp.eq.s32.totalorder %s22, 1
    %p124 = por %p122, %p123
    %p125 = scmp.ne.s32.totalorder %s116, %s117
    %p126 = scmp.eq.s32.totalorder %s22, 0
    %p127 = por %p125, %p126
    %p128 = scmp.ne.s32.totalorder %s116, %s117
    %p129 = scmp.eq.s32.totalorder %s23, 1
    %p130 = por %p128, %p129
    %p132 = scmp.ne.s32.totalorder %s117, %s131
    %p133 = scmp.eq.s32.totalorder %s23, 0
    %p134 = por %p132, %p133
    %s136 = sadd.s32 %s135, 1
    %p139 = scmp.eq.s32.totalorder %s17, 1
    %p140 = scmp.ne.s32.totalorder %s135, %s137
    %p141 = scmp.eq.s32.totalorder %s17, 0
    %p142 = por %p140, %p141
    %p143 = scmp.ne.s32.totalorder %s135, %s137
    %p144 = scmp.eq.s32.totalorder %s22, 1
    %p145 = por %p143, %p144
    %p146 = scmp.ne.s32.totalorder %s137, %s138
    %p147 = scmp.eq.s32.totalorder %s22, 0
    %p148 = por %p146, %p147
    %p149 = scmp.ne.s32.totalorder %s137, %s138
    %p150 = scmp.eq.s32.totalorder %s23, 1
    %p151 = por %p149, %p150
    %p153 = scmp.ne.s32.totalorder %s138, %s152
    %p154 = scmp.eq.s32.totalorder %s23, 0
    %p155 = por %p153, %p154
    %s157 = sadd.s32 %s156, 1
    %p160 = scmp.eq.s32.totalorder %s17, 1
    %p161 = scmp.ne.s32.totalorder %s156, %s158
    %p162 = scmp.eq.s32.totalorder %s17, 0
    %p163 = por %p161, %p162
    %p164 = scmp.ne.s32.totalorder %s156, %s158
    %p165 = scmp.eq.s32.totalorder %s22, 1
    %p166 = por %p164, %p165
    %p167 = scmp.ne.s32.totalorder %s158, %s159
    %p168 = scmp.eq.s32.totalorder %s22, 0
    %p169 = por %p167, %p168
    %p170 = scmp.ne.s32.totalorder %s158, %s159
    %p171 = scmp.eq.s32.totalorder %s23, 1
    %p172 = por %p170, %p171
    %p174 = scmp.ne.s32.totalorder %s159, %s173
    %p175 = scmp.eq.s32.totalorder %s23, 0
    %p176 = por %p174, %p175
    %s178 = sadd.s32 %s177, 1
    %p181 = scmp.eq.s32.totalorder %s17, 1
    %p182 = scmp.ne.s32.totalorder %s177, %s179
    %p183 = scmp.eq.s32.totalorder %s17, 0
    %p184 = por %p182, %p183
    %p185 = scmp.ne.s32.totalorder %s177, %s179
    %p186 = scmp.eq.s32.totalorder %s22, 1
    %p187 = por %p185, %p186
    %p188 = scmp.ne.s32.totalorder %s179, %s180
    %p189 = scmp.eq.s32.totalorder %s22, 0
    %p190 = por %p188, %p189
    %p191 = scmp.ne.s32.totalorder %s179, %s180
    %p192 = scmp.eq.s32.totalorder %s23, 1
    %p193 = por %p191, %p192
    %p195 = scmp.ne.s32.totalorder %s180, %s194
    %p196 = scmp.eq.s32.totalorder %s23, 0
    %p197 = por %p195, %p196
    %s199 = sadd.s32 %s198, 1
    %p202 = scmp.eq.s32.totalorder %s17, 1
    %p203 = scmp.ne.s32.totalorder %s198, %s200
    %p204 = scmp.eq.s32.totalorder %s17, 0
    %p205 = por %p203, %p204
    %p206 = scmp.ne.s32.totalorder %s198, %s200
    %p207 = scmp.eq.s32.totalorder %s22, 1
    %p208 = por %p206, %p207
    %p209 = scmp.ne.s32.totalorder %s200, %s201
    %p210 = scmp.eq.s32.totalorder %s22, 0
    %p211 = por %p209, %p210
    %p212 = scmp.ne.s32.totalorder %s200, %s201
    %p213 = scmp.eq.s32.totalorder %s23, 1
    %p214 = por %p212, %p213
    %p216 = scmp.ne.s32.totalorder %s201, %s215
    %p217 = scmp.eq.s32.totalorder %s23, 0
    %p218 = por %p216, %p217
    %s220 = sadd.s32 %s219, 1
    %p223 = scmp.eq.s32.totalorder %s17, 1
    %p224 = scmp.ne.s32.totalorder %s219, %s221
    %p225 = scmp.eq.s32.totalorder %s17, 0
    %p226 = por %p224, %p225
    %p227 = scmp.ne.s32.totalorder %s219, %s221
    %p228 = scmp.eq.s32.totalorder %s22, 1
    %p229 = por %p227, %p228
    %p230 = scmp.ne.s32.totalorder %s221, %s222
    %p231 = scmp.eq.s32.totalorder %s22, 0
    %p232 = por %p230, %p231
    %p233 = scmp.ne.s32.totalorder %s221, %s222
    %p234 = scmp.eq.s32.totalorder %s23, 1
    %p235 = por %p233, %p234
    %p237 = scmp.ne.s32.totalorder %s222, %s236
    %p238 = scmp.eq.s32.totalorder %s23, 0
    %p239 = por %p237, %p238
    %s240 = ssub.s32 %s17, %s24
    %p241 = scmp.eq.s32.totalorder %s240, 0
    %s243 = sadd.s32 %s242, 1
    %s244 = scalar_select %p241, %s242, %s243
    %p247 = pneg %p241
    %p248 = scmp.eq.s32.totalorder %s17, 1
    %p249 = por %p247, %p248
    %p250 = scmp.ne.s32.totalorder %s242, %s245
    %p251 = scmp.eq.s32.totalorder %s17, 0
    %p252 = por %p250, %p251
    %p253 = scmp.ne.s32.totalorder %s242, %s245
    %p254 = scmp.eq.s32.totalorder %s22, 1
    %p255 = por %p253, %p254
    %p256 = scmp.ne.s32.totalorder %s245, %s246
    %p257 = scmp.eq.s32.totalorder %s22, 0
    %p258 = por %p256, %p257
    %p259 = scmp.ne.s32.totalorder %s245, %s246
    %p260 = scmp.eq.s32.totalorder %s23, 1
    %p261 = por %p259, %p260
    %p263 = scmp.ne.s32.totalorder %s246, %s262
    %p264 = scmp.eq.s32.totalorder %s23, 0
    %p265 = por %p263, %p264
    %s266 = ssub.s32 %s17, %s24
    %p267 = scmp.eq.s32.totalorder %s266, 0
    %s269 = sadd.s32 %s268, 1
    %s270 = scalar_select %p267, %s268, %s269
    %p273 = pneg %p267
    %p274 = scmp.eq.s32.totalorder %s17, 1
    %p275 = por %p273, %p274
    %p276 = scmp.ne.s32.totalorder %s268, %s271
    %p277 = scmp.eq.s32.totalorder %s17, 0
    %p278 = por %p276, %p277
    %p279 = scmp.ne.s32.totalorder %s268, %s271
    %p280 = scmp.eq.s32.totalorder %s22, 1
    %p281 = por %p279, %p280
    %p282 = scmp.ne.s32.totalorder %s271, %s272
    %p283 = scmp.eq.s32.totalorder %s22, 0
    %p284 = por %p282, %p283
    %p285 = scmp.ne.s32.totalorder %s271, %s272
    %p286 = scmp.eq.s32.totalorder %s23, 1
    %p287 = por %p285, %p286
    %p289 = scmp.ne.s32.totalorder %s272, %s288
    %p290 = scmp.eq.s32.totalorder %s23, 0
    %p291 = por %p289, %p290
    %p292 = scmp.le.s32.totalorder 1, %s17
    %p293 = scmp.lt.s32.totalorder %s17, 3
    %p294 = pnand %p292, %p293
    %p295 = pneg %p294
    // Predicated region
    $region9: #{_lambda_.24} parent=5 // pred_check
      _
    $region10: #{_lambda_.24} parent=5 // pred_check_branch
      %297 = sbr.rel (%p294) target = $region12
    $region11: #{_lambda_.24} parent=5 // pred_region
      %s298 = ssub.s32 %s17, 1
      // Predicated region
      $region13: #{_lambda_.24} parent=11 // pred_check
        %p299 = pneg %p64
      $region14: #{_lambda_.24} parent=11 // pred_check_branch
        %301 = sbr.rel (%p299) target = $region16
      $region15: #{_lambda_.24} parent=11 // pred_region
        _
      $region16: #{_lambda_.24} parent=11 // pred_fallthru
        _
      // Predicated region
      $region17: #{_lambda_.24} parent=11 // pred_check
        %p302 = pneg %p85
      $region18: #{_lambda_.24} parent=11 // pred_check_branch
        %304 = sbr.rel (%p302) target = $region20
      $region19: #{_lambda_.24} parent=11 // pred_region
        _
      $region20: #{_lambda_.24} parent=11 // pred_fallthru
        _
      // Predicated region
      $region21: #{_lambda_.24} parent=11 // pred_check
        %p305 = pneg %p106
      $region22: #{_lambda_.24} parent=11 // pred_check_branch
        %307 = sbr.rel (%p305) target = $region24
      $region23: #{_lambda_.24} parent=11 // pred_region
        _
      $region24: #{_lambda_.24} parent=11 // pred_fallthru
        _
      // Predicated region
      $region25: #{_lambda_.24} parent=11 // pred_check
        %p308 = pneg %p127
      $region26: #{_lambda_.24} parent=11 // pred_check_branch
        %310 = sbr.rel (%p308) target = $region28
      $region27: #{_lambda_.24} parent=11 // pred_region
        _
      $region28: #{_lambda_.24} parent=11 // pred_fallthru
        _
      // Predicated region
      $region29: #{_lambda_.24} parent=11 // pred_check
        %p311 = pneg %p148
      $region30: #{_lambda_.24} parent=11 // pred_check_branch
        %313 = sbr.rel (%p311) target = $region32
      $region31: #{_lambda_.24} parent=11 // pred_region
        _
      $region32: #{_lambda_.24} parent=11 // pred_fallthru
        _
      // Predicated region
      $region33: #{_lambda_.24} parent=11 // pred_check
        %p314 = pneg %p169
      $region34: #{_lambda_.24} parent=11 // pred_check_branch
        %316 = sbr.rel (%p314) target = $region36
      $region35: #{_lambda_.24} parent=11 // pred_region
        _
      $region36: #{_lambda_.24} parent=11 // pred_fallthru
        _
      // Predicated region
      $region37: #{_lambda_.24} parent=11 // pred_check
        %p317 = pneg %p190
      $region38: #{_lambda_.24} parent=11 // pred_check_branch
        %319 = sbr.rel (%p317) target = $region40
      $region39: #{_lambda_.24} parent=11 // pred_region
        _
      $region40: #{_lambda_.24} parent=11 // pred_fallthru
        _
      // Predicated region
      $region41: #{_lambda_.24} parent=11 // pred_check
        %p320 = pneg %p211
      $region42: #{_lambda_.24} parent=11 // pred_check_branch
        %322 = sbr.rel (%p320) target = $region44
      $region43: #{_lambda_.24} parent=11 // pred_region
        _
      $region44: #{_lambda_.24} parent=11 // pred_fallthru
        _
      // Predicated region
      $region45: #{_lambda_.24} parent=11 // pred_check
        %p323 = pneg %p232
      $region46: #{_lambda_.24} parent=11 // pred_check_branch
        %325 = sbr.rel (%p323) target = $region48
      $region47: #{_lambda_.24} parent=11 // pred_region
        _
      $region48: #{_lambda_.24} parent=11 // pred_fallthru
        _
    $region12: #{_lambda_.24} parent=5 // pred_fallthru
      _
    %p326 = scmp.lt.s32.totalorder %s17, 2
    // Predicated region
    $region49: #{_lambda_.24} parent=5 // pred_check
      %p327 = pneg %p326
    $region50: #{_lambda_.24} parent=5 // pred_check_branch
      %329 = sbr.rel (%p327) target = $region52
    $region51: #{_lambda_.24} parent=5 // pred_region
      // Predicated region
      $region53: #{_lambda_.24} parent=51 // pred_check
        %p330 = pneg %p37
      $region54: #{_lambda_.24} parent=51 // pred_check_branch
        %332 = sbr.rel (%p330) target = $region56
      $region55: #{_lambda_.24} parent=51 // pred_region
        %p333 = scmp.lt.s32.totalorder %s17, 1
        %s334 = scalar_select %p333, %s17, 1
        %s335 = smul.addr %s334, 5
        %s336 = smul.addr %s335, 8
        %s337 = scalar_lea.vmem %s0, %s336
      $region56: #{_lambda_.24} parent=51 // pred_fallthru
        _
      // Predicated region
      $region57: #{_lambda_.24} parent=51 // pred_check
        %p338 = pneg %p252
      $region58: #{_lambda_.24} parent=51 // pred_check_branch
        %340 = sbr.rel (%p338) target = $region60
      $region59: #{_lambda_.24} parent=51 // pred_region
        %p341 = scmp.lt.s32.totalorder %s17, 1
        %s342 = scalar_select %p341, %s17, 1
        %s343 = smul.addr %s342, 3
        %s344 = smul.addr %s343, 8
        %s345 = scalar_lea.vmem %s10, %s344
      $region60: #{_lambda_.24} parent=51 // pred_fallthru
        _
    $region52: #{_lambda_.24} parent=5 // pred_fallthru
      _
    %p346 = scmp.le.s32.totalorder 1, %s17
    %p347 = scmp.lt.s32.totalorder %s17, 3
    %p348 = pnand %p346, %p347
    %p349 = pneg %p348
    // Predicated region
    $region61: #{_lambda_.24} parent=5 // pred_check
      _
    $region62: #{_lambda_.24} parent=5 // pred_check_branch
      %351 = sbr.rel (%p348) target = $region64
    $region63: #{_lambda_.24} parent=5 // pred_region
      %s352 = ssub.s32 %s17, 1
      %p353 = scmp.lt.s32.totalorder %s22, 1
      %s354 = scalar_select %p353, %s22, 1
      %s355 = smul.addr %s354, 5
      %s356 = smul.addr %s355, 8
      %s357 = scalar_lea.vmem %s0, %s356
      %p358 = pneg %p43
      %p359 = pneg %p40
      %p360 = pneg %p64
      %p361 = pneg %p61
      %p362 = pneg %p85
      %p363 = pneg %p82
      %p364 = pneg %p106
      %p365 = pneg %p103
      %p366 = pneg %p127
      %p367 = pneg %p124
      %p368 = pneg %p148
      %p369 = pneg %p145
      %p370 = pneg %p169
      %p371 = pneg %p166
      %p372 = pneg %p190
      %p373 = pneg %p187
      %p374 = pneg %p211
      %p375 = pneg %p208
      %p376 = pneg %p232
      %p377 = pneg %p229
      %p378 = scmp.lt.s32.totalorder %s22, 1
      %s379 = scalar_select %p378, %s22, 1
      %s380 = smul.addr %s379, 3
      %s381 = smul.addr %s380, 8
      %s382 = scalar_lea.vmem %s10, %s381
      %p383 = pneg %p258
      %p384 = pneg %p255
      %p385 = pneg %p284
      %p386 = pneg %p281
      %p387 = scmp.lt.s32.totalorder %s22, 1
      %s388 = scalar_select %p387, %s22, 1
      %s389 = smul.addr %s388, 3
      %s390 = smul.addr %s389, 8
      %s391 = scalar_lea.vmem %s11, %s390
      %p392 = scmp.lt.s32.totalorder %s22, 1
      %s393 = scalar_select %p392, %s22, 1
      %s394 = smul.addr %s393, 5
      %s395 = smul.addr %s394, 8
      %s396 = scalar_lea.vmem %s0, %s395
      %p397 = scmp.lt.s32.totalorder %s22, 1
      %s398 = scalar_select %p397, %s22, 1
      %s399 = smul.addr %s398, 3
      %s400 = smul.addr %s399, 8
      %s401 = scalar_lea.vmem %s10, %s400
      %p402 = scmp.lt.s32.totalorder %s22, 1
      %s403 = scalar_select %p402, %s22, 1
      %s404 = smul.addr %s403, 3
      %s405 = smul.addr %s404, 8
      %s406 = scalar_lea.vmem %s11, %s405
      %v408 = vld [vmem:[%s396] sm:$0xff]
      %v409 = vld [vmem:[%s396 + $0x8] sm:$0xff]
      %v410 = vld [vmem:[%s396 + $0x10] sm:$0x3f]
      %v411 = vmax.f32 %v408, 0.0
      %v412 = vmax.f32 %v409, 0.0
      %v413 = vmax.f32 %v410, 0.0
      %v414 = vld [vmem:[%s1] sm:$0x1]
      %v415 = vlaneseq
      %v416 = vshrl.u32 %v415, 7
      %v417 = vsub.s32 0, %v416
      %v418 = vrot.slane %v414, %v417
      %v419 = vmul.f32 %v411, %v418
      %v420 = vmul.f32 %v412, %v418
      %v421 = vmul.f32 %v413, %v418
      %v422 = vadd.f32 %v419, 0.0
      %v423 = vadd.f32 %v420, 0.0
      %v424 = vadd.f32 %v421, 0.0
      %v425 = vld [vmem:[%s396 + $0x1] sm:$0xff]
      %v426 = vld [vmem:[%s396 + $0x9] sm:$0xff]
      %v427 = vld [vmem:[%s396 + $0x11] sm:$0x3f]
      %v428 = vmax.f32 %v425, 0.0
      %v429 = vmax.f32 %v426, 0.0
      %v430 = vmax.f32 %v427, 0.0
      %v431 = vld [vmem:[%s1 + $0x1] sm:$0x1]
      %v432 = vlaneseq
      %v433 = vshrl.u32 %v432, 7
      %v434 = vsub.s32 0, %v433
      %v435 = vrot.slane %v431, %v434
      %v436 = vmul.f32 %v428, %v435
      %v437 = vmul.f32 %v429, %v435
      %v438 = vmul.f32 %v430, %v435
      %v439 = vadd.f32 %v422, %v436
      %v440 = vadd.f32 %v423, %v437
      %v441 = vadd.f32 %v424, %v438
      %v442 = vld [vmem:[%s396 + $0x2] sm:$0xff]
      %v443 = vld [vmem:[%s396 + $0xa] sm:$0xff]
      %v444 = vld [vmem:[%s396 + $0x12] sm:$0x3f]
      %v445 = vmax.f32 %v442, 0.0
      %v446 = vmax.f32 %v443, 0.0
      %v447 = vmax.f32 %v444, 0.0
      %v448 = vld [vmem:[%s1 + $0x2] sm:$0x1]
      %v449 = vlaneseq
      %v450 = vshrl.u32 %v449, 7
      %v451 = vsub.s32 0, %v450
      %v452 = vrot.slane %v448, %v451
      %v453 = vmul.f32 %v445, %v452
      %v454 = vmul.f32 %v446, %v452
      %v455 = vmul.f32 %v447, %v452
      %v456 = vadd.f32 %v439, %v453
      %v457 = vadd.f32 %v440, %v454
      %v458 = vadd.f32 %v441, %v455
      %v459 = vld [vmem:[%s396 + $0x6] sm:$0xff]
      %v460 = vld [vmem:[%s396 + $0xe] sm:$0xff]
      %v461 = vld [vmem:[%s396 + $0x16] sm:$0x3f]
      %v462 = vmax.f32 %v459, 0.0
      %v463 = vmax.f32 %v460, 0.0
      %v464 = vmax.f32 %v461, 0.0
      %v465 = vld [vmem:[%s1 + $0x3] sm:$0x1]
      %v466 = vlaneseq
      %v467 = vshrl.u32 %v466, 7
      %v468 = vsub.s32 0, %v467
      %v469 = vrot.slane %v465, %v468
      %v470 = vmul.f32 %v462, %v469
      %v471 = vmul.f32 %v463, %v469
      %v472 = vmul.f32 %v464, %v469
      %v473 = vadd.f32 %v456, %v470
      %v474 = vadd.f32 %v457, %v471
      %v475 = vadd.f32 %v458, %v472
      %v476 = vld [vmem:[%s396 + $0x7] sm:$0xff]
      %v477 = vld [vmem:[%s396 + $0xf] sm:$0xff]
      %v478 = vld [vmem:[%s396 + $0x17] sm:$0x3f]
      %v479 = vmax.f32 %v476, 0.0
      %v480 = vmax.f32 %v477, 0.0
      %v481 = vmax.f32 %v478, 0.0
      %v482 = vld [vmem:[%s1 + $0x4] sm:$0x1]
      %v483 = vlaneseq
      %v484 = vshrl.u32 %v483, 7
      %v485 = vsub.s32 0, %v484
      %v486 = vrot.slane %v482, %v485
      %v487 = vmul.f32 %v479, %v486
      %v488 = vmul.f32 %v480, %v486
      %v489 = vmul.f32 %v481, %v486
      %v490 = vadd.f32 %v473, %v487
      %v491 = vadd.f32 %v474, %v488
      %v492 = vadd.f32 %v475, %v489
      %v493 = vld [vmem:[%s396 + $0x10] sm:$0xff]
      %v494 = vld [vmem:[%s396 + $0x18] sm:$0x3f]
      %v495 = vmax.f32 %v493, 0.0
      %v496 = vmax.f32 %v494, 0.0
      %v497 = vld [vmem:[%s1 + $0x5] sm:$0x1]
      %v498 = vlaneseq
      %v499 = vshrl.u32 %v498, 7
      %v500 = vsub.s32 0, %v499
      %v501 = vrot.slane %v497, %v500
      %v502 = vmul.f32 %v412, %v501
      %v503 = vmul.f32 %v495, %v501
      %v504 = vmul.f32 %v496, %v501
      %v505 = vadd.f32 %v490, %v502
      %v506 = vadd.f32 %v491, %v503
      %v507 = vadd.f32 %v492, %v504
      %v508 = vld [vmem:[%s396 + $0xc] sm:$0xff]
      %v509 = vld [vmem:[%s396 + $0x14] sm:$0xff]
      %v510 = vld [vmem:[%s396 + $0x1c] sm:$0x3f]
      %v511 = vmax.f32 %v508, 0.0
      %v512 = vmax.f32 %v509, 0.0
      %v513 = vmax.f32 %v510, 0.0
      %v514 = vld [vmem:[%s1 + $0x6] sm:$0x1]
      %v515 = vlaneseq
      %v516 = vshrl.u32 %v515, 7
      %v517 = vsub.s32 0, %v516
      %v518 = vrot.slane %v514, %v517
      %v519 = vmul.f32 %v511, %v518
      %v520 = vmul.f32 %v512, %v518
      %v521 = vmul.f32 %v513, %v518
      %v522 = vadd.f32 %v505, %v519
      %v523 = vadd.f32 %v506, %v520
      %v524 = vadd.f32 %v507, %v521
      %v525 = vld [vmem:[%s396 + $0xd] sm:$0xff]
      %v526 = vld [vmem:[%s396 + $0x15] sm:$0xff]
      %v527 = vld [vmem:[%s396 + $0x1d] sm:$0x3f]
      %v528 = vmax.f32 %v525, 0.0
      %v529 = vmax.f32 %v526, 0.0
      %v530 = vmax.f32 %v527, 0.0
      %v531 = vld [vmem:[%s1 + $0x7] sm:$0x1]
      %v532 = vlaneseq
      %v533 = vshrl.u32 %v532, 7
      %v534 = vsub.s32 0, %v533
      %v535 = vrot.slane %v531, %v534
      %v536 = vmul.f32 %v528, %v535
      %v537 = vmul.f32 %v529, %v535
      %v538 = vmul.f32 %v530, %v535
      %v539 = vadd.f32 %v522, %v536
      %v540 = vadd.f32 %v523, %v537
      %v541 = vadd.f32 %v524, %v538
      %v542 = vld [vmem:[%s396 + $0x16] sm:$0xff]
      %v543 = vld [vmem:[%s396 + $0x1e] sm:$0x3f]
      %v544 = vmax.f32 %v542, 0.0
      %v545 = vmax.f32 %v543, 0.0
      %v546 = vld [vmem:[%s1 + $0x8] sm:$0x1]
      %v547 = vlaneseq
      %v548 = vshrl.u32 %v547, 7
      %v549 = vsub.s32 0, %v548
      %v550 = vrot.slane %v546, %v549
      %v551 = vmul.f32 %v463, %v550
      %v552 = vmul.f32 %v544, %v550
      %v553 = vmul.f32 %v545, %v550
      %v554 = vadd.f32 %v539, %v551
      %v555 = vadd.f32 %v540, %v552
      %v556 = vadd.f32 %v541, %v553
      %v557 = vpack.c.bf16 %v555, %v554
      %v558 = vpack.c.bf16 %v556, %v556
      %v559 = vld [vmem:[%s2] sm:$0xf]
      %v560 = vld [vmem:[%s2 + $0x4] sm:$0xf]
      %v563 = vunpack.c.l.b16 %v559
      %v564 = vunpack.c.l.b16 %v560
      %v565 = vpack.c.b16 %v564, %v563
      %vm567 = vcmask 130048
      %v569 = vsel %vm567, %v557, 0
      %v572 = vsel %vm567, %v558, 0
      %574 = vmatprep.subr.bf16.mxu0 0
      %575 = vmatpush1.bf16.msra.mxu0 0
      %576 = vmatprep.subr.bf16.mxu0 0
      %577 = vmatpush1.bf16.msra.mxu0 0
      %578 = vmatprep.subr.bf16.mxu0 0
      %579 = vmatpush1.bf16.msra.mxu0 0
      %580 = vmatprep.subr.bf16.mxu0 0
      %581 = vmatpush1.bf16.msra.mxu0 0
      %582 = vmatprep.subr.bf16.mxu0 0
      %583 = vmatpush1.bf16.msra.mxu0 0
      %584 = vmatprep.subr.bf16.mxu0 0
      %585 = vmatpush1.bf16.msra.mxu0 0
      %586 = vmatprep.subr.bf16.mxu0 0
      %587 = vmatpush1.bf16.msra.mxu0 0
      %588 = vmatprep.subr.bf16.mxu0 0
      %589 = vmatpush1.bf16.msra.mxu0 %v565
      %590 = vmatprep.subr.bf16.mxu0 0
      %591 = vmatpush2.bf16.msra.mxu0 0
      %592 = vmatprep.subr.bf16.mxu0 0
      %593 = vmatpush2.bf16.msra.mxu0 0
      %594 = vmatprep.subr.bf16.mxu0 0
      %595 = vmatpush2.bf16.msra.mxu0 0
      %596 = vmatprep.subr.bf16.mxu0 0
      %597 = vmatpush2.bf16.msra.mxu0 0
      %598 = vmatprep.subr.bf16.mxu0 0
      %599 = vmatpush2.bf16.msra.mxu0 0
      %600 = vmatprep.subr.bf16.mxu0 0
      %601 = vmatpush2.bf16.msra.mxu0 0
      %602 = vmatprep.subr.bf16.mxu0 0
      %603 = vmatpush2.bf16.msra.mxu0 0
      %604 = vmatprep.subr.bf16.mxu0 0
      %605 = vmatpush2.bf16.msra.mxu0 0
      %606 = vmatprep.mubr.bf16.mxu0 0
      %607 = vmatmul.mubr.bf16.gmra.mxu0 %v569
      %v608 = vpop.f32.mrf.mxu0
      %v609 = vadd.f32 0.0, %v608
      %v610 = vpop.f32.mrf.mxu0
      %v611 = vpop.f32.mrf.mxu0
      %v612 = vadd.f32 0.0, %v611
      %v613 = vpop.f32.mrf.mxu0
      %614 = vmatprep.mubr.bf16.mxu0 0
      %615 = vmatmul.mubr.bf16.gmra.mxu0 %v572
      %v616 = vpop.f32.mrf.mxu0
      %v617 = vadd.f32 0.0, %v616
      %v618 = vpop.f32.mrf.mxu0
      %v619 = vpop.f32.mrf.mxu0
      %v620 = vpop.f32.mrf.mxu0
      %621 = vdwg.mxu0
      %v622 = vld [vmem:[%s3] sm:$0x1]
      %v624 = vlaneseq
      %v625 = vshrl.u32 %v624, 7
      %v626 = vsub.s32 0, %v625
      %v627 = vrot.slane %v622, %v626
      %v629 = vmul.f32 %v609, %v627
      %v630 = vmul.f32 %v612, %v627
      %v631 = vmul.f32 %v617, %v627
      %v632 = vld [vmem:[%s4] sm:$0x1]
      %v634 = vlaneseq
      %v635 = vshrl.u32 %v634, 7
      %v636 = vsub.s32 0, %v635
      %v637 = vrot.slane %v632, %v636
      %v639 = vadd.f32 %v629, %v637
      %v640 = vadd.f32 %v630, %v637
      %v641 = vadd.f32 %v631, %v637
      %v642 = vld [vmem:[%s9] sm:$0xff]
      %v643 = vld [vmem:[%s9 + $0x8] sm:$0xff]
      %v644 = vld [vmem:[%s9 + $0x10] sm:$0x3f]
      %646 = vset.pattern.permute.xlu0 0
      %647 = vperm.xlu0 %646, %v642
      %v648 = vpop.permute.xlu0 %647
      %651 = vset.pattern.permute.xlu0 0
      %652 = vperm.xlu0 %651, %v643
      %v653 = vpop.permute.xlu0 %652
      %656 = vset.pattern.permute.xlu0 0
      %657 = vperm.xlu0 %656, %v644
      %v658 = vpop.permute.xlu0 %657
      %v660 = vmul.f32 %v639, %v648
      %v661 = vmul.f32 %v640, %v653
      %v662 = vmul.f32 %v641, %v658
      %663 = vst.msk [vmem:[#allocation2] sm:$0xff] %vm567, 0.0
      %664 = vst.msk [vmem:[#allocation2 + $0x8] sm:$0xff] %vm567, 0.0
      %665 = vst.msk [vmem:[#allocation2 + $0x10] sm:$0xff] %vm567, 0.0
      %666 = vst.msk [vmem:[#allocation2 + $0x18] sm:$0xff] %vm567, 0.0
      %vm667 = vcmask 125952
      %668 = vst.msk [vmem:[#allocation2 + $0x20] sm:$0xf] %vm667, 0.0
      %669 = vst.msk [vmem:[#allocation2 + $0x7] sm:$0xff] %vm567, %v660
      %670 = vst.msk [vmem:[#allocation2 + $0xf] sm:$0xff] %vm567, %v661
      %vm671 = vcmask 128000
      %672 = vst.msk [vmem:[#allocation2 + $0x17] sm:$0x3f] %vm671, %v662
      %v673 = vld [vmem:[#allocation2] sm:$0xff]
      %v674 = vld [vmem:[#allocation2 + $0x8] sm:$0xff]
      %v675 = vld [vmem:[#allocation2 + $0x10] sm:$0x3f]
      %v676 = vmax.f32 %v673, 0.0
      %v677 = vmax.f32 %v674, 0.0
      %v678 = vmax.f32 %v675, 0.0
      %v679 = vld [vmem:[%s5] sm:$0x1]
      %v680 = vlaneseq
      %v681 = vshrl.u32 %v680, 7
      %v682 = vsub.s32 0, %v681
      %v683 = vrot.slane %v679, %v682
      %v684 = vmul.f32 %v676, %v683
      %v685 = vmul.f32 %v677, %v683
      %v686 = vmul.f32 %v678, %v683
      %v687 = vadd.f32 %v684, 0.0
      %v688 = vadd.f32 %v685, 0.0
      %v689 = vadd.f32 %v686, 0.0
      %v690 = vld [vmem:[#allocation2 + $0x1] sm:$0xff]
      %v691 = vld [vmem:[#allocation2 + $0x9] sm:$0xff]
      %v692 = vld [vmem:[#allocation2 + $0x11] sm:$0x3f]
      %v693 = vmax.f32 %v690, 0.0
      %v694 = vmax.f32 %v691, 0.0
      %v695 = vmax.f32 %v692, 0.0
      %v696 = vld [vmem:[%s5 + $0x1] sm:$0x1]
      %v697 = vlaneseq
      %v698 = vshrl.u32 %v697, 7
      %v699 = vsub.s32 0, %v698
      %v700 = vrot.slane %v696, %v699
      %v701 = vmul.f32 %v693, %v700
      %v702 = vmul.f32 %v694, %v700
      %v703 = vmul.f32 %v695, %v700
      %v704 = vadd.f32 %v687, %v701
      %v705 = vadd.f32 %v688, %v702
      %v706 = vadd.f32 %v689, %v703
      %v707 = vld [vmem:[#allocation2 + $0x2] sm:$0xff]
      %v708 = vld [vmem:[#allocation2 + $0xa] sm:$0xff]
      %v709 = vld [vmem:[#allocation2 + $0x12] sm:$0x3f]
      %v710 = vmax.f32 %v707, 0.0
      %v711 = vmax.f32 %v708, 0.0
      %v712 = vmax.f32 %v709, 0.0
      %v713 = vld [vmem:[%s5 + $0x2] sm:$0x1]
      %v714 = vlaneseq
      %v715 = vshrl.u32 %v714, 7
      %v716 = vsub.s32 0, %v715
      %v717 = vrot.slane %v713, %v716
      %v718 = vmul.f32 %v710, %v717
      %v719 = vmul.f32 %v711, %v717
      %v720 = vmul.f32 %v712, %v717
      %v721 = vadd.f32 %v704, %v718
      %v722 = vadd.f32 %v705, %v719
      %v723 = vadd.f32 %v706, %v720
      %v724 = vld [vmem:[#allocation2 + $0x6] sm:$0xff]
      %v725 = vld [vmem:[#allocation2 + $0xe] sm:$0xff]
      %v726 = vld [vmem:[#allocation2 + $0x16] sm:$0x3f]
      %v727 = vmax.f32 %v724, 0.0
      %v728 = vmax.f32 %v725, 0.0
      %v729 = vmax.f32 %v726, 0.0
      %v730 = vld [vmem:[%s5 + $0x3] sm:$0x1]
      %v731 = vlaneseq
      %v732 = vshrl.u32 %v731, 7
      %v733 = vsub.s32 0, %v732
      %v734 = vrot.slane %v730, %v733
      %v735 = vmul.f32 %v727, %v734
      %v736 = vmul.f32 %v728, %v734
      %v737 = vmul.f32 %v729, %v734
      %v738 = vadd.f32 %v721, %v735
      %v739 = vadd.f32 %v722, %v736
      %v740 = vadd.f32 %v723, %v737
      %v741 = vld [vmem:[#allocation2 + $0x7] sm:$0xff]
      %v742 = vld [vmem:[#allocation2 + $0xf] sm:$0xff]
      %v743 = vld [vmem:[#allocation2 + $0x17] sm:$0x3f]
      %v744 = vmax.f32 %v741, 0.0
      %v745 = vmax.f32 %v742, 0.0
      %v746 = vmax.f32 %v743, 0.0
      %v747 = vld [vmem:[%s5 + $0x4] sm:$0x1]
      %v748 = vlaneseq
      %v749 = vshrl.u32 %v748, 7
      %v750 = vsub.s32 0, %v749
      %v751 = vrot.slane %v747, %v750
      %v752 = vmul.f32 %v744, %v751
      %v753 = vmul.f32 %v745, %v751
      %v754 = vmul.f32 %v746, %v751
      %v755 = vadd.f32 %v738, %v752
      %v756 = vadd.f32 %v739, %v753
      %v757 = vadd.f32 %v740, %v754
      %v758 = vld [vmem:[#allocation2 + $0x10] sm:$0xff]
      %v759 = vld [vmem:[#allocation2 + $0x18] sm:$0x3f]
      %v760 = vmax.f32 %v758, 0.0
      %v761 = vmax.f32 %v759, 0.0
      %v762 = vld [vmem:[%s5 + $0x5] sm:$0x1]
      %v763 = vlaneseq
      %v764 = vshrl.u32 %v763, 7
      %v765 = vsub.s32 0, %v764
      %v766 = vrot.slane %v762, %v765
      %v767 = vmul.f32 %v677, %v766
      %v768 = vmul.f32 %v760, %v766
      %v769 = vmul.f32 %v761, %v766
      %v770 = vadd.f32 %v755, %v767
      %v771 = vadd.f32 %v756, %v768
      %v772 = vadd.f32 %v757, %v769
      %v773 = vld [vmem:[#allocation2 + $0xc] sm:$0xff]
      %v774 = vld [vmem:[#allocation2 + $0x14] sm:$0xff]
      %v775 = vld [vmem:[#allocation2 + $0x1c] sm:$0x3f]
      %v776 = vmax.f32 %v773, 0.0
      %v777 = vmax.f32 %v774, 0.0
      %v778 = vmax.f32 %v775, 0.0
      %v779 = vld [vmem:[%s5 + $0x6] sm:$0x1]
      %v780 = vlaneseq
      %v781 = vshrl.u32 %v780, 7
      %v782 = vsub.s32 0, %v781
      %v783 = vrot.slane %v779, %v782
      %v784 = vmul.f32 %v776, %v783
      %v785 = vmul.f32 %v777, %v783
      %v786 = vmul.f32 %v778, %v783
      %v787 = vadd.f32 %v770, %v784
      %v788 = vadd.f32 %v771, %v785
      %v789 = vadd.f32 %v772, %v786
      %v790 = vld [vmem:[#allocation2 + $0xd] sm:$0xff]
      %v791 = vld [vmem:[#allocation2 + $0x15] sm:$0xff]
      %v792 = vld [vmem:[#allocation2 + $0x1d] sm:$0x3f]
      %v793 = vmax.f32 %v790, 0.0
      %v794 = vmax.f32 %v791, 0.0
      %v795 = vmax.f32 %v792, 0.0
      %v796 = vld [vmem:[%s5 + $0x7] sm:$0x1]
      %v797 = vlaneseq
      %v798 = vshrl.u32 %v797, 7
      %v799 = vsub.s32 0, %v798
      %v800 = vrot.slane %v796, %v799
      %v801 = vmul.f32 %v793, %v800
      %v802 = vmul.f32 %v794, %v800
      %v803 = vmul.f32 %v795, %v800
      %v804 = vadd.f32 %v787, %v801
      %v805 = vadd.f32 %v788, %v802
      %v806 = vadd.f32 %v789, %v803
      %v807 = vld [vmem:[#allocation2 + $0x16] sm:$0xff]
      %v808 = vld [vmem:[#allocation2 + $0x1e] sm:$0x3f]
      %v809 = vmax.f32 %v807, 0.0
      %v810 = vmax.f32 %v808, 0.0
      %v811 = vld [vmem:[%s5 + $0x8] sm:$0x1]
      %v812 = vlaneseq
      %v813 = vshrl.u32 %v812, 7
      %v814 = vsub.s32 0, %v813
      %v815 = vrot.slane %v811, %v814
      %v816 = vmul.f32 %v728, %v815
      %v817 = vmul.f32 %v809, %v815
      %v818 = vmul.f32 %v810, %v815
      %v819 = vadd.f32 %v804, %v816
      %v820 = vadd.f32 %v805, %v817
      %v821 = vadd.f32 %v806, %v818
      %v822 = vpack.c.bf16 %v820, %v819
      %v823 = vpack.c.bf16 %v821, %v821
      %v824 = vld [vmem:[%s6] sm:$0xf]
      %v825 = vld [vmem:[%s6 + $0x4] sm:$0xf]
      %v828 = vunpack.c.l.b16 %v824
      %v829 = vunpack.c.l.b16 %v825
      %v830 = vpack.c.b16 %v829, %v828
      %v833 = vsel %vm567, %v822, 0
      %v836 = vsel %vm567, %v823, 0
      %838 = vmatprep.subr.bf16.mxu0 0
      %839 = vmatpush1.bf16.msra.mxu0 0
      %840 = vmatprep.subr.bf16.mxu0 0
      %841 = vmatpush1.bf16.msra.mxu0 0
      %842 = vmatprep.subr.bf16.mxu0 0
      %843 = vmatpush1.bf16.msra.mxu0 0
      %844 = vmatprep.subr.bf16.mxu0 0
      %845 = vmatpush1.bf16.msra.mxu0 0
      %846 = vmatprep.subr.bf16.mxu0 0
      %847 = vmatpush1.bf16.msra.mxu0 0
      %848 = vmatprep.subr.bf16.mxu0 0
      %849 = vmatpush1.bf16.msra.mxu0 0
      %850 = vmatprep.subr.bf16.mxu0 0
      %851 = vmatpush1.bf16.msra.mxu0 0
      %852 = vmatprep.subr.bf16.mxu0 0
      %853 = vmatpush1.bf16.msra.mxu0 %v830
      %854 = vmatprep.subr.bf16.mxu0 0
      %855 = vmatpush2.bf16.msra.mxu0 0
      %856 = vmatprep.subr.bf16.mxu0 0
      %857 = vmatpush2.bf16.msra.mxu0 0
      %858 = vmatprep.subr.bf16.mxu0 0
      %859 = vmatpush2.bf16.msra.mxu0 0
      %860 = vmatprep.subr.bf16.mxu0 0
      %861 = vmatpush2.bf16.msra.mxu0 0
      %862 = vmatprep.subr.bf16.mxu0 0
      %863 = vmatpush2.bf16.msra.mxu0 0
      %864 = vmatprep.subr.bf16.mxu0 0
      %865 = vmatpush2.bf16.msra.mxu0 0
      %866 = vmatprep.subr.bf16.mxu0 0
      %867 = vmatpush2.bf16.msra.mxu0 0
      %868 = vmatprep.subr.bf16.mxu0 0
      %869 = vmatpush2.bf16.msra.mxu0 0
      %870 = vmatprep.mubr.bf16.mxu0 0
      %871 = vmatmul.mubr.bf16.gmra.mxu0 %v833
      %v872 = vpop.f32.mrf.mxu0
      %v873 = vadd.f32 0.0, %v872
      %v874 = vpop.f32.mrf.mxu0
      %v875 = vpop.f32.mrf.mxu0
      %v876 = vadd.f32 0.0, %v875
      %v877 = vpop.f32.mrf.mxu0
      %878 = vmatprep.mubr.bf16.mxu0 0
      %879 = vmatmul.mubr.bf16.gmra.mxu0 %v836
      %v880 = vpop.f32.mrf.mxu0
      %v881 = vadd.f32 0.0, %v880
      %v882 = vpop.f32.mrf.mxu0
      %v883 = vpop.f32.mrf.mxu0
      %v884 = vpop.f32.mrf.mxu0
      %885 = vdwg.mxu0
      %v886 = vld [vmem:[%s7] sm:$0x1]
      %v888 = vlaneseq
      %v889 = vshrl.u32 %v888, 7
      %v890 = vsub.s32 0, %v889
      %v891 = vrot.slane %v886, %v890
      %v893 = vmul.f32 %v873, %v891
      %v894 = vmul.f32 %v876, %v891
      %v895 = vmul.f32 %v881, %v891
      %v896 = vld [vmem:[%s8] sm:$0x1]
      %v898 = vlaneseq
      %v899 = vshrl.u32 %v898, 7
      %v900 = vsub.s32 0, %v899
      %v901 = vrot.slane %v896, %v900
      %v903 = vadd.f32 %v893, %v901
      %v904 = vadd.f32 %v894, %v901
      %v905 = vadd.f32 %v895, %v901
      %v906 = vld [vmem:[%s401] sm:$0xff]
      %v907 = vld [vmem:[%s401 + $0x8] sm:$0xff]
      %v908 = vld [vmem:[%s401 + $0x10] sm:$0x3f]
      %v909 = vadd.f32 %v903, %v906
      %v910 = vadd.f32 %v904, %v907
      %v911 = vadd.f32 %v905, %v908
      %912 = vst.msk [vmem:[%s406] sm:$0xff] %vm567, %v909
      %913 = vst.msk [vmem:[%s406 + $0x8] sm:$0xff] %vm567, %v910
      %914 = vst.msk [vmem:[%s406 + $0x10] sm:$0x3f] %vm671, %v911
      %p915 = scmp.lt.s32.totalorder %s22, 1
      %s916 = scalar_select %p915, %s22, 1
      %s917 = smul.addr %s916, 3
      %s918 = smul.addr %s917, 8
      %s919 = scalar_lea.vmem %s11, %s918
      // Predicated region
      $region65: #{_lambda_.24} parent=63 // pred_check
        %p920 = pneg %p281
      $region66: #{_lambda_.24} parent=63 // pred_check_branch
        %922 = sbr.rel (%p920) target = $region68
      $region67: #{_lambda_.24} parent=63 // pred_region
        _
      $region68: #{_lambda_.24} parent=63 // pred_fallthru
        _
    $region64: #{_lambda_.24} parent=5 // pred_fallthru
      _
    %p923 = scmp.le.s32.totalorder 2, %s17
    // Predicated region
    $region69: #{_lambda_.24} parent=5 // pred_check
      %p924 = pneg %p923
    $region70: #{_lambda_.24} parent=5 // pred_check_branch
      %926 = sbr.rel (%p924) target = $region72
    $region71: #{_lambda_.24} parent=5 // pred_region
      %s927 = ssub.s32 %s17, 2
      // Predicated region
      $region73: #{_lambda_.24} parent=71 // pred_check
        %p928 = pneg %p287
      $region74: #{_lambda_.24} parent=71 // pred_check_branch
        %930 = sbr.rel (%p928) target = $region76
      $region75: #{_lambda_.24} parent=71 // pred_region
        %p931 = scmp.lt.s32.totalorder %s23, 1
        %s932 = scalar_select %p931, %s23, 1
        %s933 = smul.addr %s932, 3
        %s934 = smul.addr %s933, 8
        %s935 = scalar_lea.vmem %s11, %s934
      $region76: #{_lambda_.24} parent=71 // pred_fallthru
        _
    $region72: #{_lambda_.24} parent=5 // pred_fallthru
      _
  $region6: #{_lambda_.24} parent=0 // loop_footer
    %s21 = sadd.s32 1, %s17
  $region7: #{_lambda_.24} parent=0 // loop_footer_branch
    %16 = sbr.rel target = $region3
  $region8: #{_lambda_.24} parent=0 // loop_exit
    _

</llo_original>
